<compile_context>
chip_gen: v7x
topology: tpu7x:2x2x1
jax: 0.10.0
libtpu: 0.0.40
codegen_flags: <defaults>
</compile_context>

<pallas_src>
import functools
import math

import jax
import jax.numpy as jnp
from jax.experimental import pallas as pl
from jax.experimental.pallas import tpu as pltpu

_NEG_INF = -1e6          # d2l masked_softmax fill value (matches the torch ref)

# Set to False automatically if this jax build rejects pipeline_mode/Buffered.
_BUFFERED_OK = [hasattr(pl, "Buffered")]


def _choose_q_tile(S, max_tile=256):
    """Largest query tile that divides S, is a multiple of 8 and <= max_tile.
    Falls back to the full S (always a legal block) if no such tile exists,
    so no padding / slicing is ever needed outside the kernel."""
    if S <= max_tile:
        return S
    for t in range(max_tile, 7, -8):
        if S % t == 0:
            return t
    return S


# ----------------------------------------------------------------------------
# In-kernel helpers
# ----------------------------------------------------------------------------
def _attention_heads(x_c, kv_c, wq_ref, wk_ref, wv_ref, wo_ref, vlen_ref,
                     cat_ref, *, num_heads):
    """Multi-head attention for one (batch, query-tile) block.

    x_c : (tq, D) compute-dtype queries, kv_c : (T, D) key/value source.
    Head outputs are written into cat_ref (tq, D) so W_o runs as a single
    full-D MXU contraction. Returns the (tq, D) f32 attention output.
    """
    tq, D = x_c.shape
    T = kv_c.shape[0]
    hd = D // num_heads
    scale = 1.0 / math.sqrt(hd)
    cdt = x_c.dtype

    # Projections on the MXU with f32 accumulation; keep activations in the
    # compute dtype (bf16 on v6e/v7x) for the score / PV matmuls.
    q = jnp.dot(x_c, wq_ref[...], preferred_element_type=jnp.float32).astype(cdt)
    k = jnp.dot(kv_c, wk_ref[...], preferred_element_type=jnp.float32).astype(cdt)
    v = jnp.dot(kv_c, wv_ref[...], preferred_element_type=jnp.float32).astype(cdt)

    if vlen_ref is not None:
        col = jax.lax.broadcasted_iota(jnp.int32, (tq, T), 1)
        mask = col < vlen_ref[...]              # (tq, T) via (tq, 1) broadcast

    # TODO(synk): for long sequences switch to a KV-tile grid axis with online
    # softmax (flash pattern); at decoder-block sizes the (tq, T) scores fit.
    for h in range(num_heads):
        sl = slice(h * hd, (h + 1) * hd)
        scores = jax.lax.dot_general(
            q[:, sl], k[:, sl],
            dimension_numbers=(((1,), (1,)), ((), ())),
            preferred_element_type=jnp.float32) * scale
        if vlen_ref is not None:
            scores = jnp.where(mask, scores, _NEG_INF)
        scores = scores - jnp.max(scores, axis=-1, keepdims=True)
        p = jnp.exp(scores)
        denom = jnp.sum(p, axis=-1, keepdims=True)
        p = p * pl.reciprocal(denom, approx=True)       # divide on the EUP slot
        oh = jnp.dot(p.astype(cdt), v[:, sl],
                     preferred_element_type=jnp.float32)
        cat_ref[:, sl] = oh.astype(cat_ref.dtype)       # build concat(heads)

    # Single (tq, D) @ (D, D) contraction for W_o — feeds the wide MXU instead
    # of num_heads partial matmuls with contraction = head_dim.
    return jnp.dot(cat_ref[...], wo_ref[...], preferred_element_type=jnp.float32)


def _add_norm(y32, x32, gamma_ref, beta_ref, eps):
    """AddNorm in f32 (dropout == identity)."""
    z = y32 + x32
    mean = jnp.mean(z, axis=-1, keepdims=True)
    zc = z - mean
    var = jnp.mean(zc * zc, axis=-1, keepdims=True)
    inv = jax.lax.rsqrt(var + eps)
    return zc * inv * gamma_ref[...] + beta_ref[...]


def _decoder_block_kernel(*refs, num_heads, eps, mask_self, mask_cross):
    it = iter(refs)
    x_ref = next(it)
    kv_ref = next(it)
    enc_ref = next(it)
    vself_ref = next(it) if mask_self else None
    vcross_ref = next(it) if mask_cross else None
    (wq1, wk1, wv1, wo1, g1, be1,
     wq2, wk2, wv2, wo2, g2, be2,
     w1, b1, w2, b2, g3, be3,
     o_ref, cat_ref) = (next(it) for _ in range(20))

    x = x_ref[...]
    cdt = x.dtype
    x32 = x.astype(jnp.float32)

    # 1) masked multi-head self-attention + AddNorm
    a1 = _attention_heads(x, kv_ref[...], wq1, wk1, wv1, wo1, vself_ref,
                          cat_ref, num_heads=num_heads)
    y32 = _add_norm(a1, x32, g1, be1, eps)
    y = y32.astype(cdt)

    # 2) encoder-decoder cross attention + AddNorm
    a2 = _attention_heads(y, enc_ref[...], wq2, wk2, wv2, wo2, vcross_ref,
                          cat_ref, num_heads=num_heads)
    z32 = _add_norm(a2, y32, g2, be2, eps)
    z = z32.astype(cdt)

    # 3) position-wise FFN + AddNorm
    h = jnp.dot(z, w1[...], preferred_element_type=jnp.float32) + b1[...]
    h = jnp.maximum(h, 0.0).astype(cdt)                       # ReLU on the VPU
    f = jnp.dot(h, w2[...], preferred_element_type=jnp.float32) + b2[...]
    out32 = _add_norm(f, z32, g3, be3, eps)
    o_ref[...] = out32.astype(o_ref.dtype)


# ----------------------------------------------------------------------------
# Wrapper around the fused pallas_call
# ----------------------------------------------------------------------------
def _pallas_decoder_block(X, key_values, enc_outputs, vlen_self, vlen_cross,
                          params, *, num_heads, eps, compute_dtype,
                          q_tile=256, use_buffered=True):
    B, S, D = X.shape
    T = key_values.shape[1]
    T_enc = enc_outputs.shape[1]
    H = params["ffn"]["w1"].shape[1]
    assert D % num_heads == 0
    assert params["ffn"]["w2"].shape == (H, D)

    tq = _choose_q_tile(S, q_tile)
    nq = S // tq

    cdt = jnp.dtype(compute_dtype)
    f32 = jnp.float32
    cast_c = lambda a: a.astype(cdt)

    mask_self = vlen_self is not None
    mask_cross = vlen_cross is not None

    def _const_spec(shape):
        ndim = len(shape)
        imap = lambda b, qi, _n=ndim: (0,) * _n
        if use_buffered:
            # Grid-invariant operand: single-buffer it (no pipelining benefit,
            # halves its resident VMEM footprint).
            return pl.BlockSpec(shape, imap, pipeline_mode=pl.Buffered(1))
        return pl.BlockSpec(shape, imap)

    # Operands + specs kept in one list so ordering always matches the kernel.
    operands = [
        (cast_c(X),
         pl.BlockSpec((None, tq, D), lambda b, qi: (b, qi, 0))),
        (cast_c(key_values),
         pl.BlockSpec((None, T, D), lambda b, qi: (b, 0, 0))),
        (cast_c(enc_outputs),
         pl.BlockSpec((None, T_enc, D), lambda b, qi: (b, 0, 0))),
    ]
    if mask_self:
        operands.append((vlen_self.astype(jnp.int32).reshape(B, S, 1),
                         pl.BlockSpec((None, tq, 1), lambda b, qi: (b, qi, 0))))
    if mask_cross:
        operands.append((vlen_cross.astype(jnp.int32).reshape(B, S, 1),
                         pl.BlockSpec((None, tq, 1), lambda b, qi: (b, qi, 0))))

    a1, a2, f = params["attn1"], params["attn2"], params["ffn"]
    ln1, ln2, ln3 = params["ln1"], params["ln2"], params["ln3"]
    weight_like = [
        (cast_c(a1["wq"]), (D, D)), (cast_c(a1["wk"]), (D, D)),
        (cast_c(a1["wv"]), (D, D)), (cast_c(a1["wo"]), (D, D)),
        (ln1["gamma"].astype(f32).reshape(1, D), (1, D)),
        (ln1["beta"].astype(f32).reshape(1, D), (1, D)),
        (cast_c(a2["wq"]), (D, D)), (cast_c(a2["wk"]), (D, D)),
        (cast_c(a2["wv"]), (D, D)), (cast_c(a2["wo"]), (D, D)),
        (ln2["gamma"].astype(f32).reshape(1, D), (1, D)),
        (ln2["beta"].astype(f32).reshape(1, D), (1, D)),
        (cast_c(f["w1"]), (D, H)),
        (f["b1"].astype(f32).reshape(1, H), (1, H)),
        (cast_c(f["w2"]), (H, D)),
        (f["b2"].astype(f32).reshape(1, D), (1, D)),
        (ln3["gamma"].astype(f32).reshape(1, D), (1, D)),
        (ln3["beta"].astype(f32).reshape(1, D), (1, D)),
    ]
    for arr, shape in weight_like:
        operands.append((arr, _const_spec(shape)))

    args = [a for a, _ in operands]
    in_specs = [s for _, s in operands]

    # ---- VMEM budget & compiler params --------------------------------------
    cb = cdt.itemsize
    w_buf = 1 if use_buffered else 2
    weight_bytes = w_buf * (cb * (8 * D * D + D * H + H * D) + 4 * (7 * D + H))
    act_bytes = 2 * cb * D * (tq + T + T_enc) + 2 * X.dtype.itemsize * tq * D
    vlen_bytes = 2 * 4 * tq * (int(mask_self) + int(mask_cross))
    scratch_bytes = cb * tq * D
    # generous bound on live temporaries (q/k/v, scores, ffn hidden, f32 copies)
    work_bytes = 4 * ((tq + 2 * max(T, T_enc)) * D + tq * max(T, T_enc)
                      + tq * H + 6 * tq * D)
    est = weight_bytes + act_bytes + vlen_bytes + scratch_bytes + work_bytes
    assert est < 48 * 1024 * 1024, (
        "decoder block working set (~%d MiB) would not fit v7x VMEM; tile the "
        "KV / FFN-hidden dimensions before scaling these shapes up" % (est >> 20))
    vmem_limit = int(min(max(2 * est + (4 << 20), 16 << 20), 64 << 20))

    flops = 2 * B * (
        S * D * D + 2 * T * D * D + 2 * S * T * D + S * D * D            # self
        + S * D * D + 2 * T_enc * D * D + 2 * S * T_enc * D + S * D * D  # cross
        + 2 * S * D * H)                                                 # FFN
    transcendentals = B * S * (T + T_enc)
    bytes_accessed = int(cb * (B * S * D + B * T * D + B * T_enc * D
                               + 8 * D * D + 2 * D * H)
                         + X.dtype.itemsize * B * S * D)

    kernel = functools.partial(_decoder_block_kernel, num_heads=num_heads,
                               eps=eps, mask_self=mask_self,
                               mask_cross=mask_cross)
    return pl.pallas_call(
        kernel,
        out_shape=jax.ShapeDtypeStruct((B, S, D), X.dtype),
        grid_spec=pltpu.PrefetchScalarGridSpec(
            num_scalar_prefetch=0,
            grid=(B, nq),                      # batch x query tiles
            in_specs=in_specs,
            out_specs=pl.BlockSpec((None, tq, D), lambda b, qi: (b, qi, 0)),
            scratch_shapes=[pltpu.VMEM((tq, D), cdt)],   # concat(head outputs)
        ),
        compiler_params=pltpu.CompilerParams(
            dimension_semantics=("parallel", "parallel"),
            vmem_limit_bytes=vmem_limit),
        cost_estimate=pl.CostEstimate(flops=int(flops),
                                      transcendentals=int(transcendentals),
                                      bytes_accessed=bytes_accessed),
    )(*args)


# ----------------------------------------------------------------------------
# DecoderBlock.forward
# ----------------------------------------------------------------------------
def decoder_block_forward(params, X, state, i, *, num_heads, training=False,
                          compute_dtype=jnp.float32, eps=1e-5):
    """state = (enc_outputs, enc_valid_length_or_None, list_of_cached_kv)."""
    enc_outputs, enc_valid_len, kv_cache = state
    if kv_cache[i] is None:
        key_values = X
    else:
        key_values = jnp.concatenate([kv_cache[i], X], axis=1)
    kv_cache = list(kv_cache)
    kv_cache[i] = key_values

    B, S, _ = X.shape

    if training:
        # torch: valid_length = tile(arange(1, S+1), (B, 1)) — causal mask.
        # (The reference applies this even if a KV cache exists; we match.)
        vlen_self = jnp.broadcast_to(
            jnp.arange(1, S + 1, dtype=jnp.int32)[None, :], (B, S))
    else:
        vlen_self = None          # eval path: no self-attention mask at all

    if enc_valid_len is None:
        vlen_cross = None
    elif enc_valid_len.ndim == 1:
        vlen_cross = jnp.broadcast_to(
            enc_valid_len.astype(jnp.int32)[:, None], (B, S))
    else:
        vlen_cross = enc_valid_len.astype(jnp.int32)

    def run(use_buffered):
        return _pallas_decoder_block(
            X, key_values, enc_outputs, vlen_self, vlen_cross, params,
            num_heads=num_heads, eps=eps, compute_dtype=compute_dtype,
            use_buffered=use_buffered)

    if _BUFFERED_OK[0]:
        try:
            out = run(True)
        except Exception:
            # Older jax without single-buffered pipeline_mode support: retry
            # with the default double-buffered weight blocks (correct, just
            # more VMEM).
            _BUFFERED_OK[0] = False
            out = run(False)
    else:
        out = run(False)
    return out, (enc_outputs, enc_valid_len, kv_cache)


def init_decoder_block_params(key, embed, ffn_hidden):
    ks = jax.random.split(key, 12)

    def lin(k, fan_in, fan_out):
        bound = 1.0 / math.sqrt(fan_in)
        return jax.random.uniform(k, (fan_in, fan_out), jnp.float32, -bound, bound)

    def bias(k, fan_in, n):
        bound = 1.0 / math.sqrt(fan_in)
        return jax.random.uniform(k, (n,), jnp.float32, -bound, bound)

    ln = lambda: {"gamma": jnp.ones((embed,), jnp.float32),
                  "beta": jnp.zeros((embed,), jnp.float32)}
    return {
        "attn1": {"wq": lin(ks[0], embed, embed), "wk": lin(ks[1], embed, embed),
                  "wv": lin(ks[2], embed, embed), "wo": lin(ks[3], embed, embed)},
        "ln1": ln(),
        "attn2": {"wq": lin(ks[4], embed, embed), "wk": lin(ks[5], embed, embed),
                  "wv": lin(ks[6], embed, embed), "wo": lin(ks[7], embed, embed)},
        "ln2": ln(),
        "ffn": {"w1": lin(ks[8], embed, ffn_hidden),
                "b1": bias(ks[9], embed, ffn_hidden),
                "w2": lin(ks[10], ffn_hidden, embed),
                "b2": bias(ks[11], ffn_hidden, embed)},
        "ln3": ln(),
    }


# ----------------------------------------------------------------------------
# Pure-JAX reference for correctness checking.
# ----------------------------------------------------------------------------
def _ref_layernorm(x, gamma, beta, eps=1e-5):
    m = jnp.mean(x, axis=-1, keepdims=True)
    v = jnp.mean((x - m) ** 2, axis=-1, keepdims=True)
    return (x - m) / jnp.sqrt(v + eps) * gamma + beta


def _ref_mha(xq, kv, vlen_rows, wq, wk, wv, wo, num_heads):
    B, S, D = xq.shape
    T = kv.shape[1]
    hd = D // num_heads
    q = (xq @ wq).reshape(B, S, num_heads, hd).transpose(0, 2, 1, 3)
    k = (kv @ wk).reshape(B, T, num_heads, hd).transpose(0, 2, 1, 3)
    v = (kv @ wv).reshape(B, T, num_heads, hd).transpose(0, 2, 1, 3)
    scores = jnp.einsum("bhsd,bhtd->bhst", q, k) / math.sqrt(hd)
    mask = jnp.arange(T)[None, None, None, :] < vlen_rows[:, None, :, None]
    scores = jnp.where(mask, scores, _NEG_INF)
    p = jax.nn.softmax(scores, axis=-1)
    o = jnp.einsum("bhst,bhtd->bhsd", p, v).transpose(0, 2, 1, 3).reshape(B, S, D)
    return o @ wo


def _ref_decoder_block(params, X, state, i, *, num_heads, training=False):
    enc_outputs, enc_valid_len, kv_cache = state
    key_values = X if kv_cache[i] is None else jnp.concatenate([kv_cache[i], X], 1)
    B, S, _ = X.shape
    T = key_values.shape[1]
    T_enc = enc_outputs.shape[1]
    if training:
        vlen_self = jnp.broadcast_to(
            jnp.arange(1, S + 1, dtype=jnp.int32)[None, :], (B, S))
    else:
        vlen_self = jnp.full((B, S), T, jnp.int32)
    a1 = params["attn1"]
    X2 = _ref_mha(X, key_values, vlen_self,
                  a1["wq"], a1["wk"], a1["wv"], a1["wo"], num_heads)
    Y = _ref_layernorm(X2 + X, params["ln1"]["gamma"], params["ln1"]["beta"])
    if enc_valid_len is None:
        vlen_cross = jnp.full((B, S), T_enc, jnp.int32)
    elif enc_valid_len.ndim == 1:
        vlen_cross = jnp.broadcast_to(enc_valid_len.astype(jnp.int32)[:, None], (B, S))
    else:
        vlen_cross = enc_valid_len.astype(jnp.int32)
    a2 = params["attn2"]
    Y2 = _ref_mha(Y, enc_outputs, vlen_cross,
                  a2["wq"], a2["wk"], a2["wv"], a2["wo"], num_heads)
    Z = _ref_layernorm(Y2 + Y, params["ln2"]["gamma"], params["ln2"]["beta"])
    f = params["ffn"]
    ffn_out = jnp.maximum(Z @ f["w1"] + f["b1"], 0.0) @ f["w2"] + f["b2"]
    return _ref_layernorm(ffn_out + Z, params["ln3"]["gamma"], params["ln3"]["beta"])


if __name__ == "__main__":
    # Small shapes consistent with the module: embedding_size=32,
    # ffn_hidden_size=64, num_heads=4, batch=2, seq=8, encoder seq=8.
    B, S, S_ENC = 2, 8, 8
    D, FFN_H, NUM_HEADS = 32, 64, 4

    key = jax.random.PRNGKey(0)
    kx, kenc, kp = jax.random.split(key, 3)
    X = jax.random.normal(kx, (B, S, D), dtype=jnp.float32)
    enc_outputs = jax.random.normal(kenc, (B, S_ENC, D), dtype=jnp.float32)
    enc_valid_len = jnp.array([8, 6], dtype=jnp.int32)
    params = init_decoder_block_params(kp, D, FFN_H)

    # --- eval mode, f32 compute ------------------------------------------------
    state = (enc_outputs, enc_valid_len, [None])          # layer-0 KV cache empty
    out, new_state = decoder_block_forward(params, X, state, 0,
                                           num_heads=NUM_HEADS, training=False,
                                           compute_dtype=jnp.float32)
    out = jax.block_until_ready(out)
    ref = _ref_decoder_block(params, X, state, 0, num_heads=NUM_HEADS,
                             training=False)
    assert out.shape == (B, S, D)
    assert new_state[2][0].shape == (B, S, D)             # cache got key_values
    assert jnp.allclose(out, ref, atol=5e-3, rtol=5e-3), (
        "f32 eval mismatch: %g" % float(jnp.max(jnp.abs(out - ref))))

    # --- training mode (causal self-attention mask), f32 compute ---------------
    state_tr = (enc_outputs, enc_valid_len, [None])
    out_tr, _ = decoder_block_forward(params, X, state_tr, 0,
                                      num_heads=NUM_HEADS, training=True,
                                      compute_dtype=jnp.float32)
    out_tr = jax.block_until_ready(out_tr)
    ref_tr = _ref_decoder_block(params, X, state_tr, 0, num_heads=NUM_HEADS,
                                training=True)
    assert jnp.allclose(out_tr, ref_tr, atol=5e-3, rtol=5e-3), (
        "f32 train mismatch: %g" % float(jnp.max(jnp.abs(out_tr - ref_tr))))

    # --- eval mode, bf16 compute (fast MXU path on v6e/v7x), loose check -------
    state_bf = (enc_outputs, enc_valid_len, [None])
    out_bf, _ = decoder_block_forward(params, X, state_bf, 0,
                                      num_heads=NUM_HEADS, training=False,
                                      compute_dtype=jnp.bfloat16)
    out_bf = jax.block_until_ready(out_bf).astype(jnp.float32)
    err = jnp.abs(out_bf - ref)
    assert float(jnp.max(err)) < 0.5 and float(jnp.mean(err)) < 0.05, (
        "bf16 eval diverged: max=%g mean=%g"
        % (float(jnp.max(err)), float(jnp.mean(err))))

    print("KERNEL_OK")
</pallas_src>

<mosaic_0001>
module attributes {stable_mosaic.version = 11 : i64} {
  func.func @_decoder_block_kernel(%arg0: i32, %arg1: i32, %arg2: memref<1x8x32xf32, #tpu.memory_space<vmem>>, %arg3: memref<1x8x32xf32, #tpu.memory_space<vmem>>, %arg4: memref<1x8x32xf32, #tpu.memory_space<vmem>>, %arg5: memref<1x8x1xi32, #tpu.memory_space<vmem>>, %arg6: memref<32x32xf32, #tpu.memory_space<vmem>>, %arg7: memref<32x32xf32, #tpu.memory_space<vmem>>, %arg8: memref<32x32xf32, #tpu.memory_space<vmem>>, %arg9: memref<32x32xf32, #tpu.memory_space<vmem>>, %arg10: memref<1x32xf32, #tpu.memory_space<vmem>>, %arg11: memref<1x32xf32, #tpu.memory_space<vmem>>, %arg12: memref<32x32xf32, #tpu.memory_space<vmem>>, %arg13: memref<32x32xf32, #tpu.memory_space<vmem>>, %arg14: memref<32x32xf32, #tpu.memory_space<vmem>>, %arg15: memref<32x32xf32, #tpu.memory_space<vmem>>, %arg16: memref<1x32xf32, #tpu.memory_space<vmem>>, %arg17: memref<1x32xf32, #tpu.memory_space<vmem>>, %arg18: memref<32x64xf32, #tpu.memory_space<vmem>>, %arg19: memref<1x64xf32, #tpu.memory_space<vmem>>, %arg20: memref<64x32xf32, #tpu.memory_space<vmem>>, %arg21: memref<1x32xf32, #tpu.memory_space<vmem>>, %arg22: memref<1x32xf32, #tpu.memory_space<vmem>>, %arg23: memref<1x32xf32, #tpu.memory_space<vmem>>, %arg24: memref<1x8x32xf32, #tpu.memory_space<vmem>>, %arg25: memref<8x32xf32, #tpu.memory_space<vmem>>) attributes {dimension_semantics = [#tpu.dimension_semantics<parallel>, #tpu.dimension_semantics<parallel>], iteration_bounds = array<i64: 2, 1>, scalar_prefetch = 0 : i64, scratch_operands = 1 : i64, tpu.core_type = #tpu.core_type<tc>, window_params = [{transform_indices = @transform_0, window_bounds = array<i64: 1, 8, 32>}, {transform_indices = @transform_1, window_bounds = array<i64: 1, 8, 32>}, {transform_indices = @transform_2, window_bounds = array<i64: 1, 8, 32>}, {transform_indices = @transform_3, window_bounds = array<i64: 1, 8, 1>}, {pipeline_mode = #tpu.pipeline_mode<synchronous>, transform_indices = @transform_4, window_bounds = array<i64: 32, 32>}, {pipeline_mode = #tpu.pipeline_mode<synchronous>, transform_indices = @transform_5, window_bounds = array<i64: 32, 32>}, {pipeline_mode = #tpu.pipeline_mode<synchronous>, transform_indices = @transform_6, window_bounds = array<i64: 32, 32>}, {pipeline_mode = #tpu.pipeline_mode<synchronous>, transform_indices = @transform_7, window_bounds = array<i64: 32, 32>}, {pipeline_mode = #tpu.pipeline_mode<synchronous>, transform_indices = @transform_8, window_bounds = array<i64: 1, 32>}, {pipeline_mode = #tpu.pipeline_mode<synchronous>, transform_indices = @transform_9, window_bounds = array<i64: 1, 32>}, {pipeline_mode = #tpu.pipeline_mode<synchronous>, transform_indices = @transform_10, window_bounds = array<i64: 32, 32>}, {pipeline_mode = #tpu.pipeline_mode<synchronous>, transform_indices = @transform_11, window_bounds = array<i64: 32, 32>}, {pipeline_mode = #tpu.pipeline_mode<synchronous>, transform_indices = @transform_12, window_bounds = array<i64: 32, 32>}, {pipeline_mode = #tpu.pipeline_mode<synchronous>, transform_indices = @transform_13, window_bounds = array<i64: 32, 32>}, {pipeline_mode = #tpu.pipeline_mode<synchronous>, transform_indices = @transform_14, window_bounds = array<i64: 1, 32>}, {pipeline_mode = #tpu.pipeline_mode<synchronous>, transform_indices = @transform_15, window_bounds = array<i64: 1, 32>}, {pipeline_mode = #tpu.pipeline_mode<synchronous>, transform_indices = @transform_16, window_bounds = array<i64: 32, 64>}, {pipeline_mode = #tpu.pipeline_mode<synchronous>, transform_indices = @transform_17, window_bounds = array<i64: 1, 64>}, {pipeline_mode = #tpu.pipeline_mode<synchronous>, transform_indices = @transform_18, window_bounds = array<i64: 64, 32>}, {pipeline_mode = #tpu.pipeline_mode<synchronous>, transform_indices = @transform_19, window_bounds = array<i64: 1, 32>}, {pipeline_mode = #tpu.pipeline_mode<synchronous>, transform_indices = @transform_20, window_bounds = array<i64: 1, 32>}, {pipeline_mode = #tpu.pipeline_mode<synchronous>, transform_indices = @transform_21, window_bounds = array<i64: 1, 32>}, {transform_indices = @transform_22, window_bounds = array<i64: 1, 8, 32>}]} {
    %c0 = arith.constant 0 : index
    %c0_0 = arith.constant 0 : index
    %c0_1 = arith.constant 0 : index
    %0 = vector.load %arg2[%c0, %c0_0, %c0_1] : memref<1x8x32xf32, #tpu.memory_space<vmem>>, vector<1x8x32xf32>
    %1 = vector.shape_cast %0 : vector<1x8x32xf32> to vector<8x32xf32>
    %c0_2 = arith.constant 0 : index
    %c0_3 = arith.constant 0 : index
    %c0_4 = arith.constant 0 : index
    %2 = vector.load %arg3[%c0_2, %c0_3, %c0_4] : memref<1x8x32xf32, #tpu.memory_space<vmem>>, vector<1x8x32xf32>
    %3 = vector.shape_cast %2 : vector<1x8x32xf32> to vector<8x32xf32>
    %c0_5 = arith.constant 0 : index
    %c0_6 = arith.constant 0 : index
    %4 = vector.load %arg6[%c0_5, %c0_6] : memref<32x32xf32, #tpu.memory_space<vmem>>, vector<32x32xf32>
    %cst = arith.constant dense<0.000000e+00> : vector<8x32xf32>
    %5 = tpu.matmul %1, %4, %cst {dimension_numbers = #tpu.dot_dimension_numbers<[1], [0], [0], [1], [0, 0, 1, 1], [], []>} : vector<8x32xf32>, vector<32x32xf32>, vector<8x32xf32> -> vector<8x32xf32>
    %c0_7 = arith.constant 0 : index
    %c0_8 = arith.constant 0 : index
    %6 = vector.load %arg7[%c0_7, %c0_8] : memref<32x32xf32, #tpu.memory_space<vmem>>, vector<32x32xf32>
    %cst_9 = arith.constant dense<0.000000e+00> : vector<8x32xf32>
    %7 = tpu.matmul %3, %6, %cst_9 {dimension_numbers = #tpu.dot_dimension_numbers<[1], [0], [0], [1], [0, 0, 1, 1], [], []>} : vector<8x32xf32>, vector<32x32xf32>, vector<8x32xf32> -> vector<8x32xf32>
    %c0_10 = arith.constant 0 : index
    %c0_11 = arith.constant 0 : index
    %8 = vector.load %arg8[%c0_10, %c0_11] : memref<32x32xf32, #tpu.memory_space<vmem>>, vector<32x32xf32>
    %cst_12 = arith.constant dense<0.000000e+00> : vector<8x32xf32>
    %9 = tpu.matmul %3, %8, %cst_12 {dimension_numbers = #tpu.dot_dimension_numbers<[1], [0], [0], [1], [0, 0, 1, 1], [], []>} : vector<8x32xf32>, vector<32x32xf32>, vector<8x32xf32> -> vector<8x32xf32>
    %10 = vector.extract_strided_slice %5 {offsets = [0, 0], sizes = [8, 8], strides = [1, 1]} : vector<8x32xf32> to vector<8x8xf32>
    %11 = vector.extract_strided_slice %7 {offsets = [0, 0], sizes = [8, 8], strides = [1, 1]} : vector<8x32xf32> to vector<8x8xf32>
    %cst_13 = arith.constant dense<0.000000e+00> : vector<8x8xf32>
    %12 = tpu.matmul %10, %11, %cst_13 {dimension_numbers = #tpu.dot_dimension_numbers<[1], [1], [0], [0], [0, 0, 1, 0], [], []>} : vector<8x8xf32>, vector<8x8xf32>, vector<8x8xf32> -> vector<8x8xf32>
    %cst_14 = arith.constant 0.353553385 : f32
    %13 = vector.broadcast %cst_14 : f32 to vector<8x8xf32>
    %14 = arith.mulf %12, %13 : vector<8x8xf32>
    %cst_15 = arith.constant dense<0xFF800000> : vector<8xf32>
    %15 = vector.multi_reduction <maximumf>, %14, %cst_15 [1] : vector<8x8xf32> to vector<8xf32>
    %16 = vector.shape_cast %15 : vector<8xf32> to vector<8x1xf32>
    %17 = vector.broadcast %16 : vector<8x1xf32> to vector<8x8xf32>
    %18 = arith.subf %14, %17 : vector<8x8xf32>
    %19 = math.exp %18 : vector<8x8xf32>
    %cst_16 = arith.constant dense<0.000000e+00> : vector<8xf32>
    %20 = vector.multi_reduction <add>, %19, %cst_16 [1] : vector<8x8xf32> to vector<8xf32>
    %21 = vector.shape_cast %20 : vector<8xf32> to vector<8x1xf32>
    %22 = tpu.reciprocal %21 {approx = true} : vector<8x1xf32> -> vector<8x1xf32>
    %23 = vector.broadcast %22 : vector<8x1xf32> to vector<8x8xf32>
    %24 = arith.mulf %19, %23 : vector<8x8xf32>
    %25 = vector.extract_strided_slice %9 {offsets = [0, 0], sizes = [8, 8], strides = [1, 1]} : vector<8x32xf32> to vector<8x8xf32>
    %cst_17 = arith.constant dense<0.000000e+00> : vector<8x8xf32>
    %26 = tpu.matmul %24, %25, %cst_17 {dimension_numbers = #tpu.dot_dimension_numbers<[1], [0], [0], [1], [0, 0, 1, 1], [], []>} : vector<8x8xf32>, vector<8x8xf32>, vector<8x8xf32> -> vector<8x8xf32>
    %c0_18 = arith.constant 0 : index
    %c0_19 = arith.constant 0 : index
    %27 = vector.load %arg25[%c0_18, %c0_19] : memref<8x32xf32, #tpu.memory_space<vmem>>, vector<8x8xf32>
    tpu.vector_store %arg25[%c0_18, %c0_19], %26 {strides = array<i32>} : memref<8x32xf32, #tpu.memory_space<vmem>>, vector<8x8xf32>,
    %28 = vector.extract_strided_slice %5 {offsets = [0, 8], sizes = [8, 8], strides = [1, 1]} : vector<8x32xf32> to vector<8x8xf32>
    %29 = vector.extract_strided_slice %7 {offsets = [0, 8], sizes = [8, 8], strides = [1, 1]} : vector<8x32xf32> to vector<8x8xf32>
    %cst_20 = arith.constant dense<0.000000e+00> : vector<8x8xf32>
    %30 = tpu.matmul %28, %29, %cst_20 {dimension_numbers = #tpu.dot_dimension_numbers<[1], [1], [0], [0], [0, 0, 1, 0], [], []>} : vector<8x8xf32>, vector<8x8xf32>, vector<8x8xf32> -> vector<8x8xf32>
    %cst_21 = arith.constant 0.353553385 : f32
    %31 = vector.broadcast %cst_21 : f32 to vector<8x8xf32>
    %32 = arith.mulf %30, %31 : vector<8x8xf32>
    %cst_22 = arith.constant dense<0xFF800000> : vector<8xf32>
    %33 = vector.multi_reduction <maximumf>, %32, %cst_22 [1] : vector<8x8xf32> to vector<8xf32>
    %34 = vector.shape_cast %33 : vector<8xf32> to vector<8x1xf32>
    %35 = vector.broadcast %34 : vector<8x1xf32> to vector<8x8xf32>
    %36 = arith.subf %32, %35 : vector<8x8xf32>
    %37 = math.exp %36 : vector<8x8xf32>
    %cst_23 = arith.constant dense<0.000000e+00> : vector<8xf32>
    %38 = vector.multi_reduction <add>, %37, %cst_23 [1] : vector<8x8xf32> to vector<8xf32>
    %39 = vector.shape_cast %38 : vector<8xf32> to vector<8x1xf32>
    %40 = tpu.reciprocal %39 {approx = true} : vector<8x1xf32> -> vector<8x1xf32>
    %41 = vector.broadcast %40 : vector<8x1xf32> to vector<8x8xf32>
    %42 = arith.mulf %37, %41 : vector<8x8xf32>
    %43 = vector.extract_strided_slice %9 {offsets = [0, 8], sizes = [8, 8], strides = [1, 1]} : vector<8x32xf32> to vector<8x8xf32>
    %cst_24 = arith.constant dense<0.000000e+00> : vector<8x8xf32>
    %44 = tpu.matmul %42, %43, %cst_24 {dimension_numbers = #tpu.dot_dimension_numbers<[1], [0], [0], [1], [0, 0, 1, 1], [], []>} : vector<8x8xf32>, vector<8x8xf32>, vector<8x8xf32> -> vector<8x8xf32>
    %c0_25 = arith.constant 0 : index
    %c8 = arith.constant 8 : index
    %45 = vector.load %arg25[%c0_25, %c8] : memref<8x32xf32, #tpu.memory_space<vmem>>, vector<8x8xf32>
    tpu.vector_store %arg25[%c0_25, %c8], %44 {strides = array<i32>} : memref<8x32xf32, #tpu.memory_space<vmem>>, vector<8x8xf32>,
    %46 = vector.extract_strided_slice %5 {offsets = [0, 16], sizes = [8, 8], strides = [1, 1]} : vector<8x32xf32> to vector<8x8xf32>
    %47 = vector.extract_strided_slice %7 {offsets = [0, 16], sizes = [8, 8], strides = [1, 1]} : vector<8x32xf32> to vector<8x8xf32>
    %cst_26 = arith.constant dense<0.000000e+00> : vector<8x8xf32>
    %48 = tpu.matmul %46, %47, %cst_26 {dimension_numbers = #tpu.dot_dimension_numbers<[1], [1], [0], [0], [0, 0, 1, 0], [], []>} : vector<8x8xf32>, vector<8x8xf32>, vector<8x8xf32> -> vector<8x8xf32>
    %cst_27 = arith.constant 0.353553385 : f32
    %49 = vector.broadcast %cst_27 : f32 to vector<8x8xf32>
    %50 = arith.mulf %48, %49 : vector<8x8xf32>
    %cst_28 = arith.constant dense<0xFF800000> : vector<8xf32>
    %51 = vector.multi_reduction <maximumf>, %50, %cst_28 [1] : vector<8x8xf32> to vector<8xf32>
    %52 = vector.shape_cast %51 : vector<8xf32> to vector<8x1xf32>
    %53 = vector.broadcast %52 : vector<8x1xf32> to vector<8x8xf32>
    %54 = arith.subf %50, %53 : vector<8x8xf32>
    %55 = math.exp %54 : vector<8x8xf32>
    %cst_29 = arith.constant dense<0.000000e+00> : vector<8xf32>
    %56 = vector.multi_reduction <add>, %55, %cst_29 [1] : vector<8x8xf32> to vector<8xf32>
    %57 = vector.shape_cast %56 : vector<8xf32> to vector<8x1xf32>
    %58 = tpu.reciprocal %57 {approx = true} : vector<8x1xf32> -> vector<8x1xf32>
    %59 = vector.broadcast %58 : vector<8x1xf32> to vector<8x8xf32>
    %60 = arith.mulf %55, %59 : vector<8x8xf32>
    %61 = vector.extract_strided_slice %9 {offsets = [0, 16], sizes = [8, 8], strides = [1, 1]} : vector<8x32xf32> to vector<8x8xf32>
    %cst_30 = arith.constant dense<0.000000e+00> : vector<8x8xf32>
    %62 = tpu.matmul %60, %61, %cst_30 {dimension_numbers = #tpu.dot_dimension_numbers<[1], [0], [0], [1], [0, 0, 1, 1], [], []>} : vector<8x8xf32>, vector<8x8xf32>, vector<8x8xf32> -> vector<8x8xf32>
    %c0_31 = arith.constant 0 : index
    %c16 = arith.constant 16 : index
    %63 = vector.load %arg25[%c0_31, %c16] : memref<8x32xf32, #tpu.memory_space<vmem>>, vector<8x8xf32>
    tpu.vector_store %arg25[%c0_31, %c16], %62 {strides = array<i32>} : memref<8x32xf32, #tpu.memory_space<vmem>>, vector<8x8xf32>,
    %64 = vector.extract_strided_slice %5 {offsets = [0, 24], sizes = [8, 8], strides = [1, 1]} : vector<8x32xf32> to vector<8x8xf32>
    %65 = vector.extract_strided_slice %7 {offsets = [0, 24], sizes = [8, 8], strides = [1, 1]} : vector<8x32xf32> to vector<8x8xf32>
    %cst_32 = arith.constant dense<0.000000e+00> : vector<8x8xf32>
    %66 = tpu.matmul %64, %65, %cst_32 {dimension_numbers = #tpu.dot_dimension_numbers<[1], [1], [0], [0], [0, 0, 1, 0], [], []>} : vector<8x8xf32>, vector<8x8xf32>, vector<8x8xf32> -> vector<8x8xf32>
    %cst_33 = arith.constant 0.353553385 : f32
    %67 = vector.broadcast %cst_33 : f32 to vector<8x8xf32>
    %68 = arith.mulf %66, %67 : vector<8x8xf32>
    %cst_34 = arith.constant dense<0xFF800000> : vector<8xf32>
    %69 = vector.multi_reduction <maximumf>, %68, %cst_34 [1] : vector<8x8xf32> to vector<8xf32>
    %70 = vector.shape_cast %69 : vector<8xf32> to vector<8x1xf32>
    %71 = vector.broadcast %70 : vector<8x1xf32> to vector<8x8xf32>
    %72 = arith.subf %68, %71 : vector<8x8xf32>
    %73 = math.exp %72 : vector<8x8xf32>
    %cst_35 = arith.constant dense<0.000000e+00> : vector<8xf32>
    %74 = vector.multi_reduction <add>, %73, %cst_35 [1] : vector<8x8xf32> to vector<8xf32>
    %75 = vector.shape_cast %74 : vector<8xf32> to vector<8x1xf32>
    %76 = tpu.reciprocal %75 {approx = true} : vector<8x1xf32> -> vector<8x1xf32>
    %77 = vector.broadcast %76 : vector<8x1xf32> to vector<8x8xf32>
    %78 = arith.mulf %73, %77 : vector<8x8xf32>
    %79 = vector.extract_strided_slice %9 {offsets = [0, 24], sizes = [8, 8], strides = [1, 1]} : vector<8x32xf32> to vector<8x8xf32>
    %cst_36 = arith.constant dense<0.000000e+00> : vector<8x8xf32>
    %80 = tpu.matmul %78, %79, %cst_36 {dimension_numbers = #tpu.dot_dimension_numbers<[1], [0], [0], [1], [0, 0, 1, 1], [], []>} : vector<8x8xf32>, vector<8x8xf32>, vector<8x8xf32> -> vector<8x8xf32>
    %c0_37 = arith.constant 0 : index
    %c24 = arith.constant 24 : index
    %81 = vector.load %arg25[%c0_37, %c24] : memref<8x32xf32, #tpu.memory_space<vmem>>, vector<8x8xf32>
    tpu.vector_store %arg25[%c0_37, %c24], %80 {strides = array<i32>} : memref<8x32xf32, #tpu.memory_space<vmem>>, vector<8x8xf32>,
    %c0_38 = arith.constant 0 : index
    %c0_39 = arith.constant 0 : index
    %82 = vector.load %arg25[%c0_38, %c0_39] : memref<8x32xf32, #tpu.memory_space<vmem>>, vector<8x32xf32>
    %c0_40 = arith.constant 0 : index
    %c0_41 = arith.constant 0 : index
    %83 = vector.load %arg9[%c0_40, %c0_41] : memref<32x32xf32, #tpu.memory_space<vmem>>, vector<32x32xf32>
    %cst_42 = arith.constant dense<0.000000e+00> : vector<8x32xf32>
    %84 = tpu.matmul %82, %83, %cst_42 {dimension_numbers = #tpu.dot_dimension_numbers<[1], [0], [0], [1], [0, 0, 1, 1], [], []>} : vector<8x32xf32>, vector<32x32xf32>, vector<8x32xf32> -> vector<8x32xf32>
    %85 = arith.addf %84, %1 : vector<8x32xf32>
    %cst_43 = arith.constant dense<0.000000e+00> : vector<8xf32>
    %86 = vector.multi_reduction <add>, %85, %cst_43 [1] : vector<8x32xf32> to vector<8xf32>
    %87 = vector.shape_cast %86 : vector<8xf32> to vector<8x1xf32>
    %cst_44 = arith.constant 3.200000e+01 : f32
    %88 = vector.broadcast %cst_44 : f32 to vector<8x1xf32>
    %89 = arith.divf %87, %88 : vector<8x1xf32>
    %90 = vector.broadcast %89 : vector<8x1xf32> to vector<8x32xf32>
    %91 = arith.subf %85, %90 : vector<8x32xf32>
    %92 = arith.mulf %91, %91 : vector<8x32xf32>
    %cst_45 = arith.constant dense<0.000000e+00> : vector<8xf32>
    %93 = vector.multi_reduction <add>, %92, %cst_45 [1] : vector<8x32xf32> to vector<8xf32>
    %94 = vector.shape_cast %93 : vector<8xf32> to vector<8x1xf32>
    %cst_46 = arith.constant 3.200000e+01 : f32
    %95 = vector.broadcast %cst_46 : f32 to vector<8x1xf32>
    %96 = arith.divf %94, %95 : vector<8x1xf32>
    %cst_47 = arith.constant 9.99999974E-6 : f32
    %97 = vector.broadcast %cst_47 : f32 to vector<8x1xf32>
    %98 = arith.addf %96, %97 : vector<8x1xf32>
    %99 = math.rsqrt %98 : vector<8x1xf32>
    %100 = vector.broadcast %99 : vector<8x1xf32> to vector<8x32xf32>
    %101 = arith.mulf %91, %100 : vector<8x32xf32>
    %c0_48 = arith.constant 0 : index
    %c0_49 = arith.constant 0 : index
    %102 = vector.load %arg10[%c0_48, %c0_49] : memref<1x32xf32, #tpu.memory_space<vmem>>, vector<1x32xf32>
    %103 = vector.broadcast %102 : vector<1x32xf32> to vector<8x32xf32>
    %104 = arith.mulf %101, %103 : vector<8x32xf32>
    %c0_50 = arith.constant 0 : index
    %c0_51 = arith.constant 0 : index
    %105 = vector.load %arg11[%c0_50, %c0_51] : memref<1x32xf32, #tpu.memory_space<vmem>>, vector<1x32xf32>
    %106 = vector.broadcast %105 : vector<1x32xf32> to vector<8x32xf32>
    %107 = arith.addf %104, %106 : vector<8x32xf32>
    %c0_52 = arith.constant 0 : index
    %c0_53 = arith.constant 0 : index
    %c0_54 = arith.constant 0 : index
    %108 = vector.load %arg4[%c0_52, %c0_53, %c0_54] : memref<1x8x32xf32, #tpu.memory_space<vmem>>, vector<1x8x32xf32>
    %109 = vector.shape_cast %108 : vector<1x8x32xf32> to vector<8x32xf32>
    %c0_55 = arith.constant 0 : index
    %c0_56 = arith.constant 0 : index
    %110 = vector.load %arg12[%c0_55, %c0_56] : memref<32x32xf32, #tpu.memory_space<vmem>>, vector<32x32xf32>
    %cst_57 = arith.constant dense<0.000000e+00> : vector<8x32xf32>
    %111 = tpu.matmul %107, %110, %cst_57 {dimension_numbers = #tpu.dot_dimension_numbers<[1], [0], [0], [1], [0, 0, 1, 1], [], []>} : vector<8x32xf32>, vector<32x32xf32>, vector<8x32xf32> -> vector<8x32xf32>
    %c0_58 = arith.constant 0 : index
    %c0_59 = arith.constant 0 : index
    %112 = vector.load %arg13[%c0_58, %c0_59] : memref<32x32xf32, #tpu.memory_space<vmem>>, vector<32x32xf32>
    %cst_60 = arith.constant dense<0.000000e+00> : vector<8x32xf32>
    %113 = tpu.matmul %109, %112, %cst_60 {dimension_numbers = #tpu.dot_dimension_numbers<[1], [0], [0], [1], [0, 0, 1, 1], [], []>} : vector<8x32xf32>, vector<32x32xf32>, vector<8x32xf32> -> vector<8x32xf32>
    %c0_61 = arith.constant 0 : index
    %c0_62 = arith.constant 0 : index
    %114 = vector.load %arg14[%c0_61, %c0_62] : memref<32x32xf32, #tpu.memory_space<vmem>>, vector<32x32xf32>
    %cst_63 = arith.constant dense<0.000000e+00> : vector<8x32xf32>
    %115 = tpu.matmul %109, %114, %cst_63 {dimension_numbers = #tpu.dot_dimension_numbers<[1], [0], [0], [1], [0, 0, 1, 1], [], []>} : vector<8x32xf32>, vector<32x32xf32>, vector<8x32xf32> -> vector<8x32xf32>
    %116 = tpu.iota {dimensions = array<i32: 1>} : vector<8x8xi32>
    %c0_64 = arith.constant 0 : index
    %c0_65 = arith.constant 0 : index
    %c0_66 = arith.constant 0 : index
    %117 = vector.load %arg5[%c0_64, %c0_65, %c0_66] : memref<1x8x1xi32, #tpu.memory_space<vmem>>, vector<1x8x1xi32>
    %118 = vector.shape_cast %117 : vector<1x8x1xi32> to vector<8x1xi32>
    %119 = vector.broadcast %118 : vector<8x1xi32> to vector<8x8xi32>
    %120 = arith.cmpi slt, %116, %119 : vector<8x8xi32>
    %121 = vector.extract_strided_slice %111 {offsets = [0, 0], sizes = [8, 8], strides = [1, 1]} : vector<8x32xf32> to vector<8x8xf32>
    %122 = vector.extract_strided_slice %113 {offsets = [0, 0], sizes = [8, 8], strides = [1, 1]} : vector<8x32xf32> to vector<8x8xf32>
    %cst_67 = arith.constant dense<0.000000e+00> : vector<8x8xf32>
    %123 = tpu.matmul %121, %122, %cst_67 {dimension_numbers = #tpu.dot_dimension_numbers<[1], [1], [0], [0], [0, 0, 1, 0], [], []>} : vector<8x8xf32>, vector<8x8xf32>, vector<8x8xf32> -> vector<8x8xf32>
    %cst_68 = arith.constant 0.353553385 : f32
    %124 = vector.broadcast %cst_68 : f32 to vector<8x8xf32>
    %125 = arith.mulf %123, %124 : vector<8x8xf32>
    %cst_69 = arith.constant -1.000000e+06 : f32
    %126 = vector.broadcast %cst_69 : f32 to vector<8x8xf32>
    %127 = arith.select %120, %125, %126 : vector<8x8xi1>, vector<8x8xf32>
    %cst_70 = arith.constant dense<0xFF800000> : vector<8xf32>
    %128 = vector.multi_reduction <maximumf>, %127, %cst_70 [1] : vector<8x8xf32> to vector<8xf32>
    %129 = vector.shape_cast %128 : vector<8xf32> to vector<8x1xf32>
    %130 = vector.broadcast %129 : vector<8x1xf32> to vector<8x8xf32>
    %131 = arith.subf %127, %130 : vector<8x8xf32>
    %132 = math.exp %131 : vector<8x8xf32>
    %cst_71 = arith.constant dense<0.000000e+00> : vector<8xf32>
    %133 = vector.multi_reduction <add>, %132, %cst_71 [1] : vector<8x8xf32> to vector<8xf32>
    %134 = vector.shape_cast %133 : vector<8xf32> to vector<8x1xf32>
    %135 = tpu.reciprocal %134 {approx = true} : vector<8x1xf32> -> vector<8x1xf32>
    %136 = vector.broadcast %135 : vector<8x1xf32> to vector<8x8xf32>
    %137 = arith.mulf %132, %136 : vector<8x8xf32>
    %138 = vector.extract_strided_slice %115 {offsets = [0, 0], sizes = [8, 8], strides = [1, 1]} : vector<8x32xf32> to vector<8x8xf32>
    %cst_72 = arith.constant dense<0.000000e+00> : vector<8x8xf32>
    %139 = tpu.matmul %137, %138, %cst_72 {dimension_numbers = #tpu.dot_dimension_numbers<[1], [0], [0], [1], [0, 0, 1, 1], [], []>} : vector<8x8xf32>, vector<8x8xf32>, vector<8x8xf32> -> vector<8x8xf32>
    %c0_73 = arith.constant 0 : index
    %c0_74 = arith.constant 0 : index
    %140 = vector.load %arg25[%c0_73, %c0_74] : memref<8x32xf32, #tpu.memory_space<vmem>>, vector<8x8xf32>
    tpu.vector_store %arg25[%c0_73, %c0_74], %139 {strides = array<i32>} : memref<8x32xf32, #tpu.memory_space<vmem>>, vector<8x8xf32>,
    %141 = vector.extract_strided_slice %111 {offsets = [0, 8], sizes = [8, 8], strides = [1, 1]} : vector<8x32xf32> to vector<8x8xf32>
    %142 = vector.extract_strided_slice %113 {offsets = [0, 8], sizes = [8, 8], strides = [1, 1]} : vector<8x32xf32> to vector<8x8xf32>
    %cst_75 = arith.constant dense<0.000000e+00> : vector<8x8xf32>
    %143 = tpu.matmul %141, %142, %cst_75 {dimension_numbers = #tpu.dot_dimension_numbers<[1], [1], [0], [0], [0, 0, 1, 0], [], []>} : vector<8x8xf32>, vector<8x8xf32>, vector<8x8xf32> -> vector<8x8xf32>
    %cst_76 = arith.constant 0.353553385 : f32
    %144 = vector.broadcast %cst_76 : f32 to vector<8x8xf32>
    %145 = arith.mulf %143, %144 : vector<8x8xf32>
    %cst_77 = arith.constant -1.000000e+06 : f32
    %146 = vector.broadcast %cst_77 : f32 to vector<8x8xf32>
    %147 = arith.select %120, %145, %146 : vector<8x8xi1>, vector<8x8xf32>
    %cst_78 = arith.constant dense<0xFF800000> : vector<8xf32>
    %148 = vector.multi_reduction <maximumf>, %147, %cst_78 [1] : vector<8x8xf32> to vector<8xf32>
    %149 = vector.shape_cast %148 : vector<8xf32> to vector<8x1xf32>
    %150 = vector.broadcast %149 : vector<8x1xf32> to vector<8x8xf32>
    %151 = arith.subf %147, %150 : vector<8x8xf32>
    %152 = math.exp %151 : vector<8x8xf32>
    %cst_79 = arith.constant dense<0.000000e+00> : vector<8xf32>
    %153 = vector.multi_reduction <add>, %152, %cst_79 [1] : vector<8x8xf32> to vector<8xf32>
    %154 = vector.shape_cast %153 : vector<8xf32> to vector<8x1xf32>
    %155 = tpu.reciprocal %154 {approx = true} : vector<8x1xf32> -> vector<8x1xf32>
    %156 = vector.broadcast %155 : vector<8x1xf32> to vector<8x8xf32>
    %157 = arith.mulf %152, %156 : vector<8x8xf32>
    %158 = vector.extract_strided_slice %115 {offsets = [0, 8], sizes = [8, 8], strides = [1, 1]} : vector<8x32xf32> to vector<8x8xf32>
    %cst_80 = arith.constant dense<0.000000e+00> : vector<8x8xf32>
    %159 = tpu.matmul %157, %158, %cst_80 {dimension_numbers = #tpu.dot_dimension_numbers<[1], [0], [0], [1], [0, 0, 1, 1], [], []>} : vector<8x8xf32>, vector<8x8xf32>, vector<8x8xf32> -> vector<8x8xf32>
    %c0_81 = arith.constant 0 : index
    %c8_82 = arith.constant 8 : index
    %160 = vector.load %arg25[%c0_81, %c8_82] : memref<8x32xf32, #tpu.memory_space<vmem>>, vector<8x8xf32>
    tpu.vector_store %arg25[%c0_81, %c8_82], %159 {strides = array<i32>} : memref<8x32xf32, #tpu.memory_space<vmem>>, vector<8x8xf32>,
    %161 = vector.extract_strided_slice %111 {offsets = [0, 16], sizes = [8, 8], strides = [1, 1]} : vector<8x32xf32> to vector<8x8xf32>
    %162 = vector.extract_strided_slice %113 {offsets = [0, 16], sizes = [8, 8], strides = [1, 1]} : vector<8x32xf32> to vector<8x8xf32>
    %cst_83 = arith.constant dense<0.000000e+00> : vector<8x8xf32>
    %163 = tpu.matmul %161, %162, %cst_83 {dimension_numbers = #tpu.dot_dimension_numbers<[1], [1], [0], [0], [0, 0, 1, 0], [], []>} : vector<8x8xf32>, vector<8x8xf32>, vector<8x8xf32> -> vector<8x8xf32>
    %cst_84 = arith.constant 0.353553385 : f32
    %164 = vector.broadcast %cst_84 : f32 to vector<8x8xf32>
    %165 = arith.mulf %163, %164 : vector<8x8xf32>
    %cst_85 = arith.constant -1.000000e+06 : f32
    %166 = vector.broadcast %cst_85 : f32 to vector<8x8xf32>
    %167 = arith.select %120, %165, %166 : vector<8x8xi1>, vector<8x8xf32>
    %cst_86 = arith.constant dense<0xFF800000> : vector<8xf32>
    %168 = vector.multi_reduction <maximumf>, %167, %cst_86 [1] : vector<8x8xf32> to vector<8xf32>
    %169 = vector.shape_cast %168 : vector<8xf32> to vector<8x1xf32>
    %170 = vector.broadcast %169 : vector<8x1xf32> to vector<8x8xf32>
    %171 = arith.subf %167, %170 : vector<8x8xf32>
    %172 = math.exp %171 : vector<8x8xf32>
    %cst_87 = arith.constant dense<0.000000e+00> : vector<8xf32>
    %173 = vector.multi_reduction <add>, %172, %cst_87 [1] : vector<8x8xf32> to vector<8xf32>
    %174 = vector.shape_cast %173 : vector<8xf32> to vector<8x1xf32>
    %175 = tpu.reciprocal %174 {approx = true} : vector<8x1xf32> -> vector<8x1xf32>
    %176 = vector.broadcast %175 : vector<8x1xf32> to vector<8x8xf32>
    %177 = arith.mulf %172, %176 : vector<8x8xf32>
    %178 = vector.extract_strided_slice %115 {offsets = [0, 16], sizes = [8, 8], strides = [1, 1]} : vector<8x32xf32> to vector<8x8xf32>
    %cst_88 = arith.constant dense<0.000000e+00> : vector<8x8xf32>
    %179 = tpu.matmul %177, %178, %cst_88 {dimension_numbers = #tpu.dot_dimension_numbers<[1], [0], [0], [1], [0, 0, 1, 1], [], []>} : vector<8x8xf32>, vector<8x8xf32>, vector<8x8xf32> -> vector<8x8xf32>
    %c0_89 = arith.constant 0 : index
    %c16_90 = arith.constant 16 : index
    %180 = vector.load %arg25[%c0_89, %c16_90] : memref<8x32xf32, #tpu.memory_space<vmem>>, vector<8x8xf32>
    tpu.vector_store %arg25[%c0_89, %c16_90], %179 {strides = array<i32>} : memref<8x32xf32, #tpu.memory_space<vmem>>, vector<8x8xf32>,
    %181 = vector.extract_strided_slice %111 {offsets = [0, 24], sizes = [8, 8], strides = [1, 1]} : vector<8x32xf32> to vector<8x8xf32>
    %182 = vector.extract_strided_slice %113 {offsets = [0, 24], sizes = [8, 8], strides = [1, 1]} : vector<8x32xf32> to vector<8x8xf32>
    %cst_91 = arith.constant dense<0.000000e+00> : vector<8x8xf32>
    %183 = tpu.matmul %181, %182, %cst_91 {dimension_numbers = #tpu.dot_dimension_numbers<[1], [1], [0], [0], [0, 0, 1, 0], [], []>} : vector<8x8xf32>, vector<8x8xf32>, vector<8x8xf32> -> vector<8x8xf32>
    %cst_92 = arith.constant 0.353553385 : f32
    %184 = vector.broadcast %cst_92 : f32 to vector<8x8xf32>
    %185 = arith.mulf %183, %184 : vector<8x8xf32>
    %cst_93 = arith.constant -1.000000e+06 : f32
    %186 = vector.broadcast %cst_93 : f32 to vector<8x8xf32>
    %187 = arith.select %120, %185, %186 : vector<8x8xi1>, vector<8x8xf32>
    %cst_94 = arith.constant dense<0xFF800000> : vector<8xf32>
    %188 = vector.multi_reduction <maximumf>, %187, %cst_94 [1] : vector<8x8xf32> to vector<8xf32>
    %189 = vector.shape_cast %188 : vector<8xf32> to vector<8x1xf32>
    %190 = vector.broadcast %189 : vector<8x1xf32> to vector<8x8xf32>
    %191 = arith.subf %187, %190 : vector<8x8xf32>
    %192 = math.exp %191 : vector<8x8xf32>
    %cst_95 = arith.constant dense<0.000000e+00> : vector<8xf32>
    %193 = vector.multi_reduction <add>, %192, %cst_95 [1] : vector<8x8xf32> to vector<8xf32>
    %194 = vector.shape_cast %193 : vector<8xf32> to vector<8x1xf32>
    %195 = tpu.reciprocal %194 {approx = true} : vector<8x1xf32> -> vector<8x1xf32>
    %196 = vector.broadcast %195 : vector<8x1xf32> to vector<8x8xf32>
    %197 = arith.mulf %192, %196 : vector<8x8xf32>
    %198 = vector.extract_strided_slice %115 {offsets = [0, 24], sizes = [8, 8], strides = [1, 1]} : vector<8x32xf32> to vector<8x8xf32>
    %cst_96 = arith.constant dense<0.000000e+00> : vector<8x8xf32>
    %199 = tpu.matmul %197, %198, %cst_96 {dimension_numbers = #tpu.dot_dimension_numbers<[1], [0], [0], [1], [0, 0, 1, 1], [], []>} : vector<8x8xf32>, vector<8x8xf32>, vector<8x8xf32> -> vector<8x8xf32>
    %c0_97 = arith.constant 0 : index
    %c24_98 = arith.constant 24 : index
    %200 = vector.load %arg25[%c0_97, %c24_98] : memref<8x32xf32, #tpu.memory_space<vmem>>, vector<8x8xf32>
    tpu.vector_store %arg25[%c0_97, %c24_98], %199 {strides = array<i32>} : memref<8x32xf32, #tpu.memory_space<vmem>>, vector<8x8xf32>,
    %c0_99 = arith.constant 0 : index
    %c0_100 = arith.constant 0 : index
    %201 = vector.load %arg25[%c0_99, %c0_100] : memref<8x32xf32, #tpu.memory_space<vmem>>, vector<8x32xf32>
    %c0_101 = arith.constant 0 : index
    %c0_102 = arith.constant 0 : index
    %202 = vector.load %arg15[%c0_101, %c0_102] : memref<32x32xf32, #tpu.memory_space<vmem>>, vector<32x32xf32>
    %cst_103 = arith.constant dense<0.000000e+00> : vector<8x32xf32>
    %203 = tpu.matmul %201, %202, %cst_103 {dimension_numbers = #tpu.dot_dimension_numbers<[1], [0], [0], [1], [0, 0, 1, 1], [], []>} : vector<8x32xf32>, vector<32x32xf32>, vector<8x32xf32> -> vector<8x32xf32>
    %204 = arith.addf %203, %107 : vector<8x32xf32>
    %cst_104 = arith.constant dense<0.000000e+00> : vector<8xf32>
    %205 = vector.multi_reduction <add>, %204, %cst_104 [1] : vector<8x32xf32> to vector<8xf32>
    %206 = vector.shape_cast %205 : vector<8xf32> to vector<8x1xf32>
    %cst_105 = arith.constant 3.200000e+01 : f32
    %207 = vector.broadcast %cst_105 : f32 to vector<8x1xf32>
    %208 = arith.divf %206, %207 : vector<8x1xf32>
    %209 = vector.broadcast %208 : vector<8x1xf32> to vector<8x32xf32>
    %210 = arith.subf %204, %209 : vector<8x32xf32>
    %211 = arith.mulf %210, %210 : vector<8x32xf32>
    %cst_106 = arith.constant dense<0.000000e+00> : vector<8xf32>
    %212 = vector.multi_reduction <add>, %211, %cst_106 [1] : vector<8x32xf32> to vector<8xf32>
    %213 = vector.shape_cast %212 : vector<8xf32> to vector<8x1xf32>
    %cst_107 = arith.constant 3.200000e+01 : f32
    %214 = vector.broadcast %cst_107 : f32 to vector<8x1xf32>
    %215 = arith.divf %213, %214 : vector<8x1xf32>
    %cst_108 = arith.constant 9.99999974E-6 : f32
    %216 = vector.broadcast %cst_108 : f32 to vector<8x1xf32>
    %217 = arith.addf %215, %216 : vector<8x1xf32>
    %218 = math.rsqrt %217 : vector<8x1xf32>
    %219 = vector.broadcast %218 : vector<8x1xf32> to vector<8x32xf32>
    %220 = arith.mulf %210, %219 : vector<8x32xf32>
    %c0_109 = arith.constant 0 : index
    %c0_110 = arith.constant 0 : index
    %221 = vector.load %arg16[%c0_109, %c0_110] : memref<1x32xf32, #tpu.memory_space<vmem>>, vector<1x32xf32>
    %222 = vector.broadcast %221 : vector<1x32xf32> to vector<8x32xf32>
    %223 = arith.mulf %220, %222 : vector<8x32xf32>
    %c0_111 = arith.constant 0 : index
    %c0_112 = arith.constant 0 : index
    %224 = vector.load %arg17[%c0_111, %c0_112] : memref<1x32xf32, #tpu.memory_space<vmem>>, vector<1x32xf32>
    %225 = vector.broadcast %224 : vector<1x32xf32> to vector<8x32xf32>
    %226 = arith.addf %223, %225 : vector<8x32xf32>
    %c0_113 = arith.constant 0 : index
    %c0_114 = arith.constant 0 : index
    %227 = vector.load %arg18[%c0_113, %c0_114] : memref<32x64xf32, #tpu.memory_space<vmem>>, vector<32x64xf32>
    %cst_115 = arith.constant dense<0.000000e+00> : vector<8x64xf32>
    %228 = tpu.matmul %226, %227, %cst_115 {dimension_numbers = #tpu.dot_dimension_numbers<[1], [0], [0], [1], [0, 0, 1, 1], [], []>} : vector<8x32xf32>, vector<32x64xf32>, vector<8x64xf32> -> vector<8x64xf32>
    %c0_116 = arith.constant 0 : index
    %c0_117 = arith.constant 0 : index
    %229 = vector.load %arg19[%c0_116, %c0_117] : memref<1x64xf32, #tpu.memory_space<vmem>>, vector<1x64xf32>
    %230 = vector.broadcast %229 : vector<1x64xf32> to vector<8x64xf32>
    %231 = arith.addf %228, %230 : vector<8x64xf32>
    %cst_118 = arith.constant 0.000000e+00 : f32
    %232 = vector.broadcast %cst_118 : f32 to vector<8x64xf32>
    %233 = arith.maximumf %231, %232 : vector<8x64xf32>
    %c0_119 = arith.constant 0 : index
    %c0_120 = arith.constant 0 : index
    %234 = vector.load %arg20[%c0_119, %c0_120] : memref<64x32xf32, #tpu.memory_space<vmem>>, vector<64x32xf32>
    %cst_121 = arith.constant dense<0.000000e+00> : vector<8x32xf32>
    %235 = tpu.matmul %233, %234, %cst_121 {dimension_numbers = #tpu.dot_dimension_numbers<[1], [0], [0], [1], [0, 0, 1, 1], [], []>} : vector<8x64xf32>, vector<64x32xf32>, vector<8x32xf32> -> vector<8x32xf32>
    %c0_122 = arith.constant 0 : index
    %c0_123 = arith.constant 0 : index
    %236 = vector.load %arg21[%c0_122, %c0_123] : memref<1x32xf32, #tpu.memory_space<vmem>>, vector<1x32xf32>
    %237 = vector.broadcast %236 : vector<1x32xf32> to vector<8x32xf32>
    %238 = arith.addf %235, %237 : vector<8x32xf32>
    %239 = arith.addf %238, %226 : vector<8x32xf32>
    %cst_124 = arith.constant dense<0.000000e+00> : vector<8xf32>
    %240 = vector.multi_reduction <add>, %239, %cst_124 [1] : vector<8x32xf32> to vector<8xf32>
    %241 = vector.shape_cast %240 : vector<8xf32> to vector<8x1xf32>
    %cst_125 = arith.constant 3.200000e+01 : f32
    %242 = vector.broadcast %cst_125 : f32 to vector<8x1xf32>
    %243 = arith.divf %241, %242 : vector<8x1xf32>
    %244 = vector.broadcast %243 : vector<8x1xf32> to vector<8x32xf32>
    %245 = arith.subf %239, %244 : vector<8x32xf32>
    %246 = arith.mulf %245, %245 : vector<8x32xf32>
    %cst_126 = arith.constant dense<0.000000e+00> : vector<8xf32>
    %247 = vector.multi_reduction <add>, %246, %cst_126 [1] : vector<8x32xf32> to vector<8xf32>
    %248 = vector.shape_cast %247 : vector<8xf32> to vector<8x1xf32>
    %cst_127 = arith.constant 3.200000e+01 : f32
    %249 = vector.broadcast %cst_127 : f32 to vector<8x1xf32>
    %250 = arith.divf %248, %249 : vector<8x1xf32>
    %cst_128 = arith.constant 9.99999974E-6 : f32
    %251 = vector.broadcast %cst_128 : f32 to vector<8x1xf32>
    %252 = arith.addf %250, %251 : vector<8x1xf32>
    %253 = math.rsqrt %252 : vector<8x1xf32>
    %254 = vector.broadcast %253 : vector<8x1xf32> to vector<8x32xf32>
    %255 = arith.mulf %245, %254 : vector<8x32xf32>
    %c0_129 = arith.constant 0 : index
    %c0_130 = arith.constant 0 : index
    %256 = vector.load %arg22[%c0_129, %c0_130] : memref<1x32xf32, #tpu.memory_space<vmem>>, vector<1x32xf32>
    %257 = vector.broadcast %256 : vector<1x32xf32> to vector<8x32xf32>
    %258 = arith.mulf %255, %257 : vector<8x32xf32>
    %c0_131 = arith.constant 0 : index
    %c0_132 = arith.constant 0 : index
    %259 = vector.load %arg23[%c0_131, %c0_132] : memref<1x32xf32, #tpu.memory_space<vmem>>, vector<1x32xf32>
    %260 = vector.broadcast %259 : vector<1x32xf32> to vector<8x32xf32>
    %261 = arith.addf %258, %260 : vector<8x32xf32>
    %c0_133 = arith.constant 0 : index
    %c0_134 = arith.constant 0 : index
    %c0_135 = arith.constant 0 : index
    %262 = vector.load %arg24[%c0_133, %c0_134, %c0_135] : memref<1x8x32xf32, #tpu.memory_space<vmem>>, vector<1x8x32xf32>
    %263 = vector.shape_cast %262 : vector<1x8x32xf32> to vector<8x32xf32>
    %264 = vector.shape_cast %261 : vector<8x32xf32> to vector<1x8x32xf32>
    tpu.vector_store %arg24[%c0_133, %c0_134, %c0_135], %264 {strides = array<i32>} : memref<1x8x32xf32, #tpu.memory_space<vmem>>, vector<1x8x32xf32>,
    return
  }
  func.func @transform_0(%arg0: i32, %arg1: i32) -> (i32, i32, i32) {
    %c0_i32 = arith.constant 0 : i32
    %c0_i32_0 = arith.constant 0 : i32
    return %arg0, %arg1, %c0_i32 : i32, i32, i32
  }
  func.func @transform_1(%arg0: i32, %arg1: i32) -> (i32, i32, i32) {
    %c0_i32 = arith.constant 0 : i32
    %c0_i32_0 = arith.constant 0 : i32
    %c0_i32_1 = arith.constant 0 : i32
    return %arg0, %c0_i32, %c0_i32_0 : i32, i32, i32
  }
  func.func @transform_2(%arg0: i32, %arg1: i32) -> (i32, i32, i32) {
    %c0_i32 = arith.constant 0 : i32
    %c0_i32_0 = arith.constant 0 : i32
    %c0_i32_1 = arith.constant 0 : i32
    return %arg0, %c0_i32, %c0_i32_0 : i32, i32, i32
  }
  func.func @transform_3(%arg0: i32, %arg1: i32) -> (i32, i32, i32) {
    %c0_i32 = arith.constant 0 : i32
    %c0_i32_0 = arith.constant 0 : i32
    return %arg0, %arg1, %c0_i32 : i32, i32, i32
  }
  func.func @transform_4(%arg0: i32, %arg1: i32) -> (i32, i32) {
    %c0_i32 = arith.constant 0 : i32
    %c0_i32_0 = arith.constant 0 : i32
    %c0_i32_1 = arith.constant 0 : i32
    return %c0_i32, %c0_i32_0 : i32, i32
  }
  func.func @transform_5(%arg0: i32, %arg1: i32) -> (i32, i32) {
    %c0_i32 = arith.constant 0 : i32
    %c0_i32_0 = arith.constant 0 : i32
    %c0_i32_1 = arith.constant 0 : i32
    return %c0_i32, %c0_i32_0 : i32, i32
  }
  func.func @transform_6(%arg0: i32, %arg1: i32) -> (i32, i32) {
    %c0_i32 = arith.constant 0 : i32
    %c0_i32_0 = arith.constant 0 : i32
    %c0_i32_1 = arith.constant 0 : i32
    return %c0_i32, %c0_i32_0 : i32, i32
  }
  func.func @transform_7(%arg0: i32, %arg1: i32) -> (i32, i32) {
    %c0_i32 = arith.constant 0 : i32
    %c0_i32_0 = arith.constant 0 : i32
    %c0_i32_1 = arith.constant 0 : i32
    return %c0_i32, %c0_i32_0 : i32, i32
  }
  func.func @transform_8(%arg0: i32, %arg1: i32) -> (i32, i32) {
    %c0_i32 = arith.constant 0 : i32
    %c0_i32_0 = arith.constant 0 : i32
    %c0_i32_1 = arith.constant 0 : i32
    return %c0_i32, %c0_i32_0 : i32, i32
  }
  func.func @transform_9(%arg0: i32, %arg1: i32) -> (i32, i32) {
    %c0_i32 = arith.constant 0 : i32
    %c0_i32_0 = arith.constant 0 : i32
    %c0_i32_1 = arith.constant 0 : i32
    return %c0_i32, %c0_i32_0 : i32, i32
  }
  func.func @transform_10(%arg0: i32, %arg1: i32) -> (i32, i32) {
    %c0_i32 = arith.constant 0 : i32
    %c0_i32_0 = arith.constant 0 : i32
    %c0_i32_1 = arith.constant 0 : i32
    return %c0_i32, %c0_i32_0 : i32, i32
  }
  func.func @transform_11(%arg0: i32, %arg1: i32) -> (i32, i32) {
    %c0_i32 = arith.constant 0 : i32
    %c0_i32_0 = arith.constant 0 : i32
    %c0_i32_1 = arith.constant 0 : i32
    return %c0_i32, %c0_i32_0 : i32, i32
  }
  func.func @transform_12(%arg0: i32, %arg1: i32) -> (i32, i32) {
    %c0_i32 = arith.constant 0 : i32
    %c0_i32_0 = arith.constant 0 : i32
    %c0_i32_1 = arith.constant 0 : i32
    return %c0_i32, %c0_i32_0 : i32, i32
  }
  func.func @transform_13(%arg0: i32, %arg1: i32) -> (i32, i32) {
    %c0_i32 = arith.constant 0 : i32
    %c0_i32_0 = arith.constant 0 : i32
    %c0_i32_1 = arith.constant 0 : i32
    return %c0_i32, %c0_i32_0 : i32, i32
  }
  func.func @transform_14(%arg0: i32, %arg1: i32) -> (i32, i32) {
    %c0_i32 = arith.constant 0 : i32
    %c0_i32_0 = arith.constant 0 : i32
    %c0_i32_1 = arith.constant 0 : i32
    return %c0_i32, %c0_i32_0 : i32, i32
  }
  func.func @transform_15(%arg0: i32, %arg1: i32) -> (i32, i32) {
    %c0_i32 = arith.constant 0 : i32
    %c0_i32_0 = arith.constant 0 : i32
    %c0_i32_1 = arith.constant 0 : i32
    return %c0_i32, %c0_i32_0 : i32, i32
  }
  func.func @transform_16(%arg0: i32, %arg1: i32) -> (i32, i32) {
    %c0_i32 = arith.constant 0 : i32
    %c0_i32_0 = arith.constant 0 : i32
    %c0_i32_1 = arith.constant 0 : i32
    return %c0_i32, %c0_i32_0 : i32, i32
  }
  func.func @transform_17(%arg0: i32, %arg1: i32) -> (i32, i32) {
    %c0_i32 = arith.constant 0 : i32
    %c0_i32_0 = arith.constant 0 : i32
    %c0_i32_1 = arith.constant 0 : i32
    return %c0_i32, %c0_i32_0 : i32, i32
  }
  func.func @transform_18(%arg0: i32, %arg1: i32) -> (i32, i32) {
    %c0_i32 = arith.constant 0 : i32
    %c0_i32_0 = arith.constant 0 : i32
    %c0_i32_1 = arith.constant 0 : i32
    return %c0_i32, %c0_i32_0 : i32, i32
  }
  func.func @transform_19(%arg0: i32, %arg1: i32) -> (i32, i32) {
    %c0_i32 = arith.constant 0 : i32
    %c0_i32_0 = arith.constant 0 : i32
    %c0_i32_1 = arith.constant 0 : i32
    return %c0_i32, %c0_i32_0 : i32, i32
  }
  func.func @transform_20(%arg0: i32, %arg1: i32) -> (i32, i32) {
    %c0_i32 = arith.constant 0 : i32
    %c0_i32_0 = arith.constant 0 : i32
    %c0_i32_1 = arith.constant 0 : i32
    return %c0_i32, %c0_i32_0 : i32, i32
  }
  func.func @transform_21(%arg0: i32, %arg1: i32) -> (i32, i32) {
    %c0_i32 = arith.constant 0 : i32
    %c0_i32_0 = arith.constant 0 : i32
    %c0_i32_1 = arith.constant 0 : i32
    return %c0_i32, %c0_i32_0 : i32, i32
  }
  func.func @transform_22(%arg0: i32, %arg1: i32) -> (i32, i32, i32) {
    %c0_i32 = arith.constant 0 : i32
    %c0_i32_0 = arith.constant 0 : i32
    return %arg0, %arg1, %c0_i32 : i32, i32, i32
  }
}

module attributes {stable_mosaic.version = 11 : i64} {
  func.func @_decoder_block_kernel(%arg0: i32, %arg1: i32, %arg2: memref<1x8x32xf32, #tpu.memory_space<vmem>>, %arg3: memref<1x8x32xf32, #tpu.memory_space<vmem>>, %arg4: memref<1x8x32xf32, #tpu.memory_space<vmem>>, %arg5: memref<1x8x1xi32, #tpu.memory_space<vmem>>, %arg6: memref<32x32xf32, #tpu.memory_space<vmem>>, %arg7: memref<32x32xf32, #tpu.memory_space<vmem>>, %arg8: memref<32x32xf32, #tpu.memory_space<vmem>>, %arg9: memref<32x32xf32, #tpu.memory_space<vmem>>, %arg10: memref<1x32xf32, #tpu.memory_space<vmem>>, %arg11: memref<1x32xf32, #tpu.memory_space<vmem>>, %arg12: memref<32x32xf32, #tpu.memory_space<vmem>>, %arg13: memref<32x32xf32, #tpu.memory_space<vmem>>, %arg14: memref<32x32xf32, #tpu.memory_space<vmem>>, %arg15: memref<32x32xf32, #tpu.memory_space<vmem>>, %arg16: memref<1x32xf32, #tpu.memory_space<vmem>>, %arg17: memref<1x32xf32, #tpu.memory_space<vmem>>, %arg18: memref<32x64xf32, #tpu.memory_space<vmem>>, %arg19: memref<1x64xf32, #tpu.memory_space<vmem>>, %arg20: memref<64x32xf32, #tpu.memory_space<vmem>>, %arg21: memref<1x32xf32, #tpu.memory_space<vmem>>, %arg22: memref<1x32xf32, #tpu.memory_space<vmem>>, %arg23: memref<1x32xf32, #tpu.memory_space<vmem>>, %arg24: memref<1x8x32xf32, #tpu.memory_space<vmem>>, %arg25: memref<8x32xf32, #tpu.memory_space<vmem>>) attributes {dimension_semantics = [#tpu.dimension_semantics<parallel>, #tpu.dimension_semantics<parallel>], iteration_bounds = array<i64: 2, 1>, scalar_prefetch = 0 : i64, scratch_operands = 1 : i64, tpu.core_type = #tpu.core_type<tc>, window_params = [{transform_indices = @transform_0, window_bounds = array<i64: 1, 8, 32>}, {transform_indices = @transform_1, window_bounds = array<i64: 1, 8, 32>}, {transform_indices = @transform_2, window_bounds = array<i64: 1, 8, 32>}, {transform_indices = @transform_3, window_bounds = array<i64: 1, 8, 1>}, {pipeline_mode = #tpu.pipeline_mode<synchronous>, transform_indices = @transform_4, window_bounds = array<i64: 32, 32>}, {pipeline_mode = #tpu.pipeline_mode<synchronous>, transform_indices = @transform_5, window_bounds = array<i64: 32, 32>}, {pipeline_mode = #tpu.pipeline_mode<synchronous>, transform_indices = @transform_6, window_bounds = array<i64: 32, 32>}, {pipeline_mode = #tpu.pipeline_mode<synchronous>, transform_indices = @transform_7, window_bounds = array<i64: 32, 32>}, {pipeline_mode = #tpu.pipeline_mode<synchronous>, transform_indices = @transform_8, window_bounds = array<i64: 1, 32>}, {pipeline_mode = #tpu.pipeline_mode<synchronous>, transform_indices = @transform_9, window_bounds = array<i64: 1, 32>}, {pipeline_mode = #tpu.pipeline_mode<synchronous>, transform_indices = @transform_10, window_bounds = array<i64: 32, 32>}, {pipeline_mode = #tpu.pipeline_mode<synchronous>, transform_indices = @transform_11, window_bounds = array<i64: 32, 32>}, {pipeline_mode = #tpu.pipeline_mode<synchronous>, transform_indices = @transform_12, window_bounds = array<i64: 32, 32>}, {pipeline_mode = #tpu.pipeline_mode<synchronous>, transform_indices = @transform_13, window_bounds = array<i64: 32, 32>}, {pipeline_mode = #tpu.pipeline_mode<synchronous>, transform_indices = @transform_14, window_bounds = array<i64: 1, 32>}, {pipeline_mode = #tpu.pipeline_mode<synchronous>, transform_indices = @transform_15, window_bounds = array<i64: 1, 32>}, {pipeline_mode = #tpu.pipeline_mode<synchronous>, transform_indices = @transform_16, window_bounds = array<i64: 32, 64>}, {pipeline_mode = #tpu.pipeline_mode<synchronous>, transform_indices = @transform_17, window_bounds = array<i64: 1, 64>}, {pipeline_mode = #tpu.pipeline_mode<synchronous>, transform_indices = @transform_18, window_bounds = array<i64: 64, 32>}, {pipeline_mode = #tpu.pipeline_mode<synchronous>, transform_indices = @transform_19, window_bounds = array<i64: 1, 32>}, {pipeline_mode = #tpu.pipeline_mode<synchronous>, transform_indices = @transform_20, window_bounds = array<i64: 1, 32>}, {pipeline_mode = #tpu.pipeline_mode<synchronous>, transform_indices = @transform_21, window_bounds = array<i64: 1, 32>}, {transform_indices = @transform_22, window_bounds = array<i64: 1, 8, 32>}]} {
    %c0 = arith.constant 0 : index
    %c0_0 = arith.constant 0 : index
    %c0_1 = arith.constant 0 : index
    %0 = vector.load %arg2[%c0, %c0_0, %c0_1] : memref<1x8x32xf32, #tpu.memory_space<vmem>>, vector<1x8x32xf32>
    %1 = vector.shape_cast %0 : vector<1x8x32xf32> to vector<8x32xf32>
    %c0_2 = arith.constant 0 : index
    %c0_3 = arith.constant 0 : index
    %c0_4 = arith.constant 0 : index
    %2 = vector.load %arg3[%c0_2, %c0_3, %c0_4] : memref<1x8x32xf32, #tpu.memory_space<vmem>>, vector<1x8x32xf32>
    %3 = vector.shape_cast %2 : vector<1x8x32xf32> to vector<8x32xf32>
    %c0_5 = arith.constant 0 : index
    %c0_6 = arith.constant 0 : index
    %4 = vector.load %arg6[%c0_5, %c0_6] : memref<32x32xf32, #tpu.memory_space<vmem>>, vector<32x32xf32>
    %cst = arith.constant dense<0.000000e+00> : vector<8x32xf32>
    %5 = tpu.matmul %1, %4, %cst {dimension_numbers = #tpu.dot_dimension_numbers<[1], [0], [0], [1], [0, 0, 1, 1], [], []>} : vector<8x32xf32>, vector<32x32xf32>, vector<8x32xf32> -> vector<8x32xf32>
    %c0_7 = arith.constant 0 : index
    %c0_8 = arith.constant 0 : index
    %6 = vector.load %arg7[%c0_7, %c0_8] : memref<32x32xf32, #tpu.memory_space<vmem>>, vector<32x32xf32>
    %cst_9 = arith.constant dense<0.000000e+00> : vector<8x32xf32>
    %7 = tpu.matmul %3, %6, %cst_9 {dimension_numbers = #tpu.dot_dimension_numbers<[1], [0], [0], [1], [0, 0, 1, 1], [], []>} : vector<8x32xf32>, vector<32x32xf32>, vector<8x32xf32> -> vector<8x32xf32>
    %c0_10 = arith.constant 0 : index
    %c0_11 = arith.constant 0 : index
    %8 = vector.load %arg8[%c0_10, %c0_11] : memref<32x32xf32, #tpu.memory_space<vmem>>, vector<32x32xf32>
    %cst_12 = arith.constant dense<0.000000e+00> : vector<8x32xf32>
    %9 = tpu.matmul %3, %8, %cst_12 {dimension_numbers = #tpu.dot_dimension_numbers<[1], [0], [0], [1], [0, 0, 1, 1], [], []>} : vector<8x32xf32>, vector<32x32xf32>, vector<8x32xf32> -> vector<8x32xf32>
    %10 = vector.extract_strided_slice %5 {offsets = [0, 0], sizes = [8, 8], strides = [1, 1]} : vector<8x32xf32> to vector<8x8xf32>
    %11 = vector.extract_strided_slice %7 {offsets = [0, 0], sizes = [8, 8], strides = [1, 1]} : vector<8x32xf32> to vector<8x8xf32>
    %cst_13 = arith.constant dense<0.000000e+00> : vector<8x8xf32>
    %12 = tpu.matmul %10, %11, %cst_13 {dimension_numbers = #tpu.dot_dimension_numbers<[1], [1], [0], [0], [0, 0, 1, 0], [], []>} : vector<8x8xf32>, vector<8x8xf32>, vector<8x8xf32> -> vector<8x8xf32>
    %cst_14 = arith.constant 0.353553385 : f32
    %13 = vector.broadcast %cst_14 : f32 to vector<8x8xf32>
    %14 = arith.mulf %12, %13 : vector<8x8xf32>
    %cst_15 = arith.constant dense<0xFF800000> : vector<8xf32>
    %15 = vector.multi_reduction <maximumf>, %14, %cst_15 [1] : vector<8x8xf32> to vector<8xf32>
    %16 = vector.shape_cast %15 : vector<8xf32> to vector<8x1xf32>
    %17 = vector.broadcast %16 : vector<8x1xf32> to vector<8x8xf32>
    %18 = arith.subf %14, %17 : vector<8x8xf32>
    %19 = math.exp %18 : vector<8x8xf32>
    %cst_16 = arith.constant dense<0.000000e+00> : vector<8xf32>
    %20 = vector.multi_reduction <add>, %19, %cst_16 [1] : vector<8x8xf32> to vector<8xf32>
    %21 = vector.shape_cast %20 : vector<8xf32> to vector<8x1xf32>
    %22 = tpu.reciprocal %21 {approx = true} : vector<8x1xf32> -> vector<8x1xf32>
    %23 = vector.broadcast %22 : vector<8x1xf32> to vector<8x8xf32>
    %24 = arith.mulf %19, %23 : vector<8x8xf32>
    %25 = vector.extract_strided_slice %9 {offsets = [0, 0], sizes = [8, 8], strides = [1, 1]} : vector<8x32xf32> to vector<8x8xf32>
    %cst_17 = arith.constant dense<0.000000e+00> : vector<8x8xf32>
    %26 = tpu.matmul %24, %25, %cst_17 {dimension_numbers = #tpu.dot_dimension_numbers<[1], [0], [0], [1], [0, 0, 1, 1], [], []>} : vector<8x8xf32>, vector<8x8xf32>, vector<8x8xf32> -> vector<8x8xf32>
    %c0_18 = arith.constant 0 : index
    %c0_19 = arith.constant 0 : index
    %27 = vector.load %arg25[%c0_18, %c0_19] : memref<8x32xf32, #tpu.memory_space<vmem>>, vector<8x8xf32>
    tpu.vector_store %arg25[%c0_18, %c0_19], %26 {strides = array<i32>} : memref<8x32xf32, #tpu.memory_space<vmem>>, vector<8x8xf32>,
    %28 = vector.extract_strided_slice %5 {offsets = [0, 8], sizes = [8, 8], strides = [1, 1]} : vector<8x32xf32> to vector<8x8xf32>
    %29 = vector.extract_strided_slice %7 {offsets = [0, 8], sizes = [8, 8], strides = [1, 1]} : vector<8x32xf32> to vector<8x8xf32>
    %cst_20 = arith.constant dense<0.000000e+00> : vector<8x8xf32>
    %30 = tpu.matmul %28, %29, %cst_20 {dimension_numbers = #tpu.dot_dimension_numbers<[1], [1], [0], [0], [0, 0, 1, 0], [], []>} : vector<8x8xf32>, vector<8x8xf32>, vector<8x8xf32> -> vector<8x8xf32>
    %cst_21 = arith.constant 0.353553385 : f32
    %31 = vector.broadcast %cst_21 : f32 to vector<8x8xf32>
    %32 = arith.mulf %30, %31 : vector<8x8xf32>
    %cst_22 = arith.constant dense<0xFF800000> : vector<8xf32>
    %33 = vector.multi_reduction <maximumf>, %32, %cst_22 [1] : vector<8x8xf32> to vector<8xf32>
    %34 = vector.shape_cast %33 : vector<8xf32> to vector<8x1xf32>
    %35 = vector.broadcast %34 : vector<8x1xf32> to vector<8x8xf32>
    %36 = arith.subf %32, %35 : vector<8x8xf32>
    %37 = math.exp %36 : vector<8x8xf32>
    %cst_23 = arith.constant dense<0.000000e+00> : vector<8xf32>
    %38 = vector.multi_reduction <add>, %37, %cst_23 [1] : vector<8x8xf32> to vector<8xf32>
    %39 = vector.shape_cast %38 : vector<8xf32> to vector<8x1xf32>
    %40 = tpu.reciprocal %39 {approx = true} : vector<8x1xf32> -> vector<8x1xf32>
    %41 = vector.broadcast %40 : vector<8x1xf32> to vector<8x8xf32>
    %42 = arith.mulf %37, %41 : vector<8x8xf32>
    %43 = vector.extract_strided_slice %9 {offsets = [0, 8], sizes = [8, 8], strides = [1, 1]} : vector<8x32xf32> to vector<8x8xf32>
    %cst_24 = arith.constant dense<0.000000e+00> : vector<8x8xf32>
    %44 = tpu.matmul %42, %43, %cst_24 {dimension_numbers = #tpu.dot_dimension_numbers<[1], [0], [0], [1], [0, 0, 1, 1], [], []>} : vector<8x8xf32>, vector<8x8xf32>, vector<8x8xf32> -> vector<8x8xf32>
    %c0_25 = arith.constant 0 : index
    %c8 = arith.constant 8 : index
    %45 = vector.load %arg25[%c0_25, %c8] : memref<8x32xf32, #tpu.memory_space<vmem>>, vector<8x8xf32>
    tpu.vector_store %arg25[%c0_25, %c8], %44 {strides = array<i32>} : memref<8x32xf32, #tpu.memory_space<vmem>>, vector<8x8xf32>,
    %46 = vector.extract_strided_slice %5 {offsets = [0, 16], sizes = [8, 8], strides = [1, 1]} : vector<8x32xf32> to vector<8x8xf32>
    %47 = vector.extract_strided_slice %7 {offsets = [0, 16], sizes = [8, 8], strides = [1, 1]} : vector<8x32xf32> to vector<8x8xf32>
    %cst_26 = arith.constant dense<0.000000e+00> : vector<8x8xf32>
    %48 = tpu.matmul %46, %47, %cst_26 {dimension_numbers = #tpu.dot_dimension_numbers<[1], [1], [0], [0], [0, 0, 1, 0], [], []>} : vector<8x8xf32>, vector<8x8xf32>, vector<8x8xf32> -> vector<8x8xf32>
    %cst_27 = arith.constant 0.353553385 : f32
    %49 = vector.broadcast %cst_27 : f32 to vector<8x8xf32>
    %50 = arith.mulf %48, %49 : vector<8x8xf32>
    %cst_28 = arith.constant dense<0xFF800000> : vector<8xf32>
    %51 = vector.multi_reduction <maximumf>, %50, %cst_28 [1] : vector<8x8xf32> to vector<8xf32>
    %52 = vector.shape_cast %51 : vector<8xf32> to vector<8x1xf32>
    %53 = vector.broadcast %52 : vector<8x1xf32> to vector<8x8xf32>
    %54 = arith.subf %50, %53 : vector<8x8xf32>
    %55 = math.exp %54 : vector<8x8xf32>
    %cst_29 = arith.constant dense<0.000000e+00> : vector<8xf32>
    %56 = vector.multi_reduction <add>, %55, %cst_29 [1] : vector<8x8xf32> to vector<8xf32>
    %57 = vector.shape_cast %56 : vector<8xf32> to vector<8x1xf32>
    %58 = tpu.reciprocal %57 {approx = true} : vector<8x1xf32> -> vector<8x1xf32>
    %59 = vector.broadcast %58 : vector<8x1xf32> to vector<8x8xf32>
    %60 = arith.mulf %55, %59 : vector<8x8xf32>
    %61 = vector.extract_strided_slice %9 {offsets = [0, 16], sizes = [8, 8], strides = [1, 1]} : vector<8x32xf32> to vector<8x8xf32>
    %cst_30 = arith.constant dense<0.000000e+00> : vector<8x8xf32>
    %62 = tpu.matmul %60, %61, %cst_30 {dimension_numbers = #tpu.dot_dimension_numbers<[1], [0], [0], [1], [0, 0, 1, 1], [], []>} : vector<8x8xf32>, vector<8x8xf32>, vector<8x8xf32> -> vector<8x8xf32>
    %c0_31 = arith.constant 0 : index
    %c16 = arith.constant 16 : index
    %63 = vector.load %arg25[%c0_31, %c16] : memref<8x32xf32, #tpu.memory_space<vmem>>, vector<8x8xf32>
    tpu.vector_store %arg25[%c0_31, %c16], %62 {strides = array<i32>} : memref<8x32xf32, #tpu.memory_space<vmem>>, vector<8x8xf32>,
    %64 = vector.extract_strided_slice %5 {offsets = [0, 24], sizes = [8, 8], strides = [1, 1]} : vector<8x32xf32> to vector<8x8xf32>
    %65 = vector.extract_strided_slice %7 {offsets = [0, 24], sizes = [8, 8], strides = [1, 1]} : vector<8x32xf32> to vector<8x8xf32>
    %cst_32 = arith.constant dense<0.000000e+00> : vector<8x8xf32>
    %66 = tpu.matmul %64, %65, %cst_32 {dimension_numbers = #tpu.dot_dimension_numbers<[1], [1], [0], [0], [0, 0, 1, 0], [], []>} : vector<8x8xf32>, vector<8x8xf32>, vector<8x8xf32> -> vector<8x8xf32>
    %cst_33 = arith.constant 0.353553385 : f32
    %67 = vector.broadcast %cst_33 : f32 to vector<8x8xf32>
    %68 = arith.mulf %66, %67 : vector<8x8xf32>
    %cst_34 = arith.constant dense<0xFF800000> : vector<8xf32>
    %69 = vector.multi_reduction <maximumf>, %68, %cst_34 [1] : vector<8x8xf32> to vector<8xf32>
    %70 = vector.shape_cast %69 : vector<8xf32> to vector<8x1xf32>
    %71 = vector.broadcast %70 : vector<8x1xf32> to vector<8x8xf32>
    %72 = arith.subf %68, %71 : vector<8x8xf32>
    %73 = math.exp %72 : vector<8x8xf32>
    %cst_35 = arith.constant dense<0.000000e+00> : vector<8xf32>
    %74 = vector.multi_reduction <add>, %73, %cst_35 [1] : vector<8x8xf32> to vector<8xf32>
    %75 = vector.shape_cast %74 : vector<8xf32> to vector<8x1xf32>
    %76 = tpu.reciprocal %75 {approx = true} : vector<8x1xf32> -> vector<8x1xf32>
    %77 = vector.broadcast %76 : vector<8x1xf32> to vector<8x8xf32>
    %78 = arith.mulf %73, %77 : vector<8x8xf32>
    %79 = vector.extract_strided_slice %9 {offsets = [0, 24], sizes = [8, 8], strides = [1, 1]} : vector<8x32xf32> to vector<8x8xf32>
    %cst_36 = arith.constant dense<0.000000e+00> : vector<8x8xf32>
    %80 = tpu.matmul %78, %79, %cst_36 {dimension_numbers = #tpu.dot_dimension_numbers<[1], [0], [0], [1], [0, 0, 1, 1], [], []>} : vector<8x8xf32>, vector<8x8xf32>, vector<8x8xf32> -> vector<8x8xf32>
    %c0_37 = arith.constant 0 : index
    %c24 = arith.constant 24 : index
    %81 = vector.load %arg25[%c0_37, %c24] : memref<8x32xf32, #tpu.memory_space<vmem>>, vector<8x8xf32>
    tpu.vector_store %arg25[%c0_37, %c24], %80 {strides = array<i32>} : memref<8x32xf32, #tpu.memory_space<vmem>>, vector<8x8xf32>,
    %c0_38 = arith.constant 0 : index
    %c0_39 = arith.constant 0 : index
    %82 = vector.load %arg25[%c0_38, %c0_39] : memref<8x32xf32, #tpu.memory_space<vmem>>, vector<8x32xf32>
    %c0_40 = arith.constant 0 : index
    %c0_41 = arith.constant 0 : index
    %83 = vector.load %arg9[%c0_40, %c0_41] : memref<32x32xf32, #tpu.memory_space<vmem>>, vector<32x32xf32>
    %cst_42 = arith.constant dense<0.000000e+00> : vector<8x32xf32>
    %84 = tpu.matmul %82, %83, %cst_42 {dimension_numbers = #tpu.dot_dimension_numbers<[1], [0], [0], [1], [0, 0, 1, 1], [], []>} : vector<8x32xf32>, vector<32x32xf32>, vector<8x32xf32> -> vector<8x32xf32>
    %85 = arith.addf %84, %1 : vector<8x32xf32>
    %cst_43 = arith.constant dense<0.000000e+00> : vector<8xf32>
    %86 = vector.multi_reduction <add>, %85, %cst_43 [1] : vector<8x32xf32> to vector<8xf32>
    %87 = vector.shape_cast %86 : vector<8xf32> to vector<8x1xf32>
    %cst_44 = arith.constant 3.200000e+01 : f32
    %88 = vector.broadcast %cst_44 : f32 to vector<8x1xf32>
    %89 = arith.divf %87, %88 : vector<8x1xf32>
    %90 = vector.broadcast %89 : vector<8x1xf32> to vector<8x32xf32>
    %91 = arith.subf %85, %90 : vector<8x32xf32>
    %92 = arith.mulf %91, %91 : vector<8x32xf32>
    %cst_45 = arith.constant dense<0.000000e+00> : vector<8xf32>
    %93 = vector.multi_reduction <add>, %92, %cst_45 [1] : vector<8x32xf32> to vector<8xf32>
    %94 = vector.shape_cast %93 : vector<8xf32> to vector<8x1xf32>
    %cst_46 = arith.constant 3.200000e+01 : f32
    %95 = vector.broadcast %cst_46 : f32 to vector<8x1xf32>
    %96 = arith.divf %94, %95 : vector<8x1xf32>
    %cst_47 = arith.constant 9.99999974E-6 : f32
    %97 = vector.broadcast %cst_47 : f32 to vector<8x1xf32>
    %98 = arith.addf %96, %97 : vector<8x1xf32>
    %99 = math.rsqrt %98 : vector<8x1xf32>
    %100 = vector.broadcast %99 : vector<8x1xf32> to vector<8x32xf32>
    %101 = arith.mulf %91, %100 : vector<8x32xf32>
    %c0_48 = arith.constant 0 : index
    %c0_49 = arith.constant 0 : index
    %102 = vector.load %arg10[%c0_48, %c0_49] : memref<1x32xf32, #tpu.memory_space<vmem>>, vector<1x32xf32>
    %103 = vector.broadcast %102 : vector<1x32xf32> to vector<8x32xf32>
    %104 = arith.mulf %101, %103 : vector<8x32xf32>
    %c0_50 = arith.constant 0 : index
    %c0_51 = arith.constant 0 : index
    %105 = vector.load %arg11[%c0_50, %c0_51] : memref<1x32xf32, #tpu.memory_space<vmem>>, vector<1x32xf32>
    %106 = vector.broadcast %105 : vector<1x32xf32> to vector<8x32xf32>
    %107 = arith.addf %104, %106 : vector<8x32xf32>
    %c0_52 = arith.constant 0 : index
    %c0_53 = arith.constant 0 : index
    %c0_54 = arith.constant 0 : index
    %108 = vector.load %arg4[%c0_52, %c0_53, %c0_54] : memref<1x8x32xf32, #tpu.memory_space<vmem>>, vector<1x8x32xf32>
    %109 = vector.shape_cast %108 : vector<1x8x32xf32> to vector<8x32xf32>
    %c0_55 = arith.constant 0 : index
    %c0_56 = arith.constant 0 : index
    %110 = vector.load %arg12[%c0_55, %c0_56] : memref<32x32xf32, #tpu.memory_space<vmem>>, vector<32x32xf32>
    %cst_57 = arith.constant dense<0.000000e+00> : vector<8x32xf32>
    %111 = tpu.matmul %107, %110, %cst_57 {dimension_numbers = #tpu.dot_dimension_numbers<[1], [0], [0], [1], [0, 0, 1, 1], [], []>} : vector<8x32xf32>, vector<32x32xf32>, vector<8x32xf32> -> vector<8x32xf32>
    %c0_58 = arith.constant 0 : index
    %c0_59 = arith.constant 0 : index
    %112 = vector.load %arg13[%c0_58, %c0_59] : memref<32x32xf32, #tpu.memory_space<vmem>>, vector<32x32xf32>
    %cst_60 = arith.constant dense<0.000000e+00> : vector<8x32xf32>
    %113 = tpu.matmul %109, %112, %cst_60 {dimension_numbers = #tpu.dot_dimension_numbers<[1], [0], [0], [1], [0, 0, 1, 1], [], []>} : vector<8x32xf32>, vector<32x32xf32>, vector<8x32xf32> -> vector<8x32xf32>
    %c0_61 = arith.constant 0 : index
    %c0_62 = arith.constant 0 : index
    %114 = vector.load %arg14[%c0_61, %c0_62] : memref<32x32xf32, #tpu.memory_space<vmem>>, vector<32x32xf32>
    %cst_63 = arith.constant dense<0.000000e+00> : vector<8x32xf32>
    %115 = tpu.matmul %109, %114, %cst_63 {dimension_numbers = #tpu.dot_dimension_numbers<[1], [0], [0], [1], [0, 0, 1, 1], [], []>} : vector<8x32xf32>, vector<32x32xf32>, vector<8x32xf32> -> vector<8x32xf32>
    %116 = tpu.iota {dimensions = array<i32: 1>} : vector<8x8xi32>
    %c0_64 = arith.constant 0 : index
    %c0_65 = arith.constant 0 : index
    %c0_66 = arith.constant 0 : index
    %117 = vector.load %arg5[%c0_64, %c0_65, %c0_66] : memref<1x8x1xi32, #tpu.memory_space<vmem>>, vector<1x8x1xi32>
    %118 = vector.shape_cast %117 : vector<1x8x1xi32> to vector<8x1xi32>
    %119 = vector.broadcast %118 : vector<8x1xi32> to vector<8x8xi32>
    %120 = arith.cmpi slt, %116, %119 : vector<8x8xi32>
    %121 = vector.extract_strided_slice %111 {offsets = [0, 0], sizes = [8, 8], strides = [1, 1]} : vector<8x32xf32> to vector<8x8xf32>
    %122 = vector.extract_strided_slice %113 {offsets = [0, 0], sizes = [8, 8], strides = [1, 1]} : vector<8x32xf32> to vector<8x8xf32>
    %cst_67 = arith.constant dense<0.000000e+00> : vector<8x8xf32>
    %123 = tpu.matmul %121, %122, %cst_67 {dimension_numbers = #tpu.dot_dimension_numbers<[1], [1], [0], [0], [0, 0, 1, 0], [], []>} : vector<8x8xf32>, vector<8x8xf32>, vector<8x8xf32> -> vector<8x8xf32>
    %cst_68 = arith.constant 0.353553385 : f32
    %124 = vector.broadcast %cst_68 : f32 to vector<8x8xf32>
    %125 = arith.mulf %123, %124 : vector<8x8xf32>
    %cst_69 = arith.constant -1.000000e+06 : f32
    %126 = vector.broadcast %cst_69 : f32 to vector<8x8xf32>
    %127 = arith.select %120, %125, %126 : vector<8x8xi1>, vector<8x8xf32>
    %cst_70 = arith.constant dense<0xFF800000> : vector<8xf32>
    %128 = vector.multi_reduction <maximumf>, %127, %cst_70 [1] : vector<8x8xf32> to vector<8xf32>
    %129 = vector.shape_cast %128 : vector<8xf32> to vector<8x1xf32>
    %130 = vector.broadcast %129 : vector<8x1xf32> to vector<8x8xf32>
    %131 = arith.subf %127, %130 : vector<8x8xf32>
    %132 = math.exp %131 : vector<8x8xf32>
    %cst_71 = arith.constant dense<0.000000e+00> : vector<8xf32>
    %133 = vector.multi_reduction <add>, %132, %cst_71 [1] : vector<8x8xf32> to vector<8xf32>
    %134 = vector.shape_cast %133 : vector<8xf32> to vector<8x1xf32>
    %135 = tpu.reciprocal %134 {approx = true} : vector<8x1xf32> -> vector<8x1xf32>
    %136 = vector.broadcast %135 : vector<8x1xf32> to vector<8x8xf32>
    %137 = arith.mulf %132, %136 : vector<8x8xf32>
    %138 = vector.extract_strided_slice %115 {offsets = [0, 0], sizes = [8, 8], strides = [1, 1]} : vector<8x32xf32> to vector<8x8xf32>
    %cst_72 = arith.constant dense<0.000000e+00> : vector<8x8xf32>
    %139 = tpu.matmul %137, %138, %cst_72 {dimension_numbers = #tpu.dot_dimension_numbers<[1], [0], [0], [1], [0, 0, 1, 1], [], []>} : vector<8x8xf32>, vector<8x8xf32>, vector<8x8xf32> -> vector<8x8xf32>
    %c0_73 = arith.constant 0 : index
    %c0_74 = arith.constant 0 : index
    %140 = vector.load %arg25[%c0_73, %c0_74] : memref<8x32xf32, #tpu.memory_space<vmem>>, vector<8x8xf32>
    tpu.vector_store %arg25[%c0_73, %c0_74], %139 {strides = array<i32>} : memref<8x32xf32, #tpu.memory_space<vmem>>, vector<8x8xf32>,
    %141 = vector.extract_strided_slice %111 {offsets = [0, 8], sizes = [8, 8], strides = [1, 1]} : vector<8x32xf32> to vector<8x8xf32>
    %142 = vector.extract_strided_slice %113 {offsets = [0, 8], sizes = [8, 8], strides = [1, 1]} : vector<8x32xf32> to vector<8x8xf32>
    %cst_75 = arith.constant dense<0.000000e+00> : vector<8x8xf32>
    %143 = tpu.matmul %141, %142, %cst_75 {dimension_numbers = #tpu.dot_dimension_numbers<[1], [1], [0], [0], [0, 0, 1, 0], [], []>} : vector<8x8xf32>, vector<8x8xf32>, vector<8x8xf32> -> vector<8x8xf32>
    %cst_76 = arith.constant 0.353553385 : f32
    %144 = vector.broadcast %cst_76 : f32 to vector<8x8xf32>
    %145 = arith.mulf %143, %144 : vector<8x8xf32>
    %cst_77 = arith.constant -1.000000e+06 : f32
    %146 = vector.broadcast %cst_77 : f32 to vector<8x8xf32>
    %147 = arith.select %120, %145, %146 : vector<8x8xi1>, vector<8x8xf32>
    %cst_78 = arith.constant dense<0xFF800000> : vector<8xf32>
    %148 = vector.multi_reduction <maximumf>, %147, %cst_78 [1] : vector<8x8xf32> to vector<8xf32>
    %149 = vector.shape_cast %148 : vector<8xf32> to vector<8x1xf32>
    %150 = vector.broadcast %149 : vector<8x1xf32> to vector<8x8xf32>
    %151 = arith.subf %147, %150 : vector<8x8xf32>
    %152 = math.exp %151 : vector<8x8xf32>
    %cst_79 = arith.constant dense<0.000000e+00> : vector<8xf32>
    %153 = vector.multi_reduction <add>, %152, %cst_79 [1] : vector<8x8xf32> to vector<8xf32>
    %154 = vector.shape_cast %153 : vector<8xf32> to vector<8x1xf32>
    %155 = tpu.reciprocal %154 {approx = true} : vector<8x1xf32> -> vector<8x1xf32>
    %156 = vector.broadcast %155 : vector<8x1xf32> to vector<8x8xf32>
    %157 = arith.mulf %152, %156 : vector<8x8xf32>
    %158 = vector.extract_strided_slice %115 {offsets = [0, 8], sizes = [8, 8], strides = [1, 1]} : vector<8x32xf32> to vector<8x8xf32>
    %cst_80 = arith.constant dense<0.000000e+00> : vector<8x8xf32>
    %159 = tpu.matmul %157, %158, %cst_80 {dimension_numbers = #tpu.dot_dimension_numbers<[1], [0], [0], [1], [0, 0, 1, 1], [], []>} : vector<8x8xf32>, vector<8x8xf32>, vector<8x8xf32> -> vector<8x8xf32>
    %c0_81 = arith.constant 0 : index
    %c8_82 = arith.constant 8 : index
    %160 = vector.load %arg25[%c0_81, %c8_82] : memref<8x32xf32, #tpu.memory_space<vmem>>, vector<8x8xf32>
    tpu.vector_store %arg25[%c0_81, %c8_82], %159 {strides = array<i32>} : memref<8x32xf32, #tpu.memory_space<vmem>>, vector<8x8xf32>,
    %161 = vector.extract_strided_slice %111 {offsets = [0, 16], sizes = [8, 8], strides = [1, 1]} : vector<8x32xf32> to vector<8x8xf32>
    %162 = vector.extract_strided_slice %113 {offsets = [0, 16], sizes = [8, 8], strides = [1, 1]} : vector<8x32xf32> to vector<8x8xf32>
    %cst_83 = arith.constant dense<0.000000e+00> : vector<8x8xf32>
    %163 = tpu.matmul %161, %162, %cst_83 {dimension_numbers = #tpu.dot_dimension_numbers<[1], [1], [0], [0], [0, 0, 1, 0], [], []>} : vector<8x8xf32>, vector<8x8xf32>, vector<8x8xf32> -> vector<8x8xf32>
    %cst_84 = arith.constant 0.353553385 : f32
    %164 = vector.broadcast %cst_84 : f32 to vector<8x8xf32>
    %165 = arith.mulf %163, %164 : vector<8x8xf32>
    %cst_85 = arith.constant -1.000000e+06 : f32
    %166 = vector.broadcast %cst_85 : f32 to vector<8x8xf32>
    %167 = arith.select %120, %165, %166 : vector<8x8xi1>, vector<8x8xf32>
    %cst_86 = arith.constant dense<0xFF800000> : vector<8xf32>
    %168 = vector.multi_reduction <maximumf>, %167, %cst_86 [1] : vector<8x8xf32> to vector<8xf32>
    %169 = vector.shape_cast %168 : vector<8xf32> to vector<8x1xf32>
    %170 = vector.broadcast %169 : vector<8x1xf32> to vector<8x8xf32>
    %171 = arith.subf %167, %170 : vector<8x8xf32>
    %172 = math.exp %171 : vector<8x8xf32>
    %cst_87 = arith.constant dense<0.000000e+00> : vector<8xf32>
    %173 = vector.multi_reduction <add>, %172, %cst_87 [1] : vector<8x8xf32> to vector<8xf32>
    %174 = vector.shape_cast %173 : vector<8xf32> to vector<8x1xf32>
    %175 = tpu.reciprocal %174 {approx = true} : vector<8x1xf32> -> vector<8x1xf32>
    %176 = vector.broadcast %175 : vector<8x1xf32> to vector<8x8xf32>
    %177 = arith.mulf %172, %176 : vector<8x8xf32>
    %178 = vector.extract_strided_slice %115 {offsets = [0, 16], sizes = [8, 8], strides = [1, 1]} : vector<8x32xf32> to vector<8x8xf32>
    %cst_88 = arith.constant dense<0.000000e+00> : vector<8x8xf32>
    %179 = tpu.matmul %177, %178, %cst_88 {dimension_numbers = #tpu.dot_dimension_numbers<[1], [0], [0], [1], [0, 0, 1, 1], [], []>} : vector<8x8xf32>, vector<8x8xf32>, vector<8x8xf32> -> vector<8x8xf32>
    %c0_89 = arith.constant 0 : index
    %c16_90 = arith.constant 16 : index
    %180 = vector.load %arg25[%c0_89, %c16_90] : memref<8x32xf32, #tpu.memory_space<vmem>>, vector<8x8xf32>
    tpu.vector_store %arg25[%c0_89, %c16_90], %179 {strides = array<i32>} : memref<8x32xf32, #tpu.memory_space<vmem>>, vector<8x8xf32>,
    %181 = vector.extract_strided_slice %111 {offsets = [0, 24], sizes = [8, 8], strides = [1, 1]} : vector<8x32xf32> to vector<8x8xf32>
    %182 = vector.extract_strided_slice %113 {offsets = [0, 24], sizes = [8, 8], strides = [1, 1]} : vector<8x32xf32> to vector<8x8xf32>
    %cst_91 = arith.constant dense<0.000000e+00> : vector<8x8xf32>
    %183 = tpu.matmul %181, %182, %cst_91 {dimension_numbers = #tpu.dot_dimension_numbers<[1], [1], [0], [0], [0, 0, 1, 0], [], []>} : vector<8x8xf32>, vector<8x8xf32>, vector<8x8xf32> -> vector<8x8xf32>
    %cst_92 = arith.constant 0.353553385 : f32
    %184 = vector.broadcast %cst_92 : f32 to vector<8x8xf32>
    %185 = arith.mulf %183, %184 : vector<8x8xf32>
    %cst_93 = arith.constant -1.000000e+06 : f32
    %186 = vector.broadcast %cst_93 : f32 to vector<8x8xf32>
    %187 = arith.select %120, %185, %186 : vector<8x8xi1>, vector<8x8xf32>
    %cst_94 = arith.constant dense<0xFF800000> : vector<8xf32>
    %188 = vector.multi_reduction <maximumf>, %187, %cst_94 [1] : vector<8x8xf32> to vector<8xf32>
    %189 = vector.shape_cast %188 : vector<8xf32> to vector<8x1xf32>
    %190 = vector.broadcast %189 : vector<8x1xf32> to vector<8x8xf32>
    %191 = arith.subf %187, %190 : vector<8x8xf32>
    %192 = math.exp %191 : vector<8x8xf32>
    %cst_95 = arith.constant dense<0.000000e+00> : vector<8xf32>
    %193 = vector.multi_reduction <add>, %192, %cst_95 [1] : vector<8x8xf32> to vector<8xf32>
    %194 = vector.shape_cast %193 : vector<8xf32> to vector<8x1xf32>
    %195 = tpu.reciprocal %194 {approx = true} : vector<8x1xf32> -> vector<8x1xf32>
    %196 = vector.broadcast %195 : vector<8x1xf32> to vector<8x8xf32>
    %197 = arith.mulf %192, %196 : vector<8x8xf32>
    %198 = vector.extract_strided_slice %115 {offsets = [0, 24], sizes = [8, 8], strides = [1, 1]} : vector<8x32xf32> to vector<8x8xf32>
    %cst_96 = arith.constant dense<0.000000e+00> : vector<8x8xf32>
    %199 = tpu.matmul %197, %198, %cst_96 {dimension_numbers = #tpu.dot_dimension_numbers<[1], [0], [0], [1], [0, 0, 1, 1], [], []>} : vector<8x8xf32>, vector<8x8xf32>, vector<8x8xf32> -> vector<8x8xf32>
    %c0_97 = arith.constant 0 : index
    %c24_98 = arith.constant 24 : index
    %200 = vector.load %arg25[%c0_97, %c24_98] : memref<8x32xf32, #tpu.memory_space<vmem>>, vector<8x8xf32>
    tpu.vector_store %arg25[%c0_97, %c24_98], %199 {strides = array<i32>} : memref<8x32xf32, #tpu.memory_space<vmem>>, vector<8x8xf32>,
    %c0_99 = arith.constant 0 : index
    %c0_100 = arith.constant 0 : index
    %201 = vector.load %arg25[%c0_99, %c0_100] : memref<8x32xf32, #tpu.memory_space<vmem>>, vector<8x32xf32>
    %c0_101 = arith.constant 0 : index
    %c0_102 = arith.constant 0 : index
    %202 = vector.load %arg15[%c0_101, %c0_102] : memref<32x32xf32, #tpu.memory_space<vmem>>, vector<32x32xf32>
    %cst_103 = arith.constant dense<0.000000e+00> : vector<8x32xf32>
    %203 = tpu.matmul %201, %202, %cst_103 {dimension_numbers = #tpu.dot_dimension_numbers<[1], [0], [0], [1], [0, 0, 1, 1], [], []>} : vector<8x32xf32>, vector<32x32xf32>, vector<8x32xf32> -> vector<8x32xf32>
    %204 = arith.addf %203, %107 : vector<8x32xf32>
    %cst_104 = arith.constant dense<0.000000e+00> : vector<8xf32>
    %205 = vector.multi_reduction <add>, %204, %cst_104 [1] : vector<8x32xf32> to vector<8xf32>
    %206 = vector.shape_cast %205 : vector<8xf32> to vector<8x1xf32>
    %cst_105 = arith.constant 3.200000e+01 : f32
    %207 = vector.broadcast %cst_105 : f32 to vector<8x1xf32>
    %208 = arith.divf %206, %207 : vector<8x1xf32>
    %209 = vector.broadcast %208 : vector<8x1xf32> to vector<8x32xf32>
    %210 = arith.subf %204, %209 : vector<8x32xf32>
    %211 = arith.mulf %210, %210 : vector<8x32xf32>
    %cst_106 = arith.constant dense<0.000000e+00> : vector<8xf32>
    %212 = vector.multi_reduction <add>, %211, %cst_106 [1] : vector<8x32xf32> to vector<8xf32>
    %213 = vector.shape_cast %212 : vector<8xf32> to vector<8x1xf32>
    %cst_107 = arith.constant 3.200000e+01 : f32
    %214 = vector.broadcast %cst_107 : f32 to vector<8x1xf32>
    %215 = arith.divf %213, %214 : vector<8x1xf32>
    %cst_108 = arith.constant 9.99999974E-6 : f32
    %216 = vector.broadcast %cst_108 : f32 to vector<8x1xf32>
    %217 = arith.addf %215, %216 : vector<8x1xf32>
    %218 = math.rsqrt %217 : vector<8x1xf32>
    %219 = vector.broadcast %218 : vector<8x1xf32> to vector<8x32xf32>
    %220 = arith.mulf %210, %219 : vector<8x32xf32>
    %c0_109 = arith.constant 0 : index
    %c0_110 = arith.constant 0 : index
    %221 = vector.load %arg16[%c0_109, %c0_110] : memref<1x32xf32, #tpu.memory_space<vmem>>, vector<1x32xf32>
    %222 = vector.broadcast %221 : vector<1x32xf32> to vector<8x32xf32>
    %223 = arith.mulf %220, %222 : vector<8x32xf32>
    %c0_111 = arith.constant 0 : index
    %c0_112 = arith.constant 0 : index
    %224 = vector.load %arg17[%c0_111, %c0_112] : memref<1x32xf32, #tpu.memory_space<vmem>>, vector<1x32xf32>
    %225 = vector.broadcast %224 : vector<1x32xf32> to vector<8x32xf32>
    %226 = arith.addf %223, %225 : vector<8x32xf32>
    %c0_113 = arith.constant 0 : index
    %c0_114 = arith.constant 0 : index
    %227 = vector.load %arg18[%c0_113, %c0_114] : memref<32x64xf32, #tpu.memory_space<vmem>>, vector<32x64xf32>
    %cst_115 = arith.constant dense<0.000000e+00> : vector<8x64xf32>
    %228 = tpu.matmul %226, %227, %cst_115 {dimension_numbers = #tpu.dot_dimension_numbers<[1], [0], [0], [1], [0, 0, 1, 1], [], []>} : vector<8x32xf32>, vector<32x64xf32>, vector<8x64xf32> -> vector<8x64xf32>
    %c0_116 = arith.constant 0 : index
    %c0_117 = arith.constant 0 : index
    %229 = vector.load %arg19[%c0_116, %c0_117] : memref<1x64xf32, #tpu.memory_space<vmem>>, vector<1x64xf32>
    %230 = vector.broadcast %229 : vector<1x64xf32> to vector<8x64xf32>
    %231 = arith.addf %228, %230 : vector<8x64xf32>
    %cst_118 = arith.constant 0.000000e+00 : f32
    %232 = vector.broadcast %cst_118 : f32 to vector<8x64xf32>
    %233 = arith.maximumf %231, %232 : vector<8x64xf32>
    %c0_119 = arith.constant 0 : index
    %c0_120 = arith.constant 0 : index
    %234 = vector.load %arg20[%c0_119, %c0_120] : memref<64x32xf32, #tpu.memory_space<vmem>>, vector<64x32xf32>
    %cst_121 = arith.constant dense<0.000000e+00> : vector<8x32xf32>
    %235 = tpu.matmul %233, %234, %cst_121 {dimension_numbers = #tpu.dot_dimension_numbers<[1], [0], [0], [1], [0, 0, 1, 1], [], []>} : vector<8x64xf32>, vector<64x32xf32>, vector<8x32xf32> -> vector<8x32xf32>
    %c0_122 = arith.constant 0 : index
    %c0_123 = arith.constant 0 : index
    %236 = vector.load %arg21[%c0_122, %c0_123] : memref<1x32xf32, #tpu.memory_space<vmem>>, vector<1x32xf32>
    %237 = vector.broadcast %236 : vector<1x32xf32> to vector<8x32xf32>
    %238 = arith.addf %235, %237 : vector<8x32xf32>
    %239 = arith.addf %238, %226 : vector<8x32xf32>
    %cst_124 = arith.constant dense<0.000000e+00> : vector<8xf32>
    %240 = vector.multi_reduction <add>, %239, %cst_124 [1] : vector<8x32xf32> to vector<8xf32>
    %241 = vector.shape_cast %240 : vector<8xf32> to vector<8x1xf32>
    %cst_125 = arith.constant 3.200000e+01 : f32
    %242 = vector.broadcast %cst_125 : f32 to vector<8x1xf32>
    %243 = arith.divf %241, %242 : vector<8x1xf32>
    %244 = vector.broadcast %243 : vector<8x1xf32> to vector<8x32xf32>
    %245 = arith.subf %239, %244 : vector<8x32xf32>
    %246 = arith.mulf %245, %245 : vector<8x32xf32>
    %cst_126 = arith.constant dense<0.000000e+00> : vector<8xf32>
    %247 = vector.multi_reduction <add>, %246, %cst_126 [1] : vector<8x32xf32> to vector<8xf32>
    %248 = vector.shape_cast %247 : vector<8xf32> to vector<8x1xf32>
    %cst_127 = arith.constant 3.200000e+01 : f32
    %249 = vector.broadcast %cst_127 : f32 to vector<8x1xf32>
    %250 = arith.divf %248, %249 : vector<8x1xf32>
    %cst_128 = arith.constant 9.99999974E-6 : f32
    %251 = vector.broadcast %cst_128 : f32 to vector<8x1xf32>
    %252 = arith.addf %250, %251 : vector<8x1xf32>
    %253 = math.rsqrt %252 : vector<8x1xf32>
    %254 = vector.broadcast %253 : vector<8x1xf32> to vector<8x32xf32>
    %255 = arith.mulf %245, %254 : vector<8x32xf32>
    %c0_129 = arith.constant 0 : index
    %c0_130 = arith.constant 0 : index
    %256 = vector.load %arg22[%c0_129, %c0_130] : memref<1x32xf32, #tpu.memory_space<vmem>>, vector<1x32xf32>
    %257 = vector.broadcast %256 : vector<1x32xf32> to vector<8x32xf32>
    %258 = arith.mulf %255, %257 : vector<8x32xf32>
    %c0_131 = arith.constant 0 : index
    %c0_132 = arith.constant 0 : index
    %259 = vector.load %arg23[%c0_131, %c0_132] : memref<1x32xf32, #tpu.memory_space<vmem>>, vector<1x32xf32>
    %260 = vector.broadcast %259 : vector<1x32xf32> to vector<8x32xf32>
    %261 = arith.addf %258, %260 : vector<8x32xf32>
    %c0_133 = arith.constant 0 : index
    %c0_134 = arith.constant 0 : index
    %c0_135 = arith.constant 0 : index
    %262 = vector.load %arg24[%c0_133, %c0_134, %c0_135] : memref<1x8x32xf32, #tpu.memory_space<vmem>>, vector<1x8x32xf32>
    %263 = vector.shape_cast %262 : vector<1x8x32xf32> to vector<8x32xf32>
    %264 = vector.shape_cast %261 : vector<8x32xf32> to vector<1x8x32xf32>
    tpu.vector_store %arg24[%c0_133, %c0_134, %c0_135], %264 {strides = array<i32>} : memref<1x8x32xf32, #tpu.memory_space<vmem>>, vector<1x8x32xf32>,
    return
  }
  func.func @transform_0(%arg0: i32, %arg1: i32) -> (i32, i32, i32) {
    %c0_i32 = arith.constant 0 : i32
    %c0_i32_0 = arith.constant 0 : i32
    return %arg0, %arg1, %c0_i32 : i32, i32, i32
  }
  func.func @transform_1(%arg0: i32, %arg1: i32) -> (i32, i32, i32) {
    %c0_i32 = arith.constant 0 : i32
    %c0_i32_0 = arith.constant 0 : i32
    %c0_i32_1 = arith.constant 0 : i32
    return %arg0, %c0_i32, %c0_i32_0 : i32, i32, i32
  }
  func.func @transform_2(%arg0: i32, %arg1: i32) -> (i32, i32, i32) {
    %c0_i32 = arith.constant 0 : i32
    %c0_i32_0 = arith.constant 0 : i32
    %c0_i32_1 = arith.constant 0 : i32
    return %arg0, %c0_i32, %c0_i32_0 : i32, i32, i32
  }
  func.func @transform_3(%arg0: i32, %arg1: i32) -> (i32, i32, i32) {
    %c0_i32 = arith.constant 0 : i32
    %c0_i32_0 = arith.constant 0 : i32
    return %arg0, %arg1, %c0_i32 : i32, i32, i32
  }
  func.func @transform_4(%arg0: i32, %arg1: i32) -> (i32, i32) {
    %c0_i32 = arith.constant 0 : i32
    %c0_i32_0 = arith.constant 0 : i32
    %c0_i32_1 = arith.constant 0 : i32
    return %c0_i32, %c0_i32_0 : i32, i32
  }
  func.func @transform_5(%arg0: i32, %arg1: i32) -> (i32, i32) {
    %c0_i32 = arith.constant 0 : i32
    %c0_i32_0 = arith.constant 0 : i32
    %c0_i32_1 = arith.constant 0 : i32
    return %c0_i32, %c0_i32_0 : i32, i32
  }
  func.func @transform_6(%arg0: i32, %arg1: i32) -> (i32, i32) {
    %c0_i32 = arith.constant 0 : i32
    %c0_i32_0 = arith.constant 0 : i32
    %c0_i32_1 = arith.constant 0 : i32
    return %c0_i32, %c0_i32_0 : i32, i32
  }
  func.func @transform_7(%arg0: i32, %arg1: i32) -> (i32, i32) {
    %c0_i32 = arith.constant 0 : i32
    %c0_i32_0 = arith.constant 0 : i32
    %c0_i32_1 = arith.constant 0 : i32
    return %c0_i32, %c0_i32_0 : i32, i32
  }
  func.func @transform_8(%arg0: i32, %arg1: i32) -> (i32, i32) {
    %c0_i32 = arith.constant 0 : i32
    %c0_i32_0 = arith.constant 0 : i32
    %c0_i32_1 = arith.constant 0 : i32
    return %c0_i32, %c0_i32_0 : i32, i32
  }
  func.func @transform_9(%arg0: i32, %arg1: i32) -> (i32, i32) {
    %c0_i32 = arith.constant 0 : i32
    %c0_i32_0 = arith.constant 0 : i32
    %c0_i32_1 = arith.constant 0 : i32
    return %c0_i32, %c0_i32_0 : i32, i32
  }
  func.func @transform_10(%arg0: i32, %arg1: i32) -> (i32, i32) {
    %c0_i32 = arith.constant 0 : i32
    %c0_i32_0 = arith.constant 0 : i32
    %c0_i32_1 = arith.constant 0 : i32
    return %c0_i32, %c0_i32_0 : i32, i32
  }
  func.func @transform_11(%arg0: i32, %arg1: i32) -> (i32, i32) {
    %c0_i32 = arith.constant 0 : i32
    %c0_i32_0 = arith.constant 0 : i32
    %c0_i32_1 = arith.constant 0 : i32
    return %c0_i32, %c0_i32_0 : i32, i32
  }
  func.func @transform_12(%arg0: i32, %arg1: i32) -> (i32, i32) {
    %c0_i32 = arith.constant 0 : i32
    %c0_i32_0 = arith.constant 0 : i32
    %c0_i32_1 = arith.constant 0 : i32
    return %c0_i32, %c0_i32_0 : i32, i32
  }
  func.func @transform_13(%arg0: i32, %arg1: i32) -> (i32, i32) {
    %c0_i32 = arith.constant 0 : i32
    %c0_i32_0 = arith.constant 0 : i32
    %c0_i32_1 = arith.constant 0 : i32
    return %c0_i32, %c0_i32_0 : i32, i32
  }
  func.func @transform_14(%arg0: i32, %arg1: i32) -> (i32, i32) {
    %c0_i32 = arith.constant 0 : i32
    %c0_i32_0 = arith.constant 0 : i32
    %c0_i32_1 = arith.constant 0 : i32
    return %c0_i32, %c0_i32_0 : i32, i32
  }
  func.func @transform_15(%arg0: i32, %arg1: i32) -> (i32, i32) {
    %c0_i32 = arith.constant 0 : i32
    %c0_i32_0 = arith.constant 0 : i32
    %c0_i32_1 = arith.constant 0 : i32
    return %c0_i32, %c0_i32_0 : i32, i32
  }
  func.func @transform_16(%arg0: i32, %arg1: i32) -> (i32, i32) {
    %c0_i32 = arith.constant 0 : i32
    %c0_i32_0 = arith.constant 0 : i32
    %c0_i32_1 = arith.constant 0 : i32
    return %c0_i32, %c0_i32_0 : i32, i32
  }
  func.func @transform_17(%arg0: i32, %arg1: i32) -> (i32, i32) {
    %c0_i32 = arith.constant 0 : i32
    %c0_i32_0 = arith.constant 0 : i32
    %c0_i32_1 = arith.constant 0 : i32
    return %c0_i32, %c0_i32_0 : i32, i32
  }
  func.func @transform_18(%arg0: i32, %arg1: i32) -> (i32, i32) {
    %c0_i32 = arith.constant 0 : i32
    %c0_i32_0 = arith.constant 0 : i32
    %c0_i32_1 = arith.constant 0 : i32
    return %c0_i32, %c0_i32_0 : i32, i32
  }
  func.func @transform_19(%arg0: i32, %arg1: i32) -> (i32, i32) {
    %c0_i32 = arith.constant 0 : i32
    %c0_i32_0 = arith.constant 0 : i32
    %c0_i32_1 = arith.constant 0 : i32
    return %c0_i32, %c0_i32_0 : i32, i32
  }
  func.func @transform_20(%arg0: i32, %arg1: i32) -> (i32, i32) {
    %c0_i32 = arith.constant 0 : i32
    %c0_i32_0 = arith.constant 0 : i32
    %c0_i32_1 = arith.constant 0 : i32
    return %c0_i32, %c0_i32_0 : i32, i32
  }
  func.func @transform_21(%arg0: i32, %arg1: i32) -> (i32, i32) {
    %c0_i32 = arith.constant 0 : i32
    %c0_i32_0 = arith.constant 0 : i32
    %c0_i32_1 = arith.constant 0 : i32
    return %c0_i32, %c0_i32_0 : i32, i32
  }
  func.func @transform_22(%arg0: i32, %arg1: i32) -> (i32, i32, i32) {
    %c0_i32 = arith.constant 0 : i32
    %c0_i32_0 = arith.constant 0 : i32
    return %arg0, %arg1, %c0_i32 : i32, i32, i32
  }
}

</mosaic_0001>

<llo_original>
// kernel: tpu_custom_call.1
$region0: #{tpu_custom_call.1}
  #allocation0 [shape = 'u32[]', space=smem, size = 0x4, offset = 0x4, fixed_abs, tag = 'smem constant byte address 0x4 - core index']
  #allocation1 [shape = 'u32[144,128]{1,0:T(1,128)}', space=vmem, size = 0x12000, scoped, tag = 'internal scratch']
  #allocation2 [shape = 'f32[8,32]{1,0:T(8,128)}', space=vmem, size = 0x1000, scoped, tag = 'scratch operand']
  %s0 = inlined_call_operand.hbm [shape: f32[2,8,32], index: 0, kind: input, shape index: {}]
  %s1 = inlined_call_operand.hbm [shape: f32[2,8,32], index: 1, kind: input, shape index: {}]
  %s2 = inlined_call_operand.hbm [shape: f32[2,8,32], index: 2, kind: input, shape index: {}]
  %s3 = inlined_call_operand.vmem [shape: s32[2,8,1], index: 3, kind: input, shape index: {}]
  %s4 = inlined_call_operand.vmem [shape: f32[32,32], index: 4, kind: input, shape index: {}]
  %s5 = inlined_call_operand.vmem [shape: f32[32,32], index: 5, kind: input, shape index: {}]
  %s6 = inlined_call_operand.vmem [shape: f32[32,32], index: 6, kind: input, shape index: {}]
  %s7 = inlined_call_operand.hbm [shape: f32[32,32], index: 7, kind: input, shape index: {}]
  %s8 = inlined_call_operand.vmem [shape: f32[1,32], index: 8, kind: input, shape index: {}]
  %s9 = inlined_call_operand.vmem [shape: f32[1,32], index: 9, kind: input, shape index: {}]
  %s10 = inlined_call_operand.hbm [shape: f32[32,32], index: 10, kind: input, shape index: {}]
  %s11 = inlined_call_operand.hbm [shape: f32[32,32], index: 11, kind: input, shape index: {}]
  %s12 = inlined_call_operand.hbm [shape: f32[32,32], index: 12, kind: input, shape index: {}]
  %s13 = inlined_call_operand.vmem [shape: f32[32,32], index: 13, kind: input, shape index: {}]
  %s14 = inlined_call_operand.vmem [shape: f32[1,32], index: 14, kind: input, shape index: {}]
  %s15 = inlined_call_operand.vmem [shape: f32[1,32], index: 15, kind: input, shape index: {}]
  %s16 = inlined_call_operand.hbm [shape: f32[32,64], index: 16, kind: input, shape index: {}]
  %s17 = inlined_call_operand.vmem [shape: f32[1,64], index: 17, kind: input, shape index: {}]
  %s18 = inlined_call_operand.vmem [shape: f32[64,32], index: 18, kind: input, shape index: {}]
  %s19 = inlined_call_operand.vmem [shape: f32[1,32], index: 19, kind: input, shape index: {}]
  %s20 = inlined_call_operand.vmem [shape: f32[1,32], index: 20, kind: input, shape index: {}]
  %s21 = inlined_call_operand.vmem [shape: f32[1,32], index: 21, kind: input, shape index: {}]
  %s22 = inlined_call_operand.hbm [shape: f32[2,8,32], index: 22, kind: output, shape index: {}]
  %s23 = sld [smem:[#allocation0]]
  $region153: #{tpu_custom_call.1} parent=0
    _
  %s25 = ssub.s32 1, %s23
  %s26 = scalar_select 0, %s25, %s23
  $region1: #{tpu_custom_call.1} parent=0
    #allocation3 [shape = 'u8[8192]{0}', space=vmem, size = 0x2000, scoped, tag = 'input window, operand 0']
    #allocation4 [shape = 's32[2]{0}', space=sflag, size = 0x8, scoped, tag = 'scoped memory for tpu_custom_call.1']
    #allocation5 [shape = 's32[2]{0}', space=sflag, size = 0x8, scoped, tag = 'scoped memory for tpu_custom_call.1']
    #allocation6 [shape = 'u8[8192]{0}', space=vmem, size = 0x2000, scoped, tag = 'input window, operand 1']
    #allocation7 [shape = 's32[2]{0}', space=sflag, size = 0x8, scoped, tag = 'scoped memory for tpu_custom_call.1']
    #allocation8 [shape = 'u8[8192]{0}', space=vmem, size = 0x2000, scoped, tag = 'input window, operand 2']
    #allocation9 [shape = 'u8[16384]{0}', space=vmem, size = 0x4000, scoped, tag = 'input window, operand 7, single buffered']
    #allocation10 [shape = 's32[1]{0}', space=sflag, size = 0x4, scoped, tag = 'scoped memory for tpu_custom_call.1']
    #allocation11 [shape = 'u8[16384]{0}', space=vmem, size = 0x4000, scoped, tag = 'input window, operand 10, single buffered']
    #allocation12 [shape = 'u8[16384]{0}', space=vmem, size = 0x4000, scoped, tag = 'input window, operand 11, single buffered']
    #allocation13 [shape = 's32[1]{0}', space=sflag, size = 0x4, scoped, tag = 'scoped memory for tpu_custom_call.1']
    #allocation14 [shape = 'u8[16384]{0}', space=vmem, size = 0x4000, scoped, tag = 'input window, operand 12, single buffered']
    #allocation15 [shape = 'u8[16384]{0}', space=vmem, size = 0x4000, scoped, tag = 'input window, operand 16, single buffered']
    #allocation16 [shape = 's32[1]{0}', space=sflag, size = 0x4, scoped, tag = 'scoped memory for tpu_custom_call.1']
    #allocation17 [shape = 'u8[8192]{0}', space=vmem, size = 0x2000, scoped, tag = 'output window, operand 0']
    %27 = vsyncpa [#allocation4], 0
    %s28 = scalar_lea.sflag [#allocation4], 1
    %29 = vsyncpa %s28, 0
    %30 = vsyncpa [#allocation7], 0
    %s31 = scalar_lea.sflag [#allocation7], 1
    %32 = vsyncpa %s31, 0
    %33 = vsyncpa [#allocation10], 0
    %34 = vsyncpa [#allocation13], 0
    %35 = vsyncpa [#allocation16], 0
    %36 = vsyncpa [#allocation5], 0
    %s37 = scalar_lea.sflag [#allocation5], 1
    %38 = vsyncpa %s37, 0
    loop: start=0, step=1, limit=4
    $region2: #{tpu_custom_call.1} parent=1 // loop_pre_header
      _
    $region3: #{tpu_custom_call.1} parent=1 // loop_header
      %s40 = sphi 0, %s44
      %p41 = scmp.ge.s32.totalorder %s40, 4
      %s47 = sphi 0, %s59
      %s48 = sphi 0, %s55
      %s49 = sphi 0, %s47
      %s50 = sphi 0, %s48
      %s51 = sphi 0, %s49
      %s52 = sphi 0, %s50
      %s64 = sphi 0, %s66
      %s67 = sphi 0, %s64
      %s68 = sphi 0, %s67
      %s84 = sphi 0, %s68
      %s90 = sphi 0, %s92
      %s93 = sphi 0, %s90
      %s94 = sphi 0, %s93
      %s110 = sphi 0, %s94
      %s116 = sphi 0, %s118
      %s119 = sphi 0, %s116
      %s120 = sphi 0, %s119
      %s136 = sphi 0, %s120
      %s144 = sphi 0, %s146
      %s147 = sphi 0, %s144
      %s148 = sphi 0, %s147
      %s164 = sphi 0, %s148
      %s168 = sphi 0, %s168
      %s170 = sphi 0, %s168
      %s171 = sphi 0, %s170
      %s185 = sphi 0, %s171
      %s189 = sphi 0, %s189
      %s191 = sphi 0, %s189
      %s192 = sphi 0, %s191
      %s206 = sphi 0, %s192
      %s210 = sphi 0, %s210
      %s212 = sphi 0, %s210
      %s213 = sphi 0, %s212
      %s227 = sphi 0, %s213
      %s231 = sphi 0, %s231
      %s233 = sphi 0, %s231
      %s234 = sphi 0, %s233
      %s248 = sphi 0, %s234
      %s252 = sphi 0, %s252
      %s254 = sphi 0, %s252
      %s255 = sphi 0, %s254
      %s269 = sphi 0, %s255
      %s273 = sphi 0, %s273
      %s275 = sphi 0, %s273
      %s276 = sphi 0, %s275
      %s290 = sphi 0, %s276
      %s294 = sphi 0, %s294
      %s296 = sphi 0, %s294
      %s297 = sphi 0, %s296
      %s311 = sphi 0, %s297
      %s315 = sphi 0, %s315
      %s317 = sphi 0, %s315
      %s318 = sphi 0, %s317
      %s332 = sphi 0, %s318
      %s336 = sphi 0, %s336
      %s338 = sphi 0, %s336
      %s339 = sphi 0, %s338
      %s353 = sphi 0, %s339
      %s357 = sphi 0, %s357
      %s359 = sphi 0, %s357
      %s360 = sphi 0, %s359
      %s374 = sphi 0, %s360
      %s378 = sphi 0, %s378
      %s380 = sphi 0, %s378
      %s381 = sphi 0, %s380
      %s395 = sphi 0, %s381
      %s399 = sphi 0, %s399
      %s401 = sphi 0, %s399
      %s402 = sphi 0, %s401
      %s416 = sphi 0, %s402
      %s420 = sphi 0, %s420
      %s422 = sphi 0, %s420
      %s423 = sphi 0, %s422
      %s437 = sphi 0, %s423
      %s441 = sphi 0, %s441
      %s443 = sphi 0, %s441
      %s444 = sphi 0, %s443
      %s458 = sphi 0, %s444
      %s462 = sphi 0, %s462
      %s464 = sphi 0, %s462
      %s465 = sphi 0, %s464
      %s479 = sphi 0, %s465
      %s483 = sphi 0, %s483
      %s485 = sphi 0, %s483
      %s486 = sphi 0, %s485
      %s500 = sphi 0, %s486
      %s504 = sphi 0, %s504
      %s506 = sphi 0, %s504
      %s507 = sphi 0, %s506
      %s521 = sphi 0, %s507
      %s525 = sphi 0, %s525
      %s527 = sphi 0, %s525
      %s528 = sphi 0, %s527
      %s542 = sphi 0, %s528
      %s550 = sphi 0, %s552
      %s553 = sphi 0, %s550
      %s554 = sphi 0, %s553
      %s570 = sphi 0, %s554
    $region4: #{tpu_custom_call.1} parent=1 // loop_header_branch
      %43 = sbr.rel (%p41) target = $region8
    $region5: #{tpu_custom_call.1} parent=1 // loop_body
      %s45 = ssub.s32 %s40, 1
      %s46 = ssub.s32 %s40, 2
      %s53 = sadd.s32 1, %s48
      %p54 = scmp.ge.s32.totalorder %s53, 1
      %s55 = scalar_select %p54, 0, %s53
      %s56 = sadd.s32 1, %s47
      %s57 = scalar_select %p54, %s56, %s47
      %p58 = scmp.ge.s32.totalorder %s57, 2
      %s59 = scalar_select %p58, 0, %s57
      %s60 = ssub.s32 %s47, %s59
      %s61 = ssub.s32 %s48, %s55
      %s62 = sor.u32 %s60, %s61
      %p63 = scmp.eq.s32.totalorder %s62, 0
      %s65 = sadd.s32 %s64, 1
      %s66 = scalar_select %p63, %s64, %s65
      %p69 = pneg %p63
      %p70 = scmp.eq.s32.totalorder %s40, 1
      %p71 = por %p69, %p70
      %p72 = scmp.ne.s32.totalorder %s64, %s67
      %p73 = scmp.eq.s32.totalorder %s40, 0
      %p74 = por %p72, %p73
      %p75 = scmp.ne.s32.totalorder %s64, %s67
      %p76 = scmp.eq.s32.totalorder %s45, 1
      %p77 = por %p75, %p76
      %p78 = scmp.ne.s32.totalorder %s67, %s68
      %p79 = scmp.eq.s32.totalorder %s45, 0
      %p80 = por %p78, %p79
      %p81 = scmp.ne.s32.totalorder %s67, %s68
      %p82 = scmp.eq.s32.totalorder %s46, 1
      %p83 = por %p81, %p82
      %p85 = scmp.ne.s32.totalorder %s68, %s84
      %p86 = scmp.eq.s32.totalorder %s46, 0
      %p87 = por %p85, %p86
      %s88 = ssub.s32 %s47, %s59
      %p89 = scmp.eq.s32.totalorder %s88, 0
      %s91 = sadd.s32 %s90, 1
      %s92 = scalar_select %p89, %s90, %s91
      %p95 = pneg %p89
      %p96 = scmp.eq.s32.totalorder %s40, 1
      %p97 = por %p95, %p96
      %p98 = scmp.ne.s32.totalorder %s90, %s93
      %p99 = scmp.eq.s32.totalorder %s40, 0
      %p100 = por %p98, %p99
      %p101 = scmp.ne.s32.totalorder %s90, %s93
      %p102 = scmp.eq.s32.totalorder %s45, 1
      %p103 = por %p101, %p102
      %p104 = scmp.ne.s32.totalorder %s93, %s94
      %p105 = scmp.eq.s32.totalorder %s45, 0
      %p106 = por %p104, %p105
      %p107 = scmp.ne.s32.totalorder %s93, %s94
      %p108 = scmp.eq.s32.totalorder %s46, 1
      %p109 = por %p107, %p108
      %p111 = scmp.ne.s32.totalorder %s94, %s110
      %p112 = scmp.eq.s32.totalorder %s46, 0
      %p113 = por %p111, %p112
      %s114 = ssub.s32 %s47, %s59
      %p115 = scmp.eq.s32.totalorder %s114, 0
      %s117 = sadd.s32 %s116, 1
      %s118 = scalar_select %p115, %s116, %s117
      %p121 = pneg %p115
      %p122 = scmp.eq.s32.totalorder %s40, 1
      %p123 = por %p121, %p122
      %p124 = scmp.ne.s32.totalorder %s116, %s119
      %p125 = scmp.eq.s32.totalorder %s40, 0
      %p126 = por %p124, %p125
      %p127 = scmp.ne.s32.totalorder %s116, %s119
      %p128 = scmp.eq.s32.totalorder %s45, 1
      %p129 = por %p127, %p128
      %p130 = scmp.ne.s32.totalorder %s119, %s120
      %p131 = scmp.eq.s32.totalorder %s45, 0
      %p132 = por %p130, %p131
      %p133 = scmp.ne.s32.totalorder %s119, %s120
      %p134 = scmp.eq.s32.totalorder %s46, 1
      %p135 = por %p133, %p134
      %p137 = scmp.ne.s32.totalorder %s120, %s136
      %p138 = scmp.eq.s32.totalorder %s46, 0
      %p139 = por %p137, %p138
      %s140 = ssub.s32 %s47, %s59
      %s141 = ssub.s32 %s48, %s55
      %s142 = sor.u32 %s140, %s141
      %p143 = scmp.eq.s32.totalorder %s142, 0
      %s145 = sadd.s32 %s144, 1
      %s146 = scalar_select %p143, %s144, %s145
      %p149 = pneg %p143
      %p150 = scmp.eq.s32.totalorder %s40, 1
      %p151 = por %p149, %p150
      %p152 = scmp.ne.s32.totalorder %s144, %s147
      %p153 = scmp.eq.s32.totalorder %s40, 0
      %p154 = por %p152, %p153
      %p155 = scmp.ne.s32.totalorder %s144, %s147
      %p156 = scmp.eq.s32.totalorder %s45, 1
      %p157 = por %p155, %p156
      %p158 = scmp.ne.s32.totalorder %s147, %s148
      %p159 = scmp.eq.s32.totalorder %s45, 0
      %p160 = por %p158, %p159
      %p161 = scmp.ne.s32.totalorder %s147, %s148
      %p162 = scmp.eq.s32.totalorder %s46, 1
      %p163 = por %p161, %p162
      %p165 = scmp.ne.s32.totalorder %s148, %s164
      %p166 = scmp.eq.s32.totalorder %s46, 0
      %p167 = por %p165, %p166
      %s169 = sadd.s32 %s168, 1
      %p172 = scmp.eq.s32.totalorder %s40, 1
      %p173 = scmp.ne.s32.totalorder %s168, %s170
      %p174 = scmp.eq.s32.totalorder %s40, 0
      %p175 = por %p173, %p174
      %p176 = scmp.ne.s32.totalorder %s168, %s170
      %p177 = scmp.eq.s32.totalorder %s45, 1
      %p178 = por %p176, %p177
      %p179 = scmp.ne.s32.totalorder %s170, %s171
      %p180 = scmp.eq.s32.totalorder %s45, 0
      %p181 = por %p179, %p180
      %p182 = scmp.ne.s32.totalorder %s170, %s171
      %p183 = scmp.eq.s32.totalorder %s46, 1
      %p184 = por %p182, %p183
      %p186 = scmp.ne.s32.totalorder %s171, %s185
      %p187 = scmp.eq.s32.totalorder %s46, 0
      %p188 = por %p186, %p187
      %s190 = sadd.s32 %s189, 1
      %p193 = scmp.eq.s32.totalorder %s40, 1
      %p194 = scmp.ne.s32.totalorder %s189, %s191
      %p195 = scmp.eq.s32.totalorder %s40, 0
      %p196 = por %p194, %p195
      %p197 = scmp.ne.s32.totalorder %s189, %s191
      %p198 = scmp.eq.s32.totalorder %s45, 1
      %p199 = por %p197, %p198
      %p200 = scmp.ne.s32.totalorder %s191, %s192
      %p201 = scmp.eq.s32.totalorder %s45, 0
      %p202 = por %p200, %p201
      %p203 = scmp.ne.s32.totalorder %s191, %s192
      %p204 = scmp.eq.s32.totalorder %s46, 1
      %p205 = por %p203, %p204
      %p207 = scmp.ne.s32.totalorder %s192, %s206
      %p208 = scmp.eq.s32.totalorder %s46, 0
      %p209 = por %p207, %p208
      %s211 = sadd.s32 %s210, 1
      %p214 = scmp.eq.s32.totalorder %s40, 1
      %p215 = scmp.ne.s32.totalorder %s210, %s212
      %p216 = scmp.eq.s32.totalorder %s40, 0
      %p217 = por %p215, %p216
      %p218 = scmp.ne.s32.totalorder %s210, %s212
      %p219 = scmp.eq.s32.totalorder %s45, 1
      %p220 = por %p218, %p219
      %p221 = scmp.ne.s32.totalorder %s212, %s213
      %p222 = scmp.eq.s32.totalorder %s45, 0
      %p223 = por %p221, %p222
      %p224 = scmp.ne.s32.totalorder %s212, %s213
      %p225 = scmp.eq.s32.totalorder %s46, 1
      %p226 = por %p224, %p225
      %p228 = scmp.ne.s32.totalorder %s213, %s227
      %p229 = scmp.eq.s32.totalorder %s46, 0
      %p230 = por %p228, %p229
      %s232 = sadd.s32 %s231, 1
      %p235 = scmp.eq.s32.totalorder %s40, 1
      %p236 = scmp.ne.s32.totalorder %s231, %s233
      %p237 = scmp.eq.s32.totalorder %s40, 0
      %p238 = por %p236, %p237
      %p239 = scmp.ne.s32.totalorder %s231, %s233
      %p240 = scmp.eq.s32.totalorder %s45, 1
      %p241 = por %p239, %p240
      %p242 = scmp.ne.s32.totalorder %s233, %s234
      %p243 = scmp.eq.s32.totalorder %s45, 0
      %p244 = por %p242, %p243
      %p245 = scmp.ne.s32.totalorder %s233, %s234
      %p246 = scmp.eq.s32.totalorder %s46, 1
      %p247 = por %p245, %p246
      %p249 = scmp.ne.s32.totalorder %s234, %s248
      %p250 = scmp.eq.s32.totalorder %s46, 0
      %p251 = por %p249, %p250
      %s253 = sadd.s32 %s252, 1
      %p256 = scmp.eq.s32.totalorder %s40, 1
      %p257 = scmp.ne.s32.totalorder %s252, %s254
      %p258 = scmp.eq.s32.totalorder %s40, 0
      %p259 = por %p257, %p258
      %p260 = scmp.ne.s32.totalorder %s252, %s254
      %p261 = scmp.eq.s32.totalorder %s45, 1
      %p262 = por %p260, %p261
      %p263 = scmp.ne.s32.totalorder %s254, %s255
      %p264 = scmp.eq.s32.totalorder %s45, 0
      %p265 = por %p263, %p264
      %p266 = scmp.ne.s32.totalorder %s254, %s255
      %p267 = scmp.eq.s32.totalorder %s46, 1
      %p268 = por %p266, %p267
      %p270 = scmp.ne.s32.totalorder %s255, %s269
      %p271 = scmp.eq.s32.totalorder %s46, 0
      %p272 = por %p270, %p271
      %s274 = sadd.s32 %s273, 1
      %p277 = scmp.eq.s32.totalorder %s40, 1
      %p278 = scmp.ne.s32.totalorder %s273, %s275
      %p279 = scmp.eq.s32.totalorder %s40, 0
      %p280 = por %p278, %p279
      %p281 = scmp.ne.s32.totalorder %s273, %s275
      %p282 = scmp.eq.s32.totalorder %s45, 1
      %p283 = por %p281, %p282
      %p284 = scmp.ne.s32.totalorder %s275, %s276
      %p285 = scmp.eq.s32.totalorder %s45, 0
      %p286 = por %p284, %p285
      %p287 = scmp.ne.s32.totalorder %s275, %s276
      %p288 = scmp.eq.s32.totalorder %s46, 1
      %p289 = por %p287, %p288
      %p291 = scmp.ne.s32.totalorder %s276, %s290
      %p292 = scmp.eq.s32.totalorder %s46, 0
      %p293 = por %p291, %p292
      %s295 = sadd.s32 %s294, 1
      %p298 = scmp.eq.s32.totalorder %s40, 1
      %p299 = scmp.ne.s32.totalorder %s294, %s296
      %p300 = scmp.eq.s32.totalorder %s40, 0
      %p301 = por %p299, %p300
      %p302 = scmp.ne.s32.totalorder %s294, %s296
      %p303 = scmp.eq.s32.totalorder %s45, 1
      %p304 = por %p302, %p303
      %p305 = scmp.ne.s32.totalorder %s296, %s297
      %p306 = scmp.eq.s32.totalorder %s45, 0
      %p307 = por %p305, %p306
      %p308 = scmp.ne.s32.totalorder %s296, %s297
      %p309 = scmp.eq.s32.totalorder %s46, 1
      %p310 = por %p308, %p309
      %p312 = scmp.ne.s32.totalorder %s297, %s311
      %p313 = scmp.eq.s32.totalorder %s46, 0
      %p314 = por %p312, %p313
      %s316 = sadd.s32 %s315, 1
      %p319 = scmp.eq.s32.totalorder %s40, 1
      %p320 = scmp.ne.s32.totalorder %s315, %s317
      %p321 = scmp.eq.s32.totalorder %s40, 0
      %p322 = por %p320, %p321
      %p323 = scmp.ne.s32.totalorder %s315, %s317
      %p324 = scmp.eq.s32.totalorder %s45, 1
      %p325 = por %p323, %p324
      %p326 = scmp.ne.s32.totalorder %s317, %s318
      %p327 = scmp.eq.s32.totalorder %s45, 0
      %p328 = por %p326, %p327
      %p329 = scmp.ne.s32.totalorder %s317, %s318
      %p330 = scmp.eq.s32.totalorder %s46, 1
      %p331 = por %p329, %p330
      %p333 = scmp.ne.s32.totalorder %s318, %s332
      %p334 = scmp.eq.s32.totalorder %s46, 0
      %p335 = por %p333, %p334
      %s337 = sadd.s32 %s336, 1
      %p340 = scmp.eq.s32.totalorder %s40, 1
      %p341 = scmp.ne.s32.totalorder %s336, %s338
      %p342 = scmp.eq.s32.totalorder %s40, 0
      %p343 = por %p341, %p342
      %p344 = scmp.ne.s32.totalorder %s336, %s338
      %p345 = scmp.eq.s32.totalorder %s45, 1
      %p346 = por %p344, %p345
      %p347 = scmp.ne.s32.totalorder %s338, %s339
      %p348 = scmp.eq.s32.totalorder %s45, 0
      %p349 = por %p347, %p348
      %p350 = scmp.ne.s32.totalorder %s338, %s339
      %p351 = scmp.eq.s32.totalorder %s46, 1
      %p352 = por %p350, %p351
      %p354 = scmp.ne.s32.totalorder %s339, %s353
      %p355 = scmp.eq.s32.totalorder %s46, 0
      %p356 = por %p354, %p355
      %s358 = sadd.s32 %s357, 1
      %p361 = scmp.eq.s32.totalorder %s40, 1
      %p362 = scmp.ne.s32.totalorder %s357, %s359
      %p363 = scmp.eq.s32.totalorder %s40, 0
      %p364 = por %p362, %p363
      %p365 = scmp.ne.s32.totalorder %s357, %s359
      %p366 = scmp.eq.s32.totalorder %s45, 1
      %p367 = por %p365, %p366
      %p368 = scmp.ne.s32.totalorder %s359, %s360
      %p369 = scmp.eq.s32.totalorder %s45, 0
      %p370 = por %p368, %p369
      %p371 = scmp.ne.s32.totalorder %s359, %s360
      %p372 = scmp.eq.s32.totalorder %s46, 1
      %p373 = por %p371, %p372
      %p375 = scmp.ne.s32.totalorder %s360, %s374
      %p376 = scmp.eq.s32.totalorder %s46, 0
      %p377 = por %p375, %p376
      %s379 = sadd.s32 %s378, 1
      %p382 = scmp.eq.s32.totalorder %s40, 1
      %p383 = scmp.ne.s32.totalorder %s378, %s380
      %p384 = scmp.eq.s32.totalorder %s40, 0
      %p385 = por %p383, %p384
      %p386 = scmp.ne.s32.totalorder %s378, %s380
      %p387 = scmp.eq.s32.totalorder %s45, 1
      %p388 = por %p386, %p387
      %p389 = scmp.ne.s32.totalorder %s380, %s381
      %p390 = scmp.eq.s32.totalorder %s45, 0
      %p391 = por %p389, %p390
      %p392 = scmp.ne.s32.totalorder %s380, %s381
      %p393 = scmp.eq.s32.totalorder %s46, 1
      %p394 = por %p392, %p393
      %p396 = scmp.ne.s32.totalorder %s381, %s395
      %p397 = scmp.eq.s32.totalorder %s46, 0
      %p398 = por %p396, %p397
      %s400 = sadd.s32 %s399, 1
      %p403 = scmp.eq.s32.totalorder %s40, 1
      %p404 = scmp.ne.s32.totalorder %s399, %s401
      %p405 = scmp.eq.s32.totalorder %s40, 0
      %p406 = por %p404, %p405
      %p407 = scmp.ne.s32.totalorder %s399, %s401
      %p408 = scmp.eq.s32.totalorder %s45, 1
      %p409 = por %p407, %p408
      %p410 = scmp.ne.s32.totalorder %s401, %s402
      %p411 = scmp.eq.s32.totalorder %s45, 0
      %p412 = por %p410, %p411
      %p413 = scmp.ne.s32.totalorder %s401, %s402
      %p414 = scmp.eq.s32.totalorder %s46, 1
      %p415 = por %p413, %p414
      %p417 = scmp.ne.s32.totalorder %s402, %s416
      %p418 = scmp.eq.s32.totalorder %s46, 0
      %p419 = por %p417, %p418
      %s421 = sadd.s32 %s420, 1
      %p424 = scmp.eq.s32.totalorder %s40, 1
      %p425 = scmp.ne.s32.totalorder %s420, %s422
      %p426 = scmp.eq.s32.totalorder %s40, 0
      %p427 = por %p425, %p426
      %p428 = scmp.ne.s32.totalorder %s420, %s422
      %p429 = scmp.eq.s32.totalorder %s45, 1
      %p430 = por %p428, %p429
      %p431 = scmp.ne.s32.totalorder %s422, %s423
      %p432 = scmp.eq.s32.totalorder %s45, 0
      %p433 = por %p431, %p432
      %p434 = scmp.ne.s32.totalorder %s422, %s423
      %p435 = scmp.eq.s32.totalorder %s46, 1
      %p436 = por %p434, %p435
      %p438 = scmp.ne.s32.totalorder %s423, %s437
      %p439 = scmp.eq.s32.totalorder %s46, 0
      %p440 = por %p438, %p439
      %s442 = sadd.s32 %s441, 1
      %p445 = scmp.eq.s32.totalorder %s40, 1
      %p446 = scmp.ne.s32.totalorder %s441, %s443
      %p447 = scmp.eq.s32.totalorder %s40, 0
      %p448 = por %p446, %p447
      %p449 = scmp.ne.s32.totalorder %s441, %s443
      %p450 = scmp.eq.s32.totalorder %s45, 1
      %p451 = por %p449, %p450
      %p452 = scmp.ne.s32.totalorder %s443, %s444
      %p453 = scmp.eq.s32.totalorder %s45, 0
      %p454 = por %p452, %p453
      %p455 = scmp.ne.s32.totalorder %s443, %s444
      %p456 = scmp.eq.s32.totalorder %s46, 1
      %p457 = por %p455, %p456
      %p459 = scmp.ne.s32.totalorder %s444, %s458
      %p460 = scmp.eq.s32.totalorder %s46, 0
      %p461 = por %p459, %p460
      %s463 = sadd.s32 %s462, 1
      %p466 = scmp.eq.s32.totalorder %s40, 1
      %p467 = scmp.ne.s32.totalorder %s462, %s464
      %p468 = scmp.eq.s32.totalorder %s40, 0
      %p469 = por %p467, %p468
      %p470 = scmp.ne.s32.totalorder %s462, %s464
      %p471 = scmp.eq.s32.totalorder %s45, 1
      %p472 = por %p470, %p471
      %p473 = scmp.ne.s32.totalorder %s464, %s465
      %p474 = scmp.eq.s32.totalorder %s45, 0
      %p475 = por %p473, %p474
      %p476 = scmp.ne.s32.totalorder %s464, %s465
      %p477 = scmp.eq.s32.totalorder %s46, 1
      %p478 = por %p476, %p477
      %p480 = scmp.ne.s32.totalorder %s465, %s479
      %p481 = scmp.eq.s32.totalorder %s46, 0
      %p482 = por %p480, %p481
      %s484 = sadd.s32 %s483, 1
      %p487 = scmp.eq.s32.totalorder %s40, 1
      %p488 = scmp.ne.s32.totalorder %s483, %s485
      %p489 = scmp.eq.s32.totalorder %s40, 0
      %p490 = por %p488, %p489
      %p491 = scmp.ne.s32.totalorder %s483, %s485
      %p492 = scmp.eq.s32.totalorder %s45, 1
      %p493 = por %p491, %p492
      %p494 = scmp.ne.s32.totalorder %s485, %s486
      %p495 = scmp.eq.s32.totalorder %s45, 0
      %p496 = por %p494, %p495
      %p497 = scmp.ne.s32.totalorder %s485, %s486
      %p498 = scmp.eq.s32.totalorder %s46, 1
      %p499 = por %p497, %p498
      %p501 = scmp.ne.s32.totalorder %s486, %s500
      %p502 = scmp.eq.s32.totalorder %s46, 0
      %p503 = por %p501, %p502
      %s505 = sadd.s32 %s504, 1
      %p508 = scmp.eq.s32.totalorder %s40, 1
      %p509 = scmp.ne.s32.totalorder %s504, %s506
      %p510 = scmp.eq.s32.totalorder %s40, 0
      %p511 = por %p509, %p510
      %p512 = scmp.ne.s32.totalorder %s504, %s506
      %p513 = scmp.eq.s32.totalorder %s45, 1
      %p514 = por %p512, %p513
      %p515 = scmp.ne.s32.totalorder %s506, %s507
      %p516 = scmp.eq.s32.totalorder %s45, 0
      %p517 = por %p515, %p516
      %p518 = scmp.ne.s32.totalorder %s506, %s507
      %p519 = scmp.eq.s32.totalorder %s46, 1
      %p520 = por %p518, %p519
      %p522 = scmp.ne.s32.totalorder %s507, %s521
      %p523 = scmp.eq.s32.totalorder %s46, 0
      %p524 = por %p522, %p523
      %s526 = sadd.s32 %s525, 1
      %p529 = scmp.eq.s32.totalorder %s40, 1
      %p530 = scmp.ne.s32.totalorder %s525, %s527
      %p531 = scmp.eq.s32.totalorder %s40, 0
      %p532 = por %p530, %p531
      %p533 = scmp.ne.s32.totalorder %s525, %s527
      %p534 = scmp.eq.s32.totalorder %s45, 1
      %p535 = por %p533, %p534
      %p536 = scmp.ne.s32.totalorder %s527, %s528
      %p537 = scmp.eq.s32.totalorder %s45, 0
      %p538 = por %p536, %p537
      %p539 = scmp.ne.s32.totalorder %s527, %s528
      %p540 = scmp.eq.s32.totalorder %s46, 1
      %p541 = por %p539, %p540
      %p543 = scmp.ne.s32.totalorder %s528, %s542
      %p544 = scmp.eq.s32.totalorder %s46, 0
      %p545 = por %p543, %p544
      %s546 = ssub.s32 %s47, %s59
      %s547 = ssub.s32 %s48, %s55
      %s548 = sor.u32 %s546, %s547
      %p549 = scmp.eq.s32.totalorder %s548, 0
      %s551 = sadd.s32 %s550, 1
      %s552 = scalar_select %p549, %s550, %s551
      %p555 = pneg %p549
      %p556 = scmp.eq.s32.totalorder %s40, 1
      %p557 = por %p555, %p556
      %p558 = scmp.ne.s32.totalorder %s550, %s553
      %p559 = scmp.eq.s32.totalorder %s40, 0
      %p560 = por %p558, %p559
      %p561 = scmp.ne.s32.totalorder %s550, %s553
      %p562 = scmp.eq.s32.totalorder %s45, 1
      %p563 = por %p561, %p562
      %p564 = scmp.ne.s32.totalorder %s553, %s554
      %p565 = scmp.eq.s32.totalorder %s45, 0
      %p566 = por %p564, %p565
      %p567 = scmp.ne.s32.totalorder %s553, %s554
      %p568 = scmp.eq.s32.totalorder %s46, 1
      %p569 = por %p567, %p568
      %p571 = scmp.ne.s32.totalorder %s554, %s570
      %p572 = scmp.eq.s32.totalorder %s46, 0
      %p573 = por %p571, %p572
      %p574 = scmp.le.s32.totalorder 1, %s40
      %p575 = scmp.lt.s32.totalorder %s40, 3
      %p576 = pnand %p574, %p575
      %p577 = pneg %p576
      // Predicated region
      $region9: #{tpu_custom_call.1} parent=5 // pred_check
        _
      $region10: #{tpu_custom_call.1} parent=5 // pred_check_branch
        %579 = sbr.rel (%p576) target = $region12
      $region11: #{tpu_custom_call.1} parent=5 // pred_region
        %s580 = ssub.s32 %s40, 1
        // Predicated region
        $region13: #{tpu_custom_call.1} parent=11 // pred_check
          %p581 = pneg %p181
        $region14: #{tpu_custom_call.1} parent=11 // pred_check_branch
          %583 = sbr.rel (%p581) target = $region16
        $region15: #{tpu_custom_call.1} parent=11 // pred_region
          _
        $region16: #{tpu_custom_call.1} parent=11 // pred_fallthru
          _
        // Predicated region
        $region17: #{tpu_custom_call.1} parent=11 // pred_check
          %p584 = pneg %p202
        $region18: #{tpu_custom_call.1} parent=11 // pred_check_branch
          %586 = sbr.rel (%p584) target = $region20
        $region19: #{tpu_custom_call.1} parent=11 // pred_region
          _
        $region20: #{tpu_custom_call.1} parent=11 // pred_fallthru
          _
        // Predicated region
        $region21: #{tpu_custom_call.1} parent=11 // pred_check
          %p587 = pneg %p223
        $region22: #{tpu_custom_call.1} parent=11 // pred_check_branch
          %589 = sbr.rel (%p587) target = $region24
        $region23: #{tpu_custom_call.1} parent=11 // pred_region
          _
        $region24: #{tpu_custom_call.1} parent=11 // pred_fallthru
          _
        // Predicated region
        $region25: #{tpu_custom_call.1} parent=11 // pred_check
          %p590 = pneg %p244
        $region26: #{tpu_custom_call.1} parent=11 // pred_check_branch
          %592 = sbr.rel (%p590) target = $region28
        $region27: #{tpu_custom_call.1} parent=11 // pred_region
          %s594 = ssub.s32 512, 512
          %595 = vsyncadd [#allocation10], %s594
          %s596 = sshll.u32 [#allocation9], 4
          %s597 = int_to_ptr.vmem [resolvable:$true] %s596
          %602 = dma.hbm_to_vmem [thread:$0]  %s7, 512, %s597, [#allocation10], 128, 128, 8
        $region28: #{tpu_custom_call.1} parent=11 // pred_fallthru
          _
        // Predicated region
        $region29: #{tpu_custom_call.1} parent=11 // pred_check
          %p603 = pneg %p265
        $region30: #{tpu_custom_call.1} parent=11 // pred_check_branch
          %605 = sbr.rel (%p603) target = $region32
        $region31: #{tpu_custom_call.1} parent=11 // pred_region
          _
        $region32: #{tpu_custom_call.1} parent=11 // pred_fallthru
          _
        // Predicated region
        $region33: #{tpu_custom_call.1} parent=11 // pred_check
          %p606 = pneg %p286
        $region34: #{tpu_custom_call.1} parent=11 // pred_check_branch
          %608 = sbr.rel (%p606) target = $region36
        $region35: #{tpu_custom_call.1} parent=11 // pred_region
          _
        $region36: #{tpu_custom_call.1} parent=11 // pred_fallthru
          _
        // Predicated region
        $region37: #{tpu_custom_call.1} parent=11 // pred_check
          %p609 = pneg %p307
        $region38: #{tpu_custom_call.1} parent=11 // pred_check_branch
          %611 = sbr.rel (%p609) target = $region40
        $region39: #{tpu_custom_call.1} parent=11 // pred_region
          %s613 = ssub.s32 512, 512
          %614 = vsyncadd [#allocation10], %s613
          %s615 = sshll.u32 [#allocation11], 4
          %s616 = int_to_ptr.vmem [resolvable:$true] %s615
          %621 = dma.hbm_to_vmem [thread:$0]  %s10, 512, %s616, [#allocation10], 128, 128, 8
        $region40: #{tpu_custom_call.1} parent=11 // pred_fallthru
          _
        // Predicated region
        $region41: #{tpu_custom_call.1} parent=11 // pred_check
          %p622 = pneg %p328
        $region42: #{tpu_custom_call.1} parent=11 // pred_check_branch
          %624 = sbr.rel (%p622) target = $region44
        $region43: #{tpu_custom_call.1} parent=11 // pred_region
          %s626 = ssub.s32 512, 512
          %627 = vsyncadd [#allocation13], %s626
          %s628 = sshll.u32 [#allocation12], 4
          %s629 = int_to_ptr.vmem [resolvable:$true] %s628
          %634 = dma.hbm_to_vmem [thread:$0]  %s11, 512, %s629, [#allocation13], 128, 128, 8
        $region44: #{tpu_custom_call.1} parent=11 // pred_fallthru
          _
        // Predicated region
        $region45: #{tpu_custom_call.1} parent=11 // pred_check
          %p635 = pneg %p349
        $region46: #{tpu_custom_call.1} parent=11 // pred_check_branch
          %637 = sbr.rel (%p635) target = $region48
        $region47: #{tpu_custom_call.1} parent=11 // pred_region
          %s639 = ssub.s32 512, 512
          %640 = vsyncadd [#allocation13], %s639
          %s641 = sshll.u32 [#allocation14], 4
          %s642 = int_to_ptr.vmem [resolvable:$true] %s641
          %647 = dma.hbm_to_vmem [thread:$0]  %s12, 512, %s642, [#allocation13], 128, 128, 8
        $region48: #{tpu_custom_call.1} parent=11 // pred_fallthru
          _
        // Predicated region
        $region49: #{tpu_custom_call.1} parent=11 // pred_check
          %p648 = pneg %p370
        $region50: #{tpu_custom_call.1} parent=11 // pred_check_branch
          %650 = sbr.rel (%p648) target = $region52
        $region51: #{tpu_custom_call.1} parent=11 // pred_region
          _
        $region52: #{tpu_custom_call.1} parent=11 // pred_fallthru
          _
        // Predicated region
        $region53: #{tpu_custom_call.1} parent=11 // pred_check
          %p651 = pneg %p391
        $region54: #{tpu_custom_call.1} parent=11 // pred_check_branch
          %653 = sbr.rel (%p651) target = $region56
        $region55: #{tpu_custom_call.1} parent=11 // pred_region
          _
        $region56: #{tpu_custom_call.1} parent=11 // pred_fallthru
          _
        // Predicated region
        $region57: #{tpu_custom_call.1} parent=11 // pred_check
          %p654 = pneg %p412
        $region58: #{tpu_custom_call.1} parent=11 // pred_check_branch
          %656 = sbr.rel (%p654) target = $region60
        $region59: #{tpu_custom_call.1} parent=11 // pred_region
          _
        $region60: #{tpu_custom_call.1} parent=11 // pred_fallthru
          _
        // Predicated region
        $region61: #{tpu_custom_call.1} parent=11 // pred_check
          %p657 = pneg %p433
        $region62: #{tpu_custom_call.1} parent=11 // pred_check_branch
          %659 = sbr.rel (%p657) target = $region64
        $region63: #{tpu_custom_call.1} parent=11 // pred_region
          %s661 = ssub.s32 512, 512
          %662 = vsyncadd [#allocation16], %s661
          %s663 = sshll.u32 [#allocation15], 4
          %s664 = int_to_ptr.vmem [resolvable:$true] %s663
          %669 = dma.hbm_to_vmem [thread:$0]  %s16, 512, %s664, [#allocation16], 128, 128, 8
        $region64: #{tpu_custom_call.1} parent=11 // pred_fallthru
          _
        // Predicated region
        $region65: #{tpu_custom_call.1} parent=11 // pred_check
          %p670 = pneg %p454
        $region66: #{tpu_custom_call.1} parent=11 // pred_check_branch
          %672 = sbr.rel (%p670) target = $region68
        $region67: #{tpu_custom_call.1} parent=11 // pred_region
          _
        $region68: #{tpu_custom_call.1} parent=11 // pred_fallthru
          _
        // Predicated region
        $region69: #{tpu_custom_call.1} parent=11 // pred_check
          %p673 = pneg %p475
        $region70: #{tpu_custom_call.1} parent=11 // pred_check_branch
          %675 = sbr.rel (%p673) target = $region72
        $region71: #{tpu_custom_call.1} parent=11 // pred_region
          _
        $region72: #{tpu_custom_call.1} parent=11 // pred_fallthru
          _
        // Predicated region
        $region73: #{tpu_custom_call.1} parent=11 // pred_check
          %p676 = pneg %p496
        $region74: #{tpu_custom_call.1} parent=11 // pred_check_branch
          %678 = sbr.rel (%p676) target = $region76
        $region75: #{tpu_custom_call.1} parent=11 // pred_region
          _
        $region76: #{tpu_custom_call.1} parent=11 // pred_fallthru
          _
        // Predicated region
        $region77: #{tpu_custom_call.1} parent=11 // pred_check
          %p679 = pneg %p517
        $region78: #{tpu_custom_call.1} parent=11 // pred_check_branch
          %681 = sbr.rel (%p679) target = $region80
        $region79: #{tpu_custom_call.1} parent=11 // pred_region
          _
        $region80: #{tpu_custom_call.1} parent=11 // pred_fallthru
          _
        // Predicated region
        $region81: #{tpu_custom_call.1} parent=11 // pred_check
          %p682 = pneg %p538
        $region82: #{tpu_custom_call.1} parent=11 // pred_check_branch
          %684 = sbr.rel (%p682) target = $region84
        $region83: #{tpu_custom_call.1} parent=11 // pred_region
          _
        $region84: #{tpu_custom_call.1} parent=11 // pred_fallthru
          _
      $region12: #{tpu_custom_call.1} parent=5 // pred_fallthru
        _
      %p685 = scmp.lt.s32.totalorder %s40, 2
      // Predicated region
      $region85: #{tpu_custom_call.1} parent=5 // pred_check
        %p686 = pneg %p685
      $region86: #{tpu_custom_call.1} parent=5 // pred_check_branch
        %688 = sbr.rel (%p686) target = $region88
      $region87: #{tpu_custom_call.1} parent=5 // pred_region
        // Predicated region
        $region89: #{tpu_custom_call.1} parent=87 // pred_check
          %p689 = pneg %p74
        $region90: #{tpu_custom_call.1} parent=87 // pred_check_branch
          %691 = sbr.rel (%p689) target = $region92
        $region91: #{tpu_custom_call.1} parent=87 // pred_region
          %s692 = sand.u32 %s64, 1
          %s693 = scalar_lea.sflag [#allocation4], %s692
          %s694 = sand.u32 %s64, 1
          %s695 = smul.addr %s694, 8
          %s696 = scalar_lea.vmem [#allocation3], %s695
          %s698 = ssub.s32 128, 128
          %699 = vsyncadd %s693, %s698
          %s700 = sadd.s32 %s48, %s47
          %s701 = smul.addr %s700, 128
          %s702 = scalar_lea.hbm %s0, %s701
          %s704 = sshll.u32 %s696, 4
          %s705 = int_to_ptr.vmem [resolvable:$true] %s704
          %707 = dma.hbm_to_vmem [thread:$0]  %s702, 128, %s705, %s693
        $region92: #{tpu_custom_call.1} parent=87 // pred_fallthru
          _
        // Predicated region
        $region93: #{tpu_custom_call.1} parent=87 // pred_check
          %p708 = pneg %p100
        $region94: #{tpu_custom_call.1} parent=87 // pred_check_branch
          %710 = sbr.rel (%p708) target = $region96
        $region95: #{tpu_custom_call.1} parent=87 // pred_region
          %s711 = sand.u32 %s40, 1
          %s712 = scalar_lea.sflag [#allocation7], %s711
          %s713 = sand.u32 %s90, 1
          %s714 = smul.addr %s713, 8
          %s715 = scalar_lea.vmem [#allocation6], %s714
          %s717 = ssub.s32 128, 128
          %718 = vsyncadd %s712, %s717
          %s719 = smul.addr %s47, 128
          %s720 = scalar_lea.hbm %s1, %s719
          %s722 = sshll.u32 %s715, 4
          %s723 = int_to_ptr.vmem [resolvable:$true] %s722
          %725 = dma.hbm_to_vmem [thread:$0]  %s720, 128, %s723, %s712
        $region96: #{tpu_custom_call.1} parent=87 // pred_fallthru
          _
        // Predicated region
        $region97: #{tpu_custom_call.1} parent=87 // pred_check
          %p726 = pneg %p126
        $region98: #{tpu_custom_call.1} parent=87 // pred_check_branch
          %728 = sbr.rel (%p726) target = $region100
        $region99: #{tpu_custom_call.1} parent=87 // pred_region
          %s729 = sand.u32 %s40, 1
          %s730 = scalar_lea.sflag [#allocation7], %s729
          %s731 = sand.u32 %s116, 1
          %s732 = smul.addr %s731, 8
          %s733 = scalar_lea.vmem [#allocation8], %s732
          %s735 = ssub.s32 128, 128
          %736 = vsyncadd %s730, %s735
          %s737 = smul.addr %s47, 128
          %s738 = scalar_lea.hbm %s2, %s737
          %s740 = sshll.u32 %s733, 4
          %s741 = int_to_ptr.vmem [resolvable:$true] %s740
          %743 = dma.hbm_to_vmem [thread:$0]  %s738, 128, %s741, %s730
        $region100: #{tpu_custom_call.1} parent=87 // pred_fallthru
          _
        // Predicated region
        $region101: #{tpu_custom_call.1} parent=87 // pred_check
          %p744 = pneg %p154
        $region102: #{tpu_custom_call.1} parent=87 // pred_check_branch
          %746 = sbr.rel (%p744) target = $region104
        $region103: #{tpu_custom_call.1} parent=87 // pred_region
          %p747 = scmp.lt.s32.totalorder %s47, 1
          %s748 = scalar_select %p747, %s47, 1
          %p749 = scmp.lt.s32.totalorder %s48, 0
          %s750 = scalar_select %p749, %s48, 0
          %s751 = sadd.s32 %s750, %s748
          %s752 = smul.addr %s751, 8
          %s753 = scalar_lea.vmem %s3, %s752
        $region104: #{tpu_custom_call.1} parent=87 // pred_fallthru
          _
      $region88: #{tpu_custom_call.1} parent=5 // pred_fallthru
        _
      %p754 = scmp.le.s32.totalorder 1, %s40
      %p755 = scmp.lt.s32.totalorder %s40, 3
      %p756 = pnand %p754, %p755
      %p757 = pneg %p756
      // Predicated region
      $region105: #{tpu_custom_call.1} parent=5 // pred_check
        _
      $region106: #{tpu_custom_call.1} parent=5 // pred_check_branch
        %759 = sbr.rel (%p756) target = $region108
      $region107: #{tpu_custom_call.1} parent=5 // pred_region
        %s760 = ssub.s32 %s40, 1
        %s761 = sand.u32 %s67, 1
        %s762 = scalar_lea.sflag [#allocation4], %s761
        %s763 = sand.u32 %s67, 1
        %s764 = smul.addr %s763, 8
        %s765 = scalar_lea.vmem [#allocation3], %s764
        // Predicated region
        $region109: #{tpu_custom_call.1} parent=107 // pred_check
          %p766 = pneg %p80
        $region110: #{tpu_custom_call.1} parent=107 // pred_check_branch
          %768 = sbr.rel (%p766) target = $region112
        $region111: #{tpu_custom_call.1} parent=107 // pred_region
          %769 = dma.done %s762, 128
        $region112: #{tpu_custom_call.1} parent=107 // pred_fallthru
          _
        %s770 = sand.u32 %s45, 1
        %s771 = scalar_lea.sflag [#allocation7], %s770
        %s772 = sand.u32 %s93, 1
        %s773 = smul.addr %s772, 8
        %s774 = scalar_lea.vmem [#allocation6], %s773
        // Predicated region
        $region113: #{tpu_custom_call.1} parent=107 // pred_check
          %p775 = pneg %p106
        $region114: #{tpu_custom_call.1} parent=107 // pred_check_branch
          %777 = sbr.rel (%p775) target = $region116
        $region115: #{tpu_custom_call.1} parent=107 // pred_region
          %778 = dma.done %s771, 128
        $region116: #{tpu_custom_call.1} parent=107 // pred_fallthru
          _
        %s779 = sand.u32 %s45, 1
        %s780 = scalar_lea.sflag [#allocation7], %s779
        %s781 = sand.u32 %s119, 1
        %s782 = smul.addr %s781, 8
        %s783 = scalar_lea.vmem [#allocation8], %s782
        // Predicated region
        $region117: #{tpu_custom_call.1} parent=107 // pred_check
          %p784 = pneg %p132
        $region118: #{tpu_custom_call.1} parent=107 // pred_check_branch
          %786 = sbr.rel (%p784) target = $region120
        $region119: #{tpu_custom_call.1} parent=107 // pred_region
          %787 = dma.done %s780, 128
        $region120: #{tpu_custom_call.1} parent=107 // pred_fallthru
          _
        // Predicated region
        $region121: #{tpu_custom_call.1} parent=107 // pred_check
          %p788 = pneg %p244
        $region122: #{tpu_custom_call.1} parent=107 // pred_check_branch
          %790 = sbr.rel (%p788) target = $region124
        $region123: #{tpu_custom_call.1} parent=107 // pred_region
          %791 = dma.done [#allocation10], 512
        $region124: #{tpu_custom_call.1} parent=107 // pred_fallthru
          _
        // Predicated region
        $region125: #{tpu_custom_call.1} parent=107 // pred_check
          %p792 = pneg %p307
        $region126: #{tpu_custom_call.1} parent=107 // pred_check_branch
          %794 = sbr.rel (%p792) target = $region128
        $region127: #{tpu_custom_call.1} parent=107 // pred_region
          %795 = dma.done [#allocation10], 512
        $region128: #{tpu_custom_call.1} parent=107 // pred_fallthru
          _
        // Predicated region
        $region129: #{tpu_custom_call.1} parent=107 // pred_check
          %p796 = pneg %p328
        $region130: #{tpu_custom_call.1} parent=107 // pred_check_branch
          %798 = sbr.rel (%p796) target = $region132
        $region131: #{tpu_custom_call.1} parent=107 // pred_region
          %799 = dma.done [#allocation13], 512
        $region132: #{tpu_custom_call.1} parent=107 // pred_fallthru
          _
        // Predicated region
        $region133: #{tpu_custom_call.1} parent=107 // pred_check
          %p800 = pneg %p349
        $region134: #{tpu_custom_call.1} parent=107 // pred_check_branch
          %802 = sbr.rel (%p800) target = $region136
        $region135: #{tpu_custom_call.1} parent=107 // pred_region
          %803 = dma.done [#allocation13], 512
        $region136: #{tpu_custom_call.1} parent=107 // pred_fallthru
          _
        // Predicated region
        $region137: #{tpu_custom_call.1} parent=107 // pred_check
          %p804 = pneg %p433
        $region138: #{tpu_custom_call.1} parent=107 // pred_check_branch
          %806 = sbr.rel (%p804) target = $region140
        $region139: #{tpu_custom_call.1} parent=107 // pred_region
          %807 = dma.done [#allocation16], 512
        $region140: #{tpu_custom_call.1} parent=107 // pred_fallthru
          _
        %s808 = sand.u32 %s67, 1
        %s809 = scalar_lea.sflag [#allocation4], %s808
        %s810 = sand.u32 %s67, 1
        %s811 = smul.addr %s810, 8
        %s812 = scalar_lea.vmem [#allocation3], %s811
        %p813 = pneg %p80
        %p814 = pneg %p77
        %s815 = sand.u32 %s45, 1
        %s816 = scalar_lea.sflag [#allocation7], %s815
        %s817 = sand.u32 %s93, 1
        %s818 = smul.addr %s817, 8
        %s819 = scalar_lea.vmem [#allocation6], %s818
        %p820 = pneg %p106
        %p821 = pneg %p103
        %s822 = sand.u32 %s45, 1
        %s823 = scalar_lea.sflag [#allocation7], %s822
        %s824 = sand.u32 %s119, 1
        %s825 = smul.addr %s824, 8
        %s826 = scalar_lea.vmem [#allocation8], %s825
        %p827 = pneg %p132
        %p828 = pneg %p129
        %p829 = scmp.lt.s32.totalorder %s49, 1
        %s830 = scalar_select %p829, %s49, 1
        %p831 = scmp.lt.s32.totalorder %s50, 0
        %s832 = scalar_select %p831, %s50, 0
        %s833 = sadd.s32 %s832, %s830
        %s834 = smul.addr %s833, 8
        %s835 = scalar_lea.vmem %s3, %s834
        %p836 = pneg %p160
        %p837 = pneg %p157
        %p838 = pneg %p181
        %p839 = pneg %p178
        %p840 = pneg %p202
        %p841 = pneg %p199
        %p842 = pneg %p223
        %p843 = pneg %p220
        %p844 = pneg %p244
        %p845 = pneg %p241
        %p846 = pneg %p265
        %p847 = pneg %p262
        %p848 = pneg %p286
        %p849 = pneg %p283
        %p850 = pneg %p307
        %p851 = pneg %p304
        %p852 = pneg %p328
        %p853 = pneg %p325
        %p854 = pneg %p349
        %p855 = pneg %p346
        %p856 = pneg %p370
        %p857 = pneg %p367
        %p858 = pneg %p391
        %p859 = pneg %p388
        %p860 = pneg %p412
        %p861 = pneg %p409
        %p862 = pneg %p433
        %p863 = pneg %p430
        %p864 = pneg %p454
        %p865 = pneg %p451
        %p866 = pneg %p475
        %p867 = pneg %p472
        %p868 = pneg %p496
        %p869 = pneg %p493
        %p870 = pneg %p517
        %p871 = pneg %p514
        %p872 = pneg %p538
        %p873 = pneg %p535
        %p874 = pneg %p566
        %p875 = pneg %p563
        %s876 = sand.u32 %s553, 1
        %s877 = scalar_lea.sflag [#allocation5], %s876
        %s878 = sand.u32 %s553, 1
        %s879 = smul.addr %s878, 8
        %s880 = scalar_lea.vmem [#allocation17], %s879
        %p881 = scmp.lt.s32.totalorder %s49, 1
        %s882 = scalar_select %p881, %s49, 1
        %p883 = scmp.lt.s32.totalorder %s50, 0
        %s884 = scalar_select %p883, %s50, 0
        %s885 = sadd.s32 %s884, %s882
        %s886 = smul.addr %s885, 8
        %s887 = scalar_lea.vmem %s3, %s886
        %v888 = vld [vmem:[%s765] sm:$0xff]
        %v889 = vld [vmem:[%s774] sm:$0xff]
        %v890 = vld [vmem:[%s4] sm:$0xff]
        %v891 = vld [vmem:[%s4 + $0x8] sm:$0xff]
        %v892 = vld [vmem:[%s4 + $0x10] sm:$0xff]
        %v893 = vld [vmem:[%s4 + $0x18] sm:$0xff]
        %vm894 = vcmask 261120
        %v896 = vsel %vm894, %v888, 0
        %898 = vmatprep.subr.mxu0 0.0
        %899 = vmatpush1.msra.mxu0 %v890
        %900 = vmatprep.subr.mxu0 0.0
        %901 = vmatpush1.msra.mxu0 %v891
        %902 = vmatprep.subr.mxu0 0.0
        %903 = vmatpush1.msra.mxu0 %v892
        %904 = vmatprep.subr.mxu0 0.0
        %905 = vmatpush1.msra.mxu0 %v893
        %906 = vmatprep.subr.mxu0 0.0
        %907 = vmatpush1.msra.mxu0 0.0
        %908 = vmatprep.subr.mxu0 0.0
        %909 = vmatpush1.msra.mxu0 0.0
        %910 = vmatprep.subr.mxu0 0.0
        %911 = vmatpush1.msra.mxu0 0.0
        %912 = vmatprep.subr.mxu0 0.0
        %913 = vmatpush1.msra.mxu0 0.0
        %914 = vmatprep.subr.mxu0 0.0
        %915 = vmatpush1.msra.mxu0 0.0
        %916 = vmatprep.subr.mxu0 0.0
        %917 = vmatpush1.msra.mxu0 0.0
        %918 = vmatprep.subr.mxu0 0.0
        %919 = vmatpush1.msra.mxu0 0.0
        %920 = vmatprep.subr.mxu0 0.0
        %921 = vmatpush1.msra.mxu0 0.0
        %922 = vmatprep.subr.mxu0 0.0
        %923 = vmatpush1.msra.mxu0 0.0
        %924 = vmatprep.subr.mxu0 0.0
        %925 = vmatpush1.msra.mxu0 0.0
        %926 = vmatprep.subr.mxu0 0.0
        %927 = vmatpush1.msra.mxu0 0.0
        %928 = vmatprep.subr.mxu0 0.0
        %929 = vmatpush1.msra.mxu0 0.0
        %930 = vmatprep.subr.mxu0 0.0
        %931 = vmatpush1.msra.mxu0 0.0
        %932 = vmatprep.subr.mxu0 0.0
        %933 = vmatpush1.msra.mxu0 0.0
        %934 = vmatprep.subr.mxu0 0.0
        %935 = vmatpush1.msra.mxu0 0.0
        %936 = vmatprep.subr.mxu0 0.0
        %937 = vmatpush1.msra.mxu0 0.0
        %938 = vmatprep.subr.mxu0 0.0
        %939 = vmatpush1.msra.mxu0 0.0
        %940 = vmatprep.subr.mxu0 0.0
        %941 = vmatpush1.msra.mxu0 0.0
        %942 = vmatprep.subr.mxu0 0.0
        %943 = vmatpush1.msra.mxu0 0.0
        %944 = vmatprep.subr.mxu0 0.0
        %945 = vmatpush1.msra.mxu0 0.0
        %946 = vmatprep.subr.mxu0 0.0
        %947 = vmatpush1.msra.mxu0 0.0
        %948 = vmatprep.subr.mxu0 0.0
        %949 = vmatpush1.msra.mxu0 0.0
        %950 = vmatprep.subr.mxu0 0.0
        %951 = vmatpush1.msra.mxu0 0.0
        %952 = vmatprep.subr.mxu0 0.0
        %953 = vmatpush1.msra.mxu0 0.0
        %954 = vmatprep.subr.mxu0 0.0
        %955 = vmatpush1.msra.mxu0 0.0
        %956 = vmatprep.subr.mxu0 0.0
        %957 = vmatpush1.msra.mxu0 0.0
        %958 = vmatprep.subr.mxu0 0.0
        %959 = vmatpush1.msra.mxu0 0.0
        %960 = vmatprep.subr.mxu0 0.0
        %961 = vmatpush1.msra.mxu0 0.0
        %962 = vmatprep.mubr.f32.mxu0 0.0
        %963 = vmatmul.mubr.f32.gmra.mrb[0].mxu0 %v896
        %v964 = vpop.f32.mrb[0].mxu0
        %v965 = vadd.f32 0.0, %v964
        %v966 = vpop.f32.mrb[0].mxu0
        %967 = vdwg.mxu0
        %v968 = vld [vmem:[%s5] sm:$0xff]
        %v969 = vld [vmem:[%s5 + $0x8] sm:$0xff]
        %v970 = vld [vmem:[%s5 + $0x10] sm:$0xff]
        %v971 = vld [vmem:[%s5 + $0x18] sm:$0xff]
        %v973 = vsel %vm894, %v889, 0
        %975 = vmatprep.subr.mxu0 0.0
        %976 = vmatpush1.msra.mxu0 %v968
        %977 = vmatprep.subr.mxu0 0.0
        %978 = vmatpush1.msra.mxu0 %v969
        %979 = vmatprep.subr.mxu0 0.0
        %980 = vmatpush1.msra.mxu0 %v970
        %981 = vmatprep.subr.mxu0 0.0
        %982 = vmatpush1.msra.mxu0 %v971
        %983 = vmatprep.subr.mxu0 0.0
        %984 = vmatpush1.msra.mxu0 0.0
        %985 = vmatprep.subr.mxu0 0.0
        %986 = vmatpush1.msra.mxu0 0.0
        %987 = vmatprep.subr.mxu0 0.0
        %988 = vmatpush1.msra.mxu0 0.0
        %989 = vmatprep.subr.mxu0 0.0
        %990 = vmatpush1.msra.mxu0 0.0
        %991 = vmatprep.subr.mxu0 0.0
        %992 = vmatpush1.msra.mxu0 0.0
        %993 = vmatprep.subr.mxu0 0.0
        %994 = vmatpush1.msra.mxu0 0.0
        %995 = vmatprep.subr.mxu0 0.0
        %996 = vmatpush1.msra.mxu0 0.0
        %997 = vmatprep.subr.mxu0 0.0
        %998 = vmatpush1.msra.mxu0 0.0
        %999 = vmatprep.subr.mxu0 0.0
        %1000 = vmatpush1.msra.mxu0 0.0
        %1001 = vmatprep.subr.mxu0 0.0
        %1002 = vmatpush1.msra.mxu0 0.0
        %1003 = vmatprep.subr.mxu0 0.0
        %1004 = vmatpush1.msra.mxu0 0.0
        %1005 = vmatprep.subr.mxu0 0.0
        %1006 = vmatpush1.msra.mxu0 0.0
        %1007 = vmatprep.subr.mxu0 0.0
        %1008 = vmatpush1.msra.mxu0 0.0
        %1009 = vmatprep.subr.mxu0 0.0
        %1010 = vmatpush1.msra.mxu0 0.0
        %1011 = vmatprep.subr.mxu0 0.0
        %1012 = vmatpush1.msra.mxu0 0.0
        %1013 = vmatprep.subr.mxu0 0.0
        %1014 = vmatpush1.msra.mxu0 0.0
        %1015 = vmatprep.subr.mxu0 0.0
        %1016 = vmatpush1.msra.mxu0 0.0
        %1017 = vmatprep.subr.mxu0 0.0
        %1018 = vmatpush1.msra.mxu0 0.0
        %1019 = vmatprep.subr.mxu0 0.0
        %1020 = vmatpush1.msra.mxu0 0.0
        %1021 = vmatprep.subr.mxu0 0.0
        %1022 = vmatpush1.msra.mxu0 0.0
        %1023 = vmatprep.subr.mxu0 0.0
        %1024 = vmatpush1.msra.mxu0 0.0
        %1025 = vmatprep.subr.mxu0 0.0
        %1026 = vmatpush1.msra.mxu0 0.0
        %1027 = vmatprep.subr.mxu0 0.0
        %1028 = vmatpush1.msra.mxu0 0.0
        %1029 = vmatprep.subr.mxu0 0.0
        %1030 = vmatpush1.msra.mxu0 0.0
        %1031 = vmatprep.subr.mxu0 0.0
        %1032 = vmatpush1.msra.mxu0 0.0
        %1033 = vmatprep.subr.mxu0 0.0
        %1034 = vmatpush1.msra.mxu0 0.0
        %1035 = vmatprep.subr.mxu0 0.0
        %1036 = vmatpush1.msra.mxu0 0.0
        %1037 = vmatprep.subr.mxu0 0.0
        %1038 = vmatpush1.msra.mxu0 0.0
        %1039 = vmatprep.mubr.f32.mxu0 0.0
        %1040 = vmatmul.mubr.f32.gmra.mrb[0].mxu0 %v973
        %v1041 = vpop.f32.mrb[0].mxu0
        %v1042 = vadd.f32 0.0, %v1041
        %v1043 = vpop.f32.mrb[0].mxu0
        %1044 = vdwg.mxu0
        %v1045 = vld [vmem:[%s6] sm:$0xff]
        %v1046 = vld [vmem:[%s6 + $0x8] sm:$0xff]
        %v1047 = vld [vmem:[%s6 + $0x10] sm:$0xff]
        %v1048 = vld [vmem:[%s6 + $0x18] sm:$0xff]
        %1049 = vmatprep.subr.mxu0 0.0
        %1050 = vmatpush1.msra.mxu0 %v1045
        %1051 = vmatprep.subr.mxu0 0.0
        %1052 = vmatpush1.msra.mxu0 %v1046
        %1053 = vmatprep.subr.mxu0 0.0
        %1054 = vmatpush1.msra.mxu0 %v1047
        %1055 = vmatprep.subr.mxu0 0.0
        %1056 = vmatpush1.msra.mxu0 %v1048
        %1057 = vmatprep.subr.mxu0 0.0
        %1058 = vmatpush1.msra.mxu0 0.0
        %1059 = vmatprep.subr.mxu0 0.0
        %1060 = vmatpush1.msra.mxu0 0.0
        %1061 = vmatprep.subr.mxu0 0.0
        %1062 = vmatpush1.msra.mxu0 0.0
        %1063 = vmatprep.subr.mxu0 0.0
        %1064 = vmatpush1.msra.mxu0 0.0
        %1065 = vmatprep.subr.mxu0 0.0
        %1066 = vmatpush1.msra.mxu0 0.0
        %1067 = vmatprep.subr.mxu0 0.0
        %1068 = vmatpush1.msra.mxu0 0.0
        %1069 = vmatprep.subr.mxu0 0.0
        %1070 = vmatpush1.msra.mxu0 0.0
        %1071 = vmatprep.subr.mxu0 0.0
        %1072 = vmatpush1.msra.mxu0 0.0
        %1073 = vmatprep.subr.mxu0 0.0
        %1074 = vmatpush1.msra.mxu0 0.0
        %1075 = vmatprep.subr.mxu0 0.0
        %1076 = vmatpush1.msra.mxu0 0.0
        %1077 = vmatprep.subr.mxu0 0.0
        %1078 = vmatpush1.msra.mxu0 0.0
        %1079 = vmatprep.subr.mxu0 0.0
        %1080 = vmatpush1.msra.mxu0 0.0
        %1081 = vmatprep.subr.mxu0 0.0
        %1082 = vmatpush1.msra.mxu0 0.0
        %1083 = vmatprep.subr.mxu0 0.0
        %1084 = vmatpush1.msra.mxu0 0.0
        %1085 = vmatprep.subr.mxu0 0.0
        %1086 = vmatpush1.msra.mxu0 0.0
        %1087 = vmatprep.subr.mxu0 0.0
        %1088 = vmatpush1.msra.mxu0 0.0
        %1089 = vmatprep.subr.mxu0 0.0
        %1090 = vmatpush1.msra.mxu0 0.0
        %1091 = vmatprep.subr.mxu0 0.0
        %1092 = vmatpush1.msra.mxu0 0.0
        %1093 = vmatprep.subr.mxu0 0.0
        %1094 = vmatpush1.msra.mxu0 0.0
        %1095 = vmatprep.subr.mxu0 0.0
        %1096 = vmatpush1.msra.mxu0 0.0
        %1097 = vmatprep.subr.mxu0 0.0
        %1098 = vmatpush1.msra.mxu0 0.0
        %1099 = vmatprep.subr.mxu0 0.0
        %1100 = vmatpush1.msra.mxu0 0.0
        %1101 = vmatprep.subr.mxu0 0.0
        %1102 = vmatpush1.msra.mxu0 0.0
        %1103 = vmatprep.subr.mxu0 0.0
        %1104 = vmatpush1.msra.mxu0 0.0
        %1105 = vmatprep.subr.mxu0 0.0
        %1106 = vmatpush1.msra.mxu0 0.0
        %1107 = vmatprep.subr.mxu0 0.0
        %1108 = vmatpush1.msra.mxu0 0.0
        %1109 = vmatprep.subr.mxu0 0.0
        %1110 = vmatpush1.msra.mxu0 0.0
        %1111 = vmatprep.subr.mxu0 0.0
        %1112 = vmatpush1.msra.mxu0 0.0
        %1113 = vmatprep.mubr.f32.mxu0 0.0
        %1114 = vmatmul.mubr.f32.gmra.mrb[0].mxu0 %v973
        %v1115 = vpop.f32.mrb[0].mxu0
        %v1116 = vadd.f32 0.0, %v1115
        %v1117 = vpop.f32.mrb[0].mxu0
        %1118 = vdwg.mxu0
        %vm1119 = vcmask 64512
        %v1121 = vsel %vm1119, %v965, 0
        %v1124 = vsel %vm1119, %v1042, 0
        %1126 = vmatprep.subr.mxu0 0.0
        %1127 = vmatpush1.xpose.msra.mxu0 %v1124
        %1128 = vmatprep.subr.mxu0 0.0
        %1129 = vmatpush1.xpose.msra.mxu0 0.0
        %1130 = vmatprep.subr.mxu0 0.0
        %1131 = vmatpush1.xpose.msra.mxu0 0.0
        %1132 = vmatprep.subr.mxu0 0.0
        %1133 = vmatpush1.xpose.msra.mxu0 0.0
        %1134 = vmatprep.subr.mxu0 0.0
        %1135 = vmatpush1.xpose.msra.mxu0 0.0
        %1136 = vmatprep.subr.mxu0 0.0
        %1137 = vmatpush1.xpose.msra.mxu0 0.0
        %1138 = vmatprep.subr.mxu0 0.0
        %1139 = vmatpush1.xpose.msra.mxu0 0.0
        %1140 = vmatprep.subr.mxu0 0.0
        %1141 = vmatpush1.xpose.msra.mxu0 0.0
        %1142 = vmatprep.subr.mxu0 0.0
        %1143 = vmatpush1.xpose.msra.mxu0 0.0
        %1144 = vmatprep.subr.mxu0 0.0
        %1145 = vmatpush1.xpose.msra.mxu0 0.0
        %1146 = vmatprep.subr.mxu0 0.0
        %1147 = vmatpush1.xpose.msra.mxu0 0.0
        %1148 = vmatprep.subr.mxu0 0.0
        %1149 = vmatpush1.xpose.msra.mxu0 0.0
        %1150 = vmatprep.subr.mxu0 0.0
        %1151 = vmatpush1.xpose.msra.mxu0 0.0
        %1152 = vmatprep.subr.mxu0 0.0
        %1153 = vmatpush1.xpose.msra.mxu0 0.0
        %1154 = vmatprep.subr.mxu0 0.0
        %1155 = vmatpush1.xpose.msra.mxu0 0.0
        %1156 = vmatprep.subr.mxu0 0.0
        %1157 = vmatpush1.xpose.msra.mxu0 0.0
        %1158 = vmatprep.subr.mxu0 0.0
        %1159 = vmatpush1.xpose.msra.mxu0 0.0
        %1160 = vmatprep.subr.mxu0 0.0
        %1161 = vmatpush1.xpose.msra.mxu0 0.0
        %1162 = vmatprep.subr.mxu0 0.0
        %1163 = vmatpush1.xpose.msra.mxu0 0.0
        %1164 = vmatprep.subr.mxu0 0.0
        %1165 = vmatpush1.xpose.msra.mxu0 0.0
        %1166 = vmatprep.subr.mxu0 0.0
        %1167 = vmatpush1.xpose.msra.mxu0 0.0
        %1168 = vmatprep.subr.mxu0 0.0
        %1169 = vmatpush1.xpose.msra.mxu0 0.0
        %1170 = vmatprep.subr.mxu0 0.0
        %1171 = vmatpush1.xpose.msra.mxu0 0.0
        %1172 = vmatprep.subr.mxu0 0.0
        %1173 = vmatpush1.xpose.msra.mxu0 0.0
        %1174 = vmatprep.subr.mxu0 0.0
        %1175 = vmatpush1.xpose.msra.mxu0 0.0
        %1176 = vmatprep.subr.mxu0 0.0
        %1177 = vmatpush1.xpose.msra.mxu0 0.0
        %1178 = vmatprep.subr.mxu0 0.0
        %1179 = vmatpush1.xpose.msra.mxu0 0.0
        %1180 = vmatprep.subr.mxu0 0.0
        %1181 = vmatpush1.xpose.msra.mxu0 0.0
        %1182 = vmatprep.subr.mxu0 0.0
        %1183 = vmatpush1.xpose.msra.mxu0 0.0
        %1184 = vmatprep.subr.mxu0 0.0
        %1185 = vmatpush1.xpose.msra.mxu0 0.0
        %1186 = vmatprep.subr.mxu0 0.0
        %1187 = vmatpush1.xpose.msra.mxu0 0.0
        %1188 = vmatprep.subr.mxu0 0.0
        %1189 = vmatpush1.xpose.msra.mxu0 0.0
        %1190 = vmatprep.mubr.f32.mxu0 0.0
        %1191 = vmatmul.mubr.f32.gmra.mrb[0].mxu0 %v1121
        %v1192 = vpop.f32.mrb[0].mxu0
        %v1193 = vadd.f32 0.0, %v1192
        %v1194 = vpop.f32.mrb[0].mxu0
        %1195 = vdwg.mxu0
        %v1196 = vmul.f32 %v1193, 0.35355338
        %v1197 = vsel %vm1119, %v1196, -inf
        %1198 = vmax.xlane.f32.xlu0 %v1197
        %v1199 = vpop.xlane.xlu0 %1198
        %v1200 = vsub.f32 %v1196, %v1199
        %v1201 = vmul.f32 %v1200, 1.442695
        %v1202 = vpow.pop %v1201
        %v1203 = vsel %vm1119, %v1202, 0.0
        %1204 = vadd.xlane.f32.xlu0 %v1203
        %v1205 = vpop.xlane.xlu0 %1204
        %v1206 = vrcp.pop %v1205
        %v1207 = vmul.f32 %v1202, %v1206
        %v1209 = vsel %vm1119, %v1207, 0
        %1211 = vmatprep.subr.mxu0 0.0
        %1212 = vmatpush1.msra.mxu0 %v1116
        %1213 = vmatprep.subr.mxu0 0.0
        %1214 = vmatpush1.msra.mxu0 0.0
        %1215 = vmatprep.subr.mxu0 0.0
        %1216 = vmatpush1.msra.mxu0 0.0
        %1217 = vmatprep.subr.mxu0 0.0
        %1218 = vmatpush1.msra.mxu0 0.0
        %1219 = vmatprep.subr.mxu0 0.0
        %1220 = vmatpush1.msra.mxu0 0.0
        %1221 = vmatprep.subr.mxu0 0.0
        %1222 = vmatpush1.msra.mxu0 0.0
        %1223 = vmatprep.subr.mxu0 0.0
        %1224 = vmatpush1.msra.mxu0 0.0
        %1225 = vmatprep.subr.mxu0 0.0
        %1226 = vmatpush1.msra.mxu0 0.0
        %1227 = vmatprep.subr.mxu0 0.0
        %1228 = vmatpush1.msra.mxu0 0.0
        %1229 = vmatprep.subr.mxu0 0.0
        %1230 = vmatpush1.msra.mxu0 0.0
        %1231 = vmatprep.subr.mxu0 0.0
        %1232 = vmatpush1.msra.mxu0 0.0
        %1233 = vmatprep.subr.mxu0 0.0
        %1234 = vmatpush1.msra.mxu0 0.0
        %1235 = vmatprep.subr.mxu0 0.0
        %1236 = vmatpush1.msra.mxu0 0.0
        %1237 = vmatprep.subr.mxu0 0.0
        %1238 = vmatpush1.msra.mxu0 0.0
        %1239 = vmatprep.subr.mxu0 0.0
        %1240 = vmatpush1.msra.mxu0 0.0
        %1241 = vmatprep.subr.mxu0 0.0
        %1242 = vmatpush1.msra.mxu0 0.0
        %1243 = vmatprep.subr.mxu0 0.0
        %1244 = vmatpush1.msra.mxu0 0.0
        %1245 = vmatprep.subr.mxu0 0.0
        %1246 = vmatpush1.msra.mxu0 0.0
        %1247 = vmatprep.subr.mxu0 0.0
        %1248 = vmatpush1.msra.mxu0 0.0
        %1249 = vmatprep.subr.mxu0 0.0
        %1250 = vmatpush1.msra.mxu0 0.0
        %1251 = vmatprep.subr.mxu0 0.0
        %1252 = vmatpush1.msra.mxu0 0.0
        %1253 = vmatprep.subr.mxu0 0.0
        %1254 = vmatpush1.msra.mxu0 0.0
        %1255 = vmatprep.subr.mxu0 0.0
        %1256 = vmatpush1.msra.mxu0 0.0
        %1257 = vmatprep.subr.mxu0 0.0
        %1258 = vmatpush1.msra.mxu0 0.0
        %1259 = vmatprep.subr.mxu0 0.0
        %1260 = vmatpush1.msra.mxu0 0.0
        %1261 = vmatprep.subr.mxu0 0.0
        %1262 = vmatpush1.msra.mxu0 0.0
        %1263 = vmatprep.subr.mxu0 0.0
        %1264 = vmatpush1.msra.mxu0 0.0
        %1265 = vmatprep.subr.mxu0 0.0
        %1266 = vmatpush1.msra.mxu0 0.0
        %1267 = vmatprep.subr.mxu0 0.0
        %1268 = vmatpush1.msra.mxu0 0.0
        %1269 = vmatprep.subr.mxu0 0.0
        %1270 = vmatpush1.msra.mxu0 0.0
        %1271 = vmatprep.subr.mxu0 0.0
        %1272 = vmatpush1.msra.mxu0 0.0
        %1273 = vmatprep.subr.mxu0 0.0
        %1274 = vmatpush1.msra.mxu0 0.0
        %1275 = vmatprep.mubr.f32.mxu0 0.0
        %1276 = vmatmul.mubr.f32.gmra.mrb[0].mxu0 %v1209
        %v1277 = vpop.f32.mrb[0].mxu0
        %v1278 = vadd.f32 0.0, %v1277
        %v1279 = vpop.f32.mrb[0].mxu0
        %1280 = vdwg.mxu0
        %1281 = vst.msk [vmem:[#allocation2] sm:$0xff] %vm1119, %v1278
        %1282 = vrot.lane.b32.xlu0 %v965, 120
        %v1283 = vpop.permute.xlu0 %1282
        %1284 = vrot.lane.b32.xlu0 %v1042, 120
        %v1285 = vpop.permute.xlu0 %1284
        %v1286 = vsel %vm1119, %v1283, 0
        %v1288 = vsel %vm1119, %v1285, 0
        %1290 = vmatprep.subr.mxu0 0.0
        %1291 = vmatpush1.xpose.msra.mxu0 %v1288
        %1292 = vmatprep.subr.mxu0 0.0
        %1293 = vmatpush1.xpose.msra.mxu0 0.0
        %1294 = vmatprep.subr.mxu0 0.0
        %1295 = vmatpush1.xpose.msra.mxu0 0.0
        %1296 = vmatprep.subr.mxu0 0.0
        %1297 = vmatpush1.xpose.msra.mxu0 0.0
        %1298 = vmatprep.subr.mxu0 0.0
        %1299 = vmatpush1.xpose.msra.mxu0 0.0
        %1300 = vmatprep.subr.mxu0 0.0
        %1301 = vmatpush1.xpose.msra.mxu0 0.0
        %1302 = vmatprep.subr.mxu0 0.0
        %1303 = vmatpush1.xpose.msra.mxu0 0.0
        %1304 = vmatprep.subr.mxu0 0.0
        %1305 = vmatpush1.xpose.msra.mxu0 0.0
        %1306 = vmatprep.subr.mxu0 0.0
        %1307 = vmatpush1.xpose.msra.mxu0 0.0
        %1308 = vmatprep.subr.mxu0 0.0
        %1309 = vmatpush1.xpose.msra.mxu0 0.0
        %1310 = vmatprep.subr.mxu0 0.0
        %1311 = vmatpush1.xpose.msra.mxu0 0.0
        %1312 = vmatprep.subr.mxu0 0.0
        %1313 = vmatpush1.xpose.msra.mxu0 0.0
        %1314 = vmatprep.subr.mxu0 0.0
        %1315 = vmatpush1.xpose.msra.mxu0 0.0
        %1316 = vmatprep.subr.mxu0 0.0
        %1317 = vmatpush1.xpose.msra.mxu0 0.0
        %1318 = vmatprep.subr.mxu0 0.0
        %1319 = vmatpush1.xpose.msra.mxu0 0.0
        %1320 = vmatprep.subr.mxu0 0.0
        %1321 = vmatpush1.xpose.msra.mxu0 0.0
        %1322 = vmatprep.subr.mxu0 0.0
        %1323 = vmatpush1.xpose.msra.mxu0 0.0
        %1324 = vmatprep.subr.mxu0 0.0
        %1325 = vmatpush1.xpose.msra.mxu0 0.0
        %1326 = vmatprep.subr.mxu0 0.0
        %1327 = vmatpush1.xpose.msra.mxu0 0.0
        %1328 = vmatprep.subr.mxu0 0.0
        %1329 = vmatpush1.xpose.msra.mxu0 0.0
        %1330 = vmatprep.subr.mxu0 0.0
        %1331 = vmatpush1.xpose.msra.mxu0 0.0
        %1332 = vmatprep.subr.mxu0 0.0
        %1333 = vmatpush1.xpose.msra.mxu0 0.0
        %1334 = vmatprep.subr.mxu0 0.0
        %1335 = vmatpush1.xpose.msra.mxu0 0.0
        %1336 = vmatprep.subr.mxu0 0.0
        %1337 = vmatpush1.xpose.msra.mxu0 0.0
        %1338 = vmatprep.subr.mxu0 0.0
        %1339 = vmatpush1.xpose.msra.mxu0 0.0
        %1340 = vmatprep.subr.mxu0 0.0
        %1341 = vmatpush1.xpose.msra.mxu0 0.0
        %1342 = vmatprep.subr.mxu0 0.0
        %1343 = vmatpush1.xpose.msra.mxu0 0.0
        %1344 = vmatprep.subr.mxu0 0.0
        %1345 = vmatpush1.xpose.msra.mxu0 0.0
        %1346 = vmatprep.subr.mxu0 0.0
        %1347 = vmatpush1.xpose.msra.mxu0 0.0
        %1348 = vmatprep.subr.mxu0 0.0
        %1349 = vmatpush1.xpose.msra.mxu0 0.0
        %1350 = vmatprep.subr.mxu0 0.0
        %1351 = vmatpush1.xpose.msra.mxu0 0.0
        %1352 = vmatprep.subr.mxu0 0.0
        %1353 = vmatpush1.xpose.msra.mxu0 0.0
        %1354 = vmatprep.mubr.f32.mxu0 0.0
        %1355 = vmatmul.mubr.f32.gmra.mrb[0].mxu0 %v1286
        %v1356 = vpop.f32.mrb[0].mxu0
        %v1357 = vadd.f32 0.0, %v1356
        %v1358 = vpop.f32.mrb[0].mxu0
        %1359 = vdwg.mxu0
        %v1360 = vmul.f32 %v1357, 0.35355338
        %v1361 = vsel %vm1119, %v1360, -inf
        %1362 = vmax.xlane.f32.xlu0 %v1361
        %v1363 = vpop.xlane.xlu0 %1362
        %v1364 = vsub.f32 %v1360, %v1363
        %v1365 = vmul.f32 %v1364, 1.442695
        %v1366 = vpow.pop %v1365
        %v1367 = vsel %vm1119, %v1366, 0.0
        %1368 = vadd.xlane.f32.xlu0 %v1367
        %v1369 = vpop.xlane.xlu0 %1368
        %v1370 = vrcp.pop %v1369
        %v1371 = vmul.f32 %v1366, %v1370
        %1373 = vrot.lane.b32.xlu0 %v1116, 120
        %v1374 = vpop.permute.xlu0 %1373
        %v1377 = vsel %vm1119, %v1371, 0
        %1379 = vmatprep.subr.mxu0 0.0
        %1380 = vmatpush1.msra.mxu0 %v1374
        %1381 = vmatprep.subr.mxu0 0.0
        %1382 = vmatpush1.msra.mxu0 0.0
        %1383 = vmatprep.subr.mxu0 0.0
        %1384 = vmatpush1.msra.mxu0 0.0
        %1385 = vmatprep.subr.mxu0 0.0
        %1386 = vmatpush1.msra.mxu0 0.0
        %1387 = vmatprep.subr.mxu0 0.0
        %1388 = vmatpush1.msra.mxu0 0.0
        %1389 = vmatprep.subr.mxu0 0.0
        %1390 = vmatpush1.msra.mxu0 0.0
        %1391 = vmatprep.subr.mxu0 0.0
        %1392 = vmatpush1.msra.mxu0 0.0
        %1393 = vmatprep.subr.mxu0 0.0
        %1394 = vmatpush1.msra.mxu0 0.0
        %1395 = vmatprep.subr.mxu0 0.0
        %1396 = vmatpush1.msra.mxu0 0.0
        %1397 = vmatprep.subr.mxu0 0.0
        %1398 = vmatpush1.msra.mxu0 0.0
        %1399 = vmatprep.subr.mxu0 0.0
        %1400 = vmatpush1.msra.mxu0 0.0
        %1401 = vmatprep.subr.mxu0 0.0
        %1402 = vmatpush1.msra.mxu0 0.0
        %1403 = vmatprep.subr.mxu0 0.0
        %1404 = vmatpush1.msra.mxu0 0.0
        %1405 = vmatprep.subr.mxu0 0.0
        %1406 = vmatpush1.msra.mxu0 0.0
        %1407 = vmatprep.subr.mxu0 0.0
        %1408 = vmatpush1.msra.mxu0 0.0
        %1409 = vmatprep.subr.mxu0 0.0
        %1410 = vmatpush1.msra.mxu0 0.0
        %1411 = vmatprep.subr.mxu0 0.0
        %1412 = vmatpush1.msra.mxu0 0.0
        %1413 = vmatprep.subr.mxu0 0.0
        %1414 = vmatpush1.msra.mxu0 0.0
        %1415 = vmatprep.subr.mxu0 0.0
        %1416 = vmatpush1.msra.mxu0 0.0
        %1417 = vmatprep.subr.mxu0 0.0
        %1418 = vmatpush1.msra.mxu0 0.0
        %1419 = vmatprep.subr.mxu0 0.0
        %1420 = vmatpush1.msra.mxu0 0.0
        %1421 = vmatprep.subr.mxu0 0.0
        %1422 = vmatpush1.msra.mxu0 0.0
        %1423 = vmatprep.subr.mxu0 0.0
        %1424 = vmatpush1.msra.mxu0 0.0
        %1425 = vmatprep.subr.mxu0 0.0
        %1426 = vmatpush1.msra.mxu0 0.0
        %1427 = vmatprep.subr.mxu0 0.0
        %1428 = vmatpush1.msra.mxu0 0.0
        %1429 = vmatprep.subr.mxu0 0.0
        %1430 = vmatpush1.msra.mxu0 0.0
        %1431 = vmatprep.subr.mxu0 0.0
        %1432 = vmatpush1.msra.mxu0 0.0
        %1433 = vmatprep.subr.mxu0 0.0
        %1434 = vmatpush1.msra.mxu0 0.0
        %1435 = vmatprep.subr.mxu0 0.0
        %1436 = vmatpush1.msra.mxu0 0.0
        %1437 = vmatprep.subr.mxu0 0.0
        %1438 = vmatpush1.msra.mxu0 0.0
        %1439 = vmatprep.subr.mxu0 0.0
        %1440 = vmatpush1.msra.mxu0 0.0
        %1441 = vmatprep.subr.mxu0 0.0
        %1442 = vmatpush1.msra.mxu0 0.0
        %1443 = vmatprep.mubr.f32.mxu0 0.0
        %1444 = vmatmul.mubr.f32.gmra.mrb[0].mxu0 %v1377
        %v1445 = vpop.f32.mrb[0].mxu0
        %v1446 = vadd.f32 0.0, %v1445
        %v1447 = vpop.f32.mrb[0].mxu0
        %1448 = vdwg.mxu0
        %1450 = vrot.lane.b32.xlu0 %v1446, 8
        %v1451 = vpop.permute.xlu0 %1450
        %vm1453 = vcmask 130112
        %1454 = vst.msk [vmem:[#allocation2] sm:$0xff] %vm1453, %v1451
        %1455 = vrot.lane.b32.xlu0 %v965, 112
        %v1456 = vpop.permute.xlu0 %1455
        %1457 = vrot.lane.b32.xlu0 %v1042, 112
        %v1458 = vpop.permute.xlu0 %1457
        %v1459 = vsel %vm1119, %v1456, 0
        %v1461 = vsel %vm1119, %v1458, 0
        %1463 = vmatprep.subr.mxu0 0.0
        %1464 = vmatpush1.xpose.msra.mxu0 %v1461
        %1465 = vmatprep.subr.mxu0 0.0
        %1466 = vmatpush1.xpose.msra.mxu0 0.0
        %1467 = vmatprep.subr.mxu0 0.0
        %1468 = vmatpush1.xpose.msra.mxu0 0.0
        %1469 = vmatprep.subr.mxu0 0.0
        %1470 = vmatpush1.xpose.msra.mxu0 0.0
        %1471 = vmatprep.subr.mxu0 0.0
        %1472 = vmatpush1.xpose.msra.mxu0 0.0
        %1473 = vmatprep.subr.mxu0 0.0
        %1474 = vmatpush1.xpose.msra.mxu0 0.0
        %1475 = vmatprep.subr.mxu0 0.0
        %1476 = vmatpush1.xpose.msra.mxu0 0.0
        %1477 = vmatprep.subr.mxu0 0.0
        %1478 = vmatpush1.xpose.msra.mxu0 0.0
        %1479 = vmatprep.subr.mxu0 0.0
        %1480 = vmatpush1.xpose.msra.mxu0 0.0
        %1481 = vmatprep.subr.mxu0 0.0
        %1482 = vmatpush1.xpose.msra.mxu0 0.0
        %1483 = vmatprep.subr.mxu0 0.0
        %1484 = vmatpush1.xpose.msra.mxu0 0.0
        %1485 = vmatprep.subr.mxu0 0.0
        %1486 = vmatpush1.xpose.msra.mxu0 0.0
        %1487 = vmatprep.subr.mxu0 0.0
        %1488 = vmatpush1.xpose.msra.mxu0 0.0
        %1489 = vmatprep.subr.mxu0 0.0
        %1490 = vmatpush1.xpose.msra.mxu0 0.0
        %1491 = vmatprep.subr.mxu0 0.0
        %1492 = vmatpush1.xpose.msra.mxu0 0.0
        %1493 = vmatprep.subr.mxu0 0.0
        %1494 = vmatpush1.xpose.msra.mxu0 0.0
        %1495 = vmatprep.subr.mxu0 0.0
        %1496 = vmatpush1.xpose.msra.mxu0 0.0
        %1497 = vmatprep.subr.mxu0 0.0
        %1498 = vmatpush1.xpose.msra.mxu0 0.0
        %1499 = vmatprep.subr.mxu0 0.0
        %1500 = vmatpush1.xpose.msra.mxu0 0.0
        %1501 = vmatprep.subr.mxu0 0.0
        %1502 = vmatpush1.xpose.msra.mxu0 0.0
        %1503 = vmatprep.subr.mxu0 0.0
        %1504 = vmatpush1.xpose.msra.mxu0 0.0
        %1505 = vmatprep.subr.mxu0 0.0
        %1506 = vmatpush1.xpose.msra.mxu0 0.0
        %1507 = vmatprep.subr.mxu0 0.0
        %1508 = vmatpush1.xpose.msra.mxu0 0.0
        %1509 = vmatprep.subr.mxu0 0.0
        %1510 = vmatpush1.xpose.msra.mxu0 0.0
        %1511 = vmatprep.subr.mxu0 0.0
        %1512 = vmatpush1.xpose.msra.mxu0 0.0
        %1513 = vmatprep.subr.mxu0 0.0
        %1514 = vmatpush1.xpose.msra.mxu0 0.0
        %1515 = vmatprep.subr.mxu0 0.0
        %1516 = vmatpush1.xpose.msra.mxu0 0.0
        %1517 = vmatprep.subr.mxu0 0.0
        %1518 = vmatpush1.xpose.msra.mxu0 0.0
        %1519 = vmatprep.subr.mxu0 0.0
        %1520 = vmatpush1.xpose.msra.mxu0 0.0
        %1521 = vmatprep.subr.mxu0 0.0
        %1522 = vmatpush1.xpose.msra.mxu0 0.0
        %1523 = vmatprep.subr.mxu0 0.0
        %1524 = vmatpush1.xpose.msra.mxu0 0.0
        %1525 = vmatprep.subr.mxu0 0.0
        %1526 = vmatpush1.xpose.msra.mxu0 0.0
        %1527 = vmatprep.mubr.f32.mxu0 0.0
        %1528 = vmatmul.mubr.f32.gmra.mrb[0].mxu0 %v1459
        %v1529 = vpop.f32.mrb[0].mxu0
        %v1530 = vadd.f32 0.0, %v1529
        %v1531 = vpop.f32.mrb[0].mxu0
        %1532 = vdwg.mxu0
        %v1533 = vmul.f32 %v1530, 0.35355338
        %v1534 = vsel %vm1119, %v1533, -inf
        %1535 = vmax.xlane.f32.xlu0 %v1534
        %v1536 = vpop.xlane.xlu0 %1535
        %v1537 = vsub.f32 %v1533, %v1536
        %v1538 = vmul.f32 %v1537, 1.442695
        %v1539 = vpow.pop %v1538
        %v1540 = vsel %vm1119, %v1539, 0.0
        %1541 = vadd.xlane.f32.xlu0 %v1540
        %v1542 = vpop.xlane.xlu0 %1541
        %v1543 = vrcp.pop %v1542
        %v1544 = vmul.f32 %v1539, %v1543
        %1545 = vrot.lane.b32.xlu0 %v1116, 112
        %v1546 = vpop.permute.xlu0 %1545
        %v1549 = vsel %vm1119, %v1544, 0
        %1551 = vmatprep.subr.mxu0 0.0
        %1552 = vmatpush1.msra.mxu0 %v1546
        %1553 = vmatprep.subr.mxu0 0.0
        %1554 = vmatpush1.msra.mxu0 0.0
        %1555 = vmatprep.subr.mxu0 0.0
        %1556 = vmatpush1.msra.mxu0 0.0
        %1557 = vmatprep.subr.mxu0 0.0
        %1558 = vmatpush1.msra.mxu0 0.0
        %1559 = vmatprep.subr.mxu0 0.0
        %1560 = vmatpush1.msra.mxu0 0.0
        %1561 = vmatprep.subr.mxu0 0.0
        %1562 = vmatpush1.msra.mxu0 0.0
        %1563 = vmatprep.subr.mxu0 0.0
        %1564 = vmatpush1.msra.mxu0 0.0
        %1565 = vmatprep.subr.mxu0 0.0
        %1566 = vmatpush1.msra.mxu0 0.0
        %1567 = vmatprep.subr.mxu0 0.0
        %1568 = vmatpush1.msra.mxu0 0.0
        %1569 = vmatprep.subr.mxu0 0.0
        %1570 = vmatpush1.msra.mxu0 0.0
        %1571 = vmatprep.subr.mxu0 0.0
        %1572 = vmatpush1.msra.mxu0 0.0
        %1573 = vmatprep.subr.mxu0 0.0
        %1574 = vmatpush1.msra.mxu0 0.0
        %1575 = vmatprep.subr.mxu0 0.0
        %1576 = vmatpush1.msra.mxu0 0.0
        %1577 = vmatprep.subr.mxu0 0.0
        %1578 = vmatpush1.msra.mxu0 0.0
        %1579 = vmatprep.subr.mxu0 0.0
        %1580 = vmatpush1.msra.mxu0 0.0
        %1581 = vmatprep.subr.mxu0 0.0
        %1582 = vmatpush1.msra.mxu0 0.0
        %1583 = vmatprep.subr.mxu0 0.0
        %1584 = vmatpush1.msra.mxu0 0.0
        %1585 = vmatprep.subr.mxu0 0.0
        %1586 = vmatpush1.msra.mxu0 0.0
        %1587 = vmatprep.subr.mxu0 0.0
        %1588 = vmatpush1.msra.mxu0 0.0
        %1589 = vmatprep.subr.mxu0 0.0
        %1590 = vmatpush1.msra.mxu0 0.0
        %1591 = vmatprep.subr.mxu0 0.0
        %1592 = vmatpush1.msra.mxu0 0.0
        %1593 = vmatprep.subr.mxu0 0.0
        %1594 = vmatpush1.msra.mxu0 0.0
        %1595 = vmatprep.subr.mxu0 0.0
        %1596 = vmatpush1.msra.mxu0 0.0
        %1597 = vmatprep.subr.mxu0 0.0
        %1598 = vmatpush1.msra.mxu0 0.0
        %1599 = vmatprep.subr.mxu0 0.0
        %1600 = vmatpush1.msra.mxu0 0.0
        %1601 = vmatprep.subr.mxu0 0.0
        %1602 = vmatpush1.msra.mxu0 0.0
        %1603 = vmatprep.subr.mxu0 0.0
        %1604 = vmatpush1.msra.mxu0 0.0
        %1605 = vmatprep.subr.mxu0 0.0
        %1606 = vmatpush1.msra.mxu0 0.0
        %1607 = vmatprep.subr.mxu0 0.0
        %1608 = vmatpush1.msra.mxu0 0.0
        %1609 = vmatprep.subr.mxu0 0.0
        %1610 = vmatpush1.msra.mxu0 0.0
        %1611 = vmatprep.subr.mxu0 0.0
        %1612 = vmatpush1.msra.mxu0 0.0
        %1613 = vmatprep.subr.mxu0 0.0
        %1614 = vmatpush1.msra.mxu0 0.0
        %1615 = vmatprep.mubr.f32.mxu0 0.0
        %1616 = vmatmul.mubr.f32.gmra.mrb[0].mxu0 %v1549
        %v1617 = vpop.f32.mrb[0].mxu0
        %v1618 = vadd.f32 0.0, %v1617
        %v1619 = vpop.f32.mrb[0].mxu0
        %1620 = vdwg.mxu0
        %1622 = vrot.lane.b32.xlu0 %v1618, 16
        %v1623 = vpop.permute.xlu0 %1622
        %vm1625 = vcmask 195712
        %1626 = vst.msk [vmem:[#allocation2] sm:$0xff] %vm1625, %v1623
        %1627 = vrot.lane.b32.xlu0 %v965, 104
        %v1628 = vpop.permute.xlu0 %1627
        %1629 = vrot.lane.b32.xlu0 %v1042, 104
        %v1630 = vpop.permute.xlu0 %1629
        %v1631 = vsel %vm1119, %v1628, 0
        %v1633 = vsel %vm1119, %v1630, 0
        %1635 = vmatprep.subr.mxu0 0.0
        %1636 = vmatpush1.xpose.msra.mxu0 %v1633
        %1637 = vmatprep.subr.mxu0 0.0
        %1638 = vmatpush1.xpose.msra.mxu0 0.0
        %1639 = vmatprep.subr.mxu0 0.0
        %1640 = vmatpush1.xpose.msra.mxu0 0.0
        %1641 = vmatprep.subr.mxu0 0.0
        %1642 = vmatpush1.xpose.msra.mxu0 0.0
        %1643 = vmatprep.subr.mxu0 0.0
        %1644 = vmatpush1.xpose.msra.mxu0 0.0
        %1645 = vmatprep.subr.mxu0 0.0
        %1646 = vmatpush1.xpose.msra.mxu0 0.0
        %1647 = vmatprep.subr.mxu0 0.0
        %1648 = vmatpush1.xpose.msra.mxu0 0.0
        %1649 = vmatprep.subr.mxu0 0.0
        %1650 = vmatpush1.xpose.msra.mxu0 0.0
        %1651 = vmatprep.subr.mxu0 0.0
        %1652 = vmatpush1.xpose.msra.mxu0 0.0
        %1653 = vmatprep.subr.mxu0 0.0
        %1654 = vmatpush1.xpose.msra.mxu0 0.0
        %1655 = vmatprep.subr.mxu0 0.0
        %1656 = vmatpush1.xpose.msra.mxu0 0.0
        %1657 = vmatprep.subr.mxu0 0.0
        %1658 = vmatpush1.xpose.msra.mxu0 0.0
        %1659 = vmatprep.subr.mxu0 0.0
        %1660 = vmatpush1.xpose.msra.mxu0 0.0
        %1661 = vmatprep.subr.mxu0 0.0
        %1662 = vmatpush1.xpose.msra.mxu0 0.0
        %1663 = vmatprep.subr.mxu0 0.0
        %1664 = vmatpush1.xpose.msra.mxu0 0.0
        %1665 = vmatprep.subr.mxu0 0.0
        %1666 = vmatpush1.xpose.msra.mxu0 0.0
        %1667 = vmatprep.subr.mxu0 0.0
        %1668 = vmatpush1.xpose.msra.mxu0 0.0
        %1669 = vmatprep.subr.mxu0 0.0
        %1670 = vmatpush1.xpose.msra.mxu0 0.0
        %1671 = vmatprep.subr.mxu0 0.0
        %1672 = vmatpush1.xpose.msra.mxu0 0.0
        %1673 = vmatprep.subr.mxu0 0.0
        %1674 = vmatpush1.xpose.msra.mxu0 0.0
        %1675 = vmatprep.subr.mxu0 0.0
        %1676 = vmatpush1.xpose.msra.mxu0 0.0
        %1677 = vmatprep.subr.mxu0 0.0
        %1678 = vmatpush1.xpose.msra.mxu0 0.0
        %1679 = vmatprep.subr.mxu0 0.0
        %1680 = vmatpush1.xpose.msra.mxu0 0.0
        %1681 = vmatprep.subr.mxu0 0.0
        %1682 = vmatpush1.xpose.msra.mxu0 0.0
        %1683 = vmatprep.subr.mxu0 0.0
        %1684 = vmatpush1.xpose.msra.mxu0 0.0
        %1685 = vmatprep.subr.mxu0 0.0
        %1686 = vmatpush1.xpose.msra.mxu0 0.0
        %1687 = vmatprep.subr.mxu0 0.0
        %1688 = vmatpush1.xpose.msra.mxu0 0.0
        %1689 = vmatprep.subr.mxu0 0.0
        %1690 = vmatpush1.xpose.msra.mxu0 0.0
        %1691 = vmatprep.subr.mxu0 0.0
        %1692 = vmatpush1.xpose.msra.mxu0 0.0
        %1693 = vmatprep.subr.mxu0 0.0
        %1694 = vmatpush1.xpose.msra.mxu0 0.0
        %1695 = vmatprep.subr.mxu0 0.0
        %1696 = vmatpush1.xpose.msra.mxu0 0.0
        %1697 = vmatprep.subr.mxu0 0.0
        %1698 = vmatpush1.xpose.msra.mxu0 0.0
        %1699 = vmatprep.mubr.f32.mxu0 0.0
        %1700 = vmatmul.mubr.f32.gmra.mrb[0].mxu0 %v1631
        %v1701 = vpop.f32.mrb[0].mxu0
        %v1702 = vadd.f32 0.0, %v1701
        %v1703 = vpop.f32.mrb[0].mxu0
        %1704 = vdwg.mxu0
        %v1705 = vmul.f32 %v1702, 0.35355338
        %v1706 = vsel %vm1119, %v1705, -inf
        %1707 = vmax.xlane.f32.xlu0 %v1706
        %v1708 = vpop.xlane.xlu0 %1707
        %v1709 = vsub.f32 %v1705, %v1708
        %v1710 = vmul.f32 %v1709, 1.442695
        %v1711 = vpow.pop %v1710
        %v1712 = vsel %vm1119, %v1711, 0.0
        %1713 = vadd.xlane.f32.xlu0 %v1712
        %v1714 = vpop.xlane.xlu0 %1713
        %v1715 = vrcp.pop %v1714
        %v1716 = vmul.f32 %v1711, %v1715
        %1717 = vrot.lane.b32.xlu0 %v1116, 104
        %v1718 = vpop.permute.xlu0 %1717
        %v1721 = vsel %vm1119, %v1716, 0
        %1723 = vmatprep.subr.mxu0 0.0
        %1724 = vmatpush1.msra.mxu0 %v1718
        %1725 = vmatprep.subr.mxu0 0.0
        %1726 = vmatpush1.msra.mxu0 0.0
        %1727 = vmatprep.subr.mxu0 0.0
        %1728 = vmatpush1.msra.mxu0 0.0
        %1729 = vmatprep.subr.mxu0 0.0
        %1730 = vmatpush1.msra.mxu0 0.0
        %1731 = vmatprep.subr.mxu0 0.0
        %1732 = vmatpush1.msra.mxu0 0.0
        %1733 = vmatprep.subr.mxu0 0.0
        %1734 = vmatpush1.msra.mxu0 0.0
        %1735 = vmatprep.subr.mxu0 0.0
        %1736 = vmatpush1.msra.mxu0 0.0
        %1737 = vmatprep.subr.mxu0 0.0
        %1738 = vmatpush1.msra.mxu0 0.0
        %1739 = vmatprep.subr.mxu0 0.0
        %1740 = vmatpush1.msra.mxu0 0.0
        %1741 = vmatprep.subr.mxu0 0.0
        %1742 = vmatpush1.msra.mxu0 0.0
        %1743 = vmatprep.subr.mxu0 0.0
        %1744 = vmatpush1.msra.mxu0 0.0
        %1745 = vmatprep.subr.mxu0 0.0
        %1746 = vmatpush1.msra.mxu0 0.0
        %1747 = vmatprep.subr.mxu0 0.0
        %1748 = vmatpush1.msra.mxu0 0.0
        %1749 = vmatprep.subr.mxu0 0.0
        %1750 = vmatpush1.msra.mxu0 0.0
        %1751 = vmatprep.subr.mxu0 0.0
        %1752 = vmatpush1.msra.mxu0 0.0
        %1753 = vmatprep.subr.mxu0 0.0
        %1754 = vmatpush1.msra.mxu0 0.0
        %1755 = vmatprep.subr.mxu0 0.0
        %1756 = vmatpush1.msra.mxu0 0.0
        %1757 = vmatprep.subr.mxu0 0.0
        %1758 = vmatpush1.msra.mxu0 0.0
        %1759 = vmatprep.subr.mxu0 0.0
        %1760 = vmatpush1.msra.mxu0 0.0
        %1761 = vmatprep.subr.mxu0 0.0
        %1762 = vmatpush1.msra.mxu0 0.0
        %1763 = vmatprep.subr.mxu0 0.0
        %1764 = vmatpush1.msra.mxu0 0.0
        %1765 = vmatprep.subr.mxu0 0.0
        %1766 = vmatpush1.msra.mxu0 0.0
        %1767 = vmatprep.subr.mxu0 0.0
        %1768 = vmatpush1.msra.mxu0 0.0
        %1769 = vmatprep.subr.mxu0 0.0
        %1770 = vmatpush1.msra.mxu0 0.0
        %1771 = vmatprep.subr.mxu0 0.0
        %1772 = vmatpush1.msra.mxu0 0.0
        %1773 = vmatprep.subr.mxu0 0.0
        %1774 = vmatpush1.msra.mxu0 0.0
        %1775 = vmatprep.subr.mxu0 0.0
        %1776 = vmatpush1.msra.mxu0 0.0
        %1777 = vmatprep.subr.mxu0 0.0
        %1778 = vmatpush1.msra.mxu0 0.0
        %1779 = vmatprep.subr.mxu0 0.0
        %1780 = vmatpush1.msra.mxu0 0.0
        %1781 = vmatprep.subr.mxu0 0.0
        %1782 = vmatpush1.msra.mxu0 0.0
        %1783 = vmatprep.subr.mxu0 0.0
        %1784 = vmatpush1.msra.mxu0 0.0
        %1785 = vmatprep.subr.mxu0 0.0
        %1786 = vmatpush1.msra.mxu0 0.0
        %1787 = vmatprep.mubr.f32.mxu0 0.0
        %1788 = vmatmul.mubr.f32.gmra.mrb[0].mxu0 %v1721
        %v1789 = vpop.f32.mrb[0].mxu0
        %v1790 = vadd.f32 0.0, %v1789
        %v1791 = vpop.f32.mrb[0].mxu0
        %1792 = vdwg.mxu0
        %1794 = vrot.lane.b32.xlu0 %v1790, 24
        %v1795 = vpop.permute.xlu0 %1794
        %vm1797 = vcmask 261312
        %1798 = vst.msk [vmem:[#allocation2] sm:$0xff] %vm1797, %v1795
        %v1799 = vld [vmem:[#allocation2] sm:$0xff]
        %v1800 = vld [vmem:[#allocation9] sm:$0xff]
        %v1801 = vld [vmem:[#allocation9 + $0x8] sm:$0xff]
        %v1802 = vld [vmem:[#allocation9 + $0x10] sm:$0xff]
        %v1803 = vld [vmem:[#allocation9 + $0x18] sm:$0xff]
        %v1805 = vsel %vm894, %v1799, 0
        %1807 = vmatprep.subr.mxu0 0.0
        %1808 = vmatpush1.msra.mxu0 %v1800
        %1809 = vmatprep.subr.mxu0 0.0
        %1810 = vmatpush1.msra.mxu0 %v1801
        %1811 = vmatprep.subr.mxu0 0.0
        %1812 = vmatpush1.msra.mxu0 %v1802
        %1813 = vmatprep.subr.mxu0 0.0
        %1814 = vmatpush1.msra.mxu0 %v1803
        %1815 = vmatprep.subr.mxu0 0.0
        %1816 = vmatpush1.msra.mxu0 0.0
        %1817 = vmatprep.subr.mxu0 0.0
        %1818 = vmatpush1.msra.mxu0 0.0
        %1819 = vmatprep.subr.mxu0 0.0
        %1820 = vmatpush1.msra.mxu0 0.0
        %1821 = vmatprep.subr.mxu0 0.0
        %1822 = vmatpush1.msra.mxu0 0.0
        %1823 = vmatprep.subr.mxu0 0.0
        %1824 = vmatpush1.msra.mxu0 0.0
        %1825 = vmatprep.subr.mxu0 0.0
        %1826 = vmatpush1.msra.mxu0 0.0
        %1827 = vmatprep.subr.mxu0 0.0
        %1828 = vmatpush1.msra.mxu0 0.0
        %1829 = vmatprep.subr.mxu0 0.0
        %1830 = vmatpush1.msra.mxu0 0.0
        %1831 = vmatprep.subr.mxu0 0.0
        %1832 = vmatpush1.msra.mxu0 0.0
        %1833 = vmatprep.subr.mxu0 0.0
        %1834 = vmatpush1.msra.mxu0 0.0
        %1835 = vmatprep.subr.mxu0 0.0
        %1836 = vmatpush1.msra.mxu0 0.0
        %1837 = vmatprep.subr.mxu0 0.0
        %1838 = vmatpush1.msra.mxu0 0.0
        %1839 = vmatprep.subr.mxu0 0.0
        %1840 = vmatpush1.msra.mxu0 0.0
        %1841 = vmatprep.subr.mxu0 0.0
        %1842 = vmatpush1.msra.mxu0 0.0
        %1843 = vmatprep.subr.mxu0 0.0
        %1844 = vmatpush1.msra.mxu0 0.0
        %1845 = vmatprep.subr.mxu0 0.0
        %1846 = vmatpush1.msra.mxu0 0.0
        %1847 = vmatprep.subr.mxu0 0.0
        %1848 = vmatpush1.msra.mxu0 0.0
        %1849 = vmatprep.subr.mxu0 0.0
        %1850 = vmatpush1.msra.mxu0 0.0
        %1851 = vmatprep.subr.mxu0 0.0
        %1852 = vmatpush1.msra.mxu0 0.0
        %1853 = vmatprep.subr.mxu0 0.0
        %1854 = vmatpush1.msra.mxu0 0.0
        %1855 = vmatprep.subr.mxu0 0.0
        %1856 = vmatpush1.msra.mxu0 0.0
        %1857 = vmatprep.subr.mxu0 0.0
        %1858 = vmatpush1.msra.mxu0 0.0
        %1859 = vmatprep.subr.mxu0 0.0
        %1860 = vmatpush1.msra.mxu0 0.0
        %1861 = vmatprep.subr.mxu0 0.0
        %1862 = vmatpush1.msra.mxu0 0.0
        %1863 = vmatprep.subr.mxu0 0.0
        %1864 = vmatpush1.msra.mxu0 0.0
        %1865 = vmatprep.subr.mxu0 0.0
        %1866 = vmatpush1.msra.mxu0 0.0
        %1867 = vmatprep.subr.mxu0 0.0
        %1868 = vmatpush1.msra.mxu0 0.0
        %1869 = vmatprep.subr.mxu0 0.0
        %1870 = vmatpush1.msra.mxu0 0.0
        %1871 = vmatprep.mubr.f32.mxu0 0.0
        %1872 = vmatmul.mubr.f32.gmra.mrb[0].mxu0 %v1805
        %v1873 = vpop.f32.mrb[0].mxu0
        %v1874 = vadd.f32 %v888, %v1873
        %v1875 = vpop.f32.mrb[0].mxu0
        %1876 = vdwg.mxu0
        %v1877 = vsel %vm894, %v1874, 0.0
        %1878 = vadd.xlane.f32.xlu0 %v1877
        %v1879 = vpop.xlane.xlu0 %1878
        %v1880 = vrcp.pop 32.0
        %v1881 = vmul.f32 %v1879, %v1880
        %v1882 = vsub.f32 %v1874, %v1881
        %v1883 = vmul.f32 %v1882, %v1882
        %v1884 = vsel %vm894, %v1883, 0.0
        %1885 = vadd.xlane.f32.xlu0 %v1884
        %v1886 = vpop.xlane.xlu0 %1885
        %v1887 = vmul.f32 %v1886, %v1880
        %v1888 = vadd.f32 %v1887, 1e-05
        %v1889 = vrsqrt.pop %v1888
        %v1890 = vmul.f32 %v1882, %v1889
        %v1891 = vld [vmem:[%s8] sm:$0x1]
        %v1893 = vlaneseq
        %v1894 = vshrl.u32 %v1893, 7
        %v1895 = vsub.s32 0, %v1894
        %v1896 = vrot.slane %v1891, %v1895
        %v1898 = vmul.f32 %v1890, %v1896
        %v1899 = vld [vmem:[%s9] sm:$0x1]
        %v1901 = vlaneseq
        %v1902 = vshrl.u32 %v1901, 7
        %v1903 = vsub.s32 0, %v1902
        %v1904 = vrot.slane %v1899, %v1903
        %v1906 = vadd.f32 %v1898, %v1904
        %v1907 = vld [vmem:[%s783] sm:$0xff]
        %v1908 = vld [vmem:[#allocation11] sm:$0xff]
        %v1909 = vld [vmem:[#allocation11 + $0x8] sm:$0xff]
        %v1910 = vld [vmem:[#allocation11 + $0x10] sm:$0xff]
        %v1911 = vld [vmem:[#allocation11 + $0x18] sm:$0xff]
        %v1913 = vsel %vm894, %v1906, 0
        %1915 = vmatprep.subr.mxu0 0.0
        %1916 = vmatpush1.msra.mxu0 %v1908
        %1917 = vmatprep.subr.mxu0 0.0
        %1918 = vmatpush1.msra.mxu0 %v1909
        %1919 = vmatprep.subr.mxu0 0.0
        %1920 = vmatpush1.msra.mxu0 %v1910
        %1921 = vmatprep.subr.mxu0 0.0
        %1922 = vmatpush1.msra.mxu0 %v1911
        %1923 = vmatprep.subr.mxu0 0.0
        %1924 = vmatpush1.msra.mxu0 0.0
        %1925 = vmatprep.subr.mxu0 0.0
        %1926 = vmatpush1.msra.mxu0 0.0
        %1927 = vmatprep.subr.mxu0 0.0
        %1928 = vmatpush1.msra.mxu0 0.0
        %1929 = vmatprep.subr.mxu0 0.0
        %1930 = vmatpush1.msra.mxu0 0.0
        %1931 = vmatprep.subr.mxu0 0.0
        %1932 = vmatpush1.msra.mxu0 0.0
        %1933 = vmatprep.subr.mxu0 0.0
        %1934 = vmatpush1.msra.mxu0 0.0
        %1935 = vmatprep.subr.mxu0 0.0
        %1936 = vmatpush1.msra.mxu0 0.0
        %1937 = vmatprep.subr.mxu0 0.0
        %1938 = vmatpush1.msra.mxu0 0.0
        %1939 = vmatprep.subr.mxu0 0.0
        %1940 = vmatpush1.msra.mxu0 0.0
        %1941 = vmatprep.subr.mxu0 0.0
        %1942 = vmatpush1.msra.mxu0 0.0
        %1943 = vmatprep.subr.mxu0 0.0
        %1944 = vmatpush1.msra.mxu0 0.0
        %1945 = vmatprep.subr.mxu0 0.0
        %1946 = vmatpush1.msra.mxu0 0.0
        %1947 = vmatprep.subr.mxu0 0.0
        %1948 = vmatpush1.msra.mxu0 0.0
        %1949 = vmatprep.subr.mxu0 0.0
        %1950 = vmatpush1.msra.mxu0 0.0
        %1951 = vmatprep.subr.mxu0 0.0
        %1952 = vmatpush1.msra.mxu0 0.0
        %1953 = vmatprep.subr.mxu0 0.0
        %1954 = vmatpush1.msra.mxu0 0.0
        %1955 = vmatprep.subr.mxu0 0.0
        %1956 = vmatpush1.msra.mxu0 0.0
        %1957 = vmatprep.subr.mxu0 0.0
        %1958 = vmatpush1.msra.mxu0 0.0
        %1959 = vmatprep.subr.mxu0 0.0
        %1960 = vmatpush1.msra.mxu0 0.0
        %1961 = vmatprep.subr.mxu0 0.0
        %1962 = vmatpush1.msra.mxu0 0.0
        %1963 = vmatprep.subr.mxu0 0.0
        %1964 = vmatpush1.msra.mxu0 0.0
        %1965 = vmatprep.subr.mxu0 0.0
        %1966 = vmatpush1.msra.mxu0 0.0
        %1967 = vmatprep.subr.mxu0 0.0
        %1968 = vmatpush1.msra.mxu0 0.0
        %1969 = vmatprep.subr.mxu0 0.0
        %1970 = vmatpush1.msra.mxu0 0.0
        %1971 = vmatprep.subr.mxu0 0.0
        %1972 = vmatpush1.msra.mxu0 0.0
        %1973 = vmatprep.subr.mxu0 0.0
        %1974 = vmatpush1.msra.mxu0 0.0
        %1975 = vmatprep.subr.mxu0 0.0
        %1976 = vmatpush1.msra.mxu0 0.0
        %1977 = vmatprep.subr.mxu0 0.0
        %1978 = vmatpush1.msra.mxu0 0.0
        %1979 = vmatprep.mubr.f32.mxu0 0.0
        %1980 = vmatmul.mubr.f32.gmra.mrb[0].mxu0 %v1913
        %v1981 = vpop.f32.mrb[0].mxu0
        %v1982 = vadd.f32 0.0, %v1981
        %v1983 = vpop.f32.mrb[0].mxu0
        %1984 = vdwg.mxu0
        %v1985 = vld [vmem:[#allocation12] sm:$0xff]
        %v1986 = vld [vmem:[#allocation12 + $0x8] sm:$0xff]
        %v1987 = vld [vmem:[#allocation12 + $0x10] sm:$0xff]
        %v1988 = vld [vmem:[#allocation12 + $0x18] sm:$0xff]
        %v1990 = vsel %vm894, %v1907, 0
        %1992 = vmatprep.subr.mxu0 0.0
        %1993 = vmatpush1.msra.mxu0 %v1985
        %1994 = vmatprep.subr.mxu0 0.0
        %1995 = vmatpush1.msra.mxu0 %v1986
        %1996 = vmatprep.subr.mxu0 0.0
        %1997 = vmatpush1.msra.mxu0 %v1987
        %1998 = vmatprep.subr.mxu0 0.0
        %1999 = vmatpush1.msra.mxu0 %v1988
        %2000 = vmatprep.subr.mxu0 0.0
        %2001 = vmatpush1.msra.mxu0 0.0
        %2002 = vmatprep.subr.mxu0 0.0
        %2003 = vmatpush1.msra.mxu0 0.0
        %2004 = vmatprep.subr.mxu0 0.0
        %2005 = vmatpush1.msra.mxu0 0.0
        %2006 = vmatprep.subr.mxu0 0.0
        %2007 = vmatpush1.msra.mxu0 0.0
        %2008 = vmatprep.subr.mxu0 0.0
        %2009 = vmatpush1.msra.mxu0 0.0
        %2010 = vmatprep.subr.mxu0 0.0
        %2011 = vmatpush1.msra.mxu0 0.0
        %2012 = vmatprep.subr.mxu0 0.0
        %2013 = vmatpush1.msra.mxu0 0.0
        %2014 = vmatprep.subr.mxu0 0.0
        %2015 = vmatpush1.msra.mxu0 0.0
        %2016 = vmatprep.subr.mxu0 0.0
        %2017 = vmatpush1.msra.mxu0 0.0
        %2018 = vmatprep.subr.mxu0 0.0
        %2019 = vmatpush1.msra.mxu0 0.0
        %2020 = vmatprep.subr.mxu0 0.0
        %2021 = vmatpush1.msra.mxu0 0.0
        %2022 = vmatprep.subr.mxu0 0.0
        %2023 = vmatpush1.msra.mxu0 0.0
        %2024 = vmatprep.subr.mxu0 0.0
        %2025 = vmatpush1.msra.mxu0 0.0
        %2026 = vmatprep.subr.mxu0 0.0
        %2027 = vmatpush1.msra.mxu0 0.0
        %2028 = vmatprep.subr.mxu0 0.0
        %2029 = vmatpush1.msra.mxu0 0.0
        %2030 = vmatprep.subr.mxu0 0.0
        %2031 = vmatpush1.msra.mxu0 0.0
        %2032 = vmatprep.subr.mxu0 0.0
        %2033 = vmatpush1.msra.mxu0 0.0
        %2034 = vmatprep.subr.mxu0 0.0
        %2035 = vmatpush1.msra.mxu0 0.0
        %2036 = vmatprep.subr.mxu0 0.0
        %2037 = vmatpush1.msra.mxu0 0.0
        %2038 = vmatprep.subr.mxu0 0.0
        %2039 = vmatpush1.msra.mxu0 0.0
        %2040 = vmatprep.subr.mxu0 0.0
        %2041 = vmatpush1.msra.mxu0 0.0
        %2042 = vmatprep.subr.mxu0 0.0
        %2043 = vmatpush1.msra.mxu0 0.0
        %2044 = vmatprep.subr.mxu0 0.0
        %2045 = vmatpush1.msra.mxu0 0.0
        %2046 = vmatprep.subr.mxu0 0.0
        %2047 = vmatpush1.msra.mxu0 0.0
        %2048 = vmatprep.subr.mxu0 0.0
        %2049 = vmatpush1.msra.mxu0 0.0
        %2050 = vmatprep.subr.mxu0 0.0
        %2051 = vmatpush1.msra.mxu0 0.0
        %2052 = vmatprep.subr.mxu0 0.0
        %2053 = vmatpush1.msra.mxu0 0.0
        %2054 = vmatprep.subr.mxu0 0.0
        %2055 = vmatpush1.msra.mxu0 0.0
        %2056 = vmatprep.mubr.f32.mxu0 0.0
        %2057 = vmatmul.mubr.f32.gmra.mrb[0].mxu0 %v1990
        %v2058 = vpop.f32.mrb[0].mxu0
        %v2059 = vadd.f32 0.0, %v2058
        %v2060 = vpop.f32.mrb[0].mxu0
        %2061 = vdwg.mxu0
        %v2062 = vld [vmem:[#allocation14] sm:$0xff]
        %v2063 = vld [vmem:[#allocation14 + $0x8] sm:$0xff]
        %v2064 = vld [vmem:[#allocation14 + $0x10] sm:$0xff]
        %v2065 = vld [vmem:[#allocation14 + $0x18] sm:$0xff]
        %2066 = vmatprep.subr.mxu0 0.0
        %2067 = vmatpush1.msra.mxu0 %v2062
        %2068 = vmatprep.subr.mxu0 0.0
        %2069 = vmatpush1.msra.mxu0 %v2063
        %2070 = vmatprep.subr.mxu0 0.0
        %2071 = vmatpush1.msra.mxu0 %v2064
        %2072 = vmatprep.subr.mxu0 0.0
        %2073 = vmatpush1.msra.mxu0 %v2065
        %2074 = vmatprep.subr.mxu0 0.0
        %2075 = vmatpush1.msra.mxu0 0.0
        %2076 = vmatprep.subr.mxu0 0.0
        %2077 = vmatpush1.msra.mxu0 0.0
        %2078 = vmatprep.subr.mxu0 0.0
        %2079 = vmatpush1.msra.mxu0 0.0
        %2080 = vmatprep.subr.mxu0 0.0
        %2081 = vmatpush1.msra.mxu0 0.0
        %2082 = vmatprep.subr.mxu0 0.0
        %2083 = vmatpush1.msra.mxu0 0.0
        %2084 = vmatprep.subr.mxu0 0.0
        %2085 = vmatpush1.msra.mxu0 0.0
        %2086 = vmatprep.subr.mxu0 0.0
        %2087 = vmatpush1.msra.mxu0 0.0
        %2088 = vmatprep.subr.mxu0 0.0
        %2089 = vmatpush1.msra.mxu0 0.0
        %2090 = vmatprep.subr.mxu0 0.0
        %2091 = vmatpush1.msra.mxu0 0.0
        %2092 = vmatprep.subr.mxu0 0.0
        %2093 = vmatpush1.msra.mxu0 0.0
        %2094 = vmatprep.subr.mxu0 0.0
        %2095 = vmatpush1.msra.mxu0 0.0
        %2096 = vmatprep.subr.mxu0 0.0
        %2097 = vmatpush1.msra.mxu0 0.0
        %2098 = vmatprep.subr.mxu0 0.0
        %2099 = vmatpush1.msra.mxu0 0.0
        %2100 = vmatprep.subr.mxu0 0.0
        %2101 = vmatpush1.msra.mxu0 0.0
        %2102 = vmatprep.subr.mxu0 0.0
        %2103 = vmatpush1.msra.mxu0 0.0
        %2104 = vmatprep.subr.mxu0 0.0
        %2105 = vmatpush1.msra.mxu0 0.0
        %2106 = vmatprep.subr.mxu0 0.0
        %2107 = vmatpush1.msra.mxu0 0.0
        %2108 = vmatprep.subr.mxu0 0.0
        %2109 = vmatpush1.msra.mxu0 0.0
        %2110 = vmatprep.subr.mxu0 0.0
        %2111 = vmatpush1.msra.mxu0 0.0
        %2112 = vmatprep.subr.mxu0 0.0
        %2113 = vmatpush1.msra.mxu0 0.0
        %2114 = vmatprep.subr.mxu0 0.0
        %2115 = vmatpush1.msra.mxu0 0.0
        %2116 = vmatprep.subr.mxu0 0.0
        %2117 = vmatpush1.msra.mxu0 0.0
        %2118 = vmatprep.subr.mxu0 0.0
        %2119 = vmatpush1.msra.mxu0 0.0
        %2120 = vmatprep.subr.mxu0 0.0
        %2121 = vmatpush1.msra.mxu0 0.0
        %2122 = vmatprep.subr.mxu0 0.0
        %2123 = vmatpush1.msra.mxu0 0.0
        %2124 = vmatprep.subr.mxu0 0.0
        %2125 = vmatpush1.msra.mxu0 0.0
        %2126 = vmatprep.subr.mxu0 0.0
        %2127 = vmatpush1.msra.mxu0 0.0
        %2128 = vmatprep.subr.mxu0 0.0
        %2129 = vmatpush1.msra.mxu0 0.0
        %2130 = vmatprep.mubr.f32.mxu0 0.0
        %2131 = vmatmul.mubr.f32.gmra.mrb[0].mxu0 %v1990
        %v2132 = vpop.f32.mrb[0].mxu0
        %v2133 = vadd.f32 0.0, %v2132
        %v2134 = vpop.f32.mrb[0].mxu0
        %2135 = vdwg.mxu0
        %v2136 = vlaneseq
        %v2137 = vand.u32 %v2136, 127
        %v2138 = vld [vmem:[%s887] sm:$0xff]
        %2139 = vset.pattern.permute.xlu0 0
        %2140 = vperm.xlu0 %2139, %v2138
        %v2141 = vpop.permute.xlu0 %2140
        %vm2142 = vcmp.lt.s32.totalorder %v2137, %v2141
        %v2144 = vsel %vm1119, %v1982, 0
        %v2147 = vsel %vm1119, %v2059, 0
        %2149 = vmatprep.subr.mxu0 0.0
        %2150 = vmatpush1.xpose.msra.mxu0 %v2147
        %2151 = vmatprep.subr.mxu0 0.0
        %2152 = vmatpush1.xpose.msra.mxu0 0.0
        %2153 = vmatprep.subr.mxu0 0.0
        %2154 = vmatpush1.xpose.msra.mxu0 0.0
        %2155 = vmatprep.subr.mxu0 0.0
        %2156 = vmatpush1.xpose.msra.mxu0 0.0
        %2157 = vmatprep.subr.mxu0 0.0
        %2158 = vmatpush1.xpose.msra.mxu0 0.0
        %2159 = vmatprep.subr.mxu0 0.0
        %2160 = vmatpush1.xpose.msra.mxu0 0.0
        %2161 = vmatprep.subr.mxu0 0.0
        %2162 = vmatpush1.xpose.msra.mxu0 0.0
        %2163 = vmatprep.subr.mxu0 0.0
        %2164 = vmatpush1.xpose.msra.mxu0 0.0
        %2165 = vmatprep.subr.mxu0 0.0
        %2166 = vmatpush1.xpose.msra.mxu0 0.0
        %2167 = vmatprep.subr.mxu0 0.0
        %2168 = vmatpush1.xpose.msra.mxu0 0.0
        %2169 = vmatprep.subr.mxu0 0.0
        %2170 = vmatpush1.xpose.msra.mxu0 0.0
        %2171 = vmatprep.subr.mxu0 0.0
        %2172 = vmatpush1.xpose.msra.mxu0 0.0
        %2173 = vmatprep.subr.mxu0 0.0
        %2174 = vmatpush1.xpose.msra.mxu0 0.0
        %2175 = vmatprep.subr.mxu0 0.0
        %2176 = vmatpush1.xpose.msra.mxu0 0.0
        %2177 = vmatprep.subr.mxu0 0.0
        %2178 = vmatpush1.xpose.msra.mxu0 0.0
        %2179 = vmatprep.subr.mxu0 0.0
        %2180 = vmatpush1.xpose.msra.mxu0 0.0
        %2181 = vmatprep.subr.mxu0 0.0
        %2182 = vmatpush1.xpose.msra.mxu0 0.0
        %2183 = vmatprep.subr.mxu0 0.0
        %2184 = vmatpush1.xpose.msra.mxu0 0.0
        %2185 = vmatprep.subr.mxu0 0.0
        %2186 = vmatpush1.xpose.msra.mxu0 0.0
        %2187 = vmatprep.subr.mxu0 0.0
        %2188 = vmatpush1.xpose.msra.mxu0 0.0
        %2189 = vmatprep.subr.mxu0 0.0
        %2190 = vmatpush1.xpose.msra.mxu0 0.0
        %2191 = vmatprep.subr.mxu0 0.0
        %2192 = vmatpush1.xpose.msra.mxu0 0.0
        %2193 = vmatprep.subr.mxu0 0.0
        %2194 = vmatpush1.xpose.msra.mxu0 0.0
        %2195 = vmatprep.subr.mxu0 0.0
        %2196 = vmatpush1.xpose.msra.mxu0 0.0
        %2197 = vmatprep.subr.mxu0 0.0
        %2198 = vmatpush1.xpose.msra.mxu0 0.0
        %2199 = vmatprep.subr.mxu0 0.0
        %2200 = vmatpush1.xpose.msra.mxu0 0.0
        %2201 = vmatprep.subr.mxu0 0.0
        %2202 = vmatpush1.xpose.msra.mxu0 0.0
        %2203 = vmatprep.subr.mxu0 0.0
        %2204 = vmatpush1.xpose.msra.mxu0 0.0
        %2205 = vmatprep.subr.mxu0 0.0
        %2206 = vmatpush1.xpose.msra.mxu0 0.0
        %2207 = vmatprep.subr.mxu0 0.0
        %2208 = vmatpush1.xpose.msra.mxu0 0.0
        %2209 = vmatprep.subr.mxu0 0.0
        %2210 = vmatpush1.xpose.msra.mxu0 0.0
        %2211 = vmatprep.subr.mxu0 0.0
        %2212 = vmatpush1.xpose.msra.mxu0 0.0
        %2213 = vmatprep.mubr.f32.mxu0 0.0
        %2214 = vmatmul.mubr.f32.gmra.mrb[0].mxu0 %v2144
        %v2215 = vpop.f32.mrb[0].mxu0
        %v2216 = vadd.f32 0.0, %v2215
        %v2217 = vpop.f32.mrb[0].mxu0
        %2218 = vdwg.mxu0
        %v2219 = vmul.f32 %v2216, 0.35355338
        %v2220 = vsel %vm2142, %v2219, -1000000.0
        %v2221 = vsel %vm1119, %v2220, -inf
        %2222 = vmax.xlane.f32.xlu0 %v2221
        %v2223 = vpop.xlane.xlu0 %2222
        %v2224 = vsub.f32 %v2220, %v2223
        %v2225 = vmul.f32 %v2224, 1.442695
        %v2226 = vpow.pop %v2225
        %v2227 = vsel %vm1119, %v2226, 0.0
        %2228 = vadd.xlane.f32.xlu0 %v2227
        %v2229 = vpop.xlane.xlu0 %2228
        %v2230 = vrcp.pop %v2229
        %v2231 = vmul.f32 %v2226, %v2230
        %v2233 = vsel %vm1119, %v2231, 0
        %2235 = vmatprep.subr.mxu0 0.0
        %2236 = vmatpush1.msra.mxu0 %v2133
        %2237 = vmatprep.subr.mxu0 0.0
        %2238 = vmatpush1.msra.mxu0 0.0
        %2239 = vmatprep.subr.mxu0 0.0
        %2240 = vmatpush1.msra.mxu0 0.0
        %2241 = vmatprep.subr.mxu0 0.0
        %2242 = vmatpush1.msra.mxu0 0.0
        %2243 = vmatprep.subr.mxu0 0.0
        %2244 = vmatpush1.msra.mxu0 0.0
        %2245 = vmatprep.subr.mxu0 0.0
        %2246 = vmatpush1.msra.mxu0 0.0
        %2247 = vmatprep.subr.mxu0 0.0
        %2248 = vmatpush1.msra.mxu0 0.0
        %2249 = vmatprep.subr.mxu0 0.0
        %2250 = vmatpush1.msra.mxu0 0.0
        %2251 = vmatprep.subr.mxu0 0.0
        %2252 = vmatpush1.msra.mxu0 0.0
        %2253 = vmatprep.subr.mxu0 0.0
        %2254 = vmatpush1.msra.mxu0 0.0
        %2255 = vmatprep.subr.mxu0 0.0
        %2256 = vmatpush1.msra.mxu0 0.0
        %2257 = vmatprep.subr.mxu0 0.0
        %2258 = vmatpush1.msra.mxu0 0.0
        %2259 = vmatprep.subr.mxu0 0.0
        %2260 = vmatpush1.msra.mxu0 0.0
        %2261 = vmatprep.subr.mxu0 0.0
        %2262 = vmatpush1.msra.mxu0 0.0
        %2263 = vmatprep.subr.mxu0 0.0
        %2264 = vmatpush1.msra.mxu0 0.0
        %2265 = vmatprep.subr.mxu0 0.0
        %2266 = vmatpush1.msra.mxu0 0.0
        %2267 = vmatprep.subr.mxu0 0.0
        %2268 = vmatpush1.msra.mxu0 0.0
        %2269 = vmatprep.subr.mxu0 0.0
        %2270 = vmatpush1.msra.mxu0 0.0
        %2271 = vmatprep.subr.mxu0 0.0
        %2272 = vmatpush1.msra.mxu0 0.0
        %2273 = vmatprep.subr.mxu0 0.0
        %2274 = vmatpush1.msra.mxu0 0.0
        %2275 = vmatprep.subr.mxu0 0.0
        %2276 = vmatpush1.msra.mxu0 0.0
        %2277 = vmatprep.subr.mxu0 0.0
        %2278 = vmatpush1.msra.mxu0 0.0
        %2279 = vmatprep.subr.mxu0 0.0
        %2280 = vmatpush1.msra.mxu0 0.0
        %2281 = vmatprep.subr.mxu0 0.0
        %2282 = vmatpush1.msra.mxu0 0.0
        %2283 = vmatprep.subr.mxu0 0.0
        %2284 = vmatpush1.msra.mxu0 0.0
        %2285 = vmatprep.subr.mxu0 0.0
        %2286 = vmatpush1.msra.mxu0 0.0
        %2287 = vmatprep.subr.mxu0 0.0
        %2288 = vmatpush1.msra.mxu0 0.0
        %2289 = vmatprep.subr.mxu0 0.0
        %2290 = vmatpush1.msra.mxu0 0.0
        %2291 = vmatprep.subr.mxu0 0.0
        %2292 = vmatpush1.msra.mxu0 0.0
        %2293 = vmatprep.subr.mxu0 0.0
        %2294 = vmatpush1.msra.mxu0 0.0
        %2295 = vmatprep.subr.mxu0 0.0
        %2296 = vmatpush1.msra.mxu0 0.0
        %2297 = vmatprep.subr.mxu0 0.0
        %2298 = vmatpush1.msra.mxu0 0.0
        %2299 = vmatprep.mubr.f32.mxu0 0.0
        %2300 = vmatmul.mubr.f32.gmra.mrb[0].mxu0 %v2233
        %v2301 = vpop.f32.mrb[0].mxu0
        %v2302 = vadd.f32 0.0, %v2301
        %v2303 = vpop.f32.mrb[0].mxu0
        %2304 = vdwg.mxu0
        %2305 = vst.msk [vmem:[#allocation2] sm:$0xff] %vm1119, %v2302
        %2306 = vrot.lane.b32.xlu0 %v1982, 120
        %v2307 = vpop.permute.xlu0 %2306
        %2308 = vrot.lane.b32.xlu0 %v2059, 120
        %v2309 = vpop.permute.xlu0 %2308
        %v2310 = vsel %vm1119, %v2307, 0
        %v2312 = vsel %vm1119, %v2309, 0
        %2314 = vmatprep.subr.mxu0 0.0
        %2315 = vmatpush1.xpose.msra.mxu0 %v2312
        %2316 = vmatprep.subr.mxu0 0.0
        %2317 = vmatpush1.xpose.msra.mxu0 0.0
        %2318 = vmatprep.subr.mxu0 0.0
        %2319 = vmatpush1.xpose.msra.mxu0 0.0
        %2320 = vmatprep.subr.mxu0 0.0
        %2321 = vmatpush1.xpose.msra.mxu0 0.0
        %2322 = vmatprep.subr.mxu0 0.0
        %2323 = vmatpush1.xpose.msra.mxu0 0.0
        %2324 = vmatprep.subr.mxu0 0.0
        %2325 = vmatpush1.xpose.msra.mxu0 0.0
        %2326 = vmatprep.subr.mxu0 0.0
        %2327 = vmatpush1.xpose.msra.mxu0 0.0
        %2328 = vmatprep.subr.mxu0 0.0
        %2329 = vmatpush1.xpose.msra.mxu0 0.0
        %2330 = vmatprep.subr.mxu0 0.0
        %2331 = vmatpush1.xpose.msra.mxu0 0.0
        %2332 = vmatprep.subr.mxu0 0.0
        %2333 = vmatpush1.xpose.msra.mxu0 0.0
        %2334 = vmatprep.subr.mxu0 0.0
        %2335 = vmatpush1.xpose.msra.mxu0 0.0
        %2336 = vmatprep.subr.mxu0 0.0
        %2337 = vmatpush1.xpose.msra.mxu0 0.0
        %2338 = vmatprep.subr.mxu0 0.0
        %2339 = vmatpush1.xpose.msra.mxu0 0.0
        %2340 = vmatprep.subr.mxu0 0.0
        %2341 = vmatpush1.xpose.msra.mxu0 0.0
        %2342 = vmatprep.subr.mxu0 0.0
        %2343 = vmatpush1.xpose.msra.mxu0 0.0
        %2344 = vmatprep.subr.mxu0 0.0
        %2345 = vmatpush1.xpose.msra.mxu0 0.0
        %2346 = vmatprep.subr.mxu0 0.0
        %2347 = vmatpush1.xpose.msra.mxu0 0.0
        %2348 = vmatprep.subr.mxu0 0.0
        %2349 = vmatpush1.xpose.msra.mxu0 0.0
        %2350 = vmatprep.subr.mxu0 0.0
        %2351 = vmatpush1.xpose.msra.mxu0 0.0
        %2352 = vmatprep.subr.mxu0 0.0
        %2353 = vmatpush1.xpose.msra.mxu0 0.0
        %2354 = vmatprep.subr.mxu0 0.0
        %2355 = vmatpush1.xpose.msra.mxu0 0.0
        %2356 = vmatprep.subr.mxu0 0.0
        %2357 = vmatpush1.xpose.msra.mxu0 0.0
        %2358 = vmatprep.subr.mxu0 0.0
        %2359 = vmatpush1.xpose.msra.mxu0 0.0
        %2360 = vmatprep.subr.mxu0 0.0
        %2361 = vmatpush1.xpose.msra.mxu0 0.0
        %2362 = vmatprep.subr.mxu0 0.0
        %2363 = vmatpush1.xpose.msra.mxu0 0.0
        %2364 = vmatprep.subr.mxu0 0.0
        %2365 = vmatpush1.xpose.msra.mxu0 0.0
        %2366 = vmatprep.subr.mxu0 0.0
        %2367 = vmatpush1.xpose.msra.mxu0 0.0
        %2368 = vmatprep.subr.mxu0 0.0
        %2369 = vmatpush1.xpose.msra.mxu0 0.0
        %2370 = vmatprep.subr.mxu0 0.0
        %2371 = vmatpush1.xpose.msra.mxu0 0.0
        %2372 = vmatprep.subr.mxu0 0.0
        %2373 = vmatpush1.xpose.msra.mxu0 0.0
        %2374 = vmatprep.subr.mxu0 0.0
        %2375 = vmatpush1.xpose.msra.mxu0 0.0
        %2376 = vmatprep.subr.mxu0 0.0
        %2377 = vmatpush1.xpose.msra.mxu0 0.0
        %2378 = vmatprep.mubr.f32.mxu0 0.0
        %2379 = vmatmul.mubr.f32.gmra.mrb[0].mxu0 %v2310
        %v2380 = vpop.f32.mrb[0].mxu0
        %v2381 = vadd.f32 0.0, %v2380
        %v2382 = vpop.f32.mrb[0].mxu0
        %2383 = vdwg.mxu0
        %v2384 = vmul.f32 %v2381, 0.35355338
        %v2385 = vsel %vm2142, %v2384, -1000000.0
        %v2386 = vsel %vm1119, %v2385, -inf
        %2387 = vmax.xlane.f32.xlu0 %v2386
        %v2388 = vpop.xlane.xlu0 %2387
        %v2389 = vsub.f32 %v2385, %v2388
        %v2390 = vmul.f32 %v2389, 1.442695
        %v2391 = vpow.pop %v2390
        %v2392 = vsel %vm1119, %v2391, 0.0
        %2393 = vadd.xlane.f32.xlu0 %v2392
        %v2394 = vpop.xlane.xlu0 %2393
        %v2395 = vrcp.pop %v2394
        %v2396 = vmul.f32 %v2391, %v2395
        %2398 = vrot.lane.b32.xlu0 %v2133, 120
        %v2399 = vpop.permute.xlu0 %2398
        %v2402 = vsel %vm1119, %v2396, 0
        %2404 = vmatprep.subr.mxu0 0.0
        %2405 = vmatpush1.msra.mxu0 %v2399
        %2406 = vmatprep.subr.mxu0 0.0
        %2407 = vmatpush1.msra.mxu0 0.0
        %2408 = vmatprep.subr.mxu0 0.0
        %2409 = vmatpush1.msra.mxu0 0.0
        %2410 = vmatprep.subr.mxu0 0.0
        %2411 = vmatpush1.msra.mxu0 0.0
        %2412 = vmatprep.subr.mxu0 0.0
        %2413 = vmatpush1.msra.mxu0 0.0
        %2414 = vmatprep.subr.mxu0 0.0
        %2415 = vmatpush1.msra.mxu0 0.0
        %2416 = vmatprep.subr.mxu0 0.0
        %2417 = vmatpush1.msra.mxu0 0.0
        %2418 = vmatprep.subr.mxu0 0.0
        %2419 = vmatpush1.msra.mxu0 0.0
        %2420 = vmatprep.subr.mxu0 0.0
        %2421 = vmatpush1.msra.mxu0 0.0
        %2422 = vmatprep.subr.mxu0 0.0
        %2423 = vmatpush1.msra.mxu0 0.0
        %2424 = vmatprep.subr.mxu0 0.0
        %2425 = vmatpush1.msra.mxu0 0.0
        %2426 = vmatprep.subr.mxu0 0.0
        %2427 = vmatpush1.msra.mxu0 0.0
        %2428 = vmatprep.subr.mxu0 0.0
        %2429 = vmatpush1.msra.mxu0 0.0
        %2430 = vmatprep.subr.mxu0 0.0
        %2431 = vmatpush1.msra.mxu0 0.0
        %2432 = vmatprep.subr.mxu0 0.0
        %2433 = vmatpush1.msra.mxu0 0.0
        %2434 = vmatprep.subr.mxu0 0.0
        %2435 = vmatpush1.msra.mxu0 0.0
        %2436 = vmatprep.subr.mxu0 0.0
        %2437 = vmatpush1.msra.mxu0 0.0
        %2438 = vmatprep.subr.mxu0 0.0
        %2439 = vmatpush1.msra.mxu0 0.0
        %2440 = vmatprep.subr.mxu0 0.0
        %2441 = vmatpush1.msra.mxu0 0.0
        %2442 = vmatprep.subr.mxu0 0.0
        %2443 = vmatpush1.msra.mxu0 0.0
        %2444 = vmatprep.subr.mxu0 0.0
        %2445 = vmatpush1.msra.mxu0 0.0
        %2446 = vmatprep.subr.mxu0 0.0
        %2447 = vmatpush1.msra.mxu0 0.0
        %2448 = vmatprep.subr.mxu0 0.0
        %2449 = vmatpush1.msra.mxu0 0.0
        %2450 = vmatprep.subr.mxu0 0.0
        %2451 = vmatpush1.msra.mxu0 0.0
        %2452 = vmatprep.subr.mxu0 0.0
        %2453 = vmatpush1.msra.mxu0 0.0
        %2454 = vmatprep.subr.mxu0 0.0
        %2455 = vmatpush1.msra.mxu0 0.0
        %2456 = vmatprep.subr.mxu0 0.0
        %2457 = vmatpush1.msra.mxu0 0.0
        %2458 = vmatprep.subr.mxu0 0.0
        %2459 = vmatpush1.msra.mxu0 0.0
        %2460 = vmatprep.subr.mxu0 0.0
        %2461 = vmatpush1.msra.mxu0 0.0
        %2462 = vmatprep.subr.mxu0 0.0
        %2463 = vmatpush1.msra.mxu0 0.0
        %2464 = vmatprep.subr.mxu0 0.0
        %2465 = vmatpush1.msra.mxu0 0.0
        %2466 = vmatprep.subr.mxu0 0.0
        %2467 = vmatpush1.msra.mxu0 0.0
        %2468 = vmatprep.mubr.f32.mxu0 0.0
        %2469 = vmatmul.mubr.f32.gmra.mrb[0].mxu0 %v2402
        %v2470 = vpop.f32.mrb[0].mxu0
        %v2471 = vadd.f32 0.0, %v2470
        %v2472 = vpop.f32.mrb[0].mxu0
        %2473 = vdwg.mxu0
        %2475 = vrot.lane.b32.xlu0 %v2471, 8
        %v2476 = vpop.permute.xlu0 %2475
        %2478 = vst.msk [vmem:[#allocation2] sm:$0xff] %vm1453, %v2476
        %2479 = vrot.lane.b32.xlu0 %v1982, 112
        %v2480 = vpop.permute.xlu0 %2479
        %2481 = vrot.lane.b32.xlu0 %v2059, 112
        %v2482 = vpop.permute.xlu0 %2481
        %v2483 = vsel %vm1119, %v2480, 0
        %v2485 = vsel %vm1119, %v2482, 0
        %2487 = vmatprep.subr.mxu0 0.0
        %2488 = vmatpush1.xpose.msra.mxu0 %v2485
        %2489 = vmatprep.subr.mxu0 0.0
        %2490 = vmatpush1.xpose.msra.mxu0 0.0
        %2491 = vmatprep.subr.mxu0 0.0
        %2492 = vmatpush1.xpose.msra.mxu0 0.0
        %2493 = vmatprep.subr.mxu0 0.0
        %2494 = vmatpush1.xpose.msra.mxu0 0.0
        %2495 = vmatprep.subr.mxu0 0.0
        %2496 = vmatpush1.xpose.msra.mxu0 0.0
        %2497 = vmatprep.subr.mxu0 0.0
        %2498 = vmatpush1.xpose.msra.mxu0 0.0
        %2499 = vmatprep.subr.mxu0 0.0
        %2500 = vmatpush1.xpose.msra.mxu0 0.0
        %2501 = vmatprep.subr.mxu0 0.0
        %2502 = vmatpush1.xpose.msra.mxu0 0.0
        %2503 = vmatprep.subr.mxu0 0.0
        %2504 = vmatpush1.xpose.msra.mxu0 0.0
        %2505 = vmatprep.subr.mxu0 0.0
        %2506 = vmatpush1.xpose.msra.mxu0 0.0
        %2507 = vmatprep.subr.mxu0 0.0
        %2508 = vmatpush1.xpose.msra.mxu0 0.0
        %2509 = vmatprep.subr.mxu0 0.0
        %2510 = vmatpush1.xpose.msra.mxu0 0.0
        %2511 = vmatprep.subr.mxu0 0.0
        %2512 = vmatpush1.xpose.msra.mxu0 0.0
        %2513 = vmatprep.subr.mxu0 0.0
        %2514 = vmatpush1.xpose.msra.mxu0 0.0
        %2515 = vmatprep.subr.mxu0 0.0
        %2516 = vmatpush1.xpose.msra.mxu0 0.0
        %2517 = vmatprep.subr.mxu0 0.0
        %2518 = vmatpush1.xpose.msra.mxu0 0.0
        %2519 = vmatprep.subr.mxu0 0.0
        %2520 = vmatpush1.xpose.msra.mxu0 0.0
        %2521 = vmatprep.subr.mxu0 0.0
        %2522 = vmatpush1.xpose.msra.mxu0 0.0
        %2523 = vmatprep.subr.mxu0 0.0
        %2524 = vmatpush1.xpose.msra.mxu0 0.0
        %2525 = vmatprep.subr.mxu0 0.0
        %2526 = vmatpush1.xpose.msra.mxu0 0.0
        %2527 = vmatprep.subr.mxu0 0.0
        %2528 = vmatpush1.xpose.msra.mxu0 0.0
        %2529 = vmatprep.subr.mxu0 0.0
        %2530 = vmatpush1.xpose.msra.mxu0 0.0
        %2531 = vmatprep.subr.mxu0 0.0
        %2532 = vmatpush1.xpose.msra.mxu0 0.0
        %2533 = vmatprep.subr.mxu0 0.0
        %2534 = vmatpush1.xpose.msra.mxu0 0.0
        %2535 = vmatprep.subr.mxu0 0.0
        %2536 = vmatpush1.xpose.msra.mxu0 0.0
        %2537 = vmatprep.subr.mxu0 0.0
        %2538 = vmatpush1.xpose.msra.mxu0 0.0
        %2539 = vmatprep.subr.mxu0 0.0
        %2540 = vmatpush1.xpose.msra.mxu0 0.0
        %2541 = vmatprep.subr.mxu0 0.0
        %2542 = vmatpush1.xpose.msra.mxu0 0.0
        %2543 = vmatprep.subr.mxu0 0.0
        %2544 = vmatpush1.xpose.msra.mxu0 0.0
        %2545 = vmatprep.subr.mxu0 0.0
        %2546 = vmatpush1.xpose.msra.mxu0 0.0
        %2547 = vmatprep.subr.mxu0 0.0
        %2548 = vmatpush1.xpose.msra.mxu0 0.0
        %2549 = vmatprep.subr.mxu0 0.0
        %2550 = vmatpush1.xpose.msra.mxu0 0.0
        %2551 = vmatprep.mubr.f32.mxu0 0.0
        %2552 = vmatmul.mubr.f32.gmra.mrb[0].mxu0 %v2483
        %v2553 = vpop.f32.mrb[0].mxu0
        %v2554 = vadd.f32 0.0, %v2553
        %v2555 = vpop.f32.mrb[0].mxu0
        %2556 = vdwg.mxu0
        %v2557 = vmul.f32 %v2554, 0.35355338
        %v2558 = vsel %vm2142, %v2557, -1000000.0
        %v2559 = vsel %vm1119, %v2558, -inf
        %2560 = vmax.xlane.f32.xlu0 %v2559
        %v2561 = vpop.xlane.xlu0 %2560
        %v2562 = vsub.f32 %v2558, %v2561
        %v2563 = vmul.f32 %v2562, 1.442695
        %v2564 = vpow.pop %v2563
        %v2565 = vsel %vm1119, %v2564, 0.0
        %2566 = vadd.xlane.f32.xlu0 %v2565
        %v2567 = vpop.xlane.xlu0 %2566
        %v2568 = vrcp.pop %v2567
        %v2569 = vmul.f32 %v2564, %v2568
        %2570 = vrot.lane.b32.xlu0 %v2133, 112
        %v2571 = vpop.permute.xlu0 %2570
        %v2574 = vsel %vm1119, %v2569, 0
        %2576 = vmatprep.subr.mxu0 0.0
        %2577 = vmatpush1.msra.mxu0 %v2571
        %2578 = vmatprep.subr.mxu0 0.0
        %2579 = vmatpush1.msra.mxu0 0.0
        %2580 = vmatprep.subr.mxu0 0.0
        %2581 = vmatpush1.msra.mxu0 0.0
        %2582 = vmatprep.subr.mxu0 0.0
        %2583 = vmatpush1.msra.mxu0 0.0
        %2584 = vmatprep.subr.mxu0 0.0
        %2585 = vmatpush1.msra.mxu0 0.0
        %2586 = vmatprep.subr.mxu0 0.0
        %2587 = vmatpush1.msra.mxu0 0.0
        %2588 = vmatprep.subr.mxu0 0.0
        %2589 = vmatpush1.msra.mxu0 0.0
        %2590 = vmatprep.subr.mxu0 0.0
        %2591 = vmatpush1.msra.mxu0 0.0
        %2592 = vmatprep.subr.mxu0 0.0
        %2593 = vmatpush1.msra.mxu0 0.0
        %2594 = vmatprep.subr.mxu0 0.0
        %2595 = vmatpush1.msra.mxu0 0.0
        %2596 = vmatprep.subr.mxu0 0.0
        %2597 = vmatpush1.msra.mxu0 0.0
        %2598 = vmatprep.subr.mxu0 0.0
        %2599 = vmatpush1.msra.mxu0 0.0
        %2600 = vmatprep.subr.mxu0 0.0
        %2601 = vmatpush1.msra.mxu0 0.0
        %2602 = vmatprep.subr.mxu0 0.0
        %2603 = vmatpush1.msra.mxu0 0.0
        %2604 = vmatprep.subr.mxu0 0.0
        %2605 = vmatpush1.msra.mxu0 0.0
        %2606 = vmatprep.subr.mxu0 0.0
        %2607 = vmatpush1.msra.mxu0 0.0
        %2608 = vmatprep.subr.mxu0 0.0
        %2609 = vmatpush1.msra.mxu0 0.0
        %2610 = vmatprep.subr.mxu0 0.0
        %2611 = vmatpush1.msra.mxu0 0.0
        %2612 = vmatprep.subr.mxu0 0.0
        %2613 = vmatpush1.msra.mxu0 0.0
        %2614 = vmatprep.subr.mxu0 0.0
        %2615 = vmatpush1.msra.mxu0 0.0
        %2616 = vmatprep.subr.mxu0 0.0
        %2617 = vmatpush1.msra.mxu0 0.0
        %2618 = vmatprep.subr.mxu0 0.0
        %2619 = vmatpush1.msra.mxu0 0.0
        %2620 = vmatprep.subr.mxu0 0.0
        %2621 = vmatpush1.msra.mxu0 0.0
        %2622 = vmatprep.subr.mxu0 0.0
        %2623 = vmatpush1.msra.mxu0 0.0
        %2624 = vmatprep.subr.mxu0 0.0
        %2625 = vmatpush1.msra.mxu0 0.0
        %2626 = vmatprep.subr.mxu0 0.0
        %2627 = vmatpush1.msra.mxu0 0.0
        %2628 = vmatprep.subr.mxu0 0.0
        %2629 = vmatpush1.msra.mxu0 0.0
        %2630 = vmatprep.subr.mxu0 0.0
        %2631 = vmatpush1.msra.mxu0 0.0
        %2632 = vmatprep.subr.mxu0 0.0
        %2633 = vmatpush1.msra.mxu0 0.0
        %2634 = vmatprep.subr.mxu0 0.0
        %2635 = vmatpush1.msra.mxu0 0.0
        %2636 = vmatprep.subr.mxu0 0.0
        %2637 = vmatpush1.msra.mxu0 0.0
        %2638 = vmatprep.subr.mxu0 0.0
        %2639 = vmatpush1.msra.mxu0 0.0
        %2640 = vmatprep.mubr.f32.mxu0 0.0
        %2641 = vmatmul.mubr.f32.gmra.mrb[0].mxu0 %v2574
        %v2642 = vpop.f32.mrb[0].mxu0
        %v2643 = vadd.f32 0.0, %v2642
        %v2644 = vpop.f32.mrb[0].mxu0
        %2645 = vdwg.mxu0
        %2647 = vrot.lane.b32.xlu0 %v2643, 16
        %v2648 = vpop.permute.xlu0 %2647
        %2650 = vst.msk [vmem:[#allocation2] sm:$0xff] %vm1625, %v2648
        %2651 = vrot.lane.b32.xlu0 %v1982, 104
        %v2652 = vpop.permute.xlu0 %2651
        %2653 = vrot.lane.b32.xlu0 %v2059, 104
        %v2654 = vpop.permute.xlu0 %2653
        %v2655 = vsel %vm1119, %v2652, 0
        %v2657 = vsel %vm1119, %v2654, 0
        %2659 = vmatprep.subr.mxu0 0.0
        %2660 = vmatpush1.xpose.msra.mxu0 %v2657
        %2661 = vmatprep.subr.mxu0 0.0
        %2662 = vmatpush1.xpose.msra.mxu0 0.0
        %2663 = vmatprep.subr.mxu0 0.0
        %2664 = vmatpush1.xpose.msra.mxu0 0.0
        %2665 = vmatprep.subr.mxu0 0.0
        %2666 = vmatpush1.xpose.msra.mxu0 0.0
        %2667 = vmatprep.subr.mxu0 0.0
        %2668 = vmatpush1.xpose.msra.mxu0 0.0
        %2669 = vmatprep.subr.mxu0 0.0
        %2670 = vmatpush1.xpose.msra.mxu0 0.0
        %2671 = vmatprep.subr.mxu0 0.0
        %2672 = vmatpush1.xpose.msra.mxu0 0.0
        %2673 = vmatprep.subr.mxu0 0.0
        %2674 = vmatpush1.xpose.msra.mxu0 0.0
        %2675 = vmatprep.subr.mxu0 0.0
        %2676 = vmatpush1.xpose.msra.mxu0 0.0
        %2677 = vmatprep.subr.mxu0 0.0
        %2678 = vmatpush1.xpose.msra.mxu0 0.0
        %2679 = vmatprep.subr.mxu0 0.0
        %2680 = vmatpush1.xpose.msra.mxu0 0.0
        %2681 = vmatprep.subr.mxu0 0.0
        %2682 = vmatpush1.xpose.msra.mxu0 0.0
        %2683 = vmatprep.subr.mxu0 0.0
        %2684 = vmatpush1.xpose.msra.mxu0 0.0
        %2685 = vmatprep.subr.mxu0 0.0
        %2686 = vmatpush1.xpose.msra.mxu0 0.0
        %2687 = vmatprep.subr.mxu0 0.0
        %2688 = vmatpush1.xpose.msra.mxu0 0.0
        %2689 = vmatprep.subr.mxu0 0.0
        %2690 = vmatpush1.xpose.msra.mxu0 0.0
        %2691 = vmatprep.subr.mxu0 0.0
        %2692 = vmatpush1.xpose.msra.mxu0 0.0
        %2693 = vmatprep.subr.mxu0 0.0
        %2694 = vmatpush1.xpose.msra.mxu0 0.0
        %2695 = vmatprep.subr.mxu0 0.0
        %2696 = vmatpush1.xpose.msra.mxu0 0.0
        %2697 = vmatprep.subr.mxu0 0.0
        %2698 = vmatpush1.xpose.msra.mxu0 0.0
        %2699 = vmatprep.subr.mxu0 0.0
        %2700 = vmatpush1.xpose.msra.mxu0 0.0
        %2701 = vmatprep.subr.mxu0 0.0
        %2702 = vmatpush1.xpose.msra.mxu0 0.0
        %2703 = vmatprep.subr.mxu0 0.0
        %2704 = vmatpush1.xpose.msra.mxu0 0.0
        %2705 = vmatprep.subr.mxu0 0.0
        %2706 = vmatpush1.xpose.msra.mxu0 0.0
        %2707 = vmatprep.subr.mxu0 0.0
        %2708 = vmatpush1.xpose.msra.mxu0 0.0
        %2709 = vmatprep.subr.mxu0 0.0
        %2710 = vmatpush1.xpose.msra.mxu0 0.0
        %2711 = vmatprep.subr.mxu0 0.0
        %2712 = vmatpush1.xpose.msra.mxu0 0.0
        %2713 = vmatprep.subr.mxu0 0.0
        %2714 = vmatpush1.xpose.msra.mxu0 0.0
        %2715 = vmatprep.subr.mxu0 0.0
        %2716 = vmatpush1.xpose.msra.mxu0 0.0
        %2717 = vmatprep.subr.mxu0 0.0
        %2718 = vmatpush1.xpose.msra.mxu0 0.0
        %2719 = vmatprep.subr.mxu0 0.0
        %2720 = vmatpush1.xpose.msra.mxu0 0.0
        %2721 = vmatprep.subr.mxu0 0.0
        %2722 = vmatpush1.xpose.msra.mxu0 0.0
        %2723 = vmatprep.mubr.f32.mxu0 0.0
        %2724 = vmatmul.mubr.f32.gmra.mrb[0].mxu0 %v2655
        %v2725 = vpop.f32.mrb[0].mxu0
        %v2726 = vadd.f32 0.0, %v2725
        %v2727 = vpop.f32.mrb[0].mxu0
        %2728 = vdwg.mxu0
        %v2729 = vmul.f32 %v2726, 0.35355338
        %v2730 = vsel %vm2142, %v2729, -1000000.0
        %v2731 = vsel %vm1119, %v2730, -inf
        %2732 = vmax.xlane.f32.xlu0 %v2731
        %v2733 = vpop.xlane.xlu0 %2732
        %v2734 = vsub.f32 %v2730, %v2733
        %v2735 = vmul.f32 %v2734, 1.442695
        %v2736 = vpow.pop %v2735
        %v2737 = vsel %vm1119, %v2736, 0.0
        %2738 = vadd.xlane.f32.xlu0 %v2737
        %v2739 = vpop.xlane.xlu0 %2738
        %v2740 = vrcp.pop %v2739
        %v2741 = vmul.f32 %v2736, %v2740
        %2742 = vrot.lane.b32.xlu0 %v2133, 104
        %v2743 = vpop.permute.xlu0 %2742
        %v2746 = vsel %vm1119, %v2741, 0
        %2748 = vmatprep.subr.mxu0 0.0
        %2749 = vmatpush1.msra.mxu0 %v2743
        %2750 = vmatprep.subr.mxu0 0.0
        %2751 = vmatpush1.msra.mxu0 0.0
        %2752 = vmatprep.subr.mxu0 0.0
        %2753 = vmatpush1.msra.mxu0 0.0
        %2754 = vmatprep.subr.mxu0 0.0
        %2755 = vmatpush1.msra.mxu0 0.0
        %2756 = vmatprep.subr.mxu0 0.0
        %2757 = vmatpush1.msra.mxu0 0.0
        %2758 = vmatprep.subr.mxu0 0.0
        %2759 = vmatpush1.msra.mxu0 0.0
        %2760 = vmatprep.subr.mxu0 0.0
        %2761 = vmatpush1.msra.mxu0 0.0
        %2762 = vmatprep.subr.mxu0 0.0
        %2763 = vmatpush1.msra.mxu0 0.0
        %2764 = vmatprep.subr.mxu0 0.0
        %2765 = vmatpush1.msra.mxu0 0.0
        %2766 = vmatprep.subr.mxu0 0.0
        %2767 = vmatpush1.msra.mxu0 0.0
        %2768 = vmatprep.subr.mxu0 0.0
        %2769 = vmatpush1.msra.mxu0 0.0
        %2770 = vmatprep.subr.mxu0 0.0
        %2771 = vmatpush1.msra.mxu0 0.0
        %2772 = vmatprep.subr.mxu0 0.0
        %2773 = vmatpush1.msra.mxu0 0.0
        %2774 = vmatprep.subr.mxu0 0.0
        %2775 = vmatpush1.msra.mxu0 0.0
        %2776 = vmatprep.subr.mxu0 0.0
        %2777 = vmatpush1.msra.mxu0 0.0
        %2778 = vmatprep.subr.mxu0 0.0
        %2779 = vmatpush1.msra.mxu0 0.0
        %2780 = vmatprep.subr.mxu0 0.0
        %2781 = vmatpush1.msra.mxu0 0.0
        %2782 = vmatprep.subr.mxu0 0.0
        %2783 = vmatpush1.msra.mxu0 0.0
        %2784 = vmatprep.subr.mxu0 0.0
        %2785 = vmatpush1.msra.mxu0 0.0
        %2786 = vmatprep.subr.mxu0 0.0
        %2787 = vmatpush1.msra.mxu0 0.0
        %2788 = vmatprep.subr.mxu0 0.0
        %2789 = vmatpush1.msra.mxu0 0.0
        %2790 = vmatprep.subr.mxu0 0.0
        %2791 = vmatpush1.msra.mxu0 0.0
        %2792 = vmatprep.subr.mxu0 0.0
        %2793 = vmatpush1.msra.mxu0 0.0
        %2794 = vmatprep.subr.mxu0 0.0
        %2795 = vmatpush1.msra.mxu0 0.0
        %2796 = vmatprep.subr.mxu0 0.0
        %2797 = vmatpush1.msra.mxu0 0.0
        %2798 = vmatprep.subr.mxu0 0.0
        %2799 = vmatpush1.msra.mxu0 0.0
        %2800 = vmatprep.subr.mxu0 0.0
        %2801 = vmatpush1.msra.mxu0 0.0
        %2802 = vmatprep.subr.mxu0 0.0
        %2803 = vmatpush1.msra.mxu0 0.0
        %2804 = vmatprep.subr.mxu0 0.0
        %2805 = vmatpush1.msra.mxu0 0.0
        %2806 = vmatprep.subr.mxu0 0.0
        %2807 = vmatpush1.msra.mxu0 0.0
        %2808 = vmatprep.subr.mxu0 0.0
        %2809 = vmatpush1.msra.mxu0 0.0
        %2810 = vmatprep.subr.mxu0 0.0
        %2811 = vmatpush1.msra.mxu0 0.0
        %2812 = vmatprep.mubr.f32.mxu0 0.0
        %2813 = vmatmul.mubr.f32.gmra.mrb[0].mxu0 %v2746
        %v2814 = vpop.f32.mrb[0].mxu0
        %v2815 = vadd.f32 0.0, %v2814
        %v2816 = vpop.f32.mrb[0].mxu0
        %2817 = vdwg.mxu0
        %2819 = vrot.lane.b32.xlu0 %v2815, 24
        %v2820 = vpop.permute.xlu0 %2819
        %2822 = vst.msk [vmem:[#allocation2] sm:$0xff] %vm1797, %v2820
        %v2823 = vld [vmem:[#allocation2] sm:$0xff]
        %v2824 = vld [vmem:[%s13] sm:$0xff]
        %v2825 = vld [vmem:[%s13 + $0x8] sm:$0xff]
        %v2826 = vld [vmem:[%s13 + $0x10] sm:$0xff]
        %v2827 = vld [vmem:[%s13 + $0x18] sm:$0xff]
        %v2829 = vsel %vm894, %v2823, 0
        %2831 = vmatprep.subr.mxu0 0.0
        %2832 = vmatpush1.msra.mxu0 %v2824
        %2833 = vmatprep.subr.mxu0 0.0
        %2834 = vmatpush1.msra.mxu0 %v2825
        %2835 = vmatprep.subr.mxu0 0.0
        %2836 = vmatpush1.msra.mxu0 %v2826
        %2837 = vmatprep.subr.mxu0 0.0
        %2838 = vmatpush1.msra.mxu0 %v2827
        %2839 = vmatprep.subr.mxu0 0.0
        %2840 = vmatpush1.msra.mxu0 0.0
        %2841 = vmatprep.subr.mxu0 0.0
        %2842 = vmatpush1.msra.mxu0 0.0
        %2843 = vmatprep.subr.mxu0 0.0
        %2844 = vmatpush1.msra.mxu0 0.0
        %2845 = vmatprep.subr.mxu0 0.0
        %2846 = vmatpush1.msra.mxu0 0.0
        %2847 = vmatprep.subr.mxu0 0.0
        %2848 = vmatpush1.msra.mxu0 0.0
        %2849 = vmatprep.subr.mxu0 0.0
        %2850 = vmatpush1.msra.mxu0 0.0
        %2851 = vmatprep.subr.mxu0 0.0
        %2852 = vmatpush1.msra.mxu0 0.0
        %2853 = vmatprep.subr.mxu0 0.0
        %2854 = vmatpush1.msra.mxu0 0.0
        %2855 = vmatprep.subr.mxu0 0.0
        %2856 = vmatpush1.msra.mxu0 0.0
        %2857 = vmatprep.subr.mxu0 0.0
        %2858 = vmatpush1.msra.mxu0 0.0
        %2859 = vmatprep.subr.mxu0 0.0
        %2860 = vmatpush1.msra.mxu0 0.0
        %2861 = vmatprep.subr.mxu0 0.0
        %2862 = vmatpush1.msra.mxu0 0.0
        %2863 = vmatprep.subr.mxu0 0.0
        %2864 = vmatpush1.msra.mxu0 0.0
        %2865 = vmatprep.subr.mxu0 0.0
        %2866 = vmatpush1.msra.mxu0 0.0
        %2867 = vmatprep.subr.mxu0 0.0
        %2868 = vmatpush1.msra.mxu0 0.0
        %2869 = vmatprep.subr.mxu0 0.0
        %2870 = vmatpush1.msra.mxu0 0.0
        %2871 = vmatprep.subr.mxu0 0.0
        %2872 = vmatpush1.msra.mxu0 0.0
        %2873 = vmatprep.subr.mxu0 0.0
        %2874 = vmatpush1.msra.mxu0 0.0
        %2875 = vmatprep.subr.mxu0 0.0
        %2876 = vmatpush1.msra.mxu0 0.0
        %2877 = vmatprep.subr.mxu0 0.0
        %2878 = vmatpush1.msra.mxu0 0.0
        %2879 = vmatprep.subr.mxu0 0.0
        %2880 = vmatpush1.msra.mxu0 0.0
        %2881 = vmatprep.subr.mxu0 0.0
        %2882 = vmatpush1.msra.mxu0 0.0
        %2883 = vmatprep.subr.mxu0 0.0
        %2884 = vmatpush1.msra.mxu0 0.0
        %2885 = vmatprep.subr.mxu0 0.0
        %2886 = vmatpush1.msra.mxu0 0.0
        %2887 = vmatprep.subr.mxu0 0.0
        %2888 = vmatpush1.msra.mxu0 0.0
        %2889 = vmatprep.subr.mxu0 0.0
        %2890 = vmatpush1.msra.mxu0 0.0
        %2891 = vmatprep.subr.mxu0 0.0
        %2892 = vmatpush1.msra.mxu0 0.0
        %2893 = vmatprep.subr.mxu0 0.0
        %2894 = vmatpush1.msra.mxu0 0.0
        %2895 = vmatprep.mubr.f32.mxu0 0.0
        %2896 = vmatmul.mubr.f32.gmra.mrb[0].mxu0 %v2829
        %v2897 = vpop.f32.mrb[0].mxu0
        %v2898 = vadd.f32 %v1906, %v2897
        %v2899 = vpop.f32.mrb[0].mxu0
        %2900 = vdwg.mxu0
        %v2901 = vsel %vm894, %v2898, 0.0
        %2902 = vadd.xlane.f32.xlu0 %v2901
        %v2903 = vpop.xlane.xlu0 %2902
        %v2904 = vmul.f32 %v2903, %v1880
        %v2905 = vsub.f32 %v2898, %v2904
        %v2906 = vmul.f32 %v2905, %v2905
        %v2907 = vsel %vm894, %v2906, 0.0
        %2908 = vadd.xlane.f32.xlu0 %v2907
        %v2909 = vpop.xlane.xlu0 %2908
        %v2910 = vmul.f32 %v2909, %v1880
        %v2911 = vadd.f32 %v2910, 1e-05
        %v2912 = vrsqrt.pop %v2911
        %v2913 = vmul.f32 %v2905, %v2912
        %v2914 = vld [vmem:[%s14] sm:$0x1]
        %v2916 = vlaneseq
        %v2917 = vshrl.u32 %v2916, 7
        %v2918 = vsub.s32 0, %v2917
        %v2919 = vrot.slane %v2914, %v2918
        %v2921 = vmul.f32 %v2913, %v2919
        %v2922 = vld [vmem:[%s15] sm:$0x1]
        %v2924 = vlaneseq
        %v2925 = vshrl.u32 %v2924, 7
        %v2926 = vsub.s32 0, %v2925
        %v2927 = vrot.slane %v2922, %v2926
        %v2929 = vadd.f32 %v2921, %v2927
        %v2930 = vld [vmem:[#allocation15] sm:$0xff]
        %v2931 = vld [vmem:[#allocation15 + $0x8] sm:$0xff]
        %v2932 = vld [vmem:[#allocation15 + $0x10] sm:$0xff]
        %v2933 = vld [vmem:[#allocation15 + $0x18] sm:$0xff]
        %v2934 = vld [vmem:[%s17] sm:$0x1]
        %v2936 = vlaneseq
        %v2937 = vshrl.u32 %v2936, 7
        %v2938 = vsub.s32 0, %v2937
        %v2939 = vrot.slane %v2934, %v2938
        %v2942 = vsel %vm894, %v2929, 0
        %2944 = vmatprep.subr.mxu0 0.0
        %2945 = vmatpush1.msra.mxu0 %v2930
        %2946 = vmatprep.subr.mxu0 0.0
        %2947 = vmatpush1.msra.mxu0 %v2931
        %2948 = vmatprep.subr.mxu0 0.0
        %2949 = vmatpush1.msra.mxu0 %v2932
        %2950 = vmatprep.subr.mxu0 0.0
        %2951 = vmatpush1.msra.mxu0 %v2933
        %2952 = vmatprep.subr.mxu0 0.0
        %2953 = vmatpush1.msra.mxu0 0.0
        %2954 = vmatprep.subr.mxu0 0.0
        %2955 = vmatpush1.msra.mxu0 0.0
        %2956 = vmatprep.subr.mxu0 0.0
        %2957 = vmatpush1.msra.mxu0 0.0
        %2958 = vmatprep.subr.mxu0 0.0
        %2959 = vmatpush1.msra.mxu0 0.0
        %2960 = vmatprep.subr.mxu0 0.0
        %2961 = vmatpush1.msra.mxu0 0.0
        %2962 = vmatprep.subr.mxu0 0.0
        %2963 = vmatpush1.msra.mxu0 0.0
        %2964 = vmatprep.subr.mxu0 0.0
        %2965 = vmatpush1.msra.mxu0 0.0
        %2966 = vmatprep.subr.mxu0 0.0
        %2967 = vmatpush1.msra.mxu0 0.0
        %2968 = vmatprep.subr.mxu0 0.0
        %2969 = vmatpush1.msra.mxu0 0.0
        %2970 = vmatprep.subr.mxu0 0.0
        %2971 = vmatpush1.msra.mxu0 0.0
        %2972 = vmatprep.subr.mxu0 0.0
        %2973 = vmatpush1.msra.mxu0 0.0
        %2974 = vmatprep.subr.mxu0 0.0
        %2975 = vmatpush1.msra.mxu0 0.0
        %2976 = vmatprep.subr.mxu0 0.0
        %2977 = vmatpush1.msra.mxu0 0.0
        %2978 = vmatprep.subr.mxu0 0.0
        %2979 = vmatpush1.msra.mxu0 0.0
        %2980 = vmatprep.subr.mxu0 0.0
        %2981 = vmatpush1.msra.mxu0 0.0
        %2982 = vmatprep.subr.mxu0 0.0
        %2983 = vmatpush1.msra.mxu0 0.0
        %2984 = vmatprep.subr.mxu0 0.0
        %2985 = vmatpush1.msra.mxu0 0.0
        %2986 = vmatprep.subr.mxu0 0.0
        %2987 = vmatpush1.msra.mxu0 0.0
        %2988 = vmatprep.subr.mxu0 0.0
        %2989 = vmatpush1.msra.mxu0 0.0
        %2990 = vmatprep.subr.mxu0 0.0
        %2991 = vmatpush1.msra.mxu0 0.0
        %2992 = vmatprep.subr.mxu0 0.0
        %2993 = vmatpush1.msra.mxu0 0.0
        %2994 = vmatprep.subr.mxu0 0.0
        %2995 = vmatpush1.msra.mxu0 0.0
        %2996 = vmatprep.subr.mxu0 0.0
        %2997 = vmatpush1.msra.mxu0 0.0
        %2998 = vmatprep.subr.mxu0 0.0
        %2999 = vmatpush1.msra.mxu0 0.0
        %3000 = vmatprep.subr.mxu0 0.0
        %3001 = vmatpush1.msra.mxu0 0.0
        %3002 = vmatprep.subr.mxu0 0.0
        %3003 = vmatpush1.msra.mxu0 0.0
        %3004 = vmatprep.subr.mxu0 0.0
        %3005 = vmatpush1.msra.mxu0 0.0
        %3006 = vmatprep.subr.mxu0 0.0
        %3007 = vmatpush1.msra.mxu0 0.0
        %3008 = vmatprep.mubr.f32.mxu0 0.0
        %3009 = vmatmul.mubr.f32.gmra.mrb[0].mxu0 %v2942
        %v3010 = vpop.f32.mrb[0].mxu0
        %v3011 = vadd.f32 %v2939, %v3010
        %v3012 = vpop.f32.mrb[0].mxu0
        %3013 = vdwg.mxu0
        %v3014 = vmax.f32 %v3011, 0.0
        %v3015 = vld [vmem:[%s18] sm:$0xff]
        %v3016 = vld [vmem:[%s18 + $0x8] sm:$0xff]
        %v3017 = vld [vmem:[%s18 + $0x10] sm:$0xff]
        %v3018 = vld [vmem:[%s18 + $0x18] sm:$0xff]
        %v3019 = vld [vmem:[%s18 + $0x20] sm:$0xff]
        %v3020 = vld [vmem:[%s18 + $0x28] sm:$0xff]
        %v3021 = vld [vmem:[%s18 + $0x30] sm:$0xff]
        %v3022 = vld [vmem:[%s18 + $0x38] sm:$0xff]
        %v3023 = vld [vmem:[%s19] sm:$0x1]
        %v3025 = vlaneseq
        %v3026 = vshrl.u32 %v3025, 7
        %v3027 = vsub.s32 0, %v3026
        %v3028 = vrot.slane %v3023, %v3027
        %vm3030 = vcmask 523264
        %v3032 = vsel %vm3030, %v3014, 0
        %3034 = vmatprep.subr.mxu0 0.0
        %3035 = vmatpush1.msra.mxu0 %v3015
        %3036 = vmatprep.subr.mxu0 0.0
        %3037 = vmatpush1.msra.mxu0 %v3016
        %3038 = vmatprep.subr.mxu0 0.0
        %3039 = vmatpush1.msra.mxu0 %v3017
        %3040 = vmatprep.subr.mxu0 0.0
        %3041 = vmatpush1.msra.mxu0 %v3018
        %3042 = vmatprep.subr.mxu0 0.0
        %3043 = vmatpush1.msra.mxu0 %v3019
        %3044 = vmatprep.subr.mxu0 0.0
        %3045 = vmatpush1.msra.mxu0 %v3020
        %3046 = vmatprep.subr.mxu0 0.0
        %3047 = vmatpush1.msra.mxu0 %v3021
        %3048 = vmatprep.subr.mxu0 0.0
        %3049 = vmatpush1.msra.mxu0 %v3022
        %3050 = vmatprep.subr.mxu0 0.0
        %3051 = vmatpush1.msra.mxu0 0.0
        %3052 = vmatprep.subr.mxu0 0.0
        %3053 = vmatpush1.msra.mxu0 0.0
        %3054 = vmatprep.subr.mxu0 0.0
        %3055 = vmatpush1.msra.mxu0 0.0
        %3056 = vmatprep.subr.mxu0 0.0
        %3057 = vmatpush1.msra.mxu0 0.0
        %3058 = vmatprep.subr.mxu0 0.0
        %3059 = vmatpush1.msra.mxu0 0.0
        %3060 = vmatprep.subr.mxu0 0.0
        %3061 = vmatpush1.msra.mxu0 0.0
        %3062 = vmatprep.subr.mxu0 0.0
        %3063 = vmatpush1.msra.mxu0 0.0
        %3064 = vmatprep.subr.mxu0 0.0
        %3065 = vmatpush1.msra.mxu0 0.0
        %3066 = vmatprep.subr.mxu0 0.0
        %3067 = vmatpush1.msra.mxu0 0.0
        %3068 = vmatprep.subr.mxu0 0.0
        %3069 = vmatpush1.msra.mxu0 0.0
        %3070 = vmatprep.subr.mxu0 0.0
        %3071 = vmatpush1.msra.mxu0 0.0
        %3072 = vmatprep.subr.mxu0 0.0
        %3073 = vmatpush1.msra.mxu0 0.0
        %3074 = vmatprep.subr.mxu0 0.0
        %3075 = vmatpush1.msra.mxu0 0.0
        %3076 = vmatprep.subr.mxu0 0.0
        %3077 = vmatpush1.msra.mxu0 0.0
        %3078 = vmatprep.subr.mxu0 0.0
        %3079 = vmatpush1.msra.mxu0 0.0
        %3080 = vmatprep.subr.mxu0 0.0
        %3081 = vmatpush1.msra.mxu0 0.0
        %3082 = vmatprep.subr.mxu0 0.0
        %3083 = vmatpush1.msra.mxu0 0.0
        %3084 = vmatprep.subr.mxu0 0.0
        %3085 = vmatpush1.msra.mxu0 0.0
        %3086 = vmatprep.subr.mxu0 0.0
        %3087 = vmatpush1.msra.mxu0 0.0
        %3088 = vmatprep.subr.mxu0 0.0
        %3089 = vmatpush1.msra.mxu0 0.0
        %3090 = vmatprep.subr.mxu0 0.0
        %3091 = vmatpush1.msra.mxu0 0.0
        %3092 = vmatprep.subr.mxu0 0.0
        %3093 = vmatpush1.msra.mxu0 0.0
        %3094 = vmatprep.subr.mxu0 0.0
        %3095 = vmatpush1.msra.mxu0 0.0
        %3096 = vmatprep.subr.mxu0 0.0
        %3097 = vmatpush1.msra.mxu0 0.0
        %3098 = vmatprep.mubr.f32.mxu0 0.0
        %3099 = vmatmul.mubr.f32.gmra.mrb[0].mxu0 %v3032
        %v3100 = vpop.f32.mrb[0].mxu0
        %v3101 = vadd.f32 %v3028, %v3100
        %v3102 = vpop.f32.mrb[0].mxu0
        %3103 = vdwg.mxu0
        %v3104 = vadd.f32 %v3101, %v2929
        %v3105 = vsel %vm894, %v3104, 0.0
        %3106 = vadd.xlane.f32.xlu0 %v3105
        %v3107 = vpop.xlane.xlu0 %3106
        %v3108 = vmul.f32 %v3107, %v1880
        %v3109 = vsub.f32 %v3104, %v3108
        %v3110 = vmul.f32 %v3109, %v3109
        %v3111 = vsel %vm894, %v3110, 0.0
        %3112 = vadd.xlane.f32.xlu0 %v3111
        %v3113 = vpop.xlane.xlu0 %3112
        %v3114 = vmul.f32 %v3113, %v1880
        %v3115 = vadd.f32 %v3114, 1e-05
        %v3116 = vrsqrt.pop %v3115
        %v3117 = vmul.f32 %v3109, %v3116
        %v3118 = vld [vmem:[%s20] sm:$0x1]
        %v3120 = vlaneseq
        %v3121 = vshrl.u32 %v3120, 7
        %v3122 = vsub.s32 0, %v3121
        %v3123 = vrot.slane %v3118, %v3122
        %v3125 = vmul.f32 %v3117, %v3123
        %v3126 = vld [vmem:[%s21] sm:$0x1]
        %v3128 = vlaneseq
        %v3129 = vshrl.u32 %v3128, 7
        %v3130 = vsub.s32 0, %v3129
        %v3131 = vrot.slane %v3126, %v3130
        %v3133 = vadd.f32 %v3125, %v3131
        %3134 = vst.msk [vmem:[%s880] sm:$0xff] %vm894, %v3133
        %s3135 = sand.u32 %s553, 1
        %s3136 = scalar_lea.sflag [#allocation5], %s3135
        %s3137 = sand.u32 %s553, 1
        %s3138 = smul.addr %s3137, 8
        %s3139 = scalar_lea.vmem [#allocation17], %s3138
        // Predicated region
        $region141: #{tpu_custom_call.1} parent=107 // pred_check
          %p3140 = pneg %p563
        $region142: #{tpu_custom_call.1} parent=107 // pred_check_branch
          %3142 = sbr.rel (%p3140) target = $region144
        $region143: #{tpu_custom_call.1} parent=107 // pred_region
          %s3144 = ssub.s32 128, 128
          %3145 = vsyncadd %s3136, %s3144
          %s3146 = sadd.s32 %s50, %s49
          %s3147 = smul.addr %s3146, 128
          %s3148 = scalar_lea.hbm %s22, %s3147
          %s3150 = sshll.u32 %s3139, 4
          %s3151 = int_to_ptr.vmem [resolvable:$true] %s3150
          %3153 = dma.vmem_to_hbm [thread:$0]  %s3151, 128, %s3148, %s3136
        $region144: #{tpu_custom_call.1} parent=107 // pred_fallthru
          _
      $region108: #{tpu_custom_call.1} parent=5 // pred_fallthru
        _
      %p3154 = scmp.le.s32.totalorder 2, %s40
      // Predicated region
      $region145: #{tpu_custom_call.1} parent=5 // pred_check
        %p3155 = pneg %p3154
      $region146: #{tpu_custom_call.1} parent=5 // pred_check_branch
        %3157 = sbr.rel (%p3155) target = $region148
      $region147: #{tpu_custom_call.1} parent=5 // pred_region
        %s3158 = ssub.s32 %s40, 2
        // Predicated region
        $region149: #{tpu_custom_call.1} parent=147 // pred_check
          %p3159 = pneg %p569
        $region150: #{tpu_custom_call.1} parent=147 // pred_check_branch
          %3161 = sbr.rel (%p3159) target = $region152
        $region151: #{tpu_custom_call.1} parent=147 // pred_region
          %s3162 = sand.u32 %s554, 1
          %s3163 = scalar_lea.sflag [#allocation5], %s3162
          %s3164 = sand.u32 %s554, 1
          %s3165 = smul.addr %s3164, 8
          %s3166 = scalar_lea.vmem [#allocation17], %s3165
          %3167 = dma.done %s3163, 128
        $region152: #{tpu_custom_call.1} parent=147 // pred_fallthru
          _
      $region148: #{tpu_custom_call.1} parent=5 // pred_fallthru
        _
    $region6: #{tpu_custom_call.1} parent=1 // loop_footer
      %s44 = sadd.s32 1, %s40
    $region7: #{tpu_custom_call.1} parent=1 // loop_footer_branch
      %39 = sbr.rel target = $region3
    $region8: #{tpu_custom_call.1} parent=1 // loop_exit
      _
    %3168 = vsyncpa [#allocation4], 1
    %s3169 = scalar_lea.sflag [#allocation4], 1
    %3170 = vsyncpa %s3169, 1
    %3171 = vsyncpa [#allocation7], 1
    %s3172 = scalar_lea.sflag [#allocation7], 1
    %3173 = vsyncpa %s3172, 1
    %3174 = vsyncpa [#allocation10], 1
    %3175 = vsyncpa [#allocation13], 1
    %3176 = vsyncpa [#allocation16], 1
    %3177 = vsyncpa [#allocation5], 1
    %s3178 = scalar_lea.sflag [#allocation5], 1
    %3179 = vsyncpa %s3178, 1

// kernel: tpu_custom_call.1
$region0: #{tpu_custom_call.1}
  #allocation0 [shape = 'u32[]', space=smem, size = 0x4, offset = 0x4, fixed_abs, tag = 'smem constant byte address 0x4 - core index']
  #allocation1 [shape = 'u32[144,128]{1,0:T(1,128)}', space=vmem, size = 0x12000, scoped, tag = 'internal scratch']
  #allocation2 [shape = 'f32[8,32]{1,0:T(8,128)}', space=vmem, size = 0x1000, scoped, tag = 'scratch operand']
  %s0 = inlined_call_operand.hbm [shape: f32[2,8,32], index: 0, kind: input, shape index: {}]
  %s1 = inlined_call_operand.hbm [shape: f32[2,8,32], index: 1, kind: input, shape index: {}]
  %s2 = inlined_call_operand.hbm [shape: f32[2,8,32], index: 2, kind: input, shape index: {}]
  %s3 = inlined_call_operand.vmem [shape: s32[2,8,1], index: 3, kind: input, shape index: {}]
  %s4 = inlined_call_operand.vmem [shape: f32[32,32], index: 4, kind: input, shape index: {}]
  %s5 = inlined_call_operand.vmem [shape: f32[32,32], index: 5, kind: input, shape index: {}]
  %s6 = inlined_call_operand.vmem [shape: f32[32,32], index: 6, kind: input, shape index: {}]
  %s7 = inlined_call_operand.hbm [shape: f32[32,32], index: 7, kind: input, shape index: {}]
  %s8 = inlined_call_operand.vmem [shape: f32[1,32], index: 8, kind: input, shape index: {}]
  %s9 = inlined_call_operand.vmem [shape: f32[1,32], index: 9, kind: input, shape index: {}]
  %s10 = inlined_call_operand.hbm [shape: f32[32,32], index: 10, kind: input, shape index: {}]
  %s11 = inlined_call_operand.hbm [shape: f32[32,32], index: 11, kind: input, shape index: {}]
  %s12 = inlined_call_operand.hbm [shape: f32[32,32], index: 12, kind: input, shape index: {}]
  %s13 = inlined_call_operand.vmem [shape: f32[32,32], index: 13, kind: input, shape index: {}]
  %s14 = inlined_call_operand.vmem [shape: f32[1,32], index: 14, kind: input, shape index: {}]
  %s15 = inlined_call_operand.vmem [shape: f32[1,32], index: 15, kind: input, shape index: {}]
  %s16 = inlined_call_operand.hbm [shape: f32[32,64], index: 16, kind: input, shape index: {}]
  %s17 = inlined_call_operand.vmem [shape: f32[1,64], index: 17, kind: input, shape index: {}]
  %s18 = inlined_call_operand.vmem [shape: f32[64,32], index: 18, kind: input, shape index: {}]
  %s19 = inlined_call_operand.vmem [shape: f32[1,32], index: 19, kind: input, shape index: {}]
  %s20 = inlined_call_operand.vmem [shape: f32[1,32], index: 20, kind: input, shape index: {}]
  %s21 = inlined_call_operand.vmem [shape: f32[1,32], index: 21, kind: input, shape index: {}]
  %s22 = inlined_call_operand.hbm [shape: f32[2,8,32], index: 22, kind: output, shape index: {}]
  %s23 = sld [smem:[#allocation0]]
  $region153: #{tpu_custom_call.1} parent=0
    _
  %s25 = ssub.s32 1, %s23
  %s26 = scalar_select 0, %s25, %s23
  $region1: #{tpu_custom_call.1} parent=0
    #allocation3 [shape = 'u8[8192]{0}', space=vmem, size = 0x2000, scoped, tag = 'input window, operand 0']
    #allocation4 [shape = 's32[2]{0}', space=sflag, size = 0x8, scoped, tag = 'scoped memory for tpu_custom_call.1']
    #allocation5 [shape = 's32[2]{0}', space=sflag, size = 0x8, scoped, tag = 'scoped memory for tpu_custom_call.1']
    #allocation6 [shape = 'u8[8192]{0}', space=vmem, size = 0x2000, scoped, tag = 'input window, operand 1']
    #allocation7 [shape = 's32[2]{0}', space=sflag, size = 0x8, scoped, tag = 'scoped memory for tpu_custom_call.1']
    #allocation8 [shape = 'u8[8192]{0}', space=vmem, size = 0x2000, scoped, tag = 'input window, operand 2']
    #allocation9 [shape = 'u8[16384]{0}', space=vmem, size = 0x4000, scoped, tag = 'input window, operand 7, single buffered']
    #allocation10 [shape = 's32[1]{0}', space=sflag, size = 0x4, scoped, tag = 'scoped memory for tpu_custom_call.1']
    #allocation11 [shape = 'u8[16384]{0}', space=vmem, size = 0x4000, scoped, tag = 'input window, operand 10, single buffered']
    #allocation12 [shape = 'u8[16384]{0}', space=vmem, size = 0x4000, scoped, tag = 'input window, operand 11, single buffered']
    #allocation13 [shape = 's32[1]{0}', space=sflag, size = 0x4, scoped, tag = 'scoped memory for tpu_custom_call.1']
    #allocation14 [shape = 'u8[16384]{0}', space=vmem, size = 0x4000, scoped, tag = 'input window, operand 12, single buffered']
    #allocation15 [shape = 'u8[16384]{0}', space=vmem, size = 0x4000, scoped, tag = 'input window, operand 16, single buffered']
    #allocation16 [shape = 's32[1]{0}', space=sflag, size = 0x4, scoped, tag = 'scoped memory for tpu_custom_call.1']
    #allocation17 [shape = 'u8[8192]{0}', space=vmem, size = 0x2000, scoped, tag = 'output window, operand 0']
    %27 = vsyncpa [#allocation4], 0
    %s28 = scalar_lea.sflag [#allocation4], 1
    %29 = vsyncpa %s28, 0
    %30 = vsyncpa [#allocation7], 0
    %s31 = scalar_lea.sflag [#allocation7], 1
    %32 = vsyncpa %s31, 0
    %33 = vsyncpa [#allocation10], 0
    %34 = vsyncpa [#allocation13], 0
    %35 = vsyncpa [#allocation16], 0
    %36 = vsyncpa [#allocation5], 0
    %s37 = scalar_lea.sflag [#allocation5], 1
    %38 = vsyncpa %s37, 0
    loop: start=0, step=1, limit=4
    $region2: #{tpu_custom_call.1} parent=1 // loop_pre_header
      _
    $region3: #{tpu_custom_call.1} parent=1 // loop_header
      %s40 = sphi 0, %s44
      %p41 = scmp.ge.s32.totalorder %s40, 4
      %s47 = sphi 0, %s59
      %s48 = sphi 0, %s55
      %s49 = sphi 0, %s47
      %s50 = sphi 0, %s48
      %s51 = sphi 0, %s49
      %s52 = sphi 0, %s50
      %s64 = sphi 0, %s66
      %s67 = sphi 0, %s64
      %s68 = sphi 0, %s67
      %s84 = sphi 0, %s68
      %s90 = sphi 0, %s92
      %s93 = sphi 0, %s90
      %s94 = sphi 0, %s93
      %s110 = sphi 0, %s94
      %s116 = sphi 0, %s118
      %s119 = sphi 0, %s116
      %s120 = sphi 0, %s119
      %s136 = sphi 0, %s120
      %s144 = sphi 0, %s146
      %s147 = sphi 0, %s144
      %s148 = sphi 0, %s147
      %s164 = sphi 0, %s148
      %s168 = sphi 0, %s168
      %s170 = sphi 0, %s168
      %s171 = sphi 0, %s170
      %s185 = sphi 0, %s171
      %s189 = sphi 0, %s189
      %s191 = sphi 0, %s189
      %s192 = sphi 0, %s191
      %s206 = sphi 0, %s192
      %s210 = sphi 0, %s210
      %s212 = sphi 0, %s210
      %s213 = sphi 0, %s212
      %s227 = sphi 0, %s213
      %s231 = sphi 0, %s231
      %s233 = sphi 0, %s231
      %s234 = sphi 0, %s233
      %s248 = sphi 0, %s234
      %s252 = sphi 0, %s252
      %s254 = sphi 0, %s252
      %s255 = sphi 0, %s254
      %s269 = sphi 0, %s255
      %s273 = sphi 0, %s273
      %s275 = sphi 0, %s273
      %s276 = sphi 0, %s275
      %s290 = sphi 0, %s276
      %s294 = sphi 0, %s294
      %s296 = sphi 0, %s294
      %s297 = sphi 0, %s296
      %s311 = sphi 0, %s297
      %s315 = sphi 0, %s315
      %s317 = sphi 0, %s315
      %s318 = sphi 0, %s317
      %s332 = sphi 0, %s318
      %s336 = sphi 0, %s336
      %s338 = sphi 0, %s336
      %s339 = sphi 0, %s338
      %s353 = sphi 0, %s339
      %s357 = sphi 0, %s357
      %s359 = sphi 0, %s357
      %s360 = sphi 0, %s359
      %s374 = sphi 0, %s360
      %s378 = sphi 0, %s378
      %s380 = sphi 0, %s378
      %s381 = sphi 0, %s380
      %s395 = sphi 0, %s381
      %s399 = sphi 0, %s399
      %s401 = sphi 0, %s399
      %s402 = sphi 0, %s401
      %s416 = sphi 0, %s402
      %s420 = sphi 0, %s420
      %s422 = sphi 0, %s420
      %s423 = sphi 0, %s422
      %s437 = sphi 0, %s423
      %s441 = sphi 0, %s441
      %s443 = sphi 0, %s441
      %s444 = sphi 0, %s443
      %s458 = sphi 0, %s444
      %s462 = sphi 0, %s462
      %s464 = sphi 0, %s462
      %s465 = sphi 0, %s464
      %s479 = sphi 0, %s465
      %s483 = sphi 0, %s483
      %s485 = sphi 0, %s483
      %s486 = sphi 0, %s485
      %s500 = sphi 0, %s486
      %s504 = sphi 0, %s504
      %s506 = sphi 0, %s504
      %s507 = sphi 0, %s506
      %s521 = sphi 0, %s507
      %s525 = sphi 0, %s525
      %s527 = sphi 0, %s525
      %s528 = sphi 0, %s527
      %s542 = sphi 0, %s528
      %s550 = sphi 0, %s552
      %s553 = sphi 0, %s550
      %s554 = sphi 0, %s553
      %s570 = sphi 0, %s554
    $region4: #{tpu_custom_call.1} parent=1 // loop_header_branch
      %43 = sbr.rel (%p41) target = $region8
    $region5: #{tpu_custom_call.1} parent=1 // loop_body
      %s45 = ssub.s32 %s40, 1
      %s46 = ssub.s32 %s40, 2
      %s53 = sadd.s32 1, %s48
      %p54 = scmp.ge.s32.totalorder %s53, 1
      %s55 = scalar_select %p54, 0, %s53
      %s56 = sadd.s32 1, %s47
      %s57 = scalar_select %p54, %s56, %s47
      %p58 = scmp.ge.s32.totalorder %s57, 2
      %s59 = scalar_select %p58, 0, %s57
      %s60 = ssub.s32 %s47, %s59
      %s61 = ssub.s32 %s48, %s55
      %s62 = sor.u32 %s60, %s61
      %p63 = scmp.eq.s32.totalorder %s62, 0
      %s65 = sadd.s32 %s64, 1
      %s66 = scalar_select %p63, %s64, %s65
      %p69 = pneg %p63
      %p70 = scmp.eq.s32.totalorder %s40, 1
      %p71 = por %p69, %p70
      %p72 = scmp.ne.s32.totalorder %s64, %s67
      %p73 = scmp.eq.s32.totalorder %s40, 0
      %p74 = por %p72, %p73
      %p75 = scmp.ne.s32.totalorder %s64, %s67
      %p76 = scmp.eq.s32.totalorder %s45, 1
      %p77 = por %p75, %p76
      %p78 = scmp.ne.s32.totalorder %s67, %s68
      %p79 = scmp.eq.s32.totalorder %s45, 0
      %p80 = por %p78, %p79
      %p81 = scmp.ne.s32.totalorder %s67, %s68
      %p82 = scmp.eq.s32.totalorder %s46, 1
      %p83 = por %p81, %p82
      %p85 = scmp.ne.s32.totalorder %s68, %s84
      %p86 = scmp.eq.s32.totalorder %s46, 0
      %p87 = por %p85, %p86
      %s88 = ssub.s32 %s47, %s59
      %p89 = scmp.eq.s32.totalorder %s88, 0
      %s91 = sadd.s32 %s90, 1
      %s92 = scalar_select %p89, %s90, %s91
      %p95 = pneg %p89
      %p96 = scmp.eq.s32.totalorder %s40, 1
      %p97 = por %p95, %p96
      %p98 = scmp.ne.s32.totalorder %s90, %s93
      %p99 = scmp.eq.s32.totalorder %s40, 0
      %p100 = por %p98, %p99
      %p101 = scmp.ne.s32.totalorder %s90, %s93
      %p102 = scmp.eq.s32.totalorder %s45, 1
      %p103 = por %p101, %p102
      %p104 = scmp.ne.s32.totalorder %s93, %s94
      %p105 = scmp.eq.s32.totalorder %s45, 0
      %p106 = por %p104, %p105
      %p107 = scmp.ne.s32.totalorder %s93, %s94
      %p108 = scmp.eq.s32.totalorder %s46, 1
      %p109 = por %p107, %p108
      %p111 = scmp.ne.s32.totalorder %s94, %s110
      %p112 = scmp.eq.s32.totalorder %s46, 0
      %p113 = por %p111, %p112
      %s114 = ssub.s32 %s47, %s59
      %p115 = scmp.eq.s32.totalorder %s114, 0
      %s117 = sadd.s32 %s116, 1
      %s118 = scalar_select %p115, %s116, %s117
      %p121 = pneg %p115
      %p122 = scmp.eq.s32.totalorder %s40, 1
      %p123 = por %p121, %p122
      %p124 = scmp.ne.s32.totalorder %s116, %s119
      %p125 = scmp.eq.s32.totalorder %s40, 0
      %p126 = por %p124, %p125
      %p127 = scmp.ne.s32.totalorder %s116, %s119
      %p128 = scmp.eq.s32.totalorder %s45, 1
      %p129 = por %p127, %p128
      %p130 = scmp.ne.s32.totalorder %s119, %s120
      %p131 = scmp.eq.s32.totalorder %s45, 0
      %p132 = por %p130, %p131
      %p133 = scmp.ne.s32.totalorder %s119, %s120
      %p134 = scmp.eq.s32.totalorder %s46, 1
      %p135 = por %p133, %p134
      %p137 = scmp.ne.s32.totalorder %s120, %s136
      %p138 = scmp.eq.s32.totalorder %s46, 0
      %p139 = por %p137, %p138
      %s140 = ssub.s32 %s47, %s59
      %s141 = ssub.s32 %s48, %s55
      %s142 = sor.u32 %s140, %s141
      %p143 = scmp.eq.s32.totalorder %s142, 0
      %s145 = sadd.s32 %s144, 1
      %s146 = scalar_select %p143, %s144, %s145
      %p149 = pneg %p143
      %p150 = scmp.eq.s32.totalorder %s40, 1
      %p151 = por %p149, %p150
      %p152 = scmp.ne.s32.totalorder %s144, %s147
      %p153 = scmp.eq.s32.totalorder %s40, 0
      %p154 = por %p152, %p153
      %p155 = scmp.ne.s32.totalorder %s144, %s147
      %p156 = scmp.eq.s32.totalorder %s45, 1
      %p157 = por %p155, %p156
      %p158 = scmp.ne.s32.totalorder %s147, %s148
      %p159 = scmp.eq.s32.totalorder %s45, 0
      %p160 = por %p158, %p159
      %p161 = scmp.ne.s32.totalorder %s147, %s148
      %p162 = scmp.eq.s32.totalorder %s46, 1
      %p163 = por %p161, %p162
      %p165 = scmp.ne.s32.totalorder %s148, %s164
      %p166 = scmp.eq.s32.totalorder %s46, 0
      %p167 = por %p165, %p166
      %s169 = sadd.s32 %s168, 1
      %p172 = scmp.eq.s32.totalorder %s40, 1
      %p173 = scmp.ne.s32.totalorder %s168, %s170
      %p174 = scmp.eq.s32.totalorder %s40, 0
      %p175 = por %p173, %p174
      %p176 = scmp.ne.s32.totalorder %s168, %s170
      %p177 = scmp.eq.s32.totalorder %s45, 1
      %p178 = por %p176, %p177
      %p179 = scmp.ne.s32.totalorder %s170, %s171
      %p180 = scmp.eq.s32.totalorder %s45, 0
      %p181 = por %p179, %p180
      %p182 = scmp.ne.s32.totalorder %s170, %s171
      %p183 = scmp.eq.s32.totalorder %s46, 1
      %p184 = por %p182, %p183
      %p186 = scmp.ne.s32.totalorder %s171, %s185
      %p187 = scmp.eq.s32.totalorder %s46, 0
      %p188 = por %p186, %p187
      %s190 = sadd.s32 %s189, 1
      %p193 = scmp.eq.s32.totalorder %s40, 1
      %p194 = scmp.ne.s32.totalorder %s189, %s191
      %p195 = scmp.eq.s32.totalorder %s40, 0
      %p196 = por %p194, %p195
      %p197 = scmp.ne.s32.totalorder %s189, %s191
      %p198 = scmp.eq.s32.totalorder %s45, 1
      %p199 = por %p197, %p198
      %p200 = scmp.ne.s32.totalorder %s191, %s192
      %p201 = scmp.eq.s32.totalorder %s45, 0
      %p202 = por %p200, %p201
      %p203 = scmp.ne.s32.totalorder %s191, %s192
      %p204 = scmp.eq.s32.totalorder %s46, 1
      %p205 = por %p203, %p204
      %p207 = scmp.ne.s32.totalorder %s192, %s206
      %p208 = scmp.eq.s32.totalorder %s46, 0
      %p209 = por %p207, %p208
      %s211 = sadd.s32 %s210, 1
      %p214 = scmp.eq.s32.totalorder %s40, 1
      %p215 = scmp.ne.s32.totalorder %s210, %s212
      %p216 = scmp.eq.s32.totalorder %s40, 0
      %p217 = por %p215, %p216
      %p218 = scmp.ne.s32.totalorder %s210, %s212
      %p219 = scmp.eq.s32.totalorder %s45, 1
      %p220 = por %p218, %p219
      %p221 = scmp.ne.s32.totalorder %s212, %s213
      %p222 = scmp.eq.s32.totalorder %s45, 0
      %p223 = por %p221, %p222
      %p224 = scmp.ne.s32.totalorder %s212, %s213
      %p225 = scmp.eq.s32.totalorder %s46, 1
      %p226 = por %p224, %p225
      %p228 = scmp.ne.s32.totalorder %s213, %s227
      %p229 = scmp.eq.s32.totalorder %s46, 0
      %p230 = por %p228, %p229
      %s232 = sadd.s32 %s231, 1
      %p235 = scmp.eq.s32.totalorder %s40, 1
      %p236 = scmp.ne.s32.totalorder %s231, %s233
      %p237 = scmp.eq.s32.totalorder %s40, 0
      %p238 = por %p236, %p237
      %p239 = scmp.ne.s32.totalorder %s231, %s233
      %p240 = scmp.eq.s32.totalorder %s45, 1
      %p241 = por %p239, %p240
      %p242 = scmp.ne.s32.totalorder %s233, %s234
      %p243 = scmp.eq.s32.totalorder %s45, 0
      %p244 = por %p242, %p243
      %p245 = scmp.ne.s32.totalorder %s233, %s234
      %p246 = scmp.eq.s32.totalorder %s46, 1
      %p247 = por %p245, %p246
      %p249 = scmp.ne.s32.totalorder %s234, %s248
      %p250 = scmp.eq.s32.totalorder %s46, 0
      %p251 = por %p249, %p250
      %s253 = sadd.s32 %s252, 1
      %p256 = scmp.eq.s32.totalorder %s40, 1
      %p257 = scmp.ne.s32.totalorder %s252, %s254
      %p258 = scmp.eq.s32.totalorder %s40, 0
      %p259 = por %p257, %p258
      %p260 = scmp.ne.s32.totalorder %s252, %s254
      %p261 = scmp.eq.s32.totalorder %s45, 1
      %p262 = por %p260, %p261
      %p263 = scmp.ne.s32.totalorder %s254, %s255
      %p264 = scmp.eq.s32.totalorder %s45, 0
      %p265 = por %p263, %p264
      %p266 = scmp.ne.s32.totalorder %s254, %s255
      %p267 = scmp.eq.s32.totalorder %s46, 1
      %p268 = por %p266, %p267
      %p270 = scmp.ne.s32.totalorder %s255, %s269
      %p271 = scmp.eq.s32.totalorder %s46, 0
      %p272 = por %p270, %p271
      %s274 = sadd.s32 %s273, 1
      %p277 = scmp.eq.s32.totalorder %s40, 1
      %p278 = scmp.ne.s32.totalorder %s273, %s275
      %p279 = scmp.eq.s32.totalorder %s40, 0
      %p280 = por %p278, %p279
      %p281 = scmp.ne.s32.totalorder %s273, %s275
      %p282 = scmp.eq.s32.totalorder %s45, 1
      %p283 = por %p281, %p282
      %p284 = scmp.ne.s32.totalorder %s275, %s276
      %p285 = scmp.eq.s32.totalorder %s45, 0
      %p286 = por %p284, %p285
      %p287 = scmp.ne.s32.totalorder %s275, %s276
      %p288 = scmp.eq.s32.totalorder %s46, 1
      %p289 = por %p287, %p288
      %p291 = scmp.ne.s32.totalorder %s276, %s290
      %p292 = scmp.eq.s32.totalorder %s46, 0
      %p293 = por %p291, %p292
      %s295 = sadd.s32 %s294, 1
      %p298 = scmp.eq.s32.totalorder %s40, 1
      %p299 = scmp.ne.s32.totalorder %s294, %s296
      %p300 = scmp.eq.s32.totalorder %s40, 0
      %p301 = por %p299, %p300
      %p302 = scmp.ne.s32.totalorder %s294, %s296
      %p303 = scmp.eq.s32.totalorder %s45, 1
      %p304 = por %p302, %p303
      %p305 = scmp.ne.s32.totalorder %s296, %s297
      %p306 = scmp.eq.s32.totalorder %s45, 0
      %p307 = por %p305, %p306
      %p308 = scmp.ne.s32.totalorder %s296, %s297
      %p309 = scmp.eq.s32.totalorder %s46, 1
      %p310 = por %p308, %p309
      %p312 = scmp.ne.s32.totalorder %s297, %s311
      %p313 = scmp.eq.s32.totalorder %s46, 0
      %p314 = por %p312, %p313
      %s316 = sadd.s32 %s315, 1
      %p319 = scmp.eq.s32.totalorder %s40, 1
      %p320 = scmp.ne.s32.totalorder %s315, %s317
      %p321 = scmp.eq.s32.totalorder %s40, 0
      %p322 = por %p320, %p321
      %p323 = scmp.ne.s32.totalorder %s315, %s317
      %p324 = scmp.eq.s32.totalorder %s45, 1
      %p325 = por %p323, %p324
      %p326 = scmp.ne.s32.totalorder %s317, %s318
      %p327 = scmp.eq.s32.totalorder %s45, 0
      %p328 = por %p326, %p327
      %p329 = scmp.ne.s32.totalorder %s317, %s318
      %p330 = scmp.eq.s32.totalorder %s46, 1
      %p331 = por %p329, %p330
      %p333 = scmp.ne.s32.totalorder %s318, %s332
      %p334 = scmp.eq.s32.totalorder %s46, 0
      %p335 = por %p333, %p334
      %s337 = sadd.s32 %s336, 1
      %p340 = scmp.eq.s32.totalorder %s40, 1
      %p341 = scmp.ne.s32.totalorder %s336, %s338
      %p342 = scmp.eq.s32.totalorder %s40, 0
      %p343 = por %p341, %p342
      %p344 = scmp.ne.s32.totalorder %s336, %s338
      %p345 = scmp.eq.s32.totalorder %s45, 1
      %p346 = por %p344, %p345
      %p347 = scmp.ne.s32.totalorder %s338, %s339
      %p348 = scmp.eq.s32.totalorder %s45, 0
      %p349 = por %p347, %p348
      %p350 = scmp.ne.s32.totalorder %s338, %s339
      %p351 = scmp.eq.s32.totalorder %s46, 1
      %p352 = por %p350, %p351
      %p354 = scmp.ne.s32.totalorder %s339, %s353
      %p355 = scmp.eq.s32.totalorder %s46, 0
      %p356 = por %p354, %p355
      %s358 = sadd.s32 %s357, 1
      %p361 = scmp.eq.s32.totalorder %s40, 1
      %p362 = scmp.ne.s32.totalorder %s357, %s359
      %p363 = scmp.eq.s32.totalorder %s40, 0
      %p364 = por %p362, %p363
      %p365 = scmp.ne.s32.totalorder %s357, %s359
      %p366 = scmp.eq.s32.totalorder %s45, 1
      %p367 = por %p365, %p366
      %p368 = scmp.ne.s32.totalorder %s359, %s360
      %p369 = scmp.eq.s32.totalorder %s45, 0
      %p370 = por %p368, %p369
      %p371 = scmp.ne.s32.totalorder %s359, %s360
      %p372 = scmp.eq.s32.totalorder %s46, 1
      %p373 = por %p371, %p372
      %p375 = scmp.ne.s32.totalorder %s360, %s374
      %p376 = scmp.eq.s32.totalorder %s46, 0
      %p377 = por %p375, %p376
      %s379 = sadd.s32 %s378, 1
      %p382 = scmp.eq.s32.totalorder %s40, 1
      %p383 = scmp.ne.s32.totalorder %s378, %s380
      %p384 = scmp.eq.s32.totalorder %s40, 0
      %p385 = por %p383, %p384
      %p386 = scmp.ne.s32.totalorder %s378, %s380
      %p387 = scmp.eq.s32.totalorder %s45, 1
      %p388 = por %p386, %p387
      %p389 = scmp.ne.s32.totalorder %s380, %s381
      %p390 = scmp.eq.s32.totalorder %s45, 0
      %p391 = por %p389, %p390
      %p392 = scmp.ne.s32.totalorder %s380, %s381
      %p393 = scmp.eq.s32.totalorder %s46, 1
      %p394 = por %p392, %p393
      %p396 = scmp.ne.s32.totalorder %s381, %s395
      %p397 = scmp.eq.s32.totalorder %s46, 0
      %p398 = por %p396, %p397
      %s400 = sadd.s32 %s399, 1
      %p403 = scmp.eq.s32.totalorder %s40, 1
      %p404 = scmp.ne.s32.totalorder %s399, %s401
      %p405 = scmp.eq.s32.totalorder %s40, 0
      %p406 = por %p404, %p405
      %p407 = scmp.ne.s32.totalorder %s399, %s401
      %p408 = scmp.eq.s32.totalorder %s45, 1
      %p409 = por %p407, %p408
      %p410 = scmp.ne.s32.totalorder %s401, %s402
      %p411 = scmp.eq.s32.totalorder %s45, 0
      %p412 = por %p410, %p411
      %p413 = scmp.ne.s32.totalorder %s401, %s402
      %p414 = scmp.eq.s32.totalorder %s46, 1
      %p415 = por %p413, %p414
      %p417 = scmp.ne.s32.totalorder %s402, %s416
      %p418 = scmp.eq.s32.totalorder %s46, 0
      %p419 = por %p417, %p418
      %s421 = sadd.s32 %s420, 1
      %p424 = scmp.eq.s32.totalorder %s40, 1
      %p425 = scmp.ne.s32.totalorder %s420, %s422
      %p426 = scmp.eq.s32.totalorder %s40, 0
      %p427 = por %p425, %p426
      %p428 = scmp.ne.s32.totalorder %s420, %s422
      %p429 = scmp.eq.s32.totalorder %s45, 1
      %p430 = por %p428, %p429
      %p431 = scmp.ne.s32.totalorder %s422, %s423
      %p432 = scmp.eq.s32.totalorder %s45, 0
      %p433 = por %p431, %p432
      %p434 = scmp.ne.s32.totalorder %s422, %s423
      %p435 = scmp.eq.s32.totalorder %s46, 1
      %p436 = por %p434, %p435
      %p438 = scmp.ne.s32.totalorder %s423, %s437
      %p439 = scmp.eq.s32.totalorder %s46, 0
      %p440 = por %p438, %p439
      %s442 = sadd.s32 %s441, 1
      %p445 = scmp.eq.s32.totalorder %s40, 1
      %p446 = scmp.ne.s32.totalorder %s441, %s443
      %p447 = scmp.eq.s32.totalorder %s40, 0
      %p448 = por %p446, %p447
      %p449 = scmp.ne.s32.totalorder %s441, %s443
      %p450 = scmp.eq.s32.totalorder %s45, 1
      %p451 = por %p449, %p450
      %p452 = scmp.ne.s32.totalorder %s443, %s444
      %p453 = scmp.eq.s32.totalorder %s45, 0
      %p454 = por %p452, %p453
      %p455 = scmp.ne.s32.totalorder %s443, %s444
      %p456 = scmp.eq.s32.totalorder %s46, 1
      %p457 = por %p455, %p456
      %p459 = scmp.ne.s32.totalorder %s444, %s458
      %p460 = scmp.eq.s32.totalorder %s46, 0
      %p461 = por %p459, %p460
      %s463 = sadd.s32 %s462, 1
      %p466 = scmp.eq.s32.totalorder %s40, 1
      %p467 = scmp.ne.s32.totalorder %s462, %s464
      %p468 = scmp.eq.s32.totalorder %s40, 0
      %p469 = por %p467, %p468
      %p470 = scmp.ne.s32.totalorder %s462, %s464
      %p471 = scmp.eq.s32.totalorder %s45, 1
      %p472 = por %p470, %p471
      %p473 = scmp.ne.s32.totalorder %s464, %s465
      %p474 = scmp.eq.s32.totalorder %s45, 0
      %p475 = por %p473, %p474
      %p476 = scmp.ne.s32.totalorder %s464, %s465
      %p477 = scmp.eq.s32.totalorder %s46, 1
      %p478 = por %p476, %p477
      %p480 = scmp.ne.s32.totalorder %s465, %s479
      %p481 = scmp.eq.s32.totalorder %s46, 0
      %p482 = por %p480, %p481
      %s484 = sadd.s32 %s483, 1
      %p487 = scmp.eq.s32.totalorder %s40, 1
      %p488 = scmp.ne.s32.totalorder %s483, %s485
      %p489 = scmp.eq.s32.totalorder %s40, 0
      %p490 = por %p488, %p489
      %p491 = scmp.ne.s32.totalorder %s483, %s485
      %p492 = scmp.eq.s32.totalorder %s45, 1
      %p493 = por %p491, %p492
      %p494 = scmp.ne.s32.totalorder %s485, %s486
      %p495 = scmp.eq.s32.totalorder %s45, 0
      %p496 = por %p494, %p495
      %p497 = scmp.ne.s32.totalorder %s485, %s486
      %p498 = scmp.eq.s32.totalorder %s46, 1
      %p499 = por %p497, %p498
      %p501 = scmp.ne.s32.totalorder %s486, %s500
      %p502 = scmp.eq.s32.totalorder %s46, 0
      %p503 = por %p501, %p502
      %s505 = sadd.s32 %s504, 1
      %p508 = scmp.eq.s32.totalorder %s40, 1
      %p509 = scmp.ne.s32.totalorder %s504, %s506
      %p510 = scmp.eq.s32.totalorder %s40, 0
      %p511 = por %p509, %p510
      %p512 = scmp.ne.s32.totalorder %s504, %s506
      %p513 = scmp.eq.s32.totalorder %s45, 1
      %p514 = por %p512, %p513
      %p515 = scmp.ne.s32.totalorder %s506, %s507
      %p516 = scmp.eq.s32.totalorder %s45, 0
      %p517 = por %p515, %p516
      %p518 = scmp.ne.s32.totalorder %s506, %s507
      %p519 = scmp.eq.s32.totalorder %s46, 1
      %p520 = por %p518, %p519
      %p522 = scmp.ne.s32.totalorder %s507, %s521
      %p523 = scmp.eq.s32.totalorder %s46, 0
      %p524 = por %p522, %p523
      %s526 = sadd.s32 %s525, 1
      %p529 = scmp.eq.s32.totalorder %s40, 1
      %p530 = scmp.ne.s32.totalorder %s525, %s527
      %p531 = scmp.eq.s32.totalorder %s40, 0
      %p532 = por %p530, %p531
      %p533 = scmp.ne.s32.totalorder %s525, %s527
      %p534 = scmp.eq.s32.totalorder %s45, 1
      %p535 = por %p533, %p534
      %p536 = scmp.ne.s32.totalorder %s527, %s528
      %p537 = scmp.eq.s32.totalorder %s45, 0
      %p538 = por %p536, %p537
      %p539 = scmp.ne.s32.totalorder %s527, %s528
      %p540 = scmp.eq.s32.totalorder %s46, 1
      %p541 = por %p539, %p540
      %p543 = scmp.ne.s32.totalorder %s528, %s542
      %p544 = scmp.eq.s32.totalorder %s46, 0
      %p545 = por %p543, %p544
      %s546 = ssub.s32 %s47, %s59
      %s547 = ssub.s32 %s48, %s55
      %s548 = sor.u32 %s546, %s547
      %p549 = scmp.eq.s32.totalorder %s548, 0
      %s551 = sadd.s32 %s550, 1
      %s552 = scalar_select %p549, %s550, %s551
      %p555 = pneg %p549
      %p556 = scmp.eq.s32.totalorder %s40, 1
      %p557 = por %p555, %p556
      %p558 = scmp.ne.s32.totalorder %s550, %s553
      %p559 = scmp.eq.s32.totalorder %s40, 0
      %p560 = por %p558, %p559
      %p561 = scmp.ne.s32.totalorder %s550, %s553
      %p562 = scmp.eq.s32.totalorder %s45, 1
      %p563 = por %p561, %p562
      %p564 = scmp.ne.s32.totalorder %s553, %s554
      %p565 = scmp.eq.s32.totalorder %s45, 0
      %p566 = por %p564, %p565
      %p567 = scmp.ne.s32.totalorder %s553, %s554
      %p568 = scmp.eq.s32.totalorder %s46, 1
      %p569 = por %p567, %p568
      %p571 = scmp.ne.s32.totalorder %s554, %s570
      %p572 = scmp.eq.s32.totalorder %s46, 0
      %p573 = por %p571, %p572
      %p574 = scmp.le.s32.totalorder 1, %s40
      %p575 = scmp.lt.s32.totalorder %s40, 3
      %p576 = pnand %p574, %p575
      %p577 = pneg %p576
      // Predicated region
      $region9: #{tpu_custom_call.1} parent=5 // pred_check
        _
      $region10: #{tpu_custom_call.1} parent=5 // pred_check_branch
        %579 = sbr.rel (%p576) target = $region12
      $region11: #{tpu_custom_call.1} parent=5 // pred_region
        %s580 = ssub.s32 %s40, 1
        // Predicated region
        $region13: #{tpu_custom_call.1} parent=11 // pred_check
          %p581 = pneg %p181
        $region14: #{tpu_custom_call.1} parent=11 // pred_check_branch
          %583 = sbr.rel (%p581) target = $region16
        $region15: #{tpu_custom_call.1} parent=11 // pred_region
          _
        $region16: #{tpu_custom_call.1} parent=11 // pred_fallthru
          _
        // Predicated region
        $region17: #{tpu_custom_call.1} parent=11 // pred_check
          %p584 = pneg %p202
        $region18: #{tpu_custom_call.1} parent=11 // pred_check_branch
          %586 = sbr.rel (%p584) target = $region20
        $region19: #{tpu_custom_call.1} parent=11 // pred_region
          _
        $region20: #{tpu_custom_call.1} parent=11 // pred_fallthru
          _
        // Predicated region
        $region21: #{tpu_custom_call.1} parent=11 // pred_check
          %p587 = pneg %p223
        $region22: #{tpu_custom_call.1} parent=11 // pred_check_branch
          %589 = sbr.rel (%p587) target = $region24
        $region23: #{tpu_custom_call.1} parent=11 // pred_region
          _
        $region24: #{tpu_custom_call.1} parent=11 // pred_fallthru
          _
        // Predicated region
        $region25: #{tpu_custom_call.1} parent=11 // pred_check
          %p590 = pneg %p244
        $region26: #{tpu_custom_call.1} parent=11 // pred_check_branch
          %592 = sbr.rel (%p590) target = $region28
        $region27: #{tpu_custom_call.1} parent=11 // pred_region
          %s594 = ssub.s32 512, 512
          %595 = vsyncadd [#allocation10], %s594
          %s596 = sshll.u32 [#allocation9], 4
          %s597 = int_to_ptr.vmem [resolvable:$true] %s596
          %602 = dma.hbm_to_vmem [thread:$0]  %s7, 512, %s597, [#allocation10], 128, 128, 8
        $region28: #{tpu_custom_call.1} parent=11 // pred_fallthru
          _
        // Predicated region
        $region29: #{tpu_custom_call.1} parent=11 // pred_check
          %p603 = pneg %p265
        $region30: #{tpu_custom_call.1} parent=11 // pred_check_branch
          %605 = sbr.rel (%p603) target = $region32
        $region31: #{tpu_custom_call.1} parent=11 // pred_region
          _
        $region32: #{tpu_custom_call.1} parent=11 // pred_fallthru
          _
        // Predicated region
        $region33: #{tpu_custom_call.1} parent=11 // pred_check
          %p606 = pneg %p286
        $region34: #{tpu_custom_call.1} parent=11 // pred_check_branch
          %608 = sbr.rel (%p606) target = $region36
        $region35: #{tpu_custom_call.1} parent=11 // pred_region
          _
        $region36: #{tpu_custom_call.1} parent=11 // pred_fallthru
          _
        // Predicated region
        $region37: #{tpu_custom_call.1} parent=11 // pred_check
          %p609 = pneg %p307
        $region38: #{tpu_custom_call.1} parent=11 // pred_check_branch
          %611 = sbr.rel (%p609) target = $region40
        $region39: #{tpu_custom_call.1} parent=11 // pred_region
          %s613 = ssub.s32 512, 512
          %614 = vsyncadd [#allocation10], %s613
          %s615 = sshll.u32 [#allocation11], 4
          %s616 = int_to_ptr.vmem [resolvable:$true] %s615
          %621 = dma.hbm_to_vmem [thread:$0]  %s10, 512, %s616, [#allocation10], 128, 128, 8
        $region40: #{tpu_custom_call.1} parent=11 // pred_fallthru
          _
        // Predicated region
        $region41: #{tpu_custom_call.1} parent=11 // pred_check
          %p622 = pneg %p328
        $region42: #{tpu_custom_call.1} parent=11 // pred_check_branch
          %624 = sbr.rel (%p622) target = $region44
        $region43: #{tpu_custom_call.1} parent=11 // pred_region
          %s626 = ssub.s32 512, 512
          %627 = vsyncadd [#allocation13], %s626
          %s628 = sshll.u32 [#allocation12], 4
          %s629 = int_to_ptr.vmem [resolvable:$true] %s628
          %634 = dma.hbm_to_vmem [thread:$0]  %s11, 512, %s629, [#allocation13], 128, 128, 8
        $region44: #{tpu_custom_call.1} parent=11 // pred_fallthru
          _
        // Predicated region
        $region45: #{tpu_custom_call.1} parent=11 // pred_check
          %p635 = pneg %p349
        $region46: #{tpu_custom_call.1} parent=11 // pred_check_branch
          %637 = sbr.rel (%p635) target = $region48
        $region47: #{tpu_custom_call.1} parent=11 // pred_region
          %s639 = ssub.s32 512, 512
          %640 = vsyncadd [#allocation13], %s639
          %s641 = sshll.u32 [#allocation14], 4
          %s642 = int_to_ptr.vmem [resolvable:$true] %s641
          %647 = dma.hbm_to_vmem [thread:$0]  %s12, 512, %s642, [#allocation13], 128, 128, 8
        $region48: #{tpu_custom_call.1} parent=11 // pred_fallthru
          _
        // Predicated region
        $region49: #{tpu_custom_call.1} parent=11 // pred_check
          %p648 = pneg %p370
        $region50: #{tpu_custom_call.1} parent=11 // pred_check_branch
          %650 = sbr.rel (%p648) target = $region52
        $region51: #{tpu_custom_call.1} parent=11 // pred_region
          _
        $region52: #{tpu_custom_call.1} parent=11 // pred_fallthru
          _
        // Predicated region
        $region53: #{tpu_custom_call.1} parent=11 // pred_check
          %p651 = pneg %p391
        $region54: #{tpu_custom_call.1} parent=11 // pred_check_branch
          %653 = sbr.rel (%p651) target = $region56
        $region55: #{tpu_custom_call.1} parent=11 // pred_region
          _
        $region56: #{tpu_custom_call.1} parent=11 // pred_fallthru
          _
        // Predicated region
        $region57: #{tpu_custom_call.1} parent=11 // pred_check
          %p654 = pneg %p412
        $region58: #{tpu_custom_call.1} parent=11 // pred_check_branch
          %656 = sbr.rel (%p654) target = $region60
        $region59: #{tpu_custom_call.1} parent=11 // pred_region
          _
        $region60: #{tpu_custom_call.1} parent=11 // pred_fallthru
          _
        // Predicated region
        $region61: #{tpu_custom_call.1} parent=11 // pred_check
          %p657 = pneg %p433
        $region62: #{tpu_custom_call.1} parent=11 // pred_check_branch
          %659 = sbr.rel (%p657) target = $region64
        $region63: #{tpu_custom_call.1} parent=11 // pred_region
          %s661 = ssub.s32 512, 512
          %662 = vsyncadd [#allocation16], %s661
          %s663 = sshll.u32 [#allocation15], 4
          %s664 = int_to_ptr.vmem [resolvable:$true] %s663
          %669 = dma.hbm_to_vmem [thread:$0]  %s16, 512, %s664, [#allocation16], 128, 128, 8
        $region64: #{tpu_custom_call.1} parent=11 // pred_fallthru
          _
        // Predicated region
        $region65: #{tpu_custom_call.1} parent=11 // pred_check
          %p670 = pneg %p454
        $region66: #{tpu_custom_call.1} parent=11 // pred_check_branch
          %672 = sbr.rel (%p670) target = $region68
        $region67: #{tpu_custom_call.1} parent=11 // pred_region
          _
        $region68: #{tpu_custom_call.1} parent=11 // pred_fallthru
          _
        // Predicated region
        $region69: #{tpu_custom_call.1} parent=11 // pred_check
          %p673 = pneg %p475
        $region70: #{tpu_custom_call.1} parent=11 // pred_check_branch
          %675 = sbr.rel (%p673) target = $region72
        $region71: #{tpu_custom_call.1} parent=11 // pred_region
          _
        $region72: #{tpu_custom_call.1} parent=11 // pred_fallthru
          _
        // Predicated region
        $region73: #{tpu_custom_call.1} parent=11 // pred_check
          %p676 = pneg %p496
        $region74: #{tpu_custom_call.1} parent=11 // pred_check_branch
          %678 = sbr.rel (%p676) target = $region76
        $region75: #{tpu_custom_call.1} parent=11 // pred_region
          _
        $region76: #{tpu_custom_call.1} parent=11 // pred_fallthru
          _
        // Predicated region
        $region77: #{tpu_custom_call.1} parent=11 // pred_check
          %p679 = pneg %p517
        $region78: #{tpu_custom_call.1} parent=11 // pred_check_branch
          %681 = sbr.rel (%p679) target = $region80
        $region79: #{tpu_custom_call.1} parent=11 // pred_region
          _
        $region80: #{tpu_custom_call.1} parent=11 // pred_fallthru
          _
        // Predicated region
        $region81: #{tpu_custom_call.1} parent=11 // pred_check
          %p682 = pneg %p538
        $region82: #{tpu_custom_call.1} parent=11 // pred_check_branch
          %684 = sbr.rel (%p682) target = $region84
        $region83: #{tpu_custom_call.1} parent=11 // pred_region
          _
        $region84: #{tpu_custom_call.1} parent=11 // pred_fallthru
          _
      $region12: #{tpu_custom_call.1} parent=5 // pred_fallthru
        _
      %p685 = scmp.lt.s32.totalorder %s40, 2
      // Predicated region
      $region85: #{tpu_custom_call.1} parent=5 // pred_check
        %p686 = pneg %p685
      $region86: #{tpu_custom_call.1} parent=5 // pred_check_branch
        %688 = sbr.rel (%p686) target = $region88
      $region87: #{tpu_custom_call.1} parent=5 // pred_region
        // Predicated region
        $region89: #{tpu_custom_call.1} parent=87 // pred_check
          %p689 = pneg %p74
        $region90: #{tpu_custom_call.1} parent=87 // pred_check_branch
          %691 = sbr.rel (%p689) target = $region92
        $region91: #{tpu_custom_call.1} parent=87 // pred_region
          %s692 = sand.u32 %s64, 1
          %s693 = scalar_lea.sflag [#allocation4], %s692
          %s694 = sand.u32 %s64, 1
          %s695 = smul.addr %s694, 8
          %s696 = scalar_lea.vmem [#allocation3], %s695
          %s698 = ssub.s32 128, 128
          %699 = vsyncadd %s693, %s698
          %s700 = sadd.s32 %s48, %s47
          %s701 = smul.addr %s700, 128
          %s702 = scalar_lea.hbm %s0, %s701
          %s704 = sshll.u32 %s696, 4
          %s705 = int_to_ptr.vmem [resolvable:$true] %s704
          %707 = dma.hbm_to_vmem [thread:$0]  %s702, 128, %s705, %s693
        $region92: #{tpu_custom_call.1} parent=87 // pred_fallthru
          _
        // Predicated region
        $region93: #{tpu_custom_call.1} parent=87 // pred_check
          %p708 = pneg %p100
        $region94: #{tpu_custom_call.1} parent=87 // pred_check_branch
          %710 = sbr.rel (%p708) target = $region96
        $region95: #{tpu_custom_call.1} parent=87 // pred_region
          %s711 = sand.u32 %s40, 1
          %s712 = scalar_lea.sflag [#allocation7], %s711
          %s713 = sand.u32 %s90, 1
          %s714 = smul.addr %s713, 8
          %s715 = scalar_lea.vmem [#allocation6], %s714
          %s717 = ssub.s32 128, 128
          %718 = vsyncadd %s712, %s717
          %s719 = smul.addr %s47, 128
          %s720 = scalar_lea.hbm %s1, %s719
          %s722 = sshll.u32 %s715, 4
          %s723 = int_to_ptr.vmem [resolvable:$true] %s722
          %725 = dma.hbm_to_vmem [thread:$0]  %s720, 128, %s723, %s712
        $region96: #{tpu_custom_call.1} parent=87 // pred_fallthru
          _
        // Predicated region
        $region97: #{tpu_custom_call.1} parent=87 // pred_check
          %p726 = pneg %p126
        $region98: #{tpu_custom_call.1} parent=87 // pred_check_branch
          %728 = sbr.rel (%p726) target = $region100
        $region99: #{tpu_custom_call.1} parent=87 // pred_region
          %s729 = sand.u32 %s40, 1
          %s730 = scalar_lea.sflag [#allocation7], %s729
          %s731 = sand.u32 %s116, 1
          %s732 = smul.addr %s731, 8
          %s733 = scalar_lea.vmem [#allocation8], %s732
          %s735 = ssub.s32 128, 128
          %736 = vsyncadd %s730, %s735
          %s737 = smul.addr %s47, 128
          %s738 = scalar_lea.hbm %s2, %s737
          %s740 = sshll.u32 %s733, 4
          %s741 = int_to_ptr.vmem [resolvable:$true] %s740
          %743 = dma.hbm_to_vmem [thread:$0]  %s738, 128, %s741, %s730
        $region100: #{tpu_custom_call.1} parent=87 // pred_fallthru
          _
        // Predicated region
        $region101: #{tpu_custom_call.1} parent=87 // pred_check
          %p744 = pneg %p154
        $region102: #{tpu_custom_call.1} parent=87 // pred_check_branch
          %746 = sbr.rel (%p744) target = $region104
        $region103: #{tpu_custom_call.1} parent=87 // pred_region
          %p747 = scmp.lt.s32.totalorder %s47, 1
          %s748 = scalar_select %p747, %s47, 1
          %p749 = scmp.lt.s32.totalorder %s48, 0
          %s750 = scalar_select %p749, %s48, 0
          %s751 = sadd.s32 %s750, %s748
          %s752 = smul.addr %s751, 8
          %s753 = scalar_lea.vmem %s3, %s752
        $region104: #{tpu_custom_call.1} parent=87 // pred_fallthru
          _
      $region88: #{tpu_custom_call.1} parent=5 // pred_fallthru
        _
      %p754 = scmp.le.s32.totalorder 1, %s40
      %p755 = scmp.lt.s32.totalorder %s40, 3
      %p756 = pnand %p754, %p755
      %p757 = pneg %p756
      // Predicated region
      $region105: #{tpu_custom_call.1} parent=5 // pred_check
        _
      $region106: #{tpu_custom_call.1} parent=5 // pred_check_branch
        %759 = sbr.rel (%p756) target = $region108
      $region107: #{tpu_custom_call.1} parent=5 // pred_region
        %s760 = ssub.s32 %s40, 1
        %s761 = sand.u32 %s67, 1
        %s762 = scalar_lea.sflag [#allocation4], %s761
        %s763 = sand.u32 %s67, 1
        %s764 = smul.addr %s763, 8
        %s765 = scalar_lea.vmem [#allocation3], %s764
        // Predicated region
        $region109: #{tpu_custom_call.1} parent=107 // pred_check
          %p766 = pneg %p80
        $region110: #{tpu_custom_call.1} parent=107 // pred_check_branch
          %768 = sbr.rel (%p766) target = $region112
        $region111: #{tpu_custom_call.1} parent=107 // pred_region
          %769 = dma.done %s762, 128
        $region112: #{tpu_custom_call.1} parent=107 // pred_fallthru
          _
        %s770 = sand.u32 %s45, 1
        %s771 = scalar_lea.sflag [#allocation7], %s770
        %s772 = sand.u32 %s93, 1
        %s773 = smul.addr %s772, 8
        %s774 = scalar_lea.vmem [#allocation6], %s773
        // Predicated region
        $region113: #{tpu_custom_call.1} parent=107 // pred_check
          %p775 = pneg %p106
        $region114: #{tpu_custom_call.1} parent=107 // pred_check_branch
          %777 = sbr.rel (%p775) target = $region116
        $region115: #{tpu_custom_call.1} parent=107 // pred_region
          %778 = dma.done %s771, 128
        $region116: #{tpu_custom_call.1} parent=107 // pred_fallthru
          _
        %s779 = sand.u32 %s45, 1
        %s780 = scalar_lea.sflag [#allocation7], %s779
        %s781 = sand.u32 %s119, 1
        %s782 = smul.addr %s781, 8
        %s783 = scalar_lea.vmem [#allocation8], %s782
        // Predicated region
        $region117: #{tpu_custom_call.1} parent=107 // pred_check
          %p784 = pneg %p132
        $region118: #{tpu_custom_call.1} parent=107 // pred_check_branch
          %786 = sbr.rel (%p784) target = $region120
        $region119: #{tpu_custom_call.1} parent=107 // pred_region
          %787 = dma.done %s780, 128
        $region120: #{tpu_custom_call.1} parent=107 // pred_fallthru
          _
        // Predicated region
        $region121: #{tpu_custom_call.1} parent=107 // pred_check
          %p788 = pneg %p244
        $region122: #{tpu_custom_call.1} parent=107 // pred_check_branch
          %790 = sbr.rel (%p788) target = $region124
        $region123: #{tpu_custom_call.1} parent=107 // pred_region
          %791 = dma.done [#allocation10], 512
        $region124: #{tpu_custom_call.1} parent=107 // pred_fallthru
          _
        // Predicated region
        $region125: #{tpu_custom_call.1} parent=107 // pred_check
          %p792 = pneg %p307
        $region126: #{tpu_custom_call.1} parent=107 // pred_check_branch
          %794 = sbr.rel (%p792) target = $region128
        $region127: #{tpu_custom_call.1} parent=107 // pred_region
          %795 = dma.done [#allocation10], 512
        $region128: #{tpu_custom_call.1} parent=107 // pred_fallthru
          _
        // Predicated region
        $region129: #{tpu_custom_call.1} parent=107 // pred_check
          %p796 = pneg %p328
        $region130: #{tpu_custom_call.1} parent=107 // pred_check_branch
          %798 = sbr.rel (%p796) target = $region132
        $region131: #{tpu_custom_call.1} parent=107 // pred_region
          %799 = dma.done [#allocation13], 512
        $region132: #{tpu_custom_call.1} parent=107 // pred_fallthru
          _
        // Predicated region
        $region133: #{tpu_custom_call.1} parent=107 // pred_check
          %p800 = pneg %p349
        $region134: #{tpu_custom_call.1} parent=107 // pred_check_branch
          %802 = sbr.rel (%p800) target = $region136
        $region135: #{tpu_custom_call.1} parent=107 // pred_region
          %803 = dma.done [#allocation13], 512
        $region136: #{tpu_custom_call.1} parent=107 // pred_fallthru
          _
        // Predicated region
        $region137: #{tpu_custom_call.1} parent=107 // pred_check
          %p804 = pneg %p433
        $region138: #{tpu_custom_call.1} parent=107 // pred_check_branch
          %806 = sbr.rel (%p804) target = $region140
        $region139: #{tpu_custom_call.1} parent=107 // pred_region
          %807 = dma.done [#allocation16], 512
        $region140: #{tpu_custom_call.1} parent=107 // pred_fallthru
          _
        %s808 = sand.u32 %s67, 1
        %s809 = scalar_lea.sflag [#allocation4], %s808
        %s810 = sand.u32 %s67, 1
        %s811 = smul.addr %s810, 8
        %s812 = scalar_lea.vmem [#allocation3], %s811
        %p813 = pneg %p80
        %p814 = pneg %p77
        %s815 = sand.u32 %s45, 1
        %s816 = scalar_lea.sflag [#allocation7], %s815
        %s817 = sand.u32 %s93, 1
        %s818 = smul.addr %s817, 8
        %s819 = scalar_lea.vmem [#allocation6], %s818
        %p820 = pneg %p106
        %p821 = pneg %p103
        %s822 = sand.u32 %s45, 1
        %s823 = scalar_lea.sflag [#allocation7], %s822
        %s824 = sand.u32 %s119, 1
        %s825 = smul.addr %s824, 8
        %s826 = scalar_lea.vmem [#allocation8], %s825
        %p827 = pneg %p132
        %p828 = pneg %p129
        %p829 = scmp.lt.s32.totalorder %s49, 1
        %s830 = scalar_select %p829, %s49, 1
        %p831 = scmp.lt.s32.totalorder %s50, 0
        %s832 = scalar_select %p831, %s50, 0
        %s833 = sadd.s32 %s832, %s830
        %s834 = smul.addr %s833, 8
        %s835 = scalar_lea.vmem %s3, %s834
        %p836 = pneg %p160
        %p837 = pneg %p157
        %p838 = pneg %p181
        %p839 = pneg %p178
        %p840 = pneg %p202
        %p841 = pneg %p199
        %p842 = pneg %p223
        %p843 = pneg %p220
        %p844 = pneg %p244
        %p845 = pneg %p241
        %p846 = pneg %p265
        %p847 = pneg %p262
        %p848 = pneg %p286
        %p849 = pneg %p283
        %p850 = pneg %p307
        %p851 = pneg %p304
        %p852 = pneg %p328
        %p853 = pneg %p325
        %p854 = pneg %p349
        %p855 = pneg %p346
        %p856 = pneg %p370
        %p857 = pneg %p367
        %p858 = pneg %p391
        %p859 = pneg %p388
        %p860 = pneg %p412
        %p861 = pneg %p409
        %p862 = pneg %p433
        %p863 = pneg %p430
        %p864 = pneg %p454
        %p865 = pneg %p451
        %p866 = pneg %p475
        %p867 = pneg %p472
        %p868 = pneg %p496
        %p869 = pneg %p493
        %p870 = pneg %p517
        %p871 = pneg %p514
        %p872 = pneg %p538
        %p873 = pneg %p535
        %p874 = pneg %p566
        %p875 = pneg %p563
        %s876 = sand.u32 %s553, 1
        %s877 = scalar_lea.sflag [#allocation5], %s876
        %s878 = sand.u32 %s553, 1
        %s879 = smul.addr %s878, 8
        %s880 = scalar_lea.vmem [#allocation17], %s879
        %p881 = scmp.lt.s32.totalorder %s49, 1
        %s882 = scalar_select %p881, %s49, 1
        %p883 = scmp.lt.s32.totalorder %s50, 0
        %s884 = scalar_select %p883, %s50, 0
        %s885 = sadd.s32 %s884, %s882
        %s886 = smul.addr %s885, 8
        %s887 = scalar_lea.vmem %s3, %s886
        %v888 = vld [vmem:[%s765] sm:$0xff]
        %v889 = vld [vmem:[%s774] sm:$0xff]
        %v890 = vld [vmem:[%s4] sm:$0xff]
        %v891 = vld [vmem:[%s4 + $0x8] sm:$0xff]
        %v892 = vld [vmem:[%s4 + $0x10] sm:$0xff]
        %v893 = vld [vmem:[%s4 + $0x18] sm:$0xff]
        %vm894 = vcmask 261120
        %v896 = vsel %vm894, %v888, 0
        %898 = vmatprep.subr.mxu0 0.0
        %899 = vmatpush1.msra.mxu0 %v890
        %900 = vmatprep.subr.mxu0 0.0
        %901 = vmatpush1.msra.mxu0 %v891
        %902 = vmatprep.subr.mxu0 0.0
        %903 = vmatpush1.msra.mxu0 %v892
        %904 = vmatprep.subr.mxu0 0.0
        %905 = vmatpush1.msra.mxu0 %v893
        %906 = vmatprep.subr.mxu0 0.0
        %907 = vmatpush1.msra.mxu0 0.0
        %908 = vmatprep.subr.mxu0 0.0
        %909 = vmatpush1.msra.mxu0 0.0
        %910 = vmatprep.subr.mxu0 0.0
        %911 = vmatpush1.msra.mxu0 0.0
        %912 = vmatprep.subr.mxu0 0.0
        %913 = vmatpush1.msra.mxu0 0.0
        %914 = vmatprep.subr.mxu0 0.0
        %915 = vmatpush1.msra.mxu0 0.0
        %916 = vmatprep.subr.mxu0 0.0
        %917 = vmatpush1.msra.mxu0 0.0
        %918 = vmatprep.subr.mxu0 0.0
        %919 = vmatpush1.msra.mxu0 0.0
        %920 = vmatprep.subr.mxu0 0.0
        %921 = vmatpush1.msra.mxu0 0.0
        %922 = vmatprep.subr.mxu0 0.0
        %923 = vmatpush1.msra.mxu0 0.0
        %924 = vmatprep.subr.mxu0 0.0
        %925 = vmatpush1.msra.mxu0 0.0
        %926 = vmatprep.subr.mxu0 0.0
        %927 = vmatpush1.msra.mxu0 0.0
        %928 = vmatprep.subr.mxu0 0.0
        %929 = vmatpush1.msra.mxu0 0.0
        %930 = vmatprep.subr.mxu0 0.0
        %931 = vmatpush1.msra.mxu0 0.0
        %932 = vmatprep.subr.mxu0 0.0
        %933 = vmatpush1.msra.mxu0 0.0
        %934 = vmatprep.subr.mxu0 0.0
        %935 = vmatpush1.msra.mxu0 0.0
        %936 = vmatprep.subr.mxu0 0.0
        %937 = vmatpush1.msra.mxu0 0.0
        %938 = vmatprep.subr.mxu0 0.0
        %939 = vmatpush1.msra.mxu0 0.0
        %940 = vmatprep.subr.mxu0 0.0
        %941 = vmatpush1.msra.mxu0 0.0
        %942 = vmatprep.subr.mxu0 0.0
        %943 = vmatpush1.msra.mxu0 0.0
        %944 = vmatprep.subr.mxu0 0.0
        %945 = vmatpush1.msra.mxu0 0.0
        %946 = vmatprep.subr.mxu0 0.0
        %947 = vmatpush1.msra.mxu0 0.0
        %948 = vmatprep.subr.mxu0 0.0
        %949 = vmatpush1.msra.mxu0 0.0
        %950 = vmatprep.subr.mxu0 0.0
        %951 = vmatpush1.msra.mxu0 0.0
        %952 = vmatprep.subr.mxu0 0.0
        %953 = vmatpush1.msra.mxu0 0.0
        %954 = vmatprep.subr.mxu0 0.0
        %955 = vmatpush1.msra.mxu0 0.0
        %956 = vmatprep.subr.mxu0 0.0
        %957 = vmatpush1.msra.mxu0 0.0
        %958 = vmatprep.subr.mxu0 0.0
        %959 = vmatpush1.msra.mxu0 0.0
        %960 = vmatprep.subr.mxu0 0.0
        %961 = vmatpush1.msra.mxu0 0.0
        %962 = vmatprep.mubr.f32.mxu0 0.0
        %963 = vmatmul.mubr.f32.gmra.mrb[0].mxu0 %v896
        %v964 = vpop.f32.mrb[0].mxu0
        %v965 = vadd.f32 0.0, %v964
        %v966 = vpop.f32.mrb[0].mxu0
        %967 = vdwg.mxu0
        %v968 = vld [vmem:[%s5] sm:$0xff]
        %v969 = vld [vmem:[%s5 + $0x8] sm:$0xff]
        %v970 = vld [vmem:[%s5 + $0x10] sm:$0xff]
        %v971 = vld [vmem:[%s5 + $0x18] sm:$0xff]
        %v973 = vsel %vm894, %v889, 0
        %975 = vmatprep.subr.mxu0 0.0
        %976 = vmatpush1.msra.mxu0 %v968
        %977 = vmatprep.subr.mxu0 0.0
        %978 = vmatpush1.msra.mxu0 %v969
        %979 = vmatprep.subr.mxu0 0.0
        %980 = vmatpush1.msra.mxu0 %v970
        %981 = vmatprep.subr.mxu0 0.0
        %982 = vmatpush1.msra.mxu0 %v971
        %983 = vmatprep.subr.mxu0 0.0
        %984 = vmatpush1.msra.mxu0 0.0
        %985 = vmatprep.subr.mxu0 0.0
        %986 = vmatpush1.msra.mxu0 0.0
        %987 = vmatprep.subr.mxu0 0.0
        %988 = vmatpush1.msra.mxu0 0.0
        %989 = vmatprep.subr.mxu0 0.0
        %990 = vmatpush1.msra.mxu0 0.0
        %991 = vmatprep.subr.mxu0 0.0
        %992 = vmatpush1.msra.mxu0 0.0
        %993 = vmatprep.subr.mxu0 0.0
        %994 = vmatpush1.msra.mxu0 0.0
        %995 = vmatprep.subr.mxu0 0.0
        %996 = vmatpush1.msra.mxu0 0.0
        %997 = vmatprep.subr.mxu0 0.0
        %998 = vmatpush1.msra.mxu0 0.0
        %999 = vmatprep.subr.mxu0 0.0
        %1000 = vmatpush1.msra.mxu0 0.0
        %1001 = vmatprep.subr.mxu0 0.0
        %1002 = vmatpush1.msra.mxu0 0.0
        %1003 = vmatprep.subr.mxu0 0.0
        %1004 = vmatpush1.msra.mxu0 0.0
        %1005 = vmatprep.subr.mxu0 0.0
        %1006 = vmatpush1.msra.mxu0 0.0
        %1007 = vmatprep.subr.mxu0 0.0
        %1008 = vmatpush1.msra.mxu0 0.0
        %1009 = vmatprep.subr.mxu0 0.0
        %1010 = vmatpush1.msra.mxu0 0.0
        %1011 = vmatprep.subr.mxu0 0.0
        %1012 = vmatpush1.msra.mxu0 0.0
        %1013 = vmatprep.subr.mxu0 0.0
        %1014 = vmatpush1.msra.mxu0 0.0
        %1015 = vmatprep.subr.mxu0 0.0
        %1016 = vmatpush1.msra.mxu0 0.0
        %1017 = vmatprep.subr.mxu0 0.0
        %1018 = vmatpush1.msra.mxu0 0.0
        %1019 = vmatprep.subr.mxu0 0.0
        %1020 = vmatpush1.msra.mxu0 0.0
        %1021 = vmatprep.subr.mxu0 0.0
        %1022 = vmatpush1.msra.mxu0 0.0
        %1023 = vmatprep.subr.mxu0 0.0
        %1024 = vmatpush1.msra.mxu0 0.0
        %1025 = vmatprep.subr.mxu0 0.0
        %1026 = vmatpush1.msra.mxu0 0.0
        %1027 = vmatprep.subr.mxu0 0.0
        %1028 = vmatpush1.msra.mxu0 0.0
        %1029 = vmatprep.subr.mxu0 0.0
        %1030 = vmatpush1.msra.mxu0 0.0
        %1031 = vmatprep.subr.mxu0 0.0
        %1032 = vmatpush1.msra.mxu0 0.0
        %1033 = vmatprep.subr.mxu0 0.0
        %1034 = vmatpush1.msra.mxu0 0.0
        %1035 = vmatprep.subr.mxu0 0.0
        %1036 = vmatpush1.msra.mxu0 0.0
        %1037 = vmatprep.subr.mxu0 0.0
        %1038 = vmatpush1.msra.mxu0 0.0
        %1039 = vmatprep.mubr.f32.mxu0 0.0
        %1040 = vmatmul.mubr.f32.gmra.mrb[0].mxu0 %v973
        %v1041 = vpop.f32.mrb[0].mxu0
        %v1042 = vadd.f32 0.0, %v1041
        %v1043 = vpop.f32.mrb[0].mxu0
        %1044 = vdwg.mxu0
        %v1045 = vld [vmem:[%s6] sm:$0xff]
        %v1046 = vld [vmem:[%s6 + $0x8] sm:$0xff]
        %v1047 = vld [vmem:[%s6 + $0x10] sm:$0xff]
        %v1048 = vld [vmem:[%s6 + $0x18] sm:$0xff]
        %1049 = vmatprep.subr.mxu0 0.0
        %1050 = vmatpush1.msra.mxu0 %v1045
        %1051 = vmatprep.subr.mxu0 0.0
        %1052 = vmatpush1.msra.mxu0 %v1046
        %1053 = vmatprep.subr.mxu0 0.0
        %1054 = vmatpush1.msra.mxu0 %v1047
        %1055 = vmatprep.subr.mxu0 0.0
        %1056 = vmatpush1.msra.mxu0 %v1048
        %1057 = vmatprep.subr.mxu0 0.0
        %1058 = vmatpush1.msra.mxu0 0.0
        %1059 = vmatprep.subr.mxu0 0.0
        %1060 = vmatpush1.msra.mxu0 0.0
        %1061 = vmatprep.subr.mxu0 0.0
        %1062 = vmatpush1.msra.mxu0 0.0
        %1063 = vmatprep.subr.mxu0 0.0
        %1064 = vmatpush1.msra.mxu0 0.0
        %1065 = vmatprep.subr.mxu0 0.0
        %1066 = vmatpush1.msra.mxu0 0.0
        %1067 = vmatprep.subr.mxu0 0.0
        %1068 = vmatpush1.msra.mxu0 0.0
        %1069 = vmatprep.subr.mxu0 0.0
        %1070 = vmatpush1.msra.mxu0 0.0
        %1071 = vmatprep.subr.mxu0 0.0
        %1072 = vmatpush1.msra.mxu0 0.0
        %1073 = vmatprep.subr.mxu0 0.0
        %1074 = vmatpush1.msra.mxu0 0.0
        %1075 = vmatprep.subr.mxu0 0.0
        %1076 = vmatpush1.msra.mxu0 0.0
        %1077 = vmatprep.subr.mxu0 0.0
        %1078 = vmatpush1.msra.mxu0 0.0
        %1079 = vmatprep.subr.mxu0 0.0
        %1080 = vmatpush1.msra.mxu0 0.0
        %1081 = vmatprep.subr.mxu0 0.0
        %1082 = vmatpush1.msra.mxu0 0.0
        %1083 = vmatprep.subr.mxu0 0.0
        %1084 = vmatpush1.msra.mxu0 0.0
        %1085 = vmatprep.subr.mxu0 0.0
        %1086 = vmatpush1.msra.mxu0 0.0
        %1087 = vmatprep.subr.mxu0 0.0
        %1088 = vmatpush1.msra.mxu0 0.0
        %1089 = vmatprep.subr.mxu0 0.0
        %1090 = vmatpush1.msra.mxu0 0.0
        %1091 = vmatprep.subr.mxu0 0.0
        %1092 = vmatpush1.msra.mxu0 0.0
        %1093 = vmatprep.subr.mxu0 0.0
        %1094 = vmatpush1.msra.mxu0 0.0
        %1095 = vmatprep.subr.mxu0 0.0
        %1096 = vmatpush1.msra.mxu0 0.0
        %1097 = vmatprep.subr.mxu0 0.0
        %1098 = vmatpush1.msra.mxu0 0.0
        %1099 = vmatprep.subr.mxu0 0.0
        %1100 = vmatpush1.msra.mxu0 0.0
        %1101 = vmatprep.subr.mxu0 0.0
        %1102 = vmatpush1.msra.mxu0 0.0
        %1103 = vmatprep.subr.mxu0 0.0
        %1104 = vmatpush1.msra.mxu0 0.0
        %1105 = vmatprep.subr.mxu0 0.0
        %1106 = vmatpush1.msra.mxu0 0.0
        %1107 = vmatprep.subr.mxu0 0.0
        %1108 = vmatpush1.msra.mxu0 0.0
        %1109 = vmatprep.subr.mxu0 0.0
        %1110 = vmatpush1.msra.mxu0 0.0
        %1111 = vmatprep.subr.mxu0 0.0
        %1112 = vmatpush1.msra.mxu0 0.0
        %1113 = vmatprep.mubr.f32.mxu0 0.0
        %1114 = vmatmul.mubr.f32.gmra.mrb[0].mxu0 %v973
        %v1115 = vpop.f32.mrb[0].mxu0
        %v1116 = vadd.f32 0.0, %v1115
        %v1117 = vpop.f32.mrb[0].mxu0
        %1118 = vdwg.mxu0
        %vm1119 = vcmask 64512
        %v1121 = vsel %vm1119, %v965, 0
        %v1124 = vsel %vm1119, %v1042, 0
        %1126 = vmatprep.subr.mxu0 0.0
        %1127 = vmatpush1.xpose.msra.mxu0 %v1124
        %1128 = vmatprep.subr.mxu0 0.0
        %1129 = vmatpush1.xpose.msra.mxu0 0.0
        %1130 = vmatprep.subr.mxu0 0.0
        %1131 = vmatpush1.xpose.msra.mxu0 0.0
        %1132 = vmatprep.subr.mxu0 0.0
        %1133 = vmatpush1.xpose.msra.mxu0 0.0
        %1134 = vmatprep.subr.mxu0 0.0
        %1135 = vmatpush1.xpose.msra.mxu0 0.0
        %1136 = vmatprep.subr.mxu0 0.0
        %1137 = vmatpush1.xpose.msra.mxu0 0.0
        %1138 = vmatprep.subr.mxu0 0.0
        %1139 = vmatpush1.xpose.msra.mxu0 0.0
        %1140 = vmatprep.subr.mxu0 0.0
        %1141 = vmatpush1.xpose.msra.mxu0 0.0
        %1142 = vmatprep.subr.mxu0 0.0
        %1143 = vmatpush1.xpose.msra.mxu0 0.0
        %1144 = vmatprep.subr.mxu0 0.0
        %1145 = vmatpush1.xpose.msra.mxu0 0.0
        %1146 = vmatprep.subr.mxu0 0.0
        %1147 = vmatpush1.xpose.msra.mxu0 0.0
        %1148 = vmatprep.subr.mxu0 0.0
        %1149 = vmatpush1.xpose.msra.mxu0 0.0
        %1150 = vmatprep.subr.mxu0 0.0
        %1151 = vmatpush1.xpose.msra.mxu0 0.0
        %1152 = vmatprep.subr.mxu0 0.0
        %1153 = vmatpush1.xpose.msra.mxu0 0.0
        %1154 = vmatprep.subr.mxu0 0.0
        %1155 = vmatpush1.xpose.msra.mxu0 0.0
        %1156 = vmatprep.subr.mxu0 0.0
        %1157 = vmatpush1.xpose.msra.mxu0 0.0
        %1158 = vmatprep.subr.mxu0 0.0
        %1159 = vmatpush1.xpose.msra.mxu0 0.0
        %1160 = vmatprep.subr.mxu0 0.0
        %1161 = vmatpush1.xpose.msra.mxu0 0.0
        %1162 = vmatprep.subr.mxu0 0.0
        %1163 = vmatpush1.xpose.msra.mxu0 0.0
        %1164 = vmatprep.subr.mxu0 0.0
        %1165 = vmatpush1.xpose.msra.mxu0 0.0
        %1166 = vmatprep.subr.mxu0 0.0
        %1167 = vmatpush1.xpose.msra.mxu0 0.0
        %1168 = vmatprep.subr.mxu0 0.0
        %1169 = vmatpush1.xpose.msra.mxu0 0.0
        %1170 = vmatprep.subr.mxu0 0.0
        %1171 = vmatpush1.xpose.msra.mxu0 0.0
        %1172 = vmatprep.subr.mxu0 0.0
        %1173 = vmatpush1.xpose.msra.mxu0 0.0
        %1174 = vmatprep.subr.mxu0 0.0
        %1175 = vmatpush1.xpose.msra.mxu0 0.0
        %1176 = vmatprep.subr.mxu0 0.0
        %1177 = vmatpush1.xpose.msra.mxu0 0.0
        %1178 = vmatprep.subr.mxu0 0.0
        %1179 = vmatpush1.xpose.msra.mxu0 0.0
        %1180 = vmatprep.subr.mxu0 0.0
        %1181 = vmatpush1.xpose.msra.mxu0 0.0
        %1182 = vmatprep.subr.mxu0 0.0
        %1183 = vmatpush1.xpose.msra.mxu0 0.0
        %1184 = vmatprep.subr.mxu0 0.0
        %1185 = vmatpush1.xpose.msra.mxu0 0.0
        %1186 = vmatprep.subr.mxu0 0.0
        %1187 = vmatpush1.xpose.msra.mxu0 0.0
        %1188 = vmatprep.subr.mxu0 0.0
        %1189 = vmatpush1.xpose.msra.mxu0 0.0
        %1190 = vmatprep.mubr.f32.mxu0 0.0
        %1191 = vmatmul.mubr.f32.gmra.mrb[0].mxu0 %v1121
        %v1192 = vpop.f32.mrb[0].mxu0
        %v1193 = vadd.f32 0.0, %v1192
        %v1194 = vpop.f32.mrb[0].mxu0
        %1195 = vdwg.mxu0
        %v1196 = vmul.f32 %v1193, 0.35355338
        %v1197 = vsel %vm1119, %v1196, -inf
        %1198 = vmax.xlane.f32.xlu0 %v1197
        %v1199 = vpop.xlane.xlu0 %1198
        %v1200 = vsub.f32 %v1196, %v1199
        %v1201 = vmul.f32 %v1200, 1.442695
        %v1202 = vpow.pop %v1201
        %v1203 = vsel %vm1119, %v1202, 0.0
        %1204 = vadd.xlane.f32.xlu0 %v1203
        %v1205 = vpop.xlane.xlu0 %1204
        %v1206 = vrcp.pop %v1205
        %v1207 = vmul.f32 %v1202, %v1206
        %v1209 = vsel %vm1119, %v1207, 0
        %1211 = vmatprep.subr.mxu0 0.0
        %1212 = vmatpush1.msra.mxu0 %v1116
        %1213 = vmatprep.subr.mxu0 0.0
        %1214 = vmatpush1.msra.mxu0 0.0
        %1215 = vmatprep.subr.mxu0 0.0
        %1216 = vmatpush1.msra.mxu0 0.0
        %1217 = vmatprep.subr.mxu0 0.0
        %1218 = vmatpush1.msra.mxu0 0.0
        %1219 = vmatprep.subr.mxu0 0.0
        %1220 = vmatpush1.msra.mxu0 0.0
        %1221 = vmatprep.subr.mxu0 0.0
        %1222 = vmatpush1.msra.mxu0 0.0
        %1223 = vmatprep.subr.mxu0 0.0
        %1224 = vmatpush1.msra.mxu0 0.0
        %1225 = vmatprep.subr.mxu0 0.0
        %1226 = vmatpush1.msra.mxu0 0.0
        %1227 = vmatprep.subr.mxu0 0.0
        %1228 = vmatpush1.msra.mxu0 0.0
        %1229 = vmatprep.subr.mxu0 0.0
        %1230 = vmatpush1.msra.mxu0 0.0
        %1231 = vmatprep.subr.mxu0 0.0
        %1232 = vmatpush1.msra.mxu0 0.0
        %1233 = vmatprep.subr.mxu0 0.0
        %1234 = vmatpush1.msra.mxu0 0.0
        %1235 = vmatprep.subr.mxu0 0.0
        %1236 = vmatpush1.msra.mxu0 0.0
        %1237 = vmatprep.subr.mxu0 0.0
        %1238 = vmatpush1.msra.mxu0 0.0
        %1239 = vmatprep.subr.mxu0 0.0
        %1240 = vmatpush1.msra.mxu0 0.0
        %1241 = vmatprep.subr.mxu0 0.0
        %1242 = vmatpush1.msra.mxu0 0.0
        %1243 = vmatprep.subr.mxu0 0.0
        %1244 = vmatpush1.msra.mxu0 0.0
        %1245 = vmatprep.subr.mxu0 0.0
        %1246 = vmatpush1.msra.mxu0 0.0
        %1247 = vmatprep.subr.mxu0 0.0
        %1248 = vmatpush1.msra.mxu0 0.0
        %1249 = vmatprep.subr.mxu0 0.0
        %1250 = vmatpush1.msra.mxu0 0.0
        %1251 = vmatprep.subr.mxu0 0.0
        %1252 = vmatpush1.msra.mxu0 0.0
        %1253 = vmatprep.subr.mxu0 0.0
        %1254 = vmatpush1.msra.mxu0 0.0
        %1255 = vmatprep.subr.mxu0 0.0
        %1256 = vmatpush1.msra.mxu0 0.0
        %1257 = vmatprep.subr.mxu0 0.0
        %1258 = vmatpush1.msra.mxu0 0.0
        %1259 = vmatprep.subr.mxu0 0.0
        %1260 = vmatpush1.msra.mxu0 0.0
        %1261 = vmatprep.subr.mxu0 0.0
        %1262 = vmatpush1.msra.mxu0 0.0
        %1263 = vmatprep.subr.mxu0 0.0
        %1264 = vmatpush1.msra.mxu0 0.0
        %1265 = vmatprep.subr.mxu0 0.0
        %1266 = vmatpush1.msra.mxu0 0.0
        %1267 = vmatprep.subr.mxu0 0.0
        %1268 = vmatpush1.msra.mxu0 0.0
        %1269 = vmatprep.subr.mxu0 0.0
        %1270 = vmatpush1.msra.mxu0 0.0
        %1271 = vmatprep.subr.mxu0 0.0
        %1272 = vmatpush1.msra.mxu0 0.0
        %1273 = vmatprep.subr.mxu0 0.0
        %1274 = vmatpush1.msra.mxu0 0.0
        %1275 = vmatprep.mubr.f32.mxu0 0.0
        %1276 = vmatmul.mubr.f32.gmra.mrb[0].mxu0 %v1209
        %v1277 = vpop.f32.mrb[0].mxu0
        %v1278 = vadd.f32 0.0, %v1277
        %v1279 = vpop.f32.mrb[0].mxu0
        %1280 = vdwg.mxu0
        %1281 = vst.msk [vmem:[#allocation2] sm:$0xff] %vm1119, %v1278
        %1282 = vrot.lane.b32.xlu0 %v965, 120
        %v1283 = vpop.permute.xlu0 %1282
        %1284 = vrot.lane.b32.xlu0 %v1042, 120
        %v1285 = vpop.permute.xlu0 %1284
        %v1286 = vsel %vm1119, %v1283, 0
        %v1288 = vsel %vm1119, %v1285, 0
        %1290 = vmatprep.subr.mxu0 0.0
        %1291 = vmatpush1.xpose.msra.mxu0 %v1288
        %1292 = vmatprep.subr.mxu0 0.0
        %1293 = vmatpush1.xpose.msra.mxu0 0.0
        %1294 = vmatprep.subr.mxu0 0.0
        %1295 = vmatpush1.xpose.msra.mxu0 0.0
        %1296 = vmatprep.subr.mxu0 0.0
        %1297 = vmatpush1.xpose.msra.mxu0 0.0
        %1298 = vmatprep.subr.mxu0 0.0
        %1299 = vmatpush1.xpose.msra.mxu0 0.0
        %1300 = vmatprep.subr.mxu0 0.0
        %1301 = vmatpush1.xpose.msra.mxu0 0.0
        %1302 = vmatprep.subr.mxu0 0.0
        %1303 = vmatpush1.xpose.msra.mxu0 0.0
        %1304 = vmatprep.subr.mxu0 0.0
        %1305 = vmatpush1.xpose.msra.mxu0 0.0
        %1306 = vmatprep.subr.mxu0 0.0
        %1307 = vmatpush1.xpose.msra.mxu0 0.0
        %1308 = vmatprep.subr.mxu0 0.0
        %1309 = vmatpush1.xpose.msra.mxu0 0.0
        %1310 = vmatprep.subr.mxu0 0.0
        %1311 = vmatpush1.xpose.msra.mxu0 0.0
        %1312 = vmatprep.subr.mxu0 0.0
        %1313 = vmatpush1.xpose.msra.mxu0 0.0
        %1314 = vmatprep.subr.mxu0 0.0
        %1315 = vmatpush1.xpose.msra.mxu0 0.0
        %1316 = vmatprep.subr.mxu0 0.0
        %1317 = vmatpush1.xpose.msra.mxu0 0.0
        %1318 = vmatprep.subr.mxu0 0.0
        %1319 = vmatpush1.xpose.msra.mxu0 0.0
        %1320 = vmatprep.subr.mxu0 0.0
        %1321 = vmatpush1.xpose.msra.mxu0 0.0
        %1322 = vmatprep.subr.mxu0 0.0
        %1323 = vmatpush1.xpose.msra.mxu0 0.0
        %1324 = vmatprep.subr.mxu0 0.0
        %1325 = vmatpush1.xpose.msra.mxu0 0.0
        %1326 = vmatprep.subr.mxu0 0.0
        %1327 = vmatpush1.xpose.msra.mxu0 0.0
        %1328 = vmatprep.subr.mxu0 0.0
        %1329 = vmatpush1.xpose.msra.mxu0 0.0
        %1330 = vmatprep.subr.mxu0 0.0
        %1331 = vmatpush1.xpose.msra.mxu0 0.0
        %1332 = vmatprep.subr.mxu0 0.0
        %1333 = vmatpush1.xpose.msra.mxu0 0.0
        %1334 = vmatprep.subr.mxu0 0.0
        %1335 = vmatpush1.xpose.msra.mxu0 0.0
        %1336 = vmatprep.subr.mxu0 0.0
        %1337 = vmatpush1.xpose.msra.mxu0 0.0
        %1338 = vmatprep.subr.mxu0 0.0
        %1339 = vmatpush1.xpose.msra.mxu0 0.0
        %1340 = vmatprep.subr.mxu0 0.0
        %1341 = vmatpush1.xpose.msra.mxu0 0.0
        %1342 = vmatprep.subr.mxu0 0.0
        %1343 = vmatpush1.xpose.msra.mxu0 0.0
        %1344 = vmatprep.subr.mxu0 0.0
        %1345 = vmatpush1.xpose.msra.mxu0 0.0
        %1346 = vmatprep.subr.mxu0 0.0
        %1347 = vmatpush1.xpose.msra.mxu0 0.0
        %1348 = vmatprep.subr.mxu0 0.0
        %1349 = vmatpush1.xpose.msra.mxu0 0.0
        %1350 = vmatprep.subr.mxu0 0.0
        %1351 = vmatpush1.xpose.msra.mxu0 0.0
        %1352 = vmatprep.subr.mxu0 0.0
        %1353 = vmatpush1.xpose.msra.mxu0 0.0
        %1354 = vmatprep.mubr.f32.mxu0 0.0
        %1355 = vmatmul.mubr.f32.gmra.mrb[0].mxu0 %v1286
        %v1356 = vpop.f32.mrb[0].mxu0
        %v1357 = vadd.f32 0.0, %v1356
        %v1358 = vpop.f32.mrb[0].mxu0
        %1359 = vdwg.mxu0
        %v1360 = vmul.f32 %v1357, 0.35355338
        %v1361 = vsel %vm1119, %v1360, -inf
        %1362 = vmax.xlane.f32.xlu0 %v1361
        %v1363 = vpop.xlane.xlu0 %1362
        %v1364 = vsub.f32 %v1360, %v1363
        %v1365 = vmul.f32 %v1364, 1.442695
        %v1366 = vpow.pop %v1365
        %v1367 = vsel %vm1119, %v1366, 0.0
        %1368 = vadd.xlane.f32.xlu0 %v1367
        %v1369 = vpop.xlane.xlu0 %1368
        %v1370 = vrcp.pop %v1369
        %v1371 = vmul.f32 %v1366, %v1370
        %1373 = vrot.lane.b32.xlu0 %v1116, 120
        %v1374 = vpop.permute.xlu0 %1373
        %v1377 = vsel %vm1119, %v1371, 0
        %1379 = vmatprep.subr.mxu0 0.0
        %1380 = vmatpush1.msra.mxu0 %v1374
        %1381 = vmatprep.subr.mxu0 0.0
        %1382 = vmatpush1.msra.mxu0 0.0
        %1383 = vmatprep.subr.mxu0 0.0
        %1384 = vmatpush1.msra.mxu0 0.0
        %1385 = vmatprep.subr.mxu0 0.0
        %1386 = vmatpush1.msra.mxu0 0.0
        %1387 = vmatprep.subr.mxu0 0.0
        %1388 = vmatpush1.msra.mxu0 0.0
        %1389 = vmatprep.subr.mxu0 0.0
        %1390 = vmatpush1.msra.mxu0 0.0
        %1391 = vmatprep.subr.mxu0 0.0
        %1392 = vmatpush1.msra.mxu0 0.0
        %1393 = vmatprep.subr.mxu0 0.0
        %1394 = vmatpush1.msra.mxu0 0.0
        %1395 = vmatprep.subr.mxu0 0.0
        %1396 = vmatpush1.msra.mxu0 0.0
        %1397 = vmatprep.subr.mxu0 0.0
        %1398 = vmatpush1.msra.mxu0 0.0
        %1399 = vmatprep.subr.mxu0 0.0
        %1400 = vmatpush1.msra.mxu0 0.0
        %1401 = vmatprep.subr.mxu0 0.0
        %1402 = vmatpush1.msra.mxu0 0.0
        %1403 = vmatprep.subr.mxu0 0.0
        %1404 = vmatpush1.msra.mxu0 0.0
        %1405 = vmatprep.subr.mxu0 0.0
        %1406 = vmatpush1.msra.mxu0 0.0
        %1407 = vmatprep.subr.mxu0 0.0
        %1408 = vmatpush1.msra.mxu0 0.0
        %1409 = vmatprep.subr.mxu0 0.0
        %1410 = vmatpush1.msra.mxu0 0.0
        %1411 = vmatprep.subr.mxu0 0.0
        %1412 = vmatpush1.msra.mxu0 0.0
        %1413 = vmatprep.subr.mxu0 0.0
        %1414 = vmatpush1.msra.mxu0 0.0
        %1415 = vmatprep.subr.mxu0 0.0
        %1416 = vmatpush1.msra.mxu0 0.0
        %1417 = vmatprep.subr.mxu0 0.0
        %1418 = vmatpush1.msra.mxu0 0.0
        %1419 = vmatprep.subr.mxu0 0.0
        %1420 = vmatpush1.msra.mxu0 0.0
        %1421 = vmatprep.subr.mxu0 0.0
        %1422 = vmatpush1.msra.mxu0 0.0
        %1423 = vmatprep.subr.mxu0 0.0
        %1424 = vmatpush1.msra.mxu0 0.0
        %1425 = vmatprep.subr.mxu0 0.0
        %1426 = vmatpush1.msra.mxu0 0.0
        %1427 = vmatprep.subr.mxu0 0.0
        %1428 = vmatpush1.msra.mxu0 0.0
        %1429 = vmatprep.subr.mxu0 0.0
        %1430 = vmatpush1.msra.mxu0 0.0
        %1431 = vmatprep.subr.mxu0 0.0
        %1432 = vmatpush1.msra.mxu0 0.0
        %1433 = vmatprep.subr.mxu0 0.0
        %1434 = vmatpush1.msra.mxu0 0.0
        %1435 = vmatprep.subr.mxu0 0.0
        %1436 = vmatpush1.msra.mxu0 0.0
        %1437 = vmatprep.subr.mxu0 0.0
        %1438 = vmatpush1.msra.mxu0 0.0
        %1439 = vmatprep.subr.mxu0 0.0
        %1440 = vmatpush1.msra.mxu0 0.0
        %1441 = vmatprep.subr.mxu0 0.0
        %1442 = vmatpush1.msra.mxu0 0.0
        %1443 = vmatprep.mubr.f32.mxu0 0.0
        %1444 = vmatmul.mubr.f32.gmra.mrb[0].mxu0 %v1377
        %v1445 = vpop.f32.mrb[0].mxu0
        %v1446 = vadd.f32 0.0, %v1445
        %v1447 = vpop.f32.mrb[0].mxu0
        %1448 = vdwg.mxu0
        %1450 = vrot.lane.b32.xlu0 %v1446, 8
        %v1451 = vpop.permute.xlu0 %1450
        %vm1453 = vcmask 130112
        %1454 = vst.msk [vmem:[#allocation2] sm:$0xff] %vm1453, %v1451
        %1455 = vrot.lane.b32.xlu0 %v965, 112
        %v1456 = vpop.permute.xlu0 %1455
        %1457 = vrot.lane.b32.xlu0 %v1042, 112
        %v1458 = vpop.permute.xlu0 %1457
        %v1459 = vsel %vm1119, %v1456, 0
        %v1461 = vsel %vm1119, %v1458, 0
        %1463 = vmatprep.subr.mxu0 0.0
        %1464 = vmatpush1.xpose.msra.mxu0 %v1461
        %1465 = vmatprep.subr.mxu0 0.0
        %1466 = vmatpush1.xpose.msra.mxu0 0.0
        %1467 = vmatprep.subr.mxu0 0.0
        %1468 = vmatpush1.xpose.msra.mxu0 0.0
        %1469 = vmatprep.subr.mxu0 0.0
        %1470 = vmatpush1.xpose.msra.mxu0 0.0
        %1471 = vmatprep.subr.mxu0 0.0
        %1472 = vmatpush1.xpose.msra.mxu0 0.0
        %1473 = vmatprep.subr.mxu0 0.0
        %1474 = vmatpush1.xpose.msra.mxu0 0.0
        %1475 = vmatprep.subr.mxu0 0.0
        %1476 = vmatpush1.xpose.msra.mxu0 0.0
        %1477 = vmatprep.subr.mxu0 0.0
        %1478 = vmatpush1.xpose.msra.mxu0 0.0
        %1479 = vmatprep.subr.mxu0 0.0
        %1480 = vmatpush1.xpose.msra.mxu0 0.0
        %1481 = vmatprep.subr.mxu0 0.0
        %1482 = vmatpush1.xpose.msra.mxu0 0.0
        %1483 = vmatprep.subr.mxu0 0.0
        %1484 = vmatpush1.xpose.msra.mxu0 0.0
        %1485 = vmatprep.subr.mxu0 0.0
        %1486 = vmatpush1.xpose.msra.mxu0 0.0
        %1487 = vmatprep.subr.mxu0 0.0
        %1488 = vmatpush1.xpose.msra.mxu0 0.0
        %1489 = vmatprep.subr.mxu0 0.0
        %1490 = vmatpush1.xpose.msra.mxu0 0.0
        %1491 = vmatprep.subr.mxu0 0.0
        %1492 = vmatpush1.xpose.msra.mxu0 0.0
        %1493 = vmatprep.subr.mxu0 0.0
        %1494 = vmatpush1.xpose.msra.mxu0 0.0
        %1495 = vmatprep.subr.mxu0 0.0
        %1496 = vmatpush1.xpose.msra.mxu0 0.0
        %1497 = vmatprep.subr.mxu0 0.0
        %1498 = vmatpush1.xpose.msra.mxu0 0.0
        %1499 = vmatprep.subr.mxu0 0.0
        %1500 = vmatpush1.xpose.msra.mxu0 0.0
        %1501 = vmatprep.subr.mxu0 0.0
        %1502 = vmatpush1.xpose.msra.mxu0 0.0
        %1503 = vmatprep.subr.mxu0 0.0
        %1504 = vmatpush1.xpose.msra.mxu0 0.0
        %1505 = vmatprep.subr.mxu0 0.0
        %1506 = vmatpush1.xpose.msra.mxu0 0.0
        %1507 = vmatprep.subr.mxu0 0.0
        %1508 = vmatpush1.xpose.msra.mxu0 0.0
        %1509 = vmatprep.subr.mxu0 0.0
        %1510 = vmatpush1.xpose.msra.mxu0 0.0
        %1511 = vmatprep.subr.mxu0 0.0
        %1512 = vmatpush1.xpose.msra.mxu0 0.0
        %1513 = vmatprep.subr.mxu0 0.0
        %1514 = vmatpush1.xpose.msra.mxu0 0.0
        %1515 = vmatprep.subr.mxu0 0.0
        %1516 = vmatpush1.xpose.msra.mxu0 0.0
        %1517 = vmatprep.subr.mxu0 0.0
        %1518 = vmatpush1.xpose.msra.mxu0 0.0
        %1519 = vmatprep.subr.mxu0 0.0
        %1520 = vmatpush1.xpose.msra.mxu0 0.0
        %1521 = vmatprep.subr.mxu0 0.0
        %1522 = vmatpush1.xpose.msra.mxu0 0.0
        %1523 = vmatprep.subr.mxu0 0.0
        %1524 = vmatpush1.xpose.msra.mxu0 0.0
        %1525 = vmatprep.subr.mxu0 0.0
        %1526 = vmatpush1.xpose.msra.mxu0 0.0
        %1527 = vmatprep.mubr.f32.mxu0 0.0
        %1528 = vmatmul.mubr.f32.gmra.mrb[0].mxu0 %v1459
        %v1529 = vpop.f32.mrb[0].mxu0
        %v1530 = vadd.f32 0.0, %v1529
        %v1531 = vpop.f32.mrb[0].mxu0
        %1532 = vdwg.mxu0
        %v1533 = vmul.f32 %v1530, 0.35355338
        %v1534 = vsel %vm1119, %v1533, -inf
        %1535 = vmax.xlane.f32.xlu0 %v1534
        %v1536 = vpop.xlane.xlu0 %1535
        %v1537 = vsub.f32 %v1533, %v1536
        %v1538 = vmul.f32 %v1537, 1.442695
        %v1539 = vpow.pop %v1538
        %v1540 = vsel %vm1119, %v1539, 0.0
        %1541 = vadd.xlane.f32.xlu0 %v1540
        %v1542 = vpop.xlane.xlu0 %1541
        %v1543 = vrcp.pop %v1542
        %v1544 = vmul.f32 %v1539, %v1543
        %1545 = vrot.lane.b32.xlu0 %v1116, 112
        %v1546 = vpop.permute.xlu0 %1545
        %v1549 = vsel %vm1119, %v1544, 0
        %1551 = vmatprep.subr.mxu0 0.0
        %1552 = vmatpush1.msra.mxu0 %v1546
        %1553 = vmatprep.subr.mxu0 0.0
        %1554 = vmatpush1.msra.mxu0 0.0
        %1555 = vmatprep.subr.mxu0 0.0
        %1556 = vmatpush1.msra.mxu0 0.0
        %1557 = vmatprep.subr.mxu0 0.0
        %1558 = vmatpush1.msra.mxu0 0.0
        %1559 = vmatprep.subr.mxu0 0.0
        %1560 = vmatpush1.msra.mxu0 0.0
        %1561 = vmatprep.subr.mxu0 0.0
        %1562 = vmatpush1.msra.mxu0 0.0
        %1563 = vmatprep.subr.mxu0 0.0
        %1564 = vmatpush1.msra.mxu0 0.0
        %1565 = vmatprep.subr.mxu0 0.0
        %1566 = vmatpush1.msra.mxu0 0.0
        %1567 = vmatprep.subr.mxu0 0.0
        %1568 = vmatpush1.msra.mxu0 0.0
        %1569 = vmatprep.subr.mxu0 0.0
        %1570 = vmatpush1.msra.mxu0 0.0
        %1571 = vmatprep.subr.mxu0 0.0
        %1572 = vmatpush1.msra.mxu0 0.0
        %1573 = vmatprep.subr.mxu0 0.0
        %1574 = vmatpush1.msra.mxu0 0.0
        %1575 = vmatprep.subr.mxu0 0.0
        %1576 = vmatpush1.msra.mxu0 0.0
        %1577 = vmatprep.subr.mxu0 0.0
        %1578 = vmatpush1.msra.mxu0 0.0
        %1579 = vmatprep.subr.mxu0 0.0
        %1580 = vmatpush1.msra.mxu0 0.0
        %1581 = vmatprep.subr.mxu0 0.0
        %1582 = vmatpush1.msra.mxu0 0.0
        %1583 = vmatprep.subr.mxu0 0.0
        %1584 = vmatpush1.msra.mxu0 0.0
        %1585 = vmatprep.subr.mxu0 0.0
        %1586 = vmatpush1.msra.mxu0 0.0
        %1587 = vmatprep.subr.mxu0 0.0
        %1588 = vmatpush1.msra.mxu0 0.0
        %1589 = vmatprep.subr.mxu0 0.0
        %1590 = vmatpush1.msra.mxu0 0.0
        %1591 = vmatprep.subr.mxu0 0.0
        %1592 = vmatpush1.msra.mxu0 0.0
        %1593 = vmatprep.subr.mxu0 0.0
        %1594 = vmatpush1.msra.mxu0 0.0
        %1595 = vmatprep.subr.mxu0 0.0
        %1596 = vmatpush1.msra.mxu0 0.0
        %1597 = vmatprep.subr.mxu0 0.0
        %1598 = vmatpush1.msra.mxu0 0.0
        %1599 = vmatprep.subr.mxu0 0.0
        %1600 = vmatpush1.msra.mxu0 0.0
        %1601 = vmatprep.subr.mxu0 0.0
        %1602 = vmatpush1.msra.mxu0 0.0
        %1603 = vmatprep.subr.mxu0 0.0
        %1604 = vmatpush1.msra.mxu0 0.0
        %1605 = vmatprep.subr.mxu0 0.0
        %1606 = vmatpush1.msra.mxu0 0.0
        %1607 = vmatprep.subr.mxu0 0.0
        %1608 = vmatpush1.msra.mxu0 0.0
        %1609 = vmatprep.subr.mxu0 0.0
        %1610 = vmatpush1.msra.mxu0 0.0
        %1611 = vmatprep.subr.mxu0 0.0
        %1612 = vmatpush1.msra.mxu0 0.0
        %1613 = vmatprep.subr.mxu0 0.0
        %1614 = vmatpush1.msra.mxu0 0.0
        %1615 = vmatprep.mubr.f32.mxu0 0.0
        %1616 = vmatmul.mubr.f32.gmra.mrb[0].mxu0 %v1549
        %v1617 = vpop.f32.mrb[0].mxu0
        %v1618 = vadd.f32 0.0, %v1617
        %v1619 = vpop.f32.mrb[0].mxu0
        %1620 = vdwg.mxu0
        %1622 = vrot.lane.b32.xlu0 %v1618, 16
        %v1623 = vpop.permute.xlu0 %1622
        %vm1625 = vcmask 195712
        %1626 = vst.msk [vmem:[#allocation2] sm:$0xff] %vm1625, %v1623
        %1627 = vrot.lane.b32.xlu0 %v965, 104
        %v1628 = vpop.permute.xlu0 %1627
        %1629 = vrot.lane.b32.xlu0 %v1042, 104
        %v1630 = vpop.permute.xlu0 %1629
        %v1631 = vsel %vm1119, %v1628, 0
        %v1633 = vsel %vm1119, %v1630, 0
        %1635 = vmatprep.subr.mxu0 0.0
        %1636 = vmatpush1.xpose.msra.mxu0 %v1633
        %1637 = vmatprep.subr.mxu0 0.0
        %1638 = vmatpush1.xpose.msra.mxu0 0.0
        %1639 = vmatprep.subr.mxu0 0.0
        %1640 = vmatpush1.xpose.msra.mxu0 0.0
        %1641 = vmatprep.subr.mxu0 0.0
        %1642 = vmatpush1.xpose.msra.mxu0 0.0
        %1643 = vmatprep.subr.mxu0 0.0
        %1644 = vmatpush1.xpose.msra.mxu0 0.0
        %1645 = vmatprep.subr.mxu0 0.0
        %1646 = vmatpush1.xpose.msra.mxu0 0.0
        %1647 = vmatprep.subr.mxu0 0.0
        %1648 = vmatpush1.xpose.msra.mxu0 0.0
        %1649 = vmatprep.subr.mxu0 0.0
        %1650 = vmatpush1.xpose.msra.mxu0 0.0
        %1651 = vmatprep.subr.mxu0 0.0
        %1652 = vmatpush1.xpose.msra.mxu0 0.0
        %1653 = vmatprep.subr.mxu0 0.0
        %1654 = vmatpush1.xpose.msra.mxu0 0.0
        %1655 = vmatprep.subr.mxu0 0.0
        %1656 = vmatpush1.xpose.msra.mxu0 0.0
        %1657 = vmatprep.subr.mxu0 0.0
        %1658 = vmatpush1.xpose.msra.mxu0 0.0
        %1659 = vmatprep.subr.mxu0 0.0
        %1660 = vmatpush1.xpose.msra.mxu0 0.0
        %1661 = vmatprep.subr.mxu0 0.0
        %1662 = vmatpush1.xpose.msra.mxu0 0.0
        %1663 = vmatprep.subr.mxu0 0.0
        %1664 = vmatpush1.xpose.msra.mxu0 0.0
        %1665 = vmatprep.subr.mxu0 0.0
        %1666 = vmatpush1.xpose.msra.mxu0 0.0
        %1667 = vmatprep.subr.mxu0 0.0
        %1668 = vmatpush1.xpose.msra.mxu0 0.0
        %1669 = vmatprep.subr.mxu0 0.0
        %1670 = vmatpush1.xpose.msra.mxu0 0.0
        %1671 = vmatprep.subr.mxu0 0.0
        %1672 = vmatpush1.xpose.msra.mxu0 0.0
        %1673 = vmatprep.subr.mxu0 0.0
        %1674 = vmatpush1.xpose.msra.mxu0 0.0
        %1675 = vmatprep.subr.mxu0 0.0
        %1676 = vmatpush1.xpose.msra.mxu0 0.0
        %1677 = vmatprep.subr.mxu0 0.0
        %1678 = vmatpush1.xpose.msra.mxu0 0.0
        %1679 = vmatprep.subr.mxu0 0.0
        %1680 = vmatpush1.xpose.msra.mxu0 0.0
        %1681 = vmatprep.subr.mxu0 0.0
        %1682 = vmatpush1.xpose.msra.mxu0 0.0
        %1683 = vmatprep.subr.mxu0 0.0
        %1684 = vmatpush1.xpose.msra.mxu0 0.0
        %1685 = vmatprep.subr.mxu0 0.0
        %1686 = vmatpush1.xpose.msra.mxu0 0.0
        %1687 = vmatprep.subr.mxu0 0.0
        %1688 = vmatpush1.xpose.msra.mxu0 0.0
        %1689 = vmatprep.subr.mxu0 0.0
        %1690 = vmatpush1.xpose.msra.mxu0 0.0
        %1691 = vmatprep.subr.mxu0 0.0
        %1692 = vmatpush1.xpose.msra.mxu0 0.0
        %1693 = vmatprep.subr.mxu0 0.0
        %1694 = vmatpush1.xpose.msra.mxu0 0.0
        %1695 = vmatprep.subr.mxu0 0.0
        %1696 = vmatpush1.xpose.msra.mxu0 0.0
        %1697 = vmatprep.subr.mxu0 0.0
        %1698 = vmatpush1.xpose.msra.mxu0 0.0
        %1699 = vmatprep.mubr.f32.mxu0 0.0
        %1700 = vmatmul.mubr.f32.gmra.mrb[0].mxu0 %v1631
        %v1701 = vpop.f32.mrb[0].mxu0
        %v1702 = vadd.f32 0.0, %v1701
        %v1703 = vpop.f32.mrb[0].mxu0
        %1704 = vdwg.mxu0
        %v1705 = vmul.f32 %v1702, 0.35355338
        %v1706 = vsel %vm1119, %v1705, -inf
        %1707 = vmax.xlane.f32.xlu0 %v1706
        %v1708 = vpop.xlane.xlu0 %1707
        %v1709 = vsub.f32 %v1705, %v1708
        %v1710 = vmul.f32 %v1709, 1.442695
        %v1711 = vpow.pop %v1710
        %v1712 = vsel %vm1119, %v1711, 0.0
        %1713 = vadd.xlane.f32.xlu0 %v1712
        %v1714 = vpop.xlane.xlu0 %1713
        %v1715 = vrcp.pop %v1714
        %v1716 = vmul.f32 %v1711, %v1715
        %1717 = vrot.lane.b32.xlu0 %v1116, 104
        %v1718 = vpop.permute.xlu0 %1717
        %v1721 = vsel %vm1119, %v1716, 0
        %1723 = vmatprep.subr.mxu0 0.0
        %1724 = vmatpush1.msra.mxu0 %v1718
        %1725 = vmatprep.subr.mxu0 0.0
        %1726 = vmatpush1.msra.mxu0 0.0
        %1727 = vmatprep.subr.mxu0 0.0
        %1728 = vmatpush1.msra.mxu0 0.0
        %1729 = vmatprep.subr.mxu0 0.0
        %1730 = vmatpush1.msra.mxu0 0.0
        %1731 = vmatprep.subr.mxu0 0.0
        %1732 = vmatpush1.msra.mxu0 0.0
        %1733 = vmatprep.subr.mxu0 0.0
        %1734 = vmatpush1.msra.mxu0 0.0
        %1735 = vmatprep.subr.mxu0 0.0
        %1736 = vmatpush1.msra.mxu0 0.0
        %1737 = vmatprep.subr.mxu0 0.0
        %1738 = vmatpush1.msra.mxu0 0.0
        %1739 = vmatprep.subr.mxu0 0.0
        %1740 = vmatpush1.msra.mxu0 0.0
        %1741 = vmatprep.subr.mxu0 0.0
        %1742 = vmatpush1.msra.mxu0 0.0
        %1743 = vmatprep.subr.mxu0 0.0
        %1744 = vmatpush1.msra.mxu0 0.0
        %1745 = vmatprep.subr.mxu0 0.0
        %1746 = vmatpush1.msra.mxu0 0.0
        %1747 = vmatprep.subr.mxu0 0.0
        %1748 = vmatpush1.msra.mxu0 0.0
        %1749 = vmatprep.subr.mxu0 0.0
        %1750 = vmatpush1.msra.mxu0 0.0
        %1751 = vmatprep.subr.mxu0 0.0
        %1752 = vmatpush1.msra.mxu0 0.0
        %1753 = vmatprep.subr.mxu0 0.0
        %1754 = vmatpush1.msra.mxu0 0.0
        %1755 = vmatprep.subr.mxu0 0.0
        %1756 = vmatpush1.msra.mxu0 0.0
        %1757 = vmatprep.subr.mxu0 0.0
        %1758 = vmatpush1.msra.mxu0 0.0
        %1759 = vmatprep.subr.mxu0 0.0
        %1760 = vmatpush1.msra.mxu0 0.0
        %1761 = vmatprep.subr.mxu0 0.0
        %1762 = vmatpush1.msra.mxu0 0.0
        %1763 = vmatprep.subr.mxu0 0.0
        %1764 = vmatpush1.msra.mxu0 0.0
        %1765 = vmatprep.subr.mxu0 0.0
        %1766 = vmatpush1.msra.mxu0 0.0
        %1767 = vmatprep.subr.mxu0 0.0
        %1768 = vmatpush1.msra.mxu0 0.0
        %1769 = vmatprep.subr.mxu0 0.0
        %1770 = vmatpush1.msra.mxu0 0.0
        %1771 = vmatprep.subr.mxu0 0.0
        %1772 = vmatpush1.msra.mxu0 0.0
        %1773 = vmatprep.subr.mxu0 0.0
        %1774 = vmatpush1.msra.mxu0 0.0
        %1775 = vmatprep.subr.mxu0 0.0
        %1776 = vmatpush1.msra.mxu0 0.0
        %1777 = vmatprep.subr.mxu0 0.0
        %1778 = vmatpush1.msra.mxu0 0.0
        %1779 = vmatprep.subr.mxu0 0.0
        %1780 = vmatpush1.msra.mxu0 0.0
        %1781 = vmatprep.subr.mxu0 0.0
        %1782 = vmatpush1.msra.mxu0 0.0
        %1783 = vmatprep.subr.mxu0 0.0
        %1784 = vmatpush1.msra.mxu0 0.0
        %1785 = vmatprep.subr.mxu0 0.0
        %1786 = vmatpush1.msra.mxu0 0.0
        %1787 = vmatprep.mubr.f32.mxu0 0.0
        %1788 = vmatmul.mubr.f32.gmra.mrb[0].mxu0 %v1721
        %v1789 = vpop.f32.mrb[0].mxu0
        %v1790 = vadd.f32 0.0, %v1789
        %v1791 = vpop.f32.mrb[0].mxu0
        %1792 = vdwg.mxu0
        %1794 = vrot.lane.b32.xlu0 %v1790, 24
        %v1795 = vpop.permute.xlu0 %1794
        %vm1797 = vcmask 261312
        %1798 = vst.msk [vmem:[#allocation2] sm:$0xff] %vm1797, %v1795
        %v1799 = vld [vmem:[#allocation2] sm:$0xff]
        %v1800 = vld [vmem:[#allocation9] sm:$0xff]
        %v1801 = vld [vmem:[#allocation9 + $0x8] sm:$0xff]
        %v1802 = vld [vmem:[#allocation9 + $0x10] sm:$0xff]
        %v1803 = vld [vmem:[#allocation9 + $0x18] sm:$0xff]
        %v1805 = vsel %vm894, %v1799, 0
        %1807 = vmatprep.subr.mxu0 0.0
        %1808 = vmatpush1.msra.mxu0 %v1800
        %1809 = vmatprep.subr.mxu0 0.0
        %1810 = vmatpush1.msra.mxu0 %v1801
        %1811 = vmatprep.subr.mxu0 0.0
        %1812 = vmatpush1.msra.mxu0 %v1802
        %1813 = vmatprep.subr.mxu0 0.0
        %1814 = vmatpush1.msra.mxu0 %v1803
        %1815 = vmatprep.subr.mxu0 0.0
        %1816 = vmatpush1.msra.mxu0 0.0
        %1817 = vmatprep.subr.mxu0 0.0
        %1818 = vmatpush1.msra.mxu0 0.0
        %1819 = vmatprep.subr.mxu0 0.0
        %1820 = vmatpush1.msra.mxu0 0.0
        %1821 = vmatprep.subr.mxu0 0.0
        %1822 = vmatpush1.msra.mxu0 0.0
        %1823 = vmatprep.subr.mxu0 0.0
        %1824 = vmatpush1.msra.mxu0 0.0
        %1825 = vmatprep.subr.mxu0 0.0
        %1826 = vmatpush1.msra.mxu0 0.0
        %1827 = vmatprep.subr.mxu0 0.0
        %1828 = vmatpush1.msra.mxu0 0.0
        %1829 = vmatprep.subr.mxu0 0.0
        %1830 = vmatpush1.msra.mxu0 0.0
        %1831 = vmatprep.subr.mxu0 0.0
        %1832 = vmatpush1.msra.mxu0 0.0
        %1833 = vmatprep.subr.mxu0 0.0
        %1834 = vmatpush1.msra.mxu0 0.0
        %1835 = vmatprep.subr.mxu0 0.0
        %1836 = vmatpush1.msra.mxu0 0.0
        %1837 = vmatprep.subr.mxu0 0.0
        %1838 = vmatpush1.msra.mxu0 0.0
        %1839 = vmatprep.subr.mxu0 0.0
        %1840 = vmatpush1.msra.mxu0 0.0
        %1841 = vmatprep.subr.mxu0 0.0
        %1842 = vmatpush1.msra.mxu0 0.0
        %1843 = vmatprep.subr.mxu0 0.0
        %1844 = vmatpush1.msra.mxu0 0.0
        %1845 = vmatprep.subr.mxu0 0.0
        %1846 = vmatpush1.msra.mxu0 0.0
        %1847 = vmatprep.subr.mxu0 0.0
        %1848 = vmatpush1.msra.mxu0 0.0
        %1849 = vmatprep.subr.mxu0 0.0
        %1850 = vmatpush1.msra.mxu0 0.0
        %1851 = vmatprep.subr.mxu0 0.0
        %1852 = vmatpush1.msra.mxu0 0.0
        %1853 = vmatprep.subr.mxu0 0.0
        %1854 = vmatpush1.msra.mxu0 0.0
        %1855 = vmatprep.subr.mxu0 0.0
        %1856 = vmatpush1.msra.mxu0 0.0
        %1857 = vmatprep.subr.mxu0 0.0
        %1858 = vmatpush1.msra.mxu0 0.0
        %1859 = vmatprep.subr.mxu0 0.0
        %1860 = vmatpush1.msra.mxu0 0.0
        %1861 = vmatprep.subr.mxu0 0.0
        %1862 = vmatpush1.msra.mxu0 0.0
        %1863 = vmatprep.subr.mxu0 0.0
        %1864 = vmatpush1.msra.mxu0 0.0
        %1865 = vmatprep.subr.mxu0 0.0
        %1866 = vmatpush1.msra.mxu0 0.0
        %1867 = vmatprep.subr.mxu0 0.0
        %1868 = vmatpush1.msra.mxu0 0.0
        %1869 = vmatprep.subr.mxu0 0.0
        %1870 = vmatpush1.msra.mxu0 0.0
        %1871 = vmatprep.mubr.f32.mxu0 0.0
        %1872 = vmatmul.mubr.f32.gmra.mrb[0].mxu0 %v1805
        %v1873 = vpop.f32.mrb[0].mxu0
        %v1874 = vadd.f32 %v888, %v1873
        %v1875 = vpop.f32.mrb[0].mxu0
        %1876 = vdwg.mxu0
        %v1877 = vsel %vm894, %v1874, 0.0
        %1878 = vadd.xlane.f32.xlu0 %v1877
        %v1879 = vpop.xlane.xlu0 %1878
        %v1880 = vrcp.pop 32.0
        %v1881 = vmul.f32 %v1879, %v1880
        %v1882 = vsub.f32 %v1874, %v1881
        %v1883 = vmul.f32 %v1882, %v1882
        %v1884 = vsel %vm894, %v1883, 0.0
        %1885 = vadd.xlane.f32.xlu0 %v1884
        %v1886 = vpop.xlane.xlu0 %1885
        %v1887 = vmul.f32 %v1886, %v1880
        %v1888 = vadd.f32 %v1887, 1e-05
        %v1889 = vrsqrt.pop %v1888
        %v1890 = vmul.f32 %v1882, %v1889
        %v1891 = vld [vmem:[%s8] sm:$0x1]
        %v1893 = vlaneseq
        %v1894 = vshrl.u32 %v1893, 7
        %v1895 = vsub.s32 0, %v1894
        %v1896 = vrot.slane %v1891, %v1895
        %v1898 = vmul.f32 %v1890, %v1896
        %v1899 = vld [vmem:[%s9] sm:$0x1]
        %v1901 = vlaneseq
        %v1902 = vshrl.u32 %v1901, 7
        %v1903 = vsub.s32 0, %v1902
        %v1904 = vrot.slane %v1899, %v1903
        %v1906 = vadd.f32 %v1898, %v1904
        %v1907 = vld [vmem:[%s783] sm:$0xff]
        %v1908 = vld [vmem:[#allocation11] sm:$0xff]
        %v1909 = vld [vmem:[#allocation11 + $0x8] sm:$0xff]
        %v1910 = vld [vmem:[#allocation11 + $0x10] sm:$0xff]
        %v1911 = vld [vmem:[#allocation11 + $0x18] sm:$0xff]
        %v1913 = vsel %vm894, %v1906, 0
        %1915 = vmatprep.subr.mxu0 0.0
        %1916 = vmatpush1.msra.mxu0 %v1908
        %1917 = vmatprep.subr.mxu0 0.0
        %1918 = vmatpush1.msra.mxu0 %v1909
        %1919 = vmatprep.subr.mxu0 0.0
        %1920 = vmatpush1.msra.mxu0 %v1910
        %1921 = vmatprep.subr.mxu0 0.0
        %1922 = vmatpush1.msra.mxu0 %v1911
        %1923 = vmatprep.subr.mxu0 0.0
        %1924 = vmatpush1.msra.mxu0 0.0
        %1925 = vmatprep.subr.mxu0 0.0
        %1926 = vmatpush1.msra.mxu0 0.0
        %1927 = vmatprep.subr.mxu0 0.0
        %1928 = vmatpush1.msra.mxu0 0.0
        %1929 = vmatprep.subr.mxu0 0.0
        %1930 = vmatpush1.msra.mxu0 0.0
        %1931 = vmatprep.subr.mxu0 0.0
        %1932 = vmatpush1.msra.mxu0 0.0
        %1933 = vmatprep.subr.mxu0 0.0
        %1934 = vmatpush1.msra.mxu0 0.0
        %1935 = vmatprep.subr.mxu0 0.0
        %1936 = vmatpush1.msra.mxu0 0.0
        %1937 = vmatprep.subr.mxu0 0.0
        %1938 = vmatpush1.msra.mxu0 0.0
        %1939 = vmatprep.subr.mxu0 0.0
        %1940 = vmatpush1.msra.mxu0 0.0
        %1941 = vmatprep.subr.mxu0 0.0
        %1942 = vmatpush1.msra.mxu0 0.0
        %1943 = vmatprep.subr.mxu0 0.0
        %1944 = vmatpush1.msra.mxu0 0.0
        %1945 = vmatprep.subr.mxu0 0.0
        %1946 = vmatpush1.msra.mxu0 0.0
        %1947 = vmatprep.subr.mxu0 0.0
        %1948 = vmatpush1.msra.mxu0 0.0
        %1949 = vmatprep.subr.mxu0 0.0
        %1950 = vmatpush1.msra.mxu0 0.0
        %1951 = vmatprep.subr.mxu0 0.0
        %1952 = vmatpush1.msra.mxu0 0.0
        %1953 = vmatprep.subr.mxu0 0.0
        %1954 = vmatpush1.msra.mxu0 0.0
        %1955 = vmatprep.subr.mxu0 0.0
        %1956 = vmatpush1.msra.mxu0 0.0
        %1957 = vmatprep.subr.mxu0 0.0
        %1958 = vmatpush1.msra.mxu0 0.0
        %1959 = vmatprep.subr.mxu0 0.0
        %1960 = vmatpush1.msra.mxu0 0.0
        %1961 = vmatprep.subr.mxu0 0.0
        %1962 = vmatpush1.msra.mxu0 0.0
        %1963 = vmatprep.subr.mxu0 0.0
        %1964 = vmatpush1.msra.mxu0 0.0
        %1965 = vmatprep.subr.mxu0 0.0
        %1966 = vmatpush1.msra.mxu0 0.0
        %1967 = vmatprep.subr.mxu0 0.0
        %1968 = vmatpush1.msra.mxu0 0.0
        %1969 = vmatprep.subr.mxu0 0.0
        %1970 = vmatpush1.msra.mxu0 0.0
        %1971 = vmatprep.subr.mxu0 0.0
        %1972 = vmatpush1.msra.mxu0 0.0
        %1973 = vmatprep.subr.mxu0 0.0
        %1974 = vmatpush1.msra.mxu0 0.0
        %1975 = vmatprep.subr.mxu0 0.0
        %1976 = vmatpush1.msra.mxu0 0.0
        %1977 = vmatprep.subr.mxu0 0.0
        %1978 = vmatpush1.msra.mxu0 0.0
        %1979 = vmatprep.mubr.f32.mxu0 0.0
        %1980 = vmatmul.mubr.f32.gmra.mrb[0].mxu0 %v1913
        %v1981 = vpop.f32.mrb[0].mxu0
        %v1982 = vadd.f32 0.0, %v1981
        %v1983 = vpop.f32.mrb[0].mxu0
        %1984 = vdwg.mxu0
        %v1985 = vld [vmem:[#allocation12] sm:$0xff]
        %v1986 = vld [vmem:[#allocation12 + $0x8] sm:$0xff]
        %v1987 = vld [vmem:[#allocation12 + $0x10] sm:$0xff]
        %v1988 = vld [vmem:[#allocation12 + $0x18] sm:$0xff]
        %v1990 = vsel %vm894, %v1907, 0
        %1992 = vmatprep.subr.mxu0 0.0
        %1993 = vmatpush1.msra.mxu0 %v1985
        %1994 = vmatprep.subr.mxu0 0.0
        %1995 = vmatpush1.msra.mxu0 %v1986
        %1996 = vmatprep.subr.mxu0 0.0
        %1997 = vmatpush1.msra.mxu0 %v1987
        %1998 = vmatprep.subr.mxu0 0.0
        %1999 = vmatpush1.msra.mxu0 %v1988
        %2000 = vmatprep.subr.mxu0 0.0
        %2001 = vmatpush1.msra.mxu0 0.0
        %2002 = vmatprep.subr.mxu0 0.0
        %2003 = vmatpush1.msra.mxu0 0.0
        %2004 = vmatprep.subr.mxu0 0.0
        %2005 = vmatpush1.msra.mxu0 0.0
        %2006 = vmatprep.subr.mxu0 0.0
        %2007 = vmatpush1.msra.mxu0 0.0
        %2008 = vmatprep.subr.mxu0 0.0
        %2009 = vmatpush1.msra.mxu0 0.0
        %2010 = vmatprep.subr.mxu0 0.0
        %2011 = vmatpush1.msra.mxu0 0.0
        %2012 = vmatprep.subr.mxu0 0.0
        %2013 = vmatpush1.msra.mxu0 0.0
        %2014 = vmatprep.subr.mxu0 0.0
        %2015 = vmatpush1.msra.mxu0 0.0
        %2016 = vmatprep.subr.mxu0 0.0
        %2017 = vmatpush1.msra.mxu0 0.0
        %2018 = vmatprep.subr.mxu0 0.0
        %2019 = vmatpush1.msra.mxu0 0.0
        %2020 = vmatprep.subr.mxu0 0.0
        %2021 = vmatpush1.msra.mxu0 0.0
        %2022 = vmatprep.subr.mxu0 0.0
        %2023 = vmatpush1.msra.mxu0 0.0
        %2024 = vmatprep.subr.mxu0 0.0
        %2025 = vmatpush1.msra.mxu0 0.0
        %2026 = vmatprep.subr.mxu0 0.0
        %2027 = vmatpush1.msra.mxu0 0.0
        %2028 = vmatprep.subr.mxu0 0.0
        %2029 = vmatpush1.msra.mxu0 0.0
        %2030 = vmatprep.subr.mxu0 0.0
        %2031 = vmatpush1.msra.mxu0 0.0
        %2032 = vmatprep.subr.mxu0 0.0
        %2033 = vmatpush1.msra.mxu0 0.0
        %2034 = vmatprep.subr.mxu0 0.0
        %2035 = vmatpush1.msra.mxu0 0.0
        %2036 = vmatprep.subr.mxu0 0.0
        %2037 = vmatpush1.msra.mxu0 0.0
        %2038 = vmatprep.subr.mxu0 0.0
        %2039 = vmatpush1.msra.mxu0 0.0
        %2040 = vmatprep.subr.mxu0 0.0
        %2041 = vmatpush1.msra.mxu0 0.0
        %2042 = vmatprep.subr.mxu0 0.0
        %2043 = vmatpush1.msra.mxu0 0.0
        %2044 = vmatprep.subr.mxu0 0.0
        %2045 = vmatpush1.msra.mxu0 0.0
        %2046 = vmatprep.subr.mxu0 0.0
        %2047 = vmatpush1.msra.mxu0 0.0
        %2048 = vmatprep.subr.mxu0 0.0
        %2049 = vmatpush1.msra.mxu0 0.0
        %2050 = vmatprep.subr.mxu0 0.0
        %2051 = vmatpush1.msra.mxu0 0.0
        %2052 = vmatprep.subr.mxu0 0.0
        %2053 = vmatpush1.msra.mxu0 0.0
        %2054 = vmatprep.subr.mxu0 0.0
        %2055 = vmatpush1.msra.mxu0 0.0
        %2056 = vmatprep.mubr.f32.mxu0 0.0
        %2057 = vmatmul.mubr.f32.gmra.mrb[0].mxu0 %v1990
        %v2058 = vpop.f32.mrb[0].mxu0
        %v2059 = vadd.f32 0.0, %v2058
        %v2060 = vpop.f32.mrb[0].mxu0
        %2061 = vdwg.mxu0
        %v2062 = vld [vmem:[#allocation14] sm:$0xff]
        %v2063 = vld [vmem:[#allocation14 + $0x8] sm:$0xff]
        %v2064 = vld [vmem:[#allocation14 + $0x10] sm:$0xff]
        %v2065 = vld [vmem:[#allocation14 + $0x18] sm:$0xff]
        %2066 = vmatprep.subr.mxu0 0.0
        %2067 = vmatpush1.msra.mxu0 %v2062
        %2068 = vmatprep.subr.mxu0 0.0
        %2069 = vmatpush1.msra.mxu0 %v2063
        %2070 = vmatprep.subr.mxu0 0.0
        %2071 = vmatpush1.msra.mxu0 %v2064
        %2072 = vmatprep.subr.mxu0 0.0
        %2073 = vmatpush1.msra.mxu0 %v2065
        %2074 = vmatprep.subr.mxu0 0.0
        %2075 = vmatpush1.msra.mxu0 0.0
        %2076 = vmatprep.subr.mxu0 0.0
        %2077 = vmatpush1.msra.mxu0 0.0
        %2078 = vmatprep.subr.mxu0 0.0
        %2079 = vmatpush1.msra.mxu0 0.0
        %2080 = vmatprep.subr.mxu0 0.0
        %2081 = vmatpush1.msra.mxu0 0.0
        %2082 = vmatprep.subr.mxu0 0.0
        %2083 = vmatpush1.msra.mxu0 0.0
        %2084 = vmatprep.subr.mxu0 0.0
        %2085 = vmatpush1.msra.mxu0 0.0
        %2086 = vmatprep.subr.mxu0 0.0
        %2087 = vmatpush1.msra.mxu0 0.0
        %2088 = vmatprep.subr.mxu0 0.0
        %2089 = vmatpush1.msra.mxu0 0.0
        %2090 = vmatprep.subr.mxu0 0.0
        %2091 = vmatpush1.msra.mxu0 0.0
        %2092 = vmatprep.subr.mxu0 0.0
        %2093 = vmatpush1.msra.mxu0 0.0
        %2094 = vmatprep.subr.mxu0 0.0
        %2095 = vmatpush1.msra.mxu0 0.0
        %2096 = vmatprep.subr.mxu0 0.0
        %2097 = vmatpush1.msra.mxu0 0.0
        %2098 = vmatprep.subr.mxu0 0.0
        %2099 = vmatpush1.msra.mxu0 0.0
        %2100 = vmatprep.subr.mxu0 0.0
        %2101 = vmatpush1.msra.mxu0 0.0
        %2102 = vmatprep.subr.mxu0 0.0
        %2103 = vmatpush1.msra.mxu0 0.0
        %2104 = vmatprep.subr.mxu0 0.0
        %2105 = vmatpush1.msra.mxu0 0.0
        %2106 = vmatprep.subr.mxu0 0.0
        %2107 = vmatpush1.msra.mxu0 0.0
        %2108 = vmatprep.subr.mxu0 0.0
        %2109 = vmatpush1.msra.mxu0 0.0
        %2110 = vmatprep.subr.mxu0 0.0
        %2111 = vmatpush1.msra.mxu0 0.0
        %2112 = vmatprep.subr.mxu0 0.0
        %2113 = vmatpush1.msra.mxu0 0.0
        %2114 = vmatprep.subr.mxu0 0.0
        %2115 = vmatpush1.msra.mxu0 0.0
        %2116 = vmatprep.subr.mxu0 0.0
        %2117 = vmatpush1.msra.mxu0 0.0
        %2118 = vmatprep.subr.mxu0 0.0
        %2119 = vmatpush1.msra.mxu0 0.0
        %2120 = vmatprep.subr.mxu0 0.0
        %2121 = vmatpush1.msra.mxu0 0.0
        %2122 = vmatprep.subr.mxu0 0.0
        %2123 = vmatpush1.msra.mxu0 0.0
        %2124 = vmatprep.subr.mxu0 0.0
        %2125 = vmatpush1.msra.mxu0 0.0
        %2126 = vmatprep.subr.mxu0 0.0
        %2127 = vmatpush1.msra.mxu0 0.0
        %2128 = vmatprep.subr.mxu0 0.0
        %2129 = vmatpush1.msra.mxu0 0.0
        %2130 = vmatprep.mubr.f32.mxu0 0.0
        %2131 = vmatmul.mubr.f32.gmra.mrb[0].mxu0 %v1990
        %v2132 = vpop.f32.mrb[0].mxu0
        %v2133 = vadd.f32 0.0, %v2132
        %v2134 = vpop.f32.mrb[0].mxu0
        %2135 = vdwg.mxu0
        %v2136 = vlaneseq
        %v2137 = vand.u32 %v2136, 127
        %v2138 = vld [vmem:[%s887] sm:$0xff]
        %2139 = vset.pattern.permute.xlu0 0
        %2140 = vperm.xlu0 %2139, %v2138
        %v2141 = vpop.permute.xlu0 %2140
        %vm2142 = vcmp.lt.s32.totalorder %v2137, %v2141
        %v2144 = vsel %vm1119, %v1982, 0
        %v2147 = vsel %vm1119, %v2059, 0
        %2149 = vmatprep.subr.mxu0 0.0
        %2150 = vmatpush1.xpose.msra.mxu0 %v2147
        %2151 = vmatprep.subr.mxu0 0.0
        %2152 = vmatpush1.xpose.msra.mxu0 0.0
        %2153 = vmatprep.subr.mxu0 0.0
        %2154 = vmatpush1.xpose.msra.mxu0 0.0
        %2155 = vmatprep.subr.mxu0 0.0
        %2156 = vmatpush1.xpose.msra.mxu0 0.0
        %2157 = vmatprep.subr.mxu0 0.0
        %2158 = vmatpush1.xpose.msra.mxu0 0.0
        %2159 = vmatprep.subr.mxu0 0.0
        %2160 = vmatpush1.xpose.msra.mxu0 0.0
        %2161 = vmatprep.subr.mxu0 0.0
        %2162 = vmatpush1.xpose.msra.mxu0 0.0
        %2163 = vmatprep.subr.mxu0 0.0
        %2164 = vmatpush1.xpose.msra.mxu0 0.0
        %2165 = vmatprep.subr.mxu0 0.0
        %2166 = vmatpush1.xpose.msra.mxu0 0.0
        %2167 = vmatprep.subr.mxu0 0.0
        %2168 = vmatpush1.xpose.msra.mxu0 0.0
        %2169 = vmatprep.subr.mxu0 0.0
        %2170 = vmatpush1.xpose.msra.mxu0 0.0
        %2171 = vmatprep.subr.mxu0 0.0
        %2172 = vmatpush1.xpose.msra.mxu0 0.0
        %2173 = vmatprep.subr.mxu0 0.0
        %2174 = vmatpush1.xpose.msra.mxu0 0.0
        %2175 = vmatprep.subr.mxu0 0.0
        %2176 = vmatpush1.xpose.msra.mxu0 0.0
        %2177 = vmatprep.subr.mxu0 0.0
        %2178 = vmatpush1.xpose.msra.mxu0 0.0
        %2179 = vmatprep.subr.mxu0 0.0
        %2180 = vmatpush1.xpose.msra.mxu0 0.0
        %2181 = vmatprep.subr.mxu0 0.0
        %2182 = vmatpush1.xpose.msra.mxu0 0.0
        %2183 = vmatprep.subr.mxu0 0.0
        %2184 = vmatpush1.xpose.msra.mxu0 0.0
        %2185 = vmatprep.subr.mxu0 0.0
        %2186 = vmatpush1.xpose.msra.mxu0 0.0
        %2187 = vmatprep.subr.mxu0 0.0
        %2188 = vmatpush1.xpose.msra.mxu0 0.0
        %2189 = vmatprep.subr.mxu0 0.0
        %2190 = vmatpush1.xpose.msra.mxu0 0.0
        %2191 = vmatprep.subr.mxu0 0.0
        %2192 = vmatpush1.xpose.msra.mxu0 0.0
        %2193 = vmatprep.subr.mxu0 0.0
        %2194 = vmatpush1.xpose.msra.mxu0 0.0
        %2195 = vmatprep.subr.mxu0 0.0
        %2196 = vmatpush1.xpose.msra.mxu0 0.0
        %2197 = vmatprep.subr.mxu0 0.0
        %2198 = vmatpush1.xpose.msra.mxu0 0.0
        %2199 = vmatprep.subr.mxu0 0.0
        %2200 = vmatpush1.xpose.msra.mxu0 0.0
        %2201 = vmatprep.subr.mxu0 0.0
        %2202 = vmatpush1.xpose.msra.mxu0 0.0
        %2203 = vmatprep.subr.mxu0 0.0
        %2204 = vmatpush1.xpose.msra.mxu0 0.0
        %2205 = vmatprep.subr.mxu0 0.0
        %2206 = vmatpush1.xpose.msra.mxu0 0.0
        %2207 = vmatprep.subr.mxu0 0.0
        %2208 = vmatpush1.xpose.msra.mxu0 0.0
        %2209 = vmatprep.subr.mxu0 0.0
        %2210 = vmatpush1.xpose.msra.mxu0 0.0
        %2211 = vmatprep.subr.mxu0 0.0
        %2212 = vmatpush1.xpose.msra.mxu0 0.0
        %2213 = vmatprep.mubr.f32.mxu0 0.0
        %2214 = vmatmul.mubr.f32.gmra.mrb[0].mxu0 %v2144
        %v2215 = vpop.f32.mrb[0].mxu0
        %v2216 = vadd.f32 0.0, %v2215
        %v2217 = vpop.f32.mrb[0].mxu0
        %2218 = vdwg.mxu0
        %v2219 = vmul.f32 %v2216, 0.35355338
        %v2220 = vsel %vm2142, %v2219, -1000000.0
        %v2221 = vsel %vm1119, %v2220, -inf
        %2222 = vmax.xlane.f32.xlu0 %v2221
        %v2223 = vpop.xlane.xlu0 %2222
        %v2224 = vsub.f32 %v2220, %v2223
        %v2225 = vmul.f32 %v2224, 1.442695
        %v2226 = vpow.pop %v2225
        %v2227 = vsel %vm1119, %v2226, 0.0
        %2228 = vadd.xlane.f32.xlu0 %v2227
        %v2229 = vpop.xlane.xlu0 %2228
        %v2230 = vrcp.pop %v2229
        %v2231 = vmul.f32 %v2226, %v2230
        %v2233 = vsel %vm1119, %v2231, 0
        %2235 = vmatprep.subr.mxu0 0.0
        %2236 = vmatpush1.msra.mxu0 %v2133
        %2237 = vmatprep.subr.mxu0 0.0
        %2238 = vmatpush1.msra.mxu0 0.0
        %2239 = vmatprep.subr.mxu0 0.0
        %2240 = vmatpush1.msra.mxu0 0.0
        %2241 = vmatprep.subr.mxu0 0.0
        %2242 = vmatpush1.msra.mxu0 0.0
        %2243 = vmatprep.subr.mxu0 0.0
        %2244 = vmatpush1.msra.mxu0 0.0
        %2245 = vmatprep.subr.mxu0 0.0
        %2246 = vmatpush1.msra.mxu0 0.0
        %2247 = vmatprep.subr.mxu0 0.0
        %2248 = vmatpush1.msra.mxu0 0.0
        %2249 = vmatprep.subr.mxu0 0.0
        %2250 = vmatpush1.msra.mxu0 0.0
        %2251 = vmatprep.subr.mxu0 0.0
        %2252 = vmatpush1.msra.mxu0 0.0
        %2253 = vmatprep.subr.mxu0 0.0
        %2254 = vmatpush1.msra.mxu0 0.0
        %2255 = vmatprep.subr.mxu0 0.0
        %2256 = vmatpush1.msra.mxu0 0.0
        %2257 = vmatprep.subr.mxu0 0.0
        %2258 = vmatpush1.msra.mxu0 0.0
        %2259 = vmatprep.subr.mxu0 0.0
        %2260 = vmatpush1.msra.mxu0 0.0
        %2261 = vmatprep.subr.mxu0 0.0
        %2262 = vmatpush1.msra.mxu0 0.0
        %2263 = vmatprep.subr.mxu0 0.0
        %2264 = vmatpush1.msra.mxu0 0.0
        %2265 = vmatprep.subr.mxu0 0.0
        %2266 = vmatpush1.msra.mxu0 0.0
        %2267 = vmatprep.subr.mxu0 0.0
        %2268 = vmatpush1.msra.mxu0 0.0
        %2269 = vmatprep.subr.mxu0 0.0
        %2270 = vmatpush1.msra.mxu0 0.0
        %2271 = vmatprep.subr.mxu0 0.0
        %2272 = vmatpush1.msra.mxu0 0.0
        %2273 = vmatprep.subr.mxu0 0.0
        %2274 = vmatpush1.msra.mxu0 0.0
        %2275 = vmatprep.subr.mxu0 0.0
        %2276 = vmatpush1.msra.mxu0 0.0
        %2277 = vmatprep.subr.mxu0 0.0
        %2278 = vmatpush1.msra.mxu0 0.0
        %2279 = vmatprep.subr.mxu0 0.0
        %2280 = vmatpush1.msra.mxu0 0.0
        %2281 = vmatprep.subr.mxu0 0.0
        %2282 = vmatpush1.msra.mxu0 0.0
        %2283 = vmatprep.subr.mxu0 0.0
        %2284 = vmatpush1.msra.mxu0 0.0
        %2285 = vmatprep.subr.mxu0 0.0
        %2286 = vmatpush1.msra.mxu0 0.0
        %2287 = vmatprep.subr.mxu0 0.0
        %2288 = vmatpush1.msra.mxu0 0.0
        %2289 = vmatprep.subr.mxu0 0.0
        %2290 = vmatpush1.msra.mxu0 0.0
        %2291 = vmatprep.subr.mxu0 0.0
        %2292 = vmatpush1.msra.mxu0 0.0
        %2293 = vmatprep.subr.mxu0 0.0
        %2294 = vmatpush1.msra.mxu0 0.0
        %2295 = vmatprep.subr.mxu0 0.0
        %2296 = vmatpush1.msra.mxu0 0.0
        %2297 = vmatprep.subr.mxu0 0.0
        %2298 = vmatpush1.msra.mxu0 0.0
        %2299 = vmatprep.mubr.f32.mxu0 0.0
        %2300 = vmatmul.mubr.f32.gmra.mrb[0].mxu0 %v2233
        %v2301 = vpop.f32.mrb[0].mxu0
        %v2302 = vadd.f32 0.0, %v2301
        %v2303 = vpop.f32.mrb[0].mxu0
        %2304 = vdwg.mxu0
        %2305 = vst.msk [vmem:[#allocation2] sm:$0xff] %vm1119, %v2302
        %2306 = vrot.lane.b32.xlu0 %v1982, 120
        %v2307 = vpop.permute.xlu0 %2306
        %2308 = vrot.lane.b32.xlu0 %v2059, 120
        %v2309 = vpop.permute.xlu0 %2308
        %v2310 = vsel %vm1119, %v2307, 0
        %v2312 = vsel %vm1119, %v2309, 0
        %2314 = vmatprep.subr.mxu0 0.0
        %2315 = vmatpush1.xpose.msra.mxu0 %v2312
        %2316 = vmatprep.subr.mxu0 0.0
        %2317 = vmatpush1.xpose.msra.mxu0 0.0
        %2318 = vmatprep.subr.mxu0 0.0
        %2319 = vmatpush1.xpose.msra.mxu0 0.0
        %2320 = vmatprep.subr.mxu0 0.0
        %2321 = vmatpush1.xpose.msra.mxu0 0.0
        %2322 = vmatprep.subr.mxu0 0.0
        %2323 = vmatpush1.xpose.msra.mxu0 0.0
        %2324 = vmatprep.subr.mxu0 0.0
        %2325 = vmatpush1.xpose.msra.mxu0 0.0
        %2326 = vmatprep.subr.mxu0 0.0
        %2327 = vmatpush1.xpose.msra.mxu0 0.0
        %2328 = vmatprep.subr.mxu0 0.0
        %2329 = vmatpush1.xpose.msra.mxu0 0.0
        %2330 = vmatprep.subr.mxu0 0.0
        %2331 = vmatpush1.xpose.msra.mxu0 0.0
        %2332 = vmatprep.subr.mxu0 0.0
        %2333 = vmatpush1.xpose.msra.mxu0 0.0
        %2334 = vmatprep.subr.mxu0 0.0
        %2335 = vmatpush1.xpose.msra.mxu0 0.0
        %2336 = vmatprep.subr.mxu0 0.0
        %2337 = vmatpush1.xpose.msra.mxu0 0.0
        %2338 = vmatprep.subr.mxu0 0.0
        %2339 = vmatpush1.xpose.msra.mxu0 0.0
        %2340 = vmatprep.subr.mxu0 0.0
        %2341 = vmatpush1.xpose.msra.mxu0 0.0
        %2342 = vmatprep.subr.mxu0 0.0
        %2343 = vmatpush1.xpose.msra.mxu0 0.0
        %2344 = vmatprep.subr.mxu0 0.0
        %2345 = vmatpush1.xpose.msra.mxu0 0.0
        %2346 = vmatprep.subr.mxu0 0.0
        %2347 = vmatpush1.xpose.msra.mxu0 0.0
        %2348 = vmatprep.subr.mxu0 0.0
        %2349 = vmatpush1.xpose.msra.mxu0 0.0
        %2350 = vmatprep.subr.mxu0 0.0
        %2351 = vmatpush1.xpose.msra.mxu0 0.0
        %2352 = vmatprep.subr.mxu0 0.0
        %2353 = vmatpush1.xpose.msra.mxu0 0.0
        %2354 = vmatprep.subr.mxu0 0.0
        %2355 = vmatpush1.xpose.msra.mxu0 0.0
        %2356 = vmatprep.subr.mxu0 0.0
        %2357 = vmatpush1.xpose.msra.mxu0 0.0
        %2358 = vmatprep.subr.mxu0 0.0
        %2359 = vmatpush1.xpose.msra.mxu0 0.0
        %2360 = vmatprep.subr.mxu0 0.0
        %2361 = vmatpush1.xpose.msra.mxu0 0.0
        %2362 = vmatprep.subr.mxu0 0.0
        %2363 = vmatpush1.xpose.msra.mxu0 0.0
        %2364 = vmatprep.subr.mxu0 0.0
        %2365 = vmatpush1.xpose.msra.mxu0 0.0
        %2366 = vmatprep.subr.mxu0 0.0
        %2367 = vmatpush1.xpose.msra.mxu0 0.0
        %2368 = vmatprep.subr.mxu0 0.0
        %2369 = vmatpush1.xpose.msra.mxu0 0.0
        %2370 = vmatprep.subr.mxu0 0.0
        %2371 = vmatpush1.xpose.msra.mxu0 0.0
        %2372 = vmatprep.subr.mxu0 0.0
        %2373 = vmatpush1.xpose.msra.mxu0 0.0
        %2374 = vmatprep.subr.mxu0 0.0
        %2375 = vmatpush1.xpose.msra.mxu0 0.0
        %2376 = vmatprep.subr.mxu0 0.0
        %2377 = vmatpush1.xpose.msra.mxu0 0.0
        %2378 = vmatprep.mubr.f32.mxu0 0.0
        %2379 = vmatmul.mubr.f32.gmra.mrb[0].mxu0 %v2310
        %v2380 = vpop.f32.mrb[0].mxu0
        %v2381 = vadd.f32 0.0, %v2380
        %v2382 = vpop.f32.mrb[0].mxu0
        %2383 = vdwg.mxu0
        %v2384 = vmul.f32 %v2381, 0.35355338
        %v2385 = vsel %vm2142, %v2384, -1000000.0
        %v2386 = vsel %vm1119, %v2385, -inf
        %2387 = vmax.xlane.f32.xlu0 %v2386
        %v2388 = vpop.xlane.xlu0 %2387
        %v2389 = vsub.f32 %v2385, %v2388
        %v2390 = vmul.f32 %v2389, 1.442695
        %v2391 = vpow.pop %v2390
        %v2392 = vsel %vm1119, %v2391, 0.0
        %2393 = vadd.xlane.f32.xlu0 %v2392
        %v2394 = vpop.xlane.xlu0 %2393
        %v2395 = vrcp.pop %v2394
        %v2396 = vmul.f32 %v2391, %v2395
        %2398 = vrot.lane.b32.xlu0 %v2133, 120
        %v2399 = vpop.permute.xlu0 %2398
        %v2402 = vsel %vm1119, %v2396, 0
        %2404 = vmatprep.subr.mxu0 0.0
        %2405 = vmatpush1.msra.mxu0 %v2399
        %2406 = vmatprep.subr.mxu0 0.0
        %2407 = vmatpush1.msra.mxu0 0.0
        %2408 = vmatprep.subr.mxu0 0.0
        %2409 = vmatpush1.msra.mxu0 0.0
        %2410 = vmatprep.subr.mxu0 0.0
        %2411 = vmatpush1.msra.mxu0 0.0
        %2412 = vmatprep.subr.mxu0 0.0
        %2413 = vmatpush1.msra.mxu0 0.0
        %2414 = vmatprep.subr.mxu0 0.0
        %2415 = vmatpush1.msra.mxu0 0.0
        %2416 = vmatprep.subr.mxu0 0.0
        %2417 = vmatpush1.msra.mxu0 0.0
        %2418 = vmatprep.subr.mxu0 0.0
        %2419 = vmatpush1.msra.mxu0 0.0
        %2420 = vmatprep.subr.mxu0 0.0
        %2421 = vmatpush1.msra.mxu0 0.0
        %2422 = vmatprep.subr.mxu0 0.0
        %2423 = vmatpush1.msra.mxu0 0.0
        %2424 = vmatprep.subr.mxu0 0.0
        %2425 = vmatpush1.msra.mxu0 0.0
        %2426 = vmatprep.subr.mxu0 0.0
        %2427 = vmatpush1.msra.mxu0 0.0
        %2428 = vmatprep.subr.mxu0 0.0
        %2429 = vmatpush1.msra.mxu0 0.0
        %2430 = vmatprep.subr.mxu0 0.0
        %2431 = vmatpush1.msra.mxu0 0.0
        %2432 = vmatprep.subr.mxu0 0.0
        %2433 = vmatpush1.msra.mxu0 0.0
        %2434 = vmatprep.subr.mxu0 0.0
        %2435 = vmatpush1.msra.mxu0 0.0
        %2436 = vmatprep.subr.mxu0 0.0
        %2437 = vmatpush1.msra.mxu0 0.0
        %2438 = vmatprep.subr.mxu0 0.0
        %2439 = vmatpush1.msra.mxu0 0.0
        %2440 = vmatprep.subr.mxu0 0.0
        %2441 = vmatpush1.msra.mxu0 0.0
        %2442 = vmatprep.subr.mxu0 0.0
        %2443 = vmatpush1.msra.mxu0 0.0
        %2444 = vmatprep.subr.mxu0 0.0
        %2445 = vmatpush1.msra.mxu0 0.0
        %2446 = vmatprep.subr.mxu0 0.0
        %2447 = vmatpush1.msra.mxu0 0.0
        %2448 = vmatprep.subr.mxu0 0.0
        %2449 = vmatpush1.msra.mxu0 0.0
        %2450 = vmatprep.subr.mxu0 0.0
        %2451 = vmatpush1.msra.mxu0 0.0
        %2452 = vmatprep.subr.mxu0 0.0
        %2453 = vmatpush1.msra.mxu0 0.0
        %2454 = vmatprep.subr.mxu0 0.0
        %2455 = vmatpush1.msra.mxu0 0.0
        %2456 = vmatprep.subr.mxu0 0.0
        %2457 = vmatpush1.msra.mxu0 0.0
        %2458 = vmatprep.subr.mxu0 0.0
        %2459 = vmatpush1.msra.mxu0 0.0
        %2460 = vmatprep.subr.mxu0 0.0
        %2461 = vmatpush1.msra.mxu0 0.0
        %2462 = vmatprep.subr.mxu0 0.0
        %2463 = vmatpush1.msra.mxu0 0.0
        %2464 = vmatprep.subr.mxu0 0.0
        %2465 = vmatpush1.msra.mxu0 0.0
        %2466 = vmatprep.subr.mxu0 0.0
        %2467 = vmatpush1.msra.mxu0 0.0
        %2468 = vmatprep.mubr.f32.mxu0 0.0
        %2469 = vmatmul.mubr.f32.gmra.mrb[0].mxu0 %v2402
        %v2470 = vpop.f32.mrb[0].mxu0
        %v2471 = vadd.f32 0.0, %v2470
        %v2472 = vpop.f32.mrb[0].mxu0
        %2473 = vdwg.mxu0
        %2475 = vrot.lane.b32.xlu0 %v2471, 8
        %v2476 = vpop.permute.xlu0 %2475
        %2478 = vst.msk [vmem:[#allocation2] sm:$0xff] %vm1453, %v2476
        %2479 = vrot.lane.b32.xlu0 %v1982, 112
        %v2480 = vpop.permute.xlu0 %2479
        %2481 = vrot.lane.b32.xlu0 %v2059, 112
        %v2482 = vpop.permute.xlu0 %2481
        %v2483 = vsel %vm1119, %v2480, 0
        %v2485 = vsel %vm1119, %v2482, 0
        %2487 = vmatprep.subr.mxu0 0.0
        %2488 = vmatpush1.xpose.msra.mxu0 %v2485
        %2489 = vmatprep.subr.mxu0 0.0
        %2490 = vmatpush1.xpose.msra.mxu0 0.0
        %2491 = vmatprep.subr.mxu0 0.0
        %2492 = vmatpush1.xpose.msra.mxu0 0.0
        %2493 = vmatprep.subr.mxu0 0.0
        %2494 = vmatpush1.xpose.msra.mxu0 0.0
        %2495 = vmatprep.subr.mxu0 0.0
        %2496 = vmatpush1.xpose.msra.mxu0 0.0
        %2497 = vmatprep.subr.mxu0 0.0
        %2498 = vmatpush1.xpose.msra.mxu0 0.0
        %2499 = vmatprep.subr.mxu0 0.0
        %2500 = vmatpush1.xpose.msra.mxu0 0.0
        %2501 = vmatprep.subr.mxu0 0.0
        %2502 = vmatpush1.xpose.msra.mxu0 0.0
        %2503 = vmatprep.subr.mxu0 0.0
        %2504 = vmatpush1.xpose.msra.mxu0 0.0
        %2505 = vmatprep.subr.mxu0 0.0
        %2506 = vmatpush1.xpose.msra.mxu0 0.0
        %2507 = vmatprep.subr.mxu0 0.0
        %2508 = vmatpush1.xpose.msra.mxu0 0.0
        %2509 = vmatprep.subr.mxu0 0.0
        %2510 = vmatpush1.xpose.msra.mxu0 0.0
        %2511 = vmatprep.subr.mxu0 0.0
        %2512 = vmatpush1.xpose.msra.mxu0 0.0
        %2513 = vmatprep.subr.mxu0 0.0
        %2514 = vmatpush1.xpose.msra.mxu0 0.0
        %2515 = vmatprep.subr.mxu0 0.0
        %2516 = vmatpush1.xpose.msra.mxu0 0.0
        %2517 = vmatprep.subr.mxu0 0.0
        %2518 = vmatpush1.xpose.msra.mxu0 0.0
        %2519 = vmatprep.subr.mxu0 0.0
        %2520 = vmatpush1.xpose.msra.mxu0 0.0
        %2521 = vmatprep.subr.mxu0 0.0
        %2522 = vmatpush1.xpose.msra.mxu0 0.0
        %2523 = vmatprep.subr.mxu0 0.0
        %2524 = vmatpush1.xpose.msra.mxu0 0.0
        %2525 = vmatprep.subr.mxu0 0.0
        %2526 = vmatpush1.xpose.msra.mxu0 0.0
        %2527 = vmatprep.subr.mxu0 0.0
        %2528 = vmatpush1.xpose.msra.mxu0 0.0
        %2529 = vmatprep.subr.mxu0 0.0
        %2530 = vmatpush1.xpose.msra.mxu0 0.0
        %2531 = vmatprep.subr.mxu0 0.0
        %2532 = vmatpush1.xpose.msra.mxu0 0.0
        %2533 = vmatprep.subr.mxu0 0.0
        %2534 = vmatpush1.xpose.msra.mxu0 0.0
        %2535 = vmatprep.subr.mxu0 0.0
        %2536 = vmatpush1.xpose.msra.mxu0 0.0
        %2537 = vmatprep.subr.mxu0 0.0
        %2538 = vmatpush1.xpose.msra.mxu0 0.0
        %2539 = vmatprep.subr.mxu0 0.0
        %2540 = vmatpush1.xpose.msra.mxu0 0.0
        %2541 = vmatprep.subr.mxu0 0.0
        %2542 = vmatpush1.xpose.msra.mxu0 0.0
        %2543 = vmatprep.subr.mxu0 0.0
        %2544 = vmatpush1.xpose.msra.mxu0 0.0
        %2545 = vmatprep.subr.mxu0 0.0
        %2546 = vmatpush1.xpose.msra.mxu0 0.0
        %2547 = vmatprep.subr.mxu0 0.0
        %2548 = vmatpush1.xpose.msra.mxu0 0.0
        %2549 = vmatprep.subr.mxu0 0.0
        %2550 = vmatpush1.xpose.msra.mxu0 0.0
        %2551 = vmatprep.mubr.f32.mxu0 0.0
        %2552 = vmatmul.mubr.f32.gmra.mrb[0].mxu0 %v2483
        %v2553 = vpop.f32.mrb[0].mxu0
        %v2554 = vadd.f32 0.0, %v2553
        %v2555 = vpop.f32.mrb[0].mxu0
        %2556 = vdwg.mxu0
        %v2557 = vmul.f32 %v2554, 0.35355338
        %v2558 = vsel %vm2142, %v2557, -1000000.0
        %v2559 = vsel %vm1119, %v2558, -inf
        %2560 = vmax.xlane.f32.xlu0 %v2559
        %v2561 = vpop.xlane.xlu0 %2560
        %v2562 = vsub.f32 %v2558, %v2561
        %v2563 = vmul.f32 %v2562, 1.442695
        %v2564 = vpow.pop %v2563
        %v2565 = vsel %vm1119, %v2564, 0.0
        %2566 = vadd.xlane.f32.xlu0 %v2565
        %v2567 = vpop.xlane.xlu0 %2566
        %v2568 = vrcp.pop %v2567
        %v2569 = vmul.f32 %v2564, %v2568
        %2570 = vrot.lane.b32.xlu0 %v2133, 112
        %v2571 = vpop.permute.xlu0 %2570
        %v2574 = vsel %vm1119, %v2569, 0
        %2576 = vmatprep.subr.mxu0 0.0
        %2577 = vmatpush1.msra.mxu0 %v2571
        %2578 = vmatprep.subr.mxu0 0.0
        %2579 = vmatpush1.msra.mxu0 0.0
        %2580 = vmatprep.subr.mxu0 0.0
        %2581 = vmatpush1.msra.mxu0 0.0
        %2582 = vmatprep.subr.mxu0 0.0
        %2583 = vmatpush1.msra.mxu0 0.0
        %2584 = vmatprep.subr.mxu0 0.0
        %2585 = vmatpush1.msra.mxu0 0.0
        %2586 = vmatprep.subr.mxu0 0.0
        %2587 = vmatpush1.msra.mxu0 0.0
        %2588 = vmatprep.subr.mxu0 0.0
        %2589 = vmatpush1.msra.mxu0 0.0
        %2590 = vmatprep.subr.mxu0 0.0
        %2591 = vmatpush1.msra.mxu0 0.0
        %2592 = vmatprep.subr.mxu0 0.0
        %2593 = vmatpush1.msra.mxu0 0.0
        %2594 = vmatprep.subr.mxu0 0.0
        %2595 = vmatpush1.msra.mxu0 0.0
        %2596 = vmatprep.subr.mxu0 0.0
        %2597 = vmatpush1.msra.mxu0 0.0
        %2598 = vmatprep.subr.mxu0 0.0
        %2599 = vmatpush1.msra.mxu0 0.0
        %2600 = vmatprep.subr.mxu0 0.0
        %2601 = vmatpush1.msra.mxu0 0.0
        %2602 = vmatprep.subr.mxu0 0.0
        %2603 = vmatpush1.msra.mxu0 0.0
        %2604 = vmatprep.subr.mxu0 0.0
        %2605 = vmatpush1.msra.mxu0 0.0
        %2606 = vmatprep.subr.mxu0 0.0
        %2607 = vmatpush1.msra.mxu0 0.0
        %2608 = vmatprep.subr.mxu0 0.0
        %2609 = vmatpush1.msra.mxu0 0.0
        %2610 = vmatprep.subr.mxu0 0.0
        %2611 = vmatpush1.msra.mxu0 0.0
        %2612 = vmatprep.subr.mxu0 0.0
        %2613 = vmatpush1.msra.mxu0 0.0
        %2614 = vmatprep.subr.mxu0 0.0
        %2615 = vmatpush1.msra.mxu0 0.0
        %2616 = vmatprep.subr.mxu0 0.0
        %2617 = vmatpush1.msra.mxu0 0.0
        %2618 = vmatprep.subr.mxu0 0.0
        %2619 = vmatpush1.msra.mxu0 0.0
        %2620 = vmatprep.subr.mxu0 0.0
        %2621 = vmatpush1.msra.mxu0 0.0
        %2622 = vmatprep.subr.mxu0 0.0
        %2623 = vmatpush1.msra.mxu0 0.0
        %2624 = vmatprep.subr.mxu0 0.0
        %2625 = vmatpush1.msra.mxu0 0.0
        %2626 = vmatprep.subr.mxu0 0.0
        %2627 = vmatpush1.msra.mxu0 0.0
        %2628 = vmatprep.subr.mxu0 0.0
        %2629 = vmatpush1.msra.mxu0 0.0
        %2630 = vmatprep.subr.mxu0 0.0
        %2631 = vmatpush1.msra.mxu0 0.0
        %2632 = vmatprep.subr.mxu0 0.0
        %2633 = vmatpush1.msra.mxu0 0.0
        %2634 = vmatprep.subr.mxu0 0.0
        %2635 = vmatpush1.msra.mxu0 0.0
        %2636 = vmatprep.subr.mxu0 0.0
        %2637 = vmatpush1.msra.mxu0 0.0
        %2638 = vmatprep.subr.mxu0 0.0
        %2639 = vmatpush1.msra.mxu0 0.0
        %2640 = vmatprep.mubr.f32.mxu0 0.0
        %2641 = vmatmul.mubr.f32.gmra.mrb[0].mxu0 %v2574
        %v2642 = vpop.f32.mrb[0].mxu0
        %v2643 = vadd.f32 0.0, %v2642
        %v2644 = vpop.f32.mrb[0].mxu0
        %2645 = vdwg.mxu0
        %2647 = vrot.lane.b32.xlu0 %v2643, 16
        %v2648 = vpop.permute.xlu0 %2647
        %2650 = vst.msk [vmem:[#allocation2] sm:$0xff] %vm1625, %v2648
        %2651 = vrot.lane.b32.xlu0 %v1982, 104
        %v2652 = vpop.permute.xlu0 %2651
        %2653 = vrot.lane.b32.xlu0 %v2059, 104
        %v2654 = vpop.permute.xlu0 %2653
        %v2655 = vsel %vm1119, %v2652, 0
        %v2657 = vsel %vm1119, %v2654, 0
        %2659 = vmatprep.subr.mxu0 0.0
        %2660 = vmatpush1.xpose.msra.mxu0 %v2657
        %2661 = vmatprep.subr.mxu0 0.0
        %2662 = vmatpush1.xpose.msra.mxu0 0.0
        %2663 = vmatprep.subr.mxu0 0.0
        %2664 = vmatpush1.xpose.msra.mxu0 0.0
        %2665 = vmatprep.subr.mxu0 0.0
        %2666 = vmatpush1.xpose.msra.mxu0 0.0
        %2667 = vmatprep.subr.mxu0 0.0
        %2668 = vmatpush1.xpose.msra.mxu0 0.0
        %2669 = vmatprep.subr.mxu0 0.0
        %2670 = vmatpush1.xpose.msra.mxu0 0.0
        %2671 = vmatprep.subr.mxu0 0.0
        %2672 = vmatpush1.xpose.msra.mxu0 0.0
        %2673 = vmatprep.subr.mxu0 0.0
        %2674 = vmatpush1.xpose.msra.mxu0 0.0
        %2675 = vmatprep.subr.mxu0 0.0
        %2676 = vmatpush1.xpose.msra.mxu0 0.0
        %2677 = vmatprep.subr.mxu0 0.0
        %2678 = vmatpush1.xpose.msra.mxu0 0.0
        %2679 = vmatprep.subr.mxu0 0.0
        %2680 = vmatpush1.xpose.msra.mxu0 0.0
        %2681 = vmatprep.subr.mxu0 0.0
        %2682 = vmatpush1.xpose.msra.mxu0 0.0
        %2683 = vmatprep.subr.mxu0 0.0
        %2684 = vmatpush1.xpose.msra.mxu0 0.0
        %2685 = vmatprep.subr.mxu0 0.0
        %2686 = vmatpush1.xpose.msra.mxu0 0.0
        %2687 = vmatprep.subr.mxu0 0.0
        %2688 = vmatpush1.xpose.msra.mxu0 0.0
        %2689 = vmatprep.subr.mxu0 0.0
        %2690 = vmatpush1.xpose.msra.mxu0 0.0
        %2691 = vmatprep.subr.mxu0 0.0
        %2692 = vmatpush1.xpose.msra.mxu0 0.0
        %2693 = vmatprep.subr.mxu0 0.0
        %2694 = vmatpush1.xpose.msra.mxu0 0.0
        %2695 = vmatprep.subr.mxu0 0.0
        %2696 = vmatpush1.xpose.msra.mxu0 0.0
        %2697 = vmatprep.subr.mxu0 0.0
        %2698 = vmatpush1.xpose.msra.mxu0 0.0
        %2699 = vmatprep.subr.mxu0 0.0
        %2700 = vmatpush1.xpose.msra.mxu0 0.0
        %2701 = vmatprep.subr.mxu0 0.0
        %2702 = vmatpush1.xpose.msra.mxu0 0.0
        %2703 = vmatprep.subr.mxu0 0.0
        %2704 = vmatpush1.xpose.msra.mxu0 0.0
        %2705 = vmatprep.subr.mxu0 0.0
        %2706 = vmatpush1.xpose.msra.mxu0 0.0
        %2707 = vmatprep.subr.mxu0 0.0
        %2708 = vmatpush1.xpose.msra.mxu0 0.0
        %2709 = vmatprep.subr.mxu0 0.0
        %2710 = vmatpush1.xpose.msra.mxu0 0.0
        %2711 = vmatprep.subr.mxu0 0.0
        %2712 = vmatpush1.xpose.msra.mxu0 0.0
        %2713 = vmatprep.subr.mxu0 0.0
        %2714 = vmatpush1.xpose.msra.mxu0 0.0
        %2715 = vmatprep.subr.mxu0 0.0
        %2716 = vmatpush1.xpose.msra.mxu0 0.0
        %2717 = vmatprep.subr.mxu0 0.0
        %2718 = vmatpush1.xpose.msra.mxu0 0.0
        %2719 = vmatprep.subr.mxu0 0.0
        %2720 = vmatpush1.xpose.msra.mxu0 0.0
        %2721 = vmatprep.subr.mxu0 0.0
        %2722 = vmatpush1.xpose.msra.mxu0 0.0
        %2723 = vmatprep.mubr.f32.mxu0 0.0
        %2724 = vmatmul.mubr.f32.gmra.mrb[0].mxu0 %v2655
        %v2725 = vpop.f32.mrb[0].mxu0
        %v2726 = vadd.f32 0.0, %v2725
        %v2727 = vpop.f32.mrb[0].mxu0
        %2728 = vdwg.mxu0
        %v2729 = vmul.f32 %v2726, 0.35355338
        %v2730 = vsel %vm2142, %v2729, -1000000.0
        %v2731 = vsel %vm1119, %v2730, -inf
        %2732 = vmax.xlane.f32.xlu0 %v2731
        %v2733 = vpop.xlane.xlu0 %2732
        %v2734 = vsub.f32 %v2730, %v2733
        %v2735 = vmul.f32 %v2734, 1.442695
        %v2736 = vpow.pop %v2735
        %v2737 = vsel %vm1119, %v2736, 0.0
        %2738 = vadd.xlane.f32.xlu0 %v2737
        %v2739 = vpop.xlane.xlu0 %2738
        %v2740 = vrcp.pop %v2739
        %v2741 = vmul.f32 %v2736, %v2740
        %2742 = vrot.lane.b32.xlu0 %v2133, 104
        %v2743 = vpop.permute.xlu0 %2742
        %v2746 = vsel %vm1119, %v2741, 0
        %2748 = vmatprep.subr.mxu0 0.0
        %2749 = vmatpush1.msra.mxu0 %v2743
        %2750 = vmatprep.subr.mxu0 0.0
        %2751 = vmatpush1.msra.mxu0 0.0
        %2752 = vmatprep.subr.mxu0 0.0
        %2753 = vmatpush1.msra.mxu0 0.0
        %2754 = vmatprep.subr.mxu0 0.0
        %2755 = vmatpush1.msra.mxu0 0.0
        %2756 = vmatprep.subr.mxu0 0.0
        %2757 = vmatpush1.msra.mxu0 0.0
        %2758 = vmatprep.subr.mxu0 0.0
        %2759 = vmatpush1.msra.mxu0 0.0
        %2760 = vmatprep.subr.mxu0 0.0
        %2761 = vmatpush1.msra.mxu0 0.0
        %2762 = vmatprep.subr.mxu0 0.0
        %2763 = vmatpush1.msra.mxu0 0.0
        %2764 = vmatprep.subr.mxu0 0.0
        %2765 = vmatpush1.msra.mxu0 0.0
        %2766 = vmatprep.subr.mxu0 0.0
        %2767 = vmatpush1.msra.mxu0 0.0
        %2768 = vmatprep.subr.mxu0 0.0
        %2769 = vmatpush1.msra.mxu0 0.0
        %2770 = vmatprep.subr.mxu0 0.0
        %2771 = vmatpush1.msra.mxu0 0.0
        %2772 = vmatprep.subr.mxu0 0.0
        %2773 = vmatpush1.msra.mxu0 0.0
        %2774 = vmatprep.subr.mxu0 0.0
        %2775 = vmatpush1.msra.mxu0 0.0
        %2776 = vmatprep.subr.mxu0 0.0
        %2777 = vmatpush1.msra.mxu0 0.0
        %2778 = vmatprep.subr.mxu0 0.0
        %2779 = vmatpush1.msra.mxu0 0.0
        %2780 = vmatprep.subr.mxu0 0.0
        %2781 = vmatpush1.msra.mxu0 0.0
        %2782 = vmatprep.subr.mxu0 0.0
        %2783 = vmatpush1.msra.mxu0 0.0
        %2784 = vmatprep.subr.mxu0 0.0
        %2785 = vmatpush1.msra.mxu0 0.0
        %2786 = vmatprep.subr.mxu0 0.0
        %2787 = vmatpush1.msra.mxu0 0.0
        %2788 = vmatprep.subr.mxu0 0.0
        %2789 = vmatpush1.msra.mxu0 0.0
        %2790 = vmatprep.subr.mxu0 0.0
        %2791 = vmatpush1.msra.mxu0 0.0
        %2792 = vmatprep.subr.mxu0 0.0
        %2793 = vmatpush1.msra.mxu0 0.0
        %2794 = vmatprep.subr.mxu0 0.0
        %2795 = vmatpush1.msra.mxu0 0.0
        %2796 = vmatprep.subr.mxu0 0.0
        %2797 = vmatpush1.msra.mxu0 0.0
        %2798 = vmatprep.subr.mxu0 0.0
        %2799 = vmatpush1.msra.mxu0 0.0
        %2800 = vmatprep.subr.mxu0 0.0
        %2801 = vmatpush1.msra.mxu0 0.0
        %2802 = vmatprep.subr.mxu0 0.0
        %2803 = vmatpush1.msra.mxu0 0.0
        %2804 = vmatprep.subr.mxu0 0.0
        %2805 = vmatpush1.msra.mxu0 0.0
        %2806 = vmatprep.subr.mxu0 0.0
        %2807 = vmatpush1.msra.mxu0 0.0
        %2808 = vmatprep.subr.mxu0 0.0
        %2809 = vmatpush1.msra.mxu0 0.0
        %2810 = vmatprep.subr.mxu0 0.0
        %2811 = vmatpush1.msra.mxu0 0.0
        %2812 = vmatprep.mubr.f32.mxu0 0.0
        %2813 = vmatmul.mubr.f32.gmra.mrb[0].mxu0 %v2746
        %v2814 = vpop.f32.mrb[0].mxu0
        %v2815 = vadd.f32 0.0, %v2814
        %v2816 = vpop.f32.mrb[0].mxu0
        %2817 = vdwg.mxu0
        %2819 = vrot.lane.b32.xlu0 %v2815, 24
        %v2820 = vpop.permute.xlu0 %2819
        %2822 = vst.msk [vmem:[#allocation2] sm:$0xff] %vm1797, %v2820
        %v2823 = vld [vmem:[#allocation2] sm:$0xff]
        %v2824 = vld [vmem:[%s13] sm:$0xff]
        %v2825 = vld [vmem:[%s13 + $0x8] sm:$0xff]
        %v2826 = vld [vmem:[%s13 + $0x10] sm:$0xff]
        %v2827 = vld [vmem:[%s13 + $0x18] sm:$0xff]
        %v2829 = vsel %vm894, %v2823, 0
        %2831 = vmatprep.subr.mxu0 0.0
        %2832 = vmatpush1.msra.mxu0 %v2824
        %2833 = vmatprep.subr.mxu0 0.0
        %2834 = vmatpush1.msra.mxu0 %v2825
        %2835 = vmatprep.subr.mxu0 0.0
        %2836 = vmatpush1.msra.mxu0 %v2826
        %2837 = vmatprep.subr.mxu0 0.0
        %2838 = vmatpush1.msra.mxu0 %v2827
        %2839 = vmatprep.subr.mxu0 0.0
        %2840 = vmatpush1.msra.mxu0 0.0
        %2841 = vmatprep.subr.mxu0 0.0
        %2842 = vmatpush1.msra.mxu0 0.0
        %2843 = vmatprep.subr.mxu0 0.0
        %2844 = vmatpush1.msra.mxu0 0.0
        %2845 = vmatprep.subr.mxu0 0.0
        %2846 = vmatpush1.msra.mxu0 0.0
        %2847 = vmatprep.subr.mxu0 0.0
        %2848 = vmatpush1.msra.mxu0 0.0
        %2849 = vmatprep.subr.mxu0 0.0
        %2850 = vmatpush1.msra.mxu0 0.0
        %2851 = vmatprep.subr.mxu0 0.0
        %2852 = vmatpush1.msra.mxu0 0.0
        %2853 = vmatprep.subr.mxu0 0.0
        %2854 = vmatpush1.msra.mxu0 0.0
        %2855 = vmatprep.subr.mxu0 0.0
        %2856 = vmatpush1.msra.mxu0 0.0
        %2857 = vmatprep.subr.mxu0 0.0
        %2858 = vmatpush1.msra.mxu0 0.0
        %2859 = vmatprep.subr.mxu0 0.0
        %2860 = vmatpush1.msra.mxu0 0.0
        %2861 = vmatprep.subr.mxu0 0.0
        %2862 = vmatpush1.msra.mxu0 0.0
        %2863 = vmatprep.subr.mxu0 0.0
        %2864 = vmatpush1.msra.mxu0 0.0
        %2865 = vmatprep.subr.mxu0 0.0
        %2866 = vmatpush1.msra.mxu0 0.0
        %2867 = vmatprep.subr.mxu0 0.0
        %2868 = vmatpush1.msra.mxu0 0.0
        %2869 = vmatprep.subr.mxu0 0.0
        %2870 = vmatpush1.msra.mxu0 0.0
        %2871 = vmatprep.subr.mxu0 0.0
        %2872 = vmatpush1.msra.mxu0 0.0
        %2873 = vmatprep.subr.mxu0 0.0
        %2874 = vmatpush1.msra.mxu0 0.0
        %2875 = vmatprep.subr.mxu0 0.0
        %2876 = vmatpush1.msra.mxu0 0.0
        %2877 = vmatprep.subr.mxu0 0.0
        %2878 = vmatpush1.msra.mxu0 0.0
        %2879 = vmatprep.subr.mxu0 0.0
        %2880 = vmatpush1.msra.mxu0 0.0
        %2881 = vmatprep.subr.mxu0 0.0
        %2882 = vmatpush1.msra.mxu0 0.0
        %2883 = vmatprep.subr.mxu0 0.0
        %2884 = vmatpush1.msra.mxu0 0.0
        %2885 = vmatprep.subr.mxu0 0.0
        %2886 = vmatpush1.msra.mxu0 0.0
        %2887 = vmatprep.subr.mxu0 0.0
        %2888 = vmatpush1.msra.mxu0 0.0
        %2889 = vmatprep.subr.mxu0 0.0
        %2890 = vmatpush1.msra.mxu0 0.0
        %2891 = vmatprep.subr.mxu0 0.0
        %2892 = vmatpush1.msra.mxu0 0.0
        %2893 = vmatprep.subr.mxu0 0.0
        %2894 = vmatpush1.msra.mxu0 0.0
        %2895 = vmatprep.mubr.f32.mxu0 0.0
        %2896 = vmatmul.mubr.f32.gmra.mrb[0].mxu0 %v2829
        %v2897 = vpop.f32.mrb[0].mxu0
        %v2898 = vadd.f32 %v1906, %v2897
        %v2899 = vpop.f32.mrb[0].mxu0
        %2900 = vdwg.mxu0
        %v2901 = vsel %vm894, %v2898, 0.0
        %2902 = vadd.xlane.f32.xlu0 %v2901
        %v2903 = vpop.xlane.xlu0 %2902
        %v2904 = vmul.f32 %v2903, %v1880
        %v2905 = vsub.f32 %v2898, %v2904
        %v2906 = vmul.f32 %v2905, %v2905
        %v2907 = vsel %vm894, %v2906, 0.0
        %2908 = vadd.xlane.f32.xlu0 %v2907
        %v2909 = vpop.xlane.xlu0 %2908
        %v2910 = vmul.f32 %v2909, %v1880
        %v2911 = vadd.f32 %v2910, 1e-05
        %v2912 = vrsqrt.pop %v2911
        %v2913 = vmul.f32 %v2905, %v2912
        %v2914 = vld [vmem:[%s14] sm:$0x1]
        %v2916 = vlaneseq
        %v2917 = vshrl.u32 %v2916, 7
        %v2918 = vsub.s32 0, %v2917
        %v2919 = vrot.slane %v2914, %v2918
        %v2921 = vmul.f32 %v2913, %v2919
        %v2922 = vld [vmem:[%s15] sm:$0x1]
        %v2924 = vlaneseq
        %v2925 = vshrl.u32 %v2924, 7
        %v2926 = vsub.s32 0, %v2925
        %v2927 = vrot.slane %v2922, %v2926
        %v2929 = vadd.f32 %v2921, %v2927
        %v2930 = vld [vmem:[#allocation15] sm:$0xff]
        %v2931 = vld [vmem:[#allocation15 + $0x8] sm:$0xff]
        %v2932 = vld [vmem:[#allocation15 + $0x10] sm:$0xff]
        %v2933 = vld [vmem:[#allocation15 + $0x18] sm:$0xff]
        %v2934 = vld [vmem:[%s17] sm:$0x1]
        %v2936 = vlaneseq
        %v2937 = vshrl.u32 %v2936, 7
        %v2938 = vsub.s32 0, %v2937
        %v2939 = vrot.slane %v2934, %v2938
        %v2942 = vsel %vm894, %v2929, 0
        %2944 = vmatprep.subr.mxu0 0.0
        %2945 = vmatpush1.msra.mxu0 %v2930
        %2946 = vmatprep.subr.mxu0 0.0
        %2947 = vmatpush1.msra.mxu0 %v2931
        %2948 = vmatprep.subr.mxu0 0.0
        %2949 = vmatpush1.msra.mxu0 %v2932
        %2950 = vmatprep.subr.mxu0 0.0
        %2951 = vmatpush1.msra.mxu0 %v2933
        %2952 = vmatprep.subr.mxu0 0.0
        %2953 = vmatpush1.msra.mxu0 0.0
        %2954 = vmatprep.subr.mxu0 0.0
        %2955 = vmatpush1.msra.mxu0 0.0
        %2956 = vmatprep.subr.mxu0 0.0
        %2957 = vmatpush1.msra.mxu0 0.0
        %2958 = vmatprep.subr.mxu0 0.0
        %2959 = vmatpush1.msra.mxu0 0.0
        %2960 = vmatprep.subr.mxu0 0.0
        %2961 = vmatpush1.msra.mxu0 0.0
        %2962 = vmatprep.subr.mxu0 0.0
        %2963 = vmatpush1.msra.mxu0 0.0
        %2964 = vmatprep.subr.mxu0 0.0
        %2965 = vmatpush1.msra.mxu0 0.0
        %2966 = vmatprep.subr.mxu0 0.0
        %2967 = vmatpush1.msra.mxu0 0.0
        %2968 = vmatprep.subr.mxu0 0.0
        %2969 = vmatpush1.msra.mxu0 0.0
        %2970 = vmatprep.subr.mxu0 0.0
        %2971 = vmatpush1.msra.mxu0 0.0
        %2972 = vmatprep.subr.mxu0 0.0
        %2973 = vmatpush1.msra.mxu0 0.0
        %2974 = vmatprep.subr.mxu0 0.0
        %2975 = vmatpush1.msra.mxu0 0.0
        %2976 = vmatprep.subr.mxu0 0.0
        %2977 = vmatpush1.msra.mxu0 0.0
        %2978 = vmatprep.subr.mxu0 0.0
        %2979 = vmatpush1.msra.mxu0 0.0
        %2980 = vmatprep.subr.mxu0 0.0
        %2981 = vmatpush1.msra.mxu0 0.0
        %2982 = vmatprep.subr.mxu0 0.0
        %2983 = vmatpush1.msra.mxu0 0.0
        %2984 = vmatprep.subr.mxu0 0.0
        %2985 = vmatpush1.msra.mxu0 0.0
        %2986 = vmatprep.subr.mxu0 0.0
        %2987 = vmatpush1.msra.mxu0 0.0
        %2988 = vmatprep.subr.mxu0 0.0
        %2989 = vmatpush1.msra.mxu0 0.0
        %2990 = vmatprep.subr.mxu0 0.0
        %2991 = vmatpush1.msra.mxu0 0.0
        %2992 = vmatprep.subr.mxu0 0.0
        %2993 = vmatpush1.msra.mxu0 0.0
        %2994 = vmatprep.subr.mxu0 0.0
        %2995 = vmatpush1.msra.mxu0 0.0
        %2996 = vmatprep.subr.mxu0 0.0
        %2997 = vmatpush1.msra.mxu0 0.0
        %2998 = vmatprep.subr.mxu0 0.0
        %2999 = vmatpush1.msra.mxu0 0.0
        %3000 = vmatprep.subr.mxu0 0.0
        %3001 = vmatpush1.msra.mxu0 0.0
        %3002 = vmatprep.subr.mxu0 0.0
        %3003 = vmatpush1.msra.mxu0 0.0
        %3004 = vmatprep.subr.mxu0 0.0
        %3005 = vmatpush1.msra.mxu0 0.0
        %3006 = vmatprep.subr.mxu0 0.0
        %3007 = vmatpush1.msra.mxu0 0.0
        %3008 = vmatprep.mubr.f32.mxu0 0.0
        %3009 = vmatmul.mubr.f32.gmra.mrb[0].mxu0 %v2942
        %v3010 = vpop.f32.mrb[0].mxu0
        %v3011 = vadd.f32 %v2939, %v3010
        %v3012 = vpop.f32.mrb[0].mxu0
        %3013 = vdwg.mxu0
        %v3014 = vmax.f32 %v3011, 0.0
        %v3015 = vld [vmem:[%s18] sm:$0xff]
        %v3016 = vld [vmem:[%s18 + $0x8] sm:$0xff]
        %v3017 = vld [vmem:[%s18 + $0x10] sm:$0xff]
        %v3018 = vld [vmem:[%s18 + $0x18] sm:$0xff]
        %v3019 = vld [vmem:[%s18 + $0x20] sm:$0xff]
        %v3020 = vld [vmem:[%s18 + $0x28] sm:$0xff]
        %v3021 = vld [vmem:[%s18 + $0x30] sm:$0xff]
        %v3022 = vld [vmem:[%s18 + $0x38] sm:$0xff]
        %v3023 = vld [vmem:[%s19] sm:$0x1]
        %v3025 = vlaneseq
        %v3026 = vshrl.u32 %v3025, 7
        %v3027 = vsub.s32 0, %v3026
        %v3028 = vrot.slane %v3023, %v3027
        %vm3030 = vcmask 523264
        %v3032 = vsel %vm3030, %v3014, 0
        %3034 = vmatprep.subr.mxu0 0.0
        %3035 = vmatpush1.msra.mxu0 %v3015
        %3036 = vmatprep.subr.mxu0 0.0
        %3037 = vmatpush1.msra.mxu0 %v3016
        %3038 = vmatprep.subr.mxu0 0.0
        %3039 = vmatpush1.msra.mxu0 %v3017
        %3040 = vmatprep.subr.mxu0 0.0
        %3041 = vmatpush1.msra.mxu0 %v3018
        %3042 = vmatprep.subr.mxu0 0.0
        %3043 = vmatpush1.msra.mxu0 %v3019
        %3044 = vmatprep.subr.mxu0 0.0
        %3045 = vmatpush1.msra.mxu0 %v3020
        %3046 = vmatprep.subr.mxu0 0.0
        %3047 = vmatpush1.msra.mxu0 %v3021
        %3048 = vmatprep.subr.mxu0 0.0
        %3049 = vmatpush1.msra.mxu0 %v3022
        %3050 = vmatprep.subr.mxu0 0.0
        %3051 = vmatpush1.msra.mxu0 0.0
        %3052 = vmatprep.subr.mxu0 0.0
        %3053 = vmatpush1.msra.mxu0 0.0
        %3054 = vmatprep.subr.mxu0 0.0
        %3055 = vmatpush1.msra.mxu0 0.0
        %3056 = vmatprep.subr.mxu0 0.0
        %3057 = vmatpush1.msra.mxu0 0.0
        %3058 = vmatprep.subr.mxu0 0.0
        %3059 = vmatpush1.msra.mxu0 0.0
        %3060 = vmatprep.subr.mxu0 0.0
        %3061 = vmatpush1.msra.mxu0 0.0
        %3062 = vmatprep.subr.mxu0 0.0
        %3063 = vmatpush1.msra.mxu0 0.0
        %3064 = vmatprep.subr.mxu0 0.0
        %3065 = vmatpush1.msra.mxu0 0.0
        %3066 = vmatprep.subr.mxu0 0.0
        %3067 = vmatpush1.msra.mxu0 0.0
        %3068 = vmatprep.subr.mxu0 0.0
        %3069 = vmatpush1.msra.mxu0 0.0
        %3070 = vmatprep.subr.mxu0 0.0
        %3071 = vmatpush1.msra.mxu0 0.0
        %3072 = vmatprep.subr.mxu0 0.0
        %3073 = vmatpush1.msra.mxu0 0.0
        %3074 = vmatprep.subr.mxu0 0.0
        %3075 = vmatpush1.msra.mxu0 0.0
        %3076 = vmatprep.subr.mxu0 0.0
        %3077 = vmatpush1.msra.mxu0 0.0
        %3078 = vmatprep.subr.mxu0 0.0
        %3079 = vmatpush1.msra.mxu0 0.0
        %3080 = vmatprep.subr.mxu0 0.0
        %3081 = vmatpush1.msra.mxu0 0.0
        %3082 = vmatprep.subr.mxu0 0.0
        %3083 = vmatpush1.msra.mxu0 0.0
        %3084 = vmatprep.subr.mxu0 0.0
        %3085 = vmatpush1.msra.mxu0 0.0
        %3086 = vmatprep.subr.mxu0 0.0
        %3087 = vmatpush1.msra.mxu0 0.0
        %3088 = vmatprep.subr.mxu0 0.0
        %3089 = vmatpush1.msra.mxu0 0.0
        %3090 = vmatprep.subr.mxu0 0.0
        %3091 = vmatpush1.msra.mxu0 0.0
        %3092 = vmatprep.subr.mxu0 0.0
        %3093 = vmatpush1.msra.mxu0 0.0
        %3094 = vmatprep.subr.mxu0 0.0
        %3095 = vmatpush1.msra.mxu0 0.0
        %3096 = vmatprep.subr.mxu0 0.0
        %3097 = vmatpush1.msra.mxu0 0.0
        %3098 = vmatprep.mubr.f32.mxu0 0.0
        %3099 = vmatmul.mubr.f32.gmra.mrb[0].mxu0 %v3032
        %v3100 = vpop.f32.mrb[0].mxu0
        %v3101 = vadd.f32 %v3028, %v3100
        %v3102 = vpop.f32.mrb[0].mxu0
        %3103 = vdwg.mxu0
        %v3104 = vadd.f32 %v3101, %v2929
        %v3105 = vsel %vm894, %v3104, 0.0
        %3106 = vadd.xlane.f32.xlu0 %v3105
        %v3107 = vpop.xlane.xlu0 %3106
        %v3108 = vmul.f32 %v3107, %v1880
        %v3109 = vsub.f32 %v3104, %v3108
        %v3110 = vmul.f32 %v3109, %v3109
        %v3111 = vsel %vm894, %v3110, 0.0
        %3112 = vadd.xlane.f32.xlu0 %v3111
        %v3113 = vpop.xlane.xlu0 %3112
        %v3114 = vmul.f32 %v3113, %v1880
        %v3115 = vadd.f32 %v3114, 1e-05
        %v3116 = vrsqrt.pop %v3115
        %v3117 = vmul.f32 %v3109, %v3116
        %v3118 = vld [vmem:[%s20] sm:$0x1]
        %v3120 = vlaneseq
        %v3121 = vshrl.u32 %v3120, 7
        %v3122 = vsub.s32 0, %v3121
        %v3123 = vrot.slane %v3118, %v3122
        %v3125 = vmul.f32 %v3117, %v3123
        %v3126 = vld [vmem:[%s21] sm:$0x1]
        %v3128 = vlaneseq
        %v3129 = vshrl.u32 %v3128, 7
        %v3130 = vsub.s32 0, %v3129
        %v3131 = vrot.slane %v3126, %v3130
        %v3133 = vadd.f32 %v3125, %v3131
        %3134 = vst.msk [vmem:[%s880] sm:$0xff] %vm894, %v3133
        %s3135 = sand.u32 %s553, 1
        %s3136 = scalar_lea.sflag [#allocation5], %s3135
        %s3137 = sand.u32 %s553, 1
        %s3138 = smul.addr %s3137, 8
        %s3139 = scalar_lea.vmem [#allocation17], %s3138
        // Predicated region
        $region141: #{tpu_custom_call.1} parent=107 // pred_check
          %p3140 = pneg %p563
        $region142: #{tpu_custom_call.1} parent=107 // pred_check_branch
          %3142 = sbr.rel (%p3140) target = $region144
        $region143: #{tpu_custom_call.1} parent=107 // pred_region
          %s3144 = ssub.s32 128, 128
          %3145 = vsyncadd %s3136, %s3144
          %s3146 = sadd.s32 %s50, %s49
          %s3147 = smul.addr %s3146, 128
          %s3148 = scalar_lea.hbm %s22, %s3147
          %s3150 = sshll.u32 %s3139, 4
          %s3151 = int_to_ptr.vmem [resolvable:$true] %s3150
          %3153 = dma.vmem_to_hbm [thread:$0]  %s3151, 128, %s3148, %s3136
        $region144: #{tpu_custom_call.1} parent=107 // pred_fallthru
          _
      $region108: #{tpu_custom_call.1} parent=5 // pred_fallthru
        _
      %p3154 = scmp.le.s32.totalorder 2, %s40
      // Predicated region
      $region145: #{tpu_custom_call.1} parent=5 // pred_check
        %p3155 = pneg %p3154
      $region146: #{tpu_custom_call.1} parent=5 // pred_check_branch
        %3157 = sbr.rel (%p3155) target = $region148
      $region147: #{tpu_custom_call.1} parent=5 // pred_region
        %s3158 = ssub.s32 %s40, 2
        // Predicated region
        $region149: #{tpu_custom_call.1} parent=147 // pred_check
          %p3159 = pneg %p569
        $region150: #{tpu_custom_call.1} parent=147 // pred_check_branch
          %3161 = sbr.rel (%p3159) target = $region152
        $region151: #{tpu_custom_call.1} parent=147 // pred_region
          %s3162 = sand.u32 %s554, 1
          %s3163 = scalar_lea.sflag [#allocation5], %s3162
          %s3164 = sand.u32 %s554, 1
          %s3165 = smul.addr %s3164, 8
          %s3166 = scalar_lea.vmem [#allocation17], %s3165
          %3167 = dma.done %s3163, 128
        $region152: #{tpu_custom_call.1} parent=147 // pred_fallthru
          _
      $region148: #{tpu_custom_call.1} parent=5 // pred_fallthru
        _
    $region6: #{tpu_custom_call.1} parent=1 // loop_footer
      %s44 = sadd.s32 1, %s40
    $region7: #{tpu_custom_call.1} parent=1 // loop_footer_branch
      %39 = sbr.rel target = $region3
    $region8: #{tpu_custom_call.1} parent=1 // loop_exit
      _
    %3168 = vsyncpa [#allocation4], 1
    %s3169 = scalar_lea.sflag [#allocation4], 1
    %3170 = vsyncpa %s3169, 1
    %3171 = vsyncpa [#allocation7], 1
    %s3172 = scalar_lea.sflag [#allocation7], 1
    %3173 = vsyncpa %s3172, 1
    %3174 = vsyncpa [#allocation10], 1
    %3175 = vsyncpa [#allocation13], 1
    %3176 = vsyncpa [#allocation16], 1
    %3177 = vsyncpa [#allocation5], 1
    %s3178 = scalar_lea.sflag [#allocation5], 1
    %3179 = vsyncpa %s3178, 1

</llo_original>
